<compile_context>
chip_gen: v7x
topology: tpu7x:2x2x1
jax: 0.10.0
libtpu: 0.0.40
codegen_flags: <defaults>
</compile_context>

<pallas_src>
import functools

import jax
import jax.numpy as jnp
from jax.experimental import pallas as pl
from jax.experimental.pallas import tpu as pltpu

_LANE = 128
_SUBLANE_BF16 = 16          # bf16 packs (16, 128) per vreg
_TILE_M_MATMUL = 512        # stem / generic matmul row tile
_TILE_M_DW = 256            # fused dw+pw row tile (VMEM-safe on v7x at dm=1.0)


# ---------------------------------------------------------------------------
# Small helpers (pure glue)
# ---------------------------------------------------------------------------
def _round_up(x, m):
    return (x + m - 1) // m * m


def _pad_to(x, axis, target):
    pad = target - x.shape[axis]
    if pad <= 0:
        return x
    widths = [(0, 0)] * x.ndim
    widths[axis] = (0, pad)
    return jnp.pad(x, widths)


def _same_pad(x, k, s):
    """TF 'SAME' padding for NHWC input. Returns (padded_x, out_h, out_w)."""
    h, w = x.shape[1], x.shape[2]
    oh = -(-h // s)
    ow = -(-w // s)
    ph = max((oh - 1) * s + k - h, 0)
    pw = max((ow - 1) * s + k - w, 0)
    xp = jnp.pad(x, ((0, 0), (ph // 2, ph - ph // 2),
                     (pw // 2, pw - pw // 2), (0, 0)))
    return xp, oh, ow


def _bn_fold(bn, eps=1e-3):
    gamma, beta, mean, var = bn
    scale = gamma / jnp.sqrt(var + eps)     # eps = 0.001 (MobileNet.__init__)
    return scale, beta - mean * scale


# ---------------------------------------------------------------------------
# Pallas kernels
# ---------------------------------------------------------------------------
def _matmul_bias_kernel(x_ref, w_ref, b_ref, o_ref, *, relu6):
    y = jnp.dot(x_ref[...], w_ref[...], preferred_element_type=jnp.float32)
    y = y + b_ref[...]
    if relu6:
        y = jnp.clip(y, 0.0, 6.0)
    o_ref[...] = y.astype(o_ref.dtype)


def matmul_bias_act(x, w, bias, *, relu6, out_dtype=jnp.bfloat16,
                    tile_m=_TILE_M_MATMUL):
    """(M,K) bf16 @ (K,Np) bf16 + bias (f32), optional ReLU6.  Grid over M."""
    m, k = x.shape
    n = w.shape[1]
    tm = min(tile_m, _round_up(m, _SUBLANE_BF16))
    mp = _round_up(m, tm)
    xp = _pad_to(x, 0, mp)
    out = pl.pallas_call(
        functools.partial(_matmul_bias_kernel, relu6=relu6),
        out_shape=jax.ShapeDtypeStruct((mp, n), out_dtype),
        grid=(mp // tm,),
        in_specs=[
            pl.BlockSpec((tm, k), lambda i: (i, 0)),
            pl.BlockSpec((k, n), lambda i: (0, 0)),
            pl.BlockSpec((1, n), lambda i: (0, 0)),
        ],
        out_specs=pl.BlockSpec((tm, n), lambda i: (i, 0)),
        compiler_params=pltpu.CompilerParams(
            dimension_semantics=("parallel",)),
    )(xp, w, bias)
    return out if mp == m else out[:m]


def _dw_pw_kernel(t0, t1, t2, t3, t4, t5, t6, t7, t8,
                  dww_ref, dwb_ref, pww_ref, pwb_ref, o_ref):
    taps = (t0, t1, t2, t3, t4, t5, t6, t7, t8)
    # Depthwise 3x3 MAC in f32 on the VPU (v5e has no bf16 VALU).
    # Start the accumulator from the folded-BN bias (saves one add).
    acc = dwb_ref[...] + taps[0][...].astype(jnp.float32) * dww_ref[0]
    for kk in range(1, 9):
        acc = acc + taps[kk][...].astype(jnp.float32) * dww_ref[kk]
    y = jnp.clip(acc, 0.0, 6.0)                         # dw BN (folded) + ReLU6
    # Pointwise 1x1 on the MXU, fused — dw result never leaves VMEM.
    z = jnp.dot(y.astype(jnp.bfloat16), pww_ref[...],
                preferred_element_type=jnp.float32)
    z = jnp.clip(z + pwb_ref[...], 0.0, 6.0)            # pw BN (folded) + ReLU6
    o_ref[...] = z.astype(o_ref.dtype)


def dwconv_pw_fused(taps, dw_w, dw_b, pw_w, pw_b, *, tile_m=_TILE_M_DW):
    """Fused depthwise-3x3 + BN + ReLU6 + pointwise-1x1 + BN + ReLU6.

    taps : 9 arrays (M, Cin_p) bf16 (one per 3x3 tap)
    dw_w : (9, 1, Cin_p) f32, BN scale folded in;  dw_b : (1, Cin_p) f32
    pw_w : (Cin_p, Cout_p) bf16, BN scale folded in;  pw_b : (1, Cout_p) f32
    """
    m, cin = taps[0].shape
    cout = pw_w.shape[1]
    tm = min(tile_m, _round_up(m, _SUBLANE_BF16))
    mp = _round_up(m, tm)
    taps = [_pad_to(t, 0, mp) for t in taps]
    tap_spec = pl.BlockSpec((tm, cin), lambda i: (i, 0))
    out = pl.pallas_call(
        _dw_pw_kernel,
        out_shape=jax.ShapeDtypeStruct((mp, cout), jnp.bfloat16),
        grid=(mp // tm,),
        in_specs=[tap_spec] * 9 + [
            pl.BlockSpec((9, 1, cin), lambda i: (0, 0, 0)),
            pl.BlockSpec((1, cin), lambda i: (0, 0)),
            pl.BlockSpec((cin, cout), lambda i: (0, 0)),
            pl.BlockSpec((1, cout), lambda i: (0, 0)),
        ],
        out_specs=pl.BlockSpec((tm, cout), lambda i: (i, 0)),
        compiler_params=pltpu.CompilerParams(
            dimension_semantics=("parallel",)),
    )(*taps, dw_w, dw_b, pw_w, pw_b)
    return out if mp == m else out[:m]


def _gap_classifier_kernel(x_ref, w_ref, b_ref, o_ref, *, inv_hw):
    feat = jnp.sum(x_ref[...].astype(jnp.float32), axis=1) * inv_hw   # (bt, Cp)
    y = jnp.dot(feat.astype(jnp.bfloat16), w_ref[...],
                preferred_element_type=jnp.float32)
    o_ref[...] = y + b_ref[...]


def gap_classifier(x, w, b):
    """Global average pool fused with the 1x1 classifier.

    x: (N, HW, Cp) bf16  ->  logits (N, NCp) f32.  Grid over batch tiles.
    """
    n, hw, c = x.shape
    nc = w.shape[1]
    bt = min(8, n)
    n_pad = _round_up(n, bt)
    xp = _pad_to(x, 0, n_pad)
    out = pl.pallas_call(
        functools.partial(_gap_classifier_kernel, inv_hw=1.0 / hw),
        out_shape=jax.ShapeDtypeStruct((n_pad, nc), jnp.float32),
        grid=(n_pad // bt,),
        in_specs=[
            pl.BlockSpec((bt, hw, c), lambda i: (i, 0, 0)),
            pl.BlockSpec((c, nc), lambda i: (0, 0)),
            pl.BlockSpec((1, nc), lambda i: (0, 0)),
        ],
        out_specs=pl.BlockSpec((bt, nc), lambda i: (i, 0)),
        compiler_params=pltpu.CompilerParams(
            dimension_semantics=("parallel",)),
    )(xp, w, b)
    return out if n_pad == n else out[:n]


# ---------------------------------------------------------------------------
# MobileNet-V1 layers (glue around the kernels)
# ---------------------------------------------------------------------------
def _stem_layer(x, w, b, stride):
    """3x3 full conv via im2col + fused Pallas matmul. x: (N,H,W,3)."""
    n, _, _, cin = x.shape
    xp, oh, ow = _same_pad(x, 3, stride)
    cols = jnp.concatenate(
        [xp[:, kh:kh + stride * oh:stride, kw:kw + stride * ow:stride, :]
         for kh in range(3) for kw in range(3)], axis=-1)
    cols = cols.reshape(n * oh * ow, 9 * cin).astype(jnp.bfloat16)
    # TODO(synk): for large resolutions fuse patch extraction into the tiled
    # matmul (per-tile im2col via manual DMA) instead of materializing the
    # im2col matrix in HBM; acceptable here since cin=3.
    y = matmul_bias_act(cols, w, b, relu6=True)
    return y.reshape(n, oh, ow, -1)


def _dw_layer(x, dw_w, dw_b, pw_w, pw_b, stride):
    """Fused depthwise 3x3 + pointwise 1x1 block. x: (N,H,W,Cin_p) bf16."""
    n, _, _, c = x.shape
    xp, oh, ow = _same_pad(x, 3, stride)
    taps = [xp[:, kh:kh + stride * oh:stride, kw:kw + stride * ow:stride, :]
            .reshape(n * oh * ow, c)
            for kh in range(3) for kw in range(3)]
    # TODO(synk): taps are still 9 strided-slice materializations in HBM; full
    # de-materialization needs halo tiling (memory_space=pl.ANY + manual DMA).
    y = dwconv_pw_fused(taps, dw_w, dw_b, pw_w, pw_b)
    return y.reshape(n, oh, ow, -1)


def mobilenet_forward(params, x_nchw, *, configs, num_classes):
    x = jnp.transpose(x_nchw, (0, 2, 3, 1)).astype(jnp.float32)   # NCHW -> NHWC
    for cfg, lp in zip(configs, params["layers"]):
        kind, stride = cfg[0], cfg[1]
        if kind == "conv":
            x = _stem_layer(x, lp["w"], lp["b"], stride)
        else:
            x = _dw_layer(x, lp["dw_w"], lp["dw_b"], lp["pw_w"], lp["pw_b"],
                          stride)
    n, h, w, c = x.shape
    # F.dropout is identity in eval mode.
    logits = gap_classifier(x.reshape(n, h * w, c),
                            params["cls_w"], params["cls_b"])
    return logits[:, :num_classes]


# ---------------------------------------------------------------------------
# Static architecture config + parameter construction / preparation
# ---------------------------------------------------------------------------
V1_CONV_DEFS = [("conv", 2, 32)] + [
    ("dw", s, d) for (s, d) in [(1, 64), (2, 128), (1, 128), (2, 256), (1, 256),
                                (2, 512), (1, 512), (1, 512), (1, 512), (1, 512),
                                (1, 512), (2, 1024), (1, 1024)]
]


def make_layer_configs(depth_multiplier=0.25, min_depth=8, in_channels=3):
    """Static (hashable) per-layer config: (kind, stride, cin, cout)."""
    depth = lambda d: max(int(d * depth_multiplier), min_depth)
    configs = []
    cin = in_channels
    for kind, stride, d in V1_CONV_DEFS:
        cout = depth(d)
        configs.append((kind, stride, cin, cout))
        cin = cout
    return tuple(configs), cin


def init_mobilenet_params(key, configs, out_channels, num_classes=16):
    """Raw parameters: arrays only (strings/strides live in `configs`)."""
    def bn_init(k, c):
        k1, k2, k3, k4 = jax.random.split(k, 4)
        return (1.0 + 0.1 * jax.random.normal(k1, (c,), jnp.float32),
                0.1 * jax.random.normal(k2, (c,), jnp.float32),
                0.05 * jax.random.normal(k3, (c,), jnp.float32),
                jax.random.uniform(k4, (c,), jnp.float32, 0.5, 1.5))

    features = []
    for kind, _stride, cin, cout in configs:
        if kind == "conv":
            key, kw, kb = jax.random.split(key, 3)
            features.append({
                "w": 0.1 * jax.random.normal(kw, (3, 3, cin, cout), jnp.float32),
                "bn": bn_init(kb, cout),
            })
        else:
            key, k1, k2, k3, k4 = jax.random.split(key, 5)
            features.append({
                "dw_w": 0.1 * jax.random.normal(k1, (3, 3, cin), jnp.float32),
                "dw_bn": bn_init(k2, cin),
                "pw_w": 0.1 * jax.random.normal(k3, (cin, cout), jnp.float32),
                "pw_bn": bn_init(k4, cout),
            })
    key, kc, kcb = jax.random.split(key, 3)
    return {
        "features": features,
        "cls_w": 0.1 * jax.random.normal(kc, (out_channels, num_classes),
                                         jnp.float32),
        "cls_b": 0.1 * jax.random.normal(kcb, (num_classes,), jnp.float32),
    }


def prepare_params(raw, configs):
    """One-time prep: fold BN into weights, pad channels to 128, cast matmul
    weights to bf16.  Keeps the per-forward glue minimal."""
    layers = []
    for cfg, lp in zip(configs, raw["features"]):
        kind, _stride, cin, cout = cfg
        cout_p = _round_up(cout, _LANE)
        if kind == "conv":
            scale, bias = _bn_fold(lp["bn"])
            w = (lp["w"] * scale).reshape(9 * cin, cout)
            layers.append({
                "w": _pad_to(w, 1, cout_p).astype(jnp.bfloat16),
                "b": _pad_to(bias.reshape(1, cout), 1, cout_p),
            })
        else:
            cin_p = _round_up(cin, _LANE)
            ds, db = _bn_fold(lp["dw_bn"])
            dww = (lp["dw_w"] * ds).reshape(9, 1, cin)
            ps, pb = _bn_fold(lp["pw_bn"])
            pww = lp["pw_w"] * ps
            layers.append({
                "dw_w": _pad_to(dww, 2, cin_p).astype(jnp.float32),
                "dw_b": _pad_to(db.reshape(1, cin), 1, cin_p),
                "pw_w": _pad_to(_pad_to(pww, 1, cout_p), 0, cin_p)
                        .astype(jnp.bfloat16),
                "pw_b": _pad_to(pb.reshape(1, cout), 1, cout_p),
            })
    cin_p = _round_up(configs[-1][3], _LANE)
    nc = raw["cls_w"].shape[1]
    nc_p = _round_up(nc, _LANE)
    return {
        "layers": layers,
        "cls_w": _pad_to(_pad_to(raw["cls_w"], 1, nc_p), 0, cin_p)
                 .astype(jnp.bfloat16),
        "cls_b": _pad_to(raw["cls_b"].reshape(1, nc), 1, nc_p),
    }


# ---------------------------------------------------------------------------
if __name__ == "__main__":
    key = jax.random.PRNGKey(0)
    key, kx, kp = jax.random.split(key, 3)

    # Small but architecture-consistent shapes: NCHW input, 3 RGB channels,
    # 32x32 spatial (5 stride-2 stages -> 1x1 final map), depth_multiplier=0.25.
    num_classes = 16
    configs, out_channels = make_layer_configs(depth_multiplier=0.25,
                                               min_depth=8, in_channels=3)
    x = jax.random.normal(kx, (2, 3, 32, 32), jnp.float32)
    raw_params = init_mobilenet_params(kp, configs, out_channels,
                                       num_classes=num_classes)
    params = prepare_params(raw_params, configs)   # arrays-only pytree

    fwd = jax.jit(functools.partial(mobilenet_forward, configs=configs,
                                    num_classes=num_classes))
    logits = fwd(params, x)
    jax.block_until_ready(logits)

    assert logits.shape == (2, num_classes), logits.shape
    assert bool(jnp.all(jnp.isfinite(logits)))
    print("KERNEL_OK")
</pallas_src>

<mosaic_0001>
module attributes {stable_mosaic.version = 11 : i64} {
  func.func @_matmul_bias_kernel(%arg0: i32, %arg1: memref<512x27xbf16, #tpu.memory_space<vmem>>, %arg2: memref<27x128xbf16, #tpu.memory_space<vmem>>, %arg3: memref<1x128xf32, #tpu.memory_space<vmem>>, %arg4: memref<512x128xbf16, #tpu.memory_space<vmem>>) attributes {dimension_semantics = [#tpu.dimension_semantics<parallel>], iteration_bounds = array<i64: 1>, scalar_prefetch = 0 : i64, scratch_operands = 0 : i64, tpu.core_type = #tpu.core_type<tc>, window_params = [{transform_indices = @transform_0, window_bounds = array<i64: 512, 27>}, {pipeline_mode = #tpu.pipeline_mode<synchronous>, transform_indices = @transform_1, window_bounds = array<i64: 27, 128>}, {pipeline_mode = #tpu.pipeline_mode<synchronous>, transform_indices = @transform_2, window_bounds = array<i64: 1, 128>}, {transform_indices = @transform_3, window_bounds = array<i64: 512, 128>}]} {
    %c0 = arith.constant 0 : index
    %c0_0 = arith.constant 0 : index
    %0 = vector.load %arg1[%c0, %c0_0] : memref<512x27xbf16, #tpu.memory_space<vmem>>, vector<512x27xbf16>
    %c0_1 = arith.constant 0 : index
    %c0_2 = arith.constant 0 : index
    %1 = vector.load %arg2[%c0_1, %c0_2] : memref<27x128xbf16, #tpu.memory_space<vmem>>, vector<27x128xbf16>
    %cst = arith.constant dense<0.000000e+00> : vector<512x128xf32>
    %2 = tpu.matmul %0, %1, %cst {dimension_numbers = #tpu.dot_dimension_numbers<[1], [0], [0], [1], [0, 0, 1, 1], [], []>} : vector<512x27xbf16>, vector<27x128xbf16>, vector<512x128xf32> -> vector<512x128xf32>
    %c0_3 = arith.constant 0 : index
    %c0_4 = arith.constant 0 : index
    %3 = vector.load %arg3[%c0_3, %c0_4] : memref<1x128xf32, #tpu.memory_space<vmem>>, vector<1x128xf32>
    %4 = vector.broadcast %3 : vector<1x128xf32> to vector<512x128xf32>
    %5 = arith.addf %2, %4 : vector<512x128xf32>
    %cst_5 = arith.constant 0.000000e+00 : f32
    %cst_6 = arith.constant 6.000000e+00 : f32
    %6 = vector.broadcast %cst_5 : f32 to vector<512x128xf32>
    %7 = arith.maximumf %6, %5 : vector<512x128xf32>
    %8 = vector.broadcast %cst_6 : f32 to vector<512x128xf32>
    %9 = arith.minimumf %8, %7 : vector<512x128xf32>
    %10 = arith.truncf %9 : vector<512x128xf32> to vector<512x128xbf16>
    %c0_7 = arith.constant 0 : index
    %c0_8 = arith.constant 0 : index
    %11 = vector.load %arg4[%c0_7, %c0_8] : memref<512x128xbf16, #tpu.memory_space<vmem>>, vector<512x128xbf16>
    tpu.vector_store %arg4[%c0_7, %c0_8], %10 {strides = array<i32>} : memref<512x128xbf16, #tpu.memory_space<vmem>>, vector<512x128xbf16>,
    return
  }
  func.func @transform_0(%arg0: i32) -> (i32, i32) {
    %c0_i32 = arith.constant 0 : i32
    %c0_i32_0 = arith.constant 0 : i32
    return %arg0, %c0_i32 : i32, i32
  }
  func.func @transform_1(%arg0: i32) -> (i32, i32) {
    %c0_i32 = arith.constant 0 : i32
    %c0_i32_0 = arith.constant 0 : i32
    %c0_i32_1 = arith.constant 0 : i32
    return %c0_i32, %c0_i32_0 : i32, i32
  }
  func.func @transform_2(%arg0: i32) -> (i32, i32) {
    %c0_i32 = arith.constant 0 : i32
    %c0_i32_0 = arith.constant 0 : i32
    %c0_i32_1 = arith.constant 0 : i32
    return %c0_i32, %c0_i32_0 : i32, i32
  }
  func.func @transform_3(%arg0: i32) -> (i32, i32) {
    %c0_i32 = arith.constant 0 : i32
    %c0_i32_0 = arith.constant 0 : i32
    return %arg0, %c0_i32 : i32, i32
  }
}

module attributes {stable_mosaic.version = 11 : i64} {
  func.func @_dw_pw_kernel(%arg0: i32, %arg1: memref<256x128xbf16, #tpu.memory_space<vmem>>, %arg2: memref<256x128xbf16, #tpu.memory_space<vmem>>, %arg3: memref<256x128xbf16, #tpu.memory_space<vmem>>, %arg4: memref<256x128xbf16, #tpu.memory_space<vmem>>, %arg5: memref<256x128xbf16, #tpu.memory_space<vmem>>, %arg6: memref<256x128xbf16, #tpu.memory_space<vmem>>, %arg7: memref<256x128xbf16, #tpu.memory_space<vmem>>, %arg8: memref<256x128xbf16, #tpu.memory_space<vmem>>, %arg9: memref<256x128xbf16, #tpu.memory_space<vmem>>, %arg10: memref<9x1x128xf32, #tpu.memory_space<vmem>>, %arg11: memref<1x128xf32, #tpu.memory_space<vmem>>, %arg12: memref<128x128xbf16, #tpu.memory_space<vmem>>, %arg13: memref<1x128xf32, #tpu.memory_space<vmem>>, %arg14: memref<256x128xbf16, #tpu.memory_space<vmem>>) attributes {dimension_semantics = [#tpu.dimension_semantics<parallel>], iteration_bounds = array<i64: 2>, scalar_prefetch = 0 : i64, scratch_operands = 0 : i64, tpu.core_type = #tpu.core_type<tc>, window_params = [{transform_indices = @transform_0, window_bounds = array<i64: 256, 128>}, {transform_indices = @transform_1, window_bounds = array<i64: 256, 128>}, {transform_indices = @transform_2, window_bounds = array<i64: 256, 128>}, {transform_indices = @transform_3, window_bounds = array<i64: 256, 128>}, {transform_indices = @transform_4, window_bounds = array<i64: 256, 128>}, {transform_indices = @transform_5, window_bounds = array<i64: 256, 128>}, {transform_indices = @transform_6, window_bounds = array<i64: 256, 128>}, {transform_indices = @transform_7, window_bounds = array<i64: 256, 128>}, {transform_indices = @transform_8, window_bounds = array<i64: 256, 128>}, {pipeline_mode = #tpu.pipeline_mode<synchronous>, transform_indices = @transform_9, window_bounds = array<i64: 9, 1, 128>}, {pipeline_mode = #tpu.pipeline_mode<synchronous>, transform_indices = @transform_10, window_bounds = array<i64: 1, 128>}, {pipeline_mode = #tpu.pipeline_mode<synchronous>, transform_indices = @transform_11, window_bounds = array<i64: 128, 128>}, {pipeline_mode = #tpu.pipeline_mode<synchronous>, transform_indices = @transform_12, window_bounds = array<i64: 1, 128>}, {transform_indices = @transform_13, window_bounds = array<i64: 256, 128>}]} {
    %c0 = arith.constant 0 : index
    %c0_0 = arith.constant 0 : index
    %0 = vector.load %arg11[%c0, %c0_0] : memref<1x128xf32, #tpu.memory_space<vmem>>, vector<1x128xf32>
    %c0_1 = arith.constant 0 : index
    %c0_2 = arith.constant 0 : index
    %1 = vector.load %arg1[%c0_1, %c0_2] : memref<256x128xbf16, #tpu.memory_space<vmem>>, vector<256x128xbf16>
    %2 = arith.extf %1 : vector<256x128xbf16> to vector<256x128xf32>
    %c0_3 = arith.constant 0 : index
    %c0_4 = arith.constant 0 : index
    %c0_5 = arith.constant 0 : index
    %3 = vector.load %arg10[%c0_3, %c0_4, %c0_5] : memref<9x1x128xf32, #tpu.memory_space<vmem>>, vector<1x1x128xf32>
    %4 = vector.shape_cast %3 : vector<1x1x128xf32> to vector<1x128xf32>
    %5 = vector.broadcast %4 : vector<1x128xf32> to vector<256x128xf32>
    %6 = arith.mulf %2, %5 : vector<256x128xf32>
    %7 = vector.broadcast %0 : vector<1x128xf32> to vector<256x128xf32>
    %8 = arith.addf %7, %6 : vector<256x128xf32>
    %c0_6 = arith.constant 0 : index
    %c0_7 = arith.constant 0 : index
    %9 = vector.load %arg2[%c0_6, %c0_7] : memref<256x128xbf16, #tpu.memory_space<vmem>>, vector<256x128xbf16>
    %10 = arith.extf %9 : vector<256x128xbf16> to vector<256x128xf32>
    %c1 = arith.constant 1 : index
    %c0_8 = arith.constant 0 : index
    %c0_9 = arith.constant 0 : index
    %11 = vector.load %arg10[%c1, %c0_8, %c0_9] : memref<9x1x128xf32, #tpu.memory_space<vmem>>, vector<1x1x128xf32>
    %12 = vector.shape_cast %11 : vector<1x1x128xf32> to vector<1x128xf32>
    %13 = vector.broadcast %12 : vector<1x128xf32> to vector<256x128xf32>
    %14 = arith.mulf %10, %13 : vector<256x128xf32>
    %15 = arith.addf %8, %14 : vector<256x128xf32>
    %c0_10 = arith.constant 0 : index
    %c0_11 = arith.constant 0 : index
    %16 = vector.load %arg3[%c0_10, %c0_11] : memref<256x128xbf16, #tpu.memory_space<vmem>>, vector<256x128xbf16>
    %17 = arith.extf %16 : vector<256x128xbf16> to vector<256x128xf32>
    %c2 = arith.constant 2 : index
    %c0_12 = arith.constant 0 : index
    %c0_13 = arith.constant 0 : index
    %18 = vector.load %arg10[%c2, %c0_12, %c0_13] : memref<9x1x128xf32, #tpu.memory_space<vmem>>, vector<1x1x128xf32>
    %19 = vector.shape_cast %18 : vector<1x1x128xf32> to vector<1x128xf32>
    %20 = vector.broadcast %19 : vector<1x128xf32> to vector<256x128xf32>
    %21 = arith.mulf %17, %20 : vector<256x128xf32>
    %22 = arith.addf %15, %21 : vector<256x128xf32>
    %c0_14 = arith.constant 0 : index
    %c0_15 = arith.constant 0 : index
    %23 = vector.load %arg4[%c0_14, %c0_15] : memref<256x128xbf16, #tpu.memory_space<vmem>>, vector<256x128xbf16>
    %24 = arith.extf %23 : vector<256x128xbf16> to vector<256x128xf32>
    %c3 = arith.constant 3 : index
    %c0_16 = arith.constant 0 : index
    %c0_17 = arith.constant 0 : index
    %25 = vector.load %arg10[%c3, %c0_16, %c0_17] : memref<9x1x128xf32, #tpu.memory_space<vmem>>, vector<1x1x128xf32>
    %26 = vector.shape_cast %25 : vector<1x1x128xf32> to vector<1x128xf32>
    %27 = vector.broadcast %26 : vector<1x128xf32> to vector<256x128xf32>
    %28 = arith.mulf %24, %27 : vector<256x128xf32>
    %29 = arith.addf %22, %28 : vector<256x128xf32>
    %c0_18 = arith.constant 0 : index
    %c0_19 = arith.constant 0 : index
    %30 = vector.load %arg5[%c0_18, %c0_19] : memref<256x128xbf16, #tpu.memory_space<vmem>>, vector<256x128xbf16>
    %31 = arith.extf %30 : vector<256x128xbf16> to vector<256x128xf32>
    %c4 = arith.constant 4 : index
    %c0_20 = arith.constant 0 : index
    %c0_21 = arith.constant 0 : index
    %32 = vector.load %arg10[%c4, %c0_20, %c0_21] : memref<9x1x128xf32, #tpu.memory_space<vmem>>, vector<1x1x128xf32>
    %33 = vector.shape_cast %32 : vector<1x1x128xf32> to vector<1x128xf32>
    %34 = vector.broadcast %33 : vector<1x128xf32> to vector<256x128xf32>
    %35 = arith.mulf %31, %34 : vector<256x128xf32>
    %36 = arith.addf %29, %35 : vector<256x128xf32>
    %c0_22 = arith.constant 0 : index
    %c0_23 = arith.constant 0 : index
    %37 = vector.load %arg6[%c0_22, %c0_23] : memref<256x128xbf16, #tpu.memory_space<vmem>>, vector<256x128xbf16>
    %38 = arith.extf %37 : vector<256x128xbf16> to vector<256x128xf32>
    %c5 = arith.constant 5 : index
    %c0_24 = arith.constant 0 : index
    %c0_25 = arith.constant 0 : index
    %39 = vector.load %arg10[%c5, %c0_24, %c0_25] : memref<9x1x128xf32, #tpu.memory_space<vmem>>, vector<1x1x128xf32>
    %40 = vector.shape_cast %39 : vector<1x1x128xf32> to vector<1x128xf32>
    %41 = vector.broadcast %40 : vector<1x128xf32> to vector<256x128xf32>
    %42 = arith.mulf %38, %41 : vector<256x128xf32>
    %43 = arith.addf %36, %42 : vector<256x128xf32>
    %c0_26 = arith.constant 0 : index
    %c0_27 = arith.constant 0 : index
    %44 = vector.load %arg7[%c0_26, %c0_27] : memref<256x128xbf16, #tpu.memory_space<vmem>>, vector<256x128xbf16>
    %45 = arith.extf %44 : vector<256x128xbf16> to vector<256x128xf32>
    %c6 = arith.constant 6 : index
    %c0_28 = arith.constant 0 : index
    %c0_29 = arith.constant 0 : index
    %46 = vector.load %arg10[%c6, %c0_28, %c0_29] : memref<9x1x128xf32, #tpu.memory_space<vmem>>, vector<1x1x128xf32>
    %47 = vector.shape_cast %46 : vector<1x1x128xf32> to vector<1x128xf32>
    %48 = vector.broadcast %47 : vector<1x128xf32> to vector<256x128xf32>
    %49 = arith.mulf %45, %48 : vector<256x128xf32>
    %50 = arith.addf %43, %49 : vector<256x128xf32>
    %c0_30 = arith.constant 0 : index
    %c0_31 = arith.constant 0 : index
    %51 = vector.load %arg8[%c0_30, %c0_31] : memref<256x128xbf16, #tpu.memory_space<vmem>>, vector<256x128xbf16>
    %52 = arith.extf %51 : vector<256x128xbf16> to vector<256x128xf32>
    %c7 = arith.constant 7 : index
    %c0_32 = arith.constant 0 : index
    %c0_33 = arith.constant 0 : index
    %53 = vector.load %arg10[%c7, %c0_32, %c0_33] : memref<9x1x128xf32, #tpu.memory_space<vmem>>, vector<1x1x128xf32>
    %54 = vector.shape_cast %53 : vector<1x1x128xf32> to vector<1x128xf32>
    %55 = vector.broadcast %54 : vector<1x128xf32> to vector<256x128xf32>
    %56 = arith.mulf %52, %55 : vector<256x128xf32>
    %57 = arith.addf %50, %56 : vector<256x128xf32>
    %c0_34 = arith.constant 0 : index
    %c0_35 = arith.constant 0 : index
    %58 = vector.load %arg9[%c0_34, %c0_35] : memref<256x128xbf16, #tpu.memory_space<vmem>>, vector<256x128xbf16>
    %59 = arith.extf %58 : vector<256x128xbf16> to vector<256x128xf32>
    %c8 = arith.constant 8 : index
    %c0_36 = arith.constant 0 : index
    %c0_37 = arith.constant 0 : index
    %60 = vector.load %arg10[%c8, %c0_36, %c0_37] : memref<9x1x128xf32, #tpu.memory_space<vmem>>, vector<1x1x128xf32>
    %61 = vector.shape_cast %60 : vector<1x1x128xf32> to vector<1x128xf32>
    %62 = vector.broadcast %61 : vector<1x128xf32> to vector<256x128xf32>
    %63 = arith.mulf %59, %62 : vector<256x128xf32>
    %64 = arith.addf %57, %63 : vector<256x128xf32>
    %cst = arith.constant 0.000000e+00 : f32
    %cst_38 = arith.constant 6.000000e+00 : f32
    %65 = vector.broadcast %cst : f32 to vector<256x128xf32>
    %66 = arith.maximumf %65, %64 : vector<256x128xf32>
    %67 = vector.broadcast %cst_38 : f32 to vector<256x128xf32>
    %68 = arith.minimumf %67, %66 : vector<256x128xf32>
    %69 = arith.truncf %68 : vector<256x128xf32> to vector<256x128xbf16>
    %c0_39 = arith.constant 0 : index
    %c0_40 = arith.constant 0 : index
    %70 = vector.load %arg12[%c0_39, %c0_40] : memref<128x128xbf16, #tpu.memory_space<vmem>>, vector<128x128xbf16>
    %cst_41 = arith.constant dense<0.000000e+00> : vector<256x128xf32>
    %71 = tpu.matmul %69, %70, %cst_41 {dimension_numbers = #tpu.dot_dimension_numbers<[1], [0], [0], [1], [0, 0, 1, 1], [], []>} : vector<256x128xbf16>, vector<128x128xbf16>, vector<256x128xf32> -> vector<256x128xf32>
    %c0_42 = arith.constant 0 : index
    %c0_43 = arith.constant 0 : index
    %72 = vector.load %arg13[%c0_42, %c0_43] : memref<1x128xf32, #tpu.memory_space<vmem>>, vector<1x128xf32>
    %73 = vector.broadcast %72 : vector<1x128xf32> to vector<256x128xf32>
    %74 = arith.addf %71, %73 : vector<256x128xf32>
    %cst_44 = arith.constant 0.000000e+00 : f32
    %cst_45 = arith.constant 6.000000e+00 : f32
    %75 = vector.broadcast %cst_44 : f32 to vector<256x128xf32>
    %76 = arith.maximumf %75, %74 : vector<256x128xf32>
    %77 = vector.broadcast %cst_45 : f32 to vector<256x128xf32>
    %78 = arith.minimumf %77, %76 : vector<256x128xf32>
    %79 = arith.truncf %78 : vector<256x128xf32> to vector<256x128xbf16>
    %c0_46 = arith.constant 0 : index
    %c0_47 = arith.constant 0 : index
    %80 = vector.load %arg14[%c0_46, %c0_47] : memref<256x128xbf16, #tpu.memory_space<vmem>>, vector<256x128xbf16>
    tpu.vector_store %arg14[%c0_46, %c0_47], %79 {strides = array<i32>} : memref<256x128xbf16, #tpu.memory_space<vmem>>, vector<256x128xbf16>,
    return
  }
  func.func @transform_0(%arg0: i32) -> (i32, i32) {
    %c0_i32 = arith.constant 0 : i32
    %c0_i32_0 = arith.constant 0 : i32
    return %arg0, %c0_i32 : i32, i32
  }
  func.func @transform_1(%arg0: i32) -> (i32, i32) {
    %c0_i32 = arith.constant 0 : i32
    %c0_i32_0 = arith.constant 0 : i32
    return %arg0, %c0_i32 : i32, i32
  }
  func.func @transform_2(%arg0: i32) -> (i32, i32) {
    %c0_i32 = arith.constant 0 : i32
    %c0_i32_0 = arith.constant 0 : i32
    return %arg0, %c0_i32 : i32, i32
  }
  func.func @transform_3(%arg0: i32) -> (i32, i32) {
    %c0_i32 = arith.constant 0 : i32
    %c0_i32_0 = arith.constant 0 : i32
    return %arg0, %c0_i32 : i32, i32
  }
  func.func @transform_4(%arg0: i32) -> (i32, i32) {
    %c0_i32 = arith.constant 0 : i32
    %c0_i32_0 = arith.constant 0 : i32
    return %arg0, %c0_i32 : i32, i32
  }
  func.func @transform_5(%arg0: i32) -> (i32, i32) {
    %c0_i32 = arith.constant 0 : i32
    %c0_i32_0 = arith.constant 0 : i32
    return %arg0, %c0_i32 : i32, i32
  }
  func.func @transform_6(%arg0: i32) -> (i32, i32) {
    %c0_i32 = arith.constant 0 : i32
    %c0_i32_0 = arith.constant 0 : i32
    return %arg0, %c0_i32 : i32, i32
  }
  func.func @transform_7(%arg0: i32) -> (i32, i32) {
    %c0_i32 = arith.constant 0 : i32
    %c0_i32_0 = arith.constant 0 : i32
    return %arg0, %c0_i32 : i32, i32
  }
  func.func @transform_8(%arg0: i32) -> (i32, i32) {
    %c0_i32 = arith.constant 0 : i32
    %c0_i32_0 = arith.constant 0 : i32
    return %arg0, %c0_i32 : i32, i32
  }
  func.func @transform_9(%arg0: i32) -> (i32, i32, i32) {
    %c0_i32 = arith.constant 0 : i32
    %c0_i32_0 = arith.constant 0 : i32
    %c0_i32_1 = arith.constant 0 : i32
    %c0_i32_2 = arith.constant 0 : i32
    return %c0_i32, %c0_i32_0, %c0_i32_1 : i32, i32, i32
  }
  func.func @transform_10(%arg0: i32) -> (i32, i32) {
    %c0_i32 = arith.constant 0 : i32
    %c0_i32_0 = arith.constant 0 : i32
    %c0_i32_1 = arith.constant 0 : i32
    return %c0_i32, %c0_i32_0 : i32, i32
  }
  func.func @transform_11(%arg0: i32) -> (i32, i32) {
    %c0_i32 = arith.constant 0 : i32
    %c0_i32_0 = arith.constant 0 : i32
    %c0_i32_1 = arith.constant 0 : i32
    return %c0_i32, %c0_i32_0 : i32, i32
  }
  func.func @transform_12(%arg0: i32) -> (i32, i32) {
    %c0_i32 = arith.constant 0 : i32
    %c0_i32_0 = arith.constant 0 : i32
    %c0_i32_1 = arith.constant 0 : i32
    return %c0_i32, %c0_i32_0 : i32, i32
  }
  func.func @transform_13(%arg0: i32) -> (i32, i32) {
    %c0_i32 = arith.constant 0 : i32
    %c0_i32_0 = arith.constant 0 : i32
    return %arg0, %c0_i32 : i32, i32
  }
}

module attributes {stable_mosaic.version = 11 : i64} {
  func.func @_dw_pw_kernel(%arg0: i32, %arg1: memref<128x128xbf16, #tpu.memory_space<vmem>>, %arg2: memref<128x128xbf16, #tpu.memory_space<vmem>>, %arg3: memref<128x128xbf16, #tpu.memory_space<vmem>>, %arg4: memref<128x128xbf16, #tpu.memory_space<vmem>>, %arg5: memref<128x128xbf16, #tpu.memory_space<vmem>>, %arg6: memref<128x128xbf16, #tpu.memory_space<vmem>>, %arg7: memref<128x128xbf16, #tpu.memory_space<vmem>>, %arg8: memref<128x128xbf16, #tpu.memory_space<vmem>>, %arg9: memref<128x128xbf16, #tpu.memory_space<vmem>>, %arg10: memref<9x1x128xf32, #tpu.memory_space<vmem>>, %arg11: memref<1x128xf32, #tpu.memory_space<vmem>>, %arg12: memref<128x128xbf16, #tpu.memory_space<vmem>>, %arg13: memref<1x128xf32, #tpu.memory_space<vmem>>, %arg14: memref<128x128xbf16, #tpu.memory_space<vmem>>) attributes {dimension_semantics = [#tpu.dimension_semantics<parallel>], iteration_bounds = array<i64: 1>, scalar_prefetch = 0 : i64, scratch_operands = 0 : i64, tpu.core_type = #tpu.core_type<tc>, window_params = [{transform_indices = @transform_0, window_bounds = array<i64: 128, 128>}, {transform_indices = @transform_1, window_bounds = array<i64: 128, 128>}, {transform_indices = @transform_2, window_bounds = array<i64: 128, 128>}, {transform_indices = @transform_3, window_bounds = array<i64: 128, 128>}, {transform_indices = @transform_4, window_bounds = array<i64: 128, 128>}, {transform_indices = @transform_5, window_bounds = array<i64: 128, 128>}, {transform_indices = @transform_6, window_bounds = array<i64: 128, 128>}, {transform_indices = @transform_7, window_bounds = array<i64: 128, 128>}, {transform_indices = @transform_8, window_bounds = array<i64: 128, 128>}, {pipeline_mode = #tpu.pipeline_mode<synchronous>, transform_indices = @transform_9, window_bounds = array<i64: 9, 1, 128>}, {pipeline_mode = #tpu.pipeline_mode<synchronous>, transform_indices = @transform_10, window_bounds = array<i64: 1, 128>}, {pipeline_mode = #tpu.pipeline_mode<synchronous>, transform_indices = @transform_11, window_bounds = array<i64: 128, 128>}, {pipeline_mode = #tpu.pipeline_mode<synchronous>, transform_indices = @transform_12, window_bounds = array<i64: 1, 128>}, {transform_indices = @transform_13, window_bounds = array<i64: 128, 128>}]} {
    %c0 = arith.constant 0 : index
    %c0_0 = arith.constant 0 : index
    %0 = vector.load %arg11[%c0, %c0_0] : memref<1x128xf32, #tpu.memory_space<vmem>>, vector<1x128xf32>
    %c0_1 = arith.constant 0 : index
    %c0_2 = arith.constant 0 : index
    %1 = vector.load %arg1[%c0_1, %c0_2] : memref<128x128xbf16, #tpu.memory_space<vmem>>, vector<128x128xbf16>
    %2 = arith.extf %1 : vector<128x128xbf16> to vector<128x128xf32>
    %c0_3 = arith.constant 0 : index
    %c0_4 = arith.constant 0 : index
    %c0_5 = arith.constant 0 : index
    %3 = vector.load %arg10[%c0_3, %c0_4, %c0_5] : memref<9x1x128xf32, #tpu.memory_space<vmem>>, vector<1x1x128xf32>
    %4 = vector.shape_cast %3 : vector<1x1x128xf32> to vector<1x128xf32>
    %5 = vector.broadcast %4 : vector<1x128xf32> to vector<128x128xf32>
    %6 = arith.mulf %2, %5 : vector<128x128xf32>
    %7 = vector.broadcast %0 : vector<1x128xf32> to vector<128x128xf32>
    %8 = arith.addf %7, %6 : vector<128x128xf32>
    %c0_6 = arith.constant 0 : index
    %c0_7 = arith.constant 0 : index
    %9 = vector.load %arg2[%c0_6, %c0_7] : memref<128x128xbf16, #tpu.memory_space<vmem>>, vector<128x128xbf16>
    %10 = arith.extf %9 : vector<128x128xbf16> to vector<128x128xf32>
    %c1 = arith.constant 1 : index
    %c0_8 = arith.constant 0 : index
    %c0_9 = arith.constant 0 : index
    %11 = vector.load %arg10[%c1, %c0_8, %c0_9] : memref<9x1x128xf32, #tpu.memory_space<vmem>>, vector<1x1x128xf32>
    %12 = vector.shape_cast %11 : vector<1x1x128xf32> to vector<1x128xf32>
    %13 = vector.broadcast %12 : vector<1x128xf32> to vector<128x128xf32>
    %14 = arith.mulf %10, %13 : vector<128x128xf32>
    %15 = arith.addf %8, %14 : vector<128x128xf32>
    %c0_10 = arith.constant 0 : index
    %c0_11 = arith.constant 0 : index
    %16 = vector.load %arg3[%c0_10, %c0_11] : memref<128x128xbf16, #tpu.memory_space<vmem>>, vector<128x128xbf16>
    %17 = arith.extf %16 : vector<128x128xbf16> to vector<128x128xf32>
    %c2 = arith.constant 2 : index
    %c0_12 = arith.constant 0 : index
    %c0_13 = arith.constant 0 : index
    %18 = vector.load %arg10[%c2, %c0_12, %c0_13] : memref<9x1x128xf32, #tpu.memory_space<vmem>>, vector<1x1x128xf32>
    %19 = vector.shape_cast %18 : vector<1x1x128xf32> to vector<1x128xf32>
    %20 = vector.broadcast %19 : vector<1x128xf32> to vector<128x128xf32>
    %21 = arith.mulf %17, %20 : vector<128x128xf32>
    %22 = arith.addf %15, %21 : vector<128x128xf32>
    %c0_14 = arith.constant 0 : index
    %c0_15 = arith.constant 0 : index
    %23 = vector.load %arg4[%c0_14, %c0_15] : memref<128x128xbf16, #tpu.memory_space<vmem>>, vector<128x128xbf16>
    %24 = arith.extf %23 : vector<128x128xbf16> to vector<128x128xf32>
    %c3 = arith.constant 3 : index
    %c0_16 = arith.constant 0 : index
    %c0_17 = arith.constant 0 : index
    %25 = vector.load %arg10[%c3, %c0_16, %c0_17] : memref<9x1x128xf32, #tpu.memory_space<vmem>>, vector<1x1x128xf32>
    %26 = vector.shape_cast %25 : vector<1x1x128xf32> to vector<1x128xf32>
    %27 = vector.broadcast %26 : vector<1x128xf32> to vector<128x128xf32>
    %28 = arith.mulf %24, %27 : vector<128x128xf32>
    %29 = arith.addf %22, %28 : vector<128x128xf32>
    %c0_18 = arith.constant 0 : index
    %c0_19 = arith.constant 0 : index
    %30 = vector.load %arg5[%c0_18, %c0_19] : memref<128x128xbf16, #tpu.memory_space<vmem>>, vector<128x128xbf16>
    %31 = arith.extf %30 : vector<128x128xbf16> to vector<128x128xf32>
    %c4 = arith.constant 4 : index
    %c0_20 = arith.constant 0 : index
    %c0_21 = arith.constant 0 : index
    %32 = vector.load %arg10[%c4, %c0_20, %c0_21] : memref<9x1x128xf32, #tpu.memory_space<vmem>>, vector<1x1x128xf32>
    %33 = vector.shape_cast %32 : vector<1x1x128xf32> to vector<1x128xf32>
    %34 = vector.broadcast %33 : vector<1x128xf32> to vector<128x128xf32>
    %35 = arith.mulf %31, %34 : vector<128x128xf32>
    %36 = arith.addf %29, %35 : vector<128x128xf32>
    %c0_22 = arith.constant 0 : index
    %c0_23 = arith.constant 0 : index
    %37 = vector.load %arg6[%c0_22, %c0_23] : memref<128x128xbf16, #tpu.memory_space<vmem>>, vector<128x128xbf16>
    %38 = arith.extf %37 : vector<128x128xbf16> to vector<128x128xf32>
    %c5 = arith.constant 5 : index
    %c0_24 = arith.constant 0 : index
    %c0_25 = arith.constant 0 : index
    %39 = vector.load %arg10[%c5, %c0_24, %c0_25] : memref<9x1x128xf32, #tpu.memory_space<vmem>>, vector<1x1x128xf32>
    %40 = vector.shape_cast %39 : vector<1x1x128xf32> to vector<1x128xf32>
    %41 = vector.broadcast %40 : vector<1x128xf32> to vector<128x128xf32>
    %42 = arith.mulf %38, %41 : vector<128x128xf32>
    %43 = arith.addf %36, %42 : vector<128x128xf32>
    %c0_26 = arith.constant 0 : index
    %c0_27 = arith.constant 0 : index
    %44 = vector.load %arg7[%c0_26, %c0_27] : memref<128x128xbf16, #tpu.memory_space<vmem>>, vector<128x128xbf16>
    %45 = arith.extf %44 : vector<128x128xbf16> to vector<128x128xf32>
    %c6 = arith.constant 6 : index
    %c0_28 = arith.constant 0 : index
    %c0_29 = arith.constant 0 : index
    %46 = vector.load %arg10[%c6, %c0_28, %c0_29] : memref<9x1x128xf32, #tpu.memory_space<vmem>>, vector<1x1x128xf32>
    %47 = vector.shape_cast %46 : vector<1x1x128xf32> to vector<1x128xf32>
    %48 = vector.broadcast %47 : vector<1x128xf32> to vector<128x128xf32>
    %49 = arith.mulf %45, %48 : vector<128x128xf32>
    %50 = arith.addf %43, %49 : vector<128x128xf32>
    %c0_30 = arith.constant 0 : index
    %c0_31 = arith.constant 0 : index
    %51 = vector.load %arg8[%c0_30, %c0_31] : memref<128x128xbf16, #tpu.memory_space<vmem>>, vector<128x128xbf16>
    %52 = arith.extf %51 : vector<128x128xbf16> to vector<128x128xf32>
    %c7 = arith.constant 7 : index
    %c0_32 = arith.constant 0 : index
    %c0_33 = arith.constant 0 : index
    %53 = vector.load %arg10[%c7, %c0_32, %c0_33] : memref<9x1x128xf32, #tpu.memory_space<vmem>>, vector<1x1x128xf32>
    %54 = vector.shape_cast %53 : vector<1x1x128xf32> to vector<1x128xf32>
    %55 = vector.broadcast %54 : vector<1x128xf32> to vector<128x128xf32>
    %56 = arith.mulf %52, %55 : vector<128x128xf32>
    %57 = arith.addf %50, %56 : vector<128x128xf32>
    %c0_34 = arith.constant 0 : index
    %c0_35 = arith.constant 0 : index
    %58 = vector.load %arg9[%c0_34, %c0_35] : memref<128x128xbf16, #tpu.memory_space<vmem>>, vector<128x128xbf16>
    %59 = arith.extf %58 : vector<128x128xbf16> to vector<128x128xf32>
    %c8 = arith.constant 8 : index
    %c0_36 = arith.constant 0 : index
    %c0_37 = arith.constant 0 : index
    %60 = vector.load %arg10[%c8, %c0_36, %c0_37] : memref<9x1x128xf32, #tpu.memory_space<vmem>>, vector<1x1x128xf32>
    %61 = vector.shape_cast %60 : vector<1x1x128xf32> to vector<1x128xf32>
    %62 = vector.broadcast %61 : vector<1x128xf32> to vector<128x128xf32>
    %63 = arith.mulf %59, %62 : vector<128x128xf32>
    %64 = arith.addf %57, %63 : vector<128x128xf32>
    %cst = arith.constant 0.000000e+00 : f32
    %cst_38 = arith.constant 6.000000e+00 : f32
    %65 = vector.broadcast %cst : f32 to vector<128x128xf32>
    %66 = arith.maximumf %65, %64 : vector<128x128xf32>
    %67 = vector.broadcast %cst_38 : f32 to vector<128x128xf32>
    %68 = arith.minimumf %67, %66 : vector<128x128xf32>
    %69 = arith.truncf %68 : vector<128x128xf32> to vector<128x128xbf16>
    %c0_39 = arith.constant 0 : index
    %c0_40 = arith.constant 0 : index
    %70 = vector.load %arg12[%c0_39, %c0_40] : memref<128x128xbf16, #tpu.memory_space<vmem>>, vector<128x128xbf16>
    %cst_41 = arith.constant dense<0.000000e+00> : vector<128x128xf32>
    %71 = tpu.matmul %69, %70, %cst_41 {dimension_numbers = #tpu.dot_dimension_numbers<[1], [0], [0], [1], [0, 0, 1, 1], [], []>} : vector<128x128xbf16>, vector<128x128xbf16>, vector<128x128xf32> -> vector<128x128xf32>
    %c0_42 = arith.constant 0 : index
    %c0_43 = arith.constant 0 : index
    %72 = vector.load %arg13[%c0_42, %c0_43] : memref<1x128xf32, #tpu.memory_space<vmem>>, vector<1x128xf32>
    %73 = vector.broadcast %72 : vector<1x128xf32> to vector<128x128xf32>
    %74 = arith.addf %71, %73 : vector<128x128xf32>
    %cst_44 = arith.constant 0.000000e+00 : f32
    %cst_45 = arith.constant 6.000000e+00 : f32
    %75 = vector.broadcast %cst_44 : f32 to vector<128x128xf32>
    %76 = arith.maximumf %75, %74 : vector<128x128xf32>
    %77 = vector.broadcast %cst_45 : f32 to vector<128x128xf32>
    %78 = arith.minimumf %77, %76 : vector<128x128xf32>
    %79 = arith.truncf %78 : vector<128x128xf32> to vector<128x128xbf16>
    %c0_46 = arith.constant 0 : index
    %c0_47 = arith.constant 0 : index
    %80 = vector.load %arg14[%c0_46, %c0_47] : memref<128x128xbf16, #tpu.memory_space<vmem>>, vector<128x128xbf16>
    tpu.vector_store %arg14[%c0_46, %c0_47], %79 {strides = array<i32>} : memref<128x128xbf16, #tpu.memory_space<vmem>>, vector<128x128xbf16>,
    return
  }
  func.func @transform_0(%arg0: i32) -> (i32, i32) {
    %c0_i32 = arith.constant 0 : i32
    %c0_i32_0 = arith.constant 0 : i32
    return %arg0, %c0_i32 : i32, i32
  }
  func.func @transform_1(%arg0: i32) -> (i32, i32) {
    %c0_i32 = arith.constant 0 : i32
    %c0_i32_0 = arith.constant 0 : i32
    return %arg0, %c0_i32 : i32, i32
  }
  func.func @transform_2(%arg0: i32) -> (i32, i32) {
    %c0_i32 = arith.constant 0 : i32
    %c0_i32_0 = arith.constant 0 : i32
    return %arg0, %c0_i32 : i32, i32
  }
  func.func @transform_3(%arg0: i32) -> (i32, i32) {
    %c0_i32 = arith.constant 0 : i32
    %c0_i32_0 = arith.constant 0 : i32
    return %arg0, %c0_i32 : i32, i32
  }
  func.func @transform_4(%arg0: i32) -> (i32, i32) {
    %c0_i32 = arith.constant 0 : i32
    %c0_i32_0 = arith.constant 0 : i32
    return %arg0, %c0_i32 : i32, i32
  }
  func.func @transform_5(%arg0: i32) -> (i32, i32) {
    %c0_i32 = arith.constant 0 : i32
    %c0_i32_0 = arith.constant 0 : i32
    return %arg0, %c0_i32 : i32, i32
  }
  func.func @transform_6(%arg0: i32) -> (i32, i32) {
    %c0_i32 = arith.constant 0 : i32
    %c0_i32_0 = arith.constant 0 : i32
    return %arg0, %c0_i32 : i32, i32
  }
  func.func @transform_7(%arg0: i32) -> (i32, i32) {
    %c0_i32 = arith.constant 0 : i32
    %c0_i32_0 = arith.constant 0 : i32
    return %arg0, %c0_i32 : i32, i32
  }
  func.func @transform_8(%arg0: i32) -> (i32, i32) {
    %c0_i32 = arith.constant 0 : i32
    %c0_i32_0 = arith.constant 0 : i32
    return %arg0, %c0_i32 : i32, i32
  }
  func.func @transform_9(%arg0: i32) -> (i32, i32, i32) {
    %c0_i32 = arith.constant 0 : i32
    %c0_i32_0 = arith.constant 0 : i32
    %c0_i32_1 = arith.constant 0 : i32
    %c0_i32_2 = arith.constant 0 : i32
    return %c0_i32, %c0_i32_0, %c0_i32_1 : i32, i32, i32
  }
  func.func @transform_10(%arg0: i32) -> (i32, i32) {
    %c0_i32 = arith.constant 0 : i32
    %c0_i32_0 = arith.constant 0 : i32
    %c0_i32_1 = arith.constant 0 : i32
    return %c0_i32, %c0_i32_0 : i32, i32
  }
  func.func @transform_11(%arg0: i32) -> (i32, i32) {
    %c0_i32 = arith.constant 0 : i32
    %c0_i32_0 = arith.constant 0 : i32
    %c0_i32_1 = arith.constant 0 : i32
    return %c0_i32, %c0_i32_0 : i32, i32
  }
  func.func @transform_12(%arg0: i32) -> (i32, i32) {
    %c0_i32 = arith.constant 0 : i32
    %c0_i32_0 = arith.constant 0 : i32
    %c0_i32_1 = arith.constant 0 : i32
    return %c0_i32, %c0_i32_0 : i32, i32
  }
  func.func @transform_13(%arg0: i32) -> (i32, i32) {
    %c0_i32 = arith.constant 0 : i32
    %c0_i32_0 = arith.constant 0 : i32
    return %arg0, %c0_i32 : i32, i32
  }
}

module attributes {stable_mosaic.version = 11 : i64} {
  func.func @_dw_pw_kernel(%arg0: i32, %arg1: memref<32x128xbf16, #tpu.memory_space<vmem>>, %arg2: memref<32x128xbf16, #tpu.memory_space<vmem>>, %arg3: memref<32x128xbf16, #tpu.memory_space<vmem>>, %arg4: memref<32x128xbf16, #tpu.memory_space<vmem>>, %arg5: memref<32x128xbf16, #tpu.memory_space<vmem>>, %arg6: memref<32x128xbf16, #tpu.memory_space<vmem>>, %arg7: memref<32x128xbf16, #tpu.memory_space<vmem>>, %arg8: memref<32x128xbf16, #tpu.memory_space<vmem>>, %arg9: memref<32x128xbf16, #tpu.memory_space<vmem>>, %arg10: memref<9x1x128xf32, #tpu.memory_space<vmem>>, %arg11: memref<1x128xf32, #tpu.memory_space<vmem>>, %arg12: memref<128x128xbf16, #tpu.memory_space<vmem>>, %arg13: memref<1x128xf32, #tpu.memory_space<vmem>>, %arg14: memref<32x128xbf16, #tpu.memory_space<vmem>>) attributes {dimension_semantics = [#tpu.dimension_semantics<parallel>], iteration_bounds = array<i64: 1>, scalar_prefetch = 0 : i64, scratch_operands = 0 : i64, tpu.core_type = #tpu.core_type<tc>, window_params = [{transform_indices = @transform_0, window_bounds = array<i64: 32, 128>}, {transform_indices = @transform_1, window_bounds = array<i64: 32, 128>}, {transform_indices = @transform_2, window_bounds = array<i64: 32, 128>}, {transform_indices = @transform_3, window_bounds = array<i64: 32, 128>}, {transform_indices = @transform_4, window_bounds = array<i64: 32, 128>}, {transform_indices = @transform_5, window_bounds = array<i64: 32, 128>}, {transform_indices = @transform_6, window_bounds = array<i64: 32, 128>}, {transform_indices = @transform_7, window_bounds = array<i64: 32, 128>}, {transform_indices = @transform_8, window_bounds = array<i64: 32, 128>}, {pipeline_mode = #tpu.pipeline_mode<synchronous>, transform_indices = @transform_9, window_bounds = array<i64: 9, 1, 128>}, {pipeline_mode = #tpu.pipeline_mode<synchronous>, transform_indices = @transform_10, window_bounds = array<i64: 1, 128>}, {pipeline_mode = #tpu.pipeline_mode<synchronous>, transform_indices = @transform_11, window_bounds = array<i64: 128, 128>}, {pipeline_mode = #tpu.pipeline_mode<synchronous>, transform_indices = @transform_12, window_bounds = array<i64: 1, 128>}, {transform_indices = @transform_13, window_bounds = array<i64: 32, 128>}]} {
    %c0 = arith.constant 0 : index
    %c0_0 = arith.constant 0 : index
    %0 = vector.load %arg11[%c0, %c0_0] : memref<1x128xf32, #tpu.memory_space<vmem>>, vector<1x128xf32>
    %c0_1 = arith.constant 0 : index
    %c0_2 = arith.constant 0 : index
    %1 = vector.load %arg1[%c0_1, %c0_2] : memref<32x128xbf16, #tpu.memory_space<vmem>>, vector<32x128xbf16>
    %2 = arith.extf %1 : vector<32x128xbf16> to vector<32x128xf32>
    %c0_3 = arith.constant 0 : index
    %c0_4 = arith.constant 0 : index
    %c0_5 = arith.constant 0 : index
    %3 = vector.load %arg10[%c0_3, %c0_4, %c0_5] : memref<9x1x128xf32, #tpu.memory_space<vmem>>, vector<1x1x128xf32>
    %4 = vector.shape_cast %3 : vector<1x1x128xf32> to vector<1x128xf32>
    %5 = vector.broadcast %4 : vector<1x128xf32> to vector<32x128xf32>
    %6 = arith.mulf %2, %5 : vector<32x128xf32>
    %7 = vector.broadcast %0 : vector<1x128xf32> to vector<32x128xf32>
    %8 = arith.addf %7, %6 : vector<32x128xf32>
    %c0_6 = arith.constant 0 : index
    %c0_7 = arith.constant 0 : index
    %9 = vector.load %arg2[%c0_6, %c0_7] : memref<32x128xbf16, #tpu.memory_space<vmem>>, vector<32x128xbf16>
    %10 = arith.extf %9 : vector<32x128xbf16> to vector<32x128xf32>
    %c1 = arith.constant 1 : index
    %c0_8 = arith.constant 0 : index
    %c0_9 = arith.constant 0 : index
    %11 = vector.load %arg10[%c1, %c0_8, %c0_9] : memref<9x1x128xf32, #tpu.memory_space<vmem>>, vector<1x1x128xf32>
    %12 = vector.shape_cast %11 : vector<1x1x128xf32> to vector<1x128xf32>
    %13 = vector.broadcast %12 : vector<1x128xf32> to vector<32x128xf32>
    %14 = arith.mulf %10, %13 : vector<32x128xf32>
    %15 = arith.addf %8, %14 : vector<32x128xf32>
    %c0_10 = arith.constant 0 : index
    %c0_11 = arith.constant 0 : index
    %16 = vector.load %arg3[%c0_10, %c0_11] : memref<32x128xbf16, #tpu.memory_space<vmem>>, vector<32x128xbf16>
    %17 = arith.extf %16 : vector<32x128xbf16> to vector<32x128xf32>
    %c2 = arith.constant 2 : index
    %c0_12 = arith.constant 0 : index
    %c0_13 = arith.constant 0 : index
    %18 = vector.load %arg10[%c2, %c0_12, %c0_13] : memref<9x1x128xf32, #tpu.memory_space<vmem>>, vector<1x1x128xf32>
    %19 = vector.shape_cast %18 : vector<1x1x128xf32> to vector<1x128xf32>
    %20 = vector.broadcast %19 : vector<1x128xf32> to vector<32x128xf32>
    %21 = arith.mulf %17, %20 : vector<32x128xf32>
    %22 = arith.addf %15, %21 : vector<32x128xf32>
    %c0_14 = arith.constant 0 : index
    %c0_15 = arith.constant 0 : index
    %23 = vector.load %arg4[%c0_14, %c0_15] : memref<32x128xbf16, #tpu.memory_space<vmem>>, vector<32x128xbf16>
    %24 = arith.extf %23 : vector<32x128xbf16> to vector<32x128xf32>
    %c3 = arith.constant 3 : index
    %c0_16 = arith.constant 0 : index
    %c0_17 = arith.constant 0 : index
    %25 = vector.load %arg10[%c3, %c0_16, %c0_17] : memref<9x1x128xf32, #tpu.memory_space<vmem>>, vector<1x1x128xf32>
    %26 = vector.shape_cast %25 : vector<1x1x128xf32> to vector<1x128xf32>
    %27 = vector.broadcast %26 : vector<1x128xf32> to vector<32x128xf32>
    %28 = arith.mulf %24, %27 : vector<32x128xf32>
    %29 = arith.addf %22, %28 : vector<32x128xf32>
    %c0_18 = arith.constant 0 : index
    %c0_19 = arith.constant 0 : index
    %30 = vector.load %arg5[%c0_18, %c0_19] : memref<32x128xbf16, #tpu.memory_space<vmem>>, vector<32x128xbf16>
    %31 = arith.extf %30 : vector<32x128xbf16> to vector<32x128xf32>
    %c4 = arith.constant 4 : index
    %c0_20 = arith.constant 0 : index
    %c0_21 = arith.constant 0 : index
    %32 = vector.load %arg10[%c4, %c0_20, %c0_21] : memref<9x1x128xf32, #tpu.memory_space<vmem>>, vector<1x1x128xf32>
    %33 = vector.shape_cast %32 : vector<1x1x128xf32> to vector<1x128xf32>
    %34 = vector.broadcast %33 : vector<1x128xf32> to vector<32x128xf32>
    %35 = arith.mulf %31, %34 : vector<32x128xf32>
    %36 = arith.addf %29, %35 : vector<32x128xf32>
    %c0_22 = arith.constant 0 : index
    %c0_23 = arith.constant 0 : index
    %37 = vector.load %arg6[%c0_22, %c0_23] : memref<32x128xbf16, #tpu.memory_space<vmem>>, vector<32x128xbf16>
    %38 = arith.extf %37 : vector<32x128xbf16> to vector<32x128xf32>
    %c5 = arith.constant 5 : index
    %c0_24 = arith.constant 0 : index
    %c0_25 = arith.constant 0 : index
    %39 = vector.load %arg10[%c5, %c0_24, %c0_25] : memref<9x1x128xf32, #tpu.memory_space<vmem>>, vector<1x1x128xf32>
    %40 = vector.shape_cast %39 : vector<1x1x128xf32> to vector<1x128xf32>
    %41 = vector.broadcast %40 : vector<1x128xf32> to vector<32x128xf32>
    %42 = arith.mulf %38, %41 : vector<32x128xf32>
    %43 = arith.addf %36, %42 : vector<32x128xf32>
    %c0_26 = arith.constant 0 : index
    %c0_27 = arith.constant 0 : index
    %44 = vector.load %arg7[%c0_26, %c0_27] : memref<32x128xbf16, #tpu.memory_space<vmem>>, vector<32x128xbf16>
    %45 = arith.extf %44 : vector<32x128xbf16> to vector<32x128xf32>
    %c6 = arith.constant 6 : index
    %c0_28 = arith.constant 0 : index
    %c0_29 = arith.constant 0 : index
    %46 = vector.load %arg10[%c6, %c0_28, %c0_29] : memref<9x1x128xf32, #tpu.memory_space<vmem>>, vector<1x1x128xf32>
    %47 = vector.shape_cast %46 : vector<1x1x128xf32> to vector<1x128xf32>
    %48 = vector.broadcast %47 : vector<1x128xf32> to vector<32x128xf32>
    %49 = arith.mulf %45, %48 : vector<32x128xf32>
    %50 = arith.addf %43, %49 : vector<32x128xf32>
    %c0_30 = arith.constant 0 : index
    %c0_31 = arith.constant 0 : index
    %51 = vector.load %arg8[%c0_30, %c0_31] : memref<32x128xbf16, #tpu.memory_space<vmem>>, vector<32x128xbf16>
    %52 = arith.extf %51 : vector<32x128xbf16> to vector<32x128xf32>
    %c7 = arith.constant 7 : index
    %c0_32 = arith.constant 0 : index
    %c0_33 = arith.constant 0 : index
    %53 = vector.load %arg10[%c7, %c0_32, %c0_33] : memref<9x1x128xf32, #tpu.memory_space<vmem>>, vector<1x1x128xf32>
    %54 = vector.shape_cast %53 : vector<1x1x128xf32> to vector<1x128xf32>
    %55 = vector.broadcast %54 : vector<1x128xf32> to vector<32x128xf32>
    %56 = arith.mulf %52, %55 : vector<32x128xf32>
    %57 = arith.addf %50, %56 : vector<32x128xf32>
    %c0_34 = arith.constant 0 : index
    %c0_35 = arith.constant 0 : index
    %58 = vector.load %arg9[%c0_34, %c0_35] : memref<32x128xbf16, #tpu.memory_space<vmem>>, vector<32x128xbf16>
    %59 = arith.extf %58 : vector<32x128xbf16> to vector<32x128xf32>
    %c8 = arith.constant 8 : index
    %c0_36 = arith.constant 0 : index
    %c0_37 = arith.constant 0 : index
    %60 = vector.load %arg10[%c8, %c0_36, %c0_37] : memref<9x1x128xf32, #tpu.memory_space<vmem>>, vector<1x1x128xf32>
    %61 = vector.shape_cast %60 : vector<1x1x128xf32> to vector<1x128xf32>
    %62 = vector.broadcast %61 : vector<1x128xf32> to vector<32x128xf32>
    %63 = arith.mulf %59, %62 : vector<32x128xf32>
    %64 = arith.addf %57, %63 : vector<32x128xf32>
    %cst = arith.constant 0.000000e+00 : f32
    %cst_38 = arith.constant 6.000000e+00 : f32
    %65 = vector.broadcast %cst : f32 to vector<32x128xf32>
    %66 = arith.maximumf %65, %64 : vector<32x128xf32>
    %67 = vector.broadcast %cst_38 : f32 to vector<32x128xf32>
    %68 = arith.minimumf %67, %66 : vector<32x128xf32>
    %69 = arith.truncf %68 : vector<32x128xf32> to vector<32x128xbf16>
    %c0_39 = arith.constant 0 : index
    %c0_40 = arith.constant 0 : index
    %70 = vector.load %arg12[%c0_39, %c0_40] : memref<128x128xbf16, #tpu.memory_space<vmem>>, vector<128x128xbf16>
    %cst_41 = arith.constant dense<0.000000e+00> : vector<32x128xf32>
    %71 = tpu.matmul %69, %70, %cst_41 {dimension_numbers = #tpu.dot_dimension_numbers<[1], [0], [0], [1], [0, 0, 1, 1], [], []>} : vector<32x128xbf16>, vector<128x128xbf16>, vector<32x128xf32> -> vector<32x128xf32>
    %c0_42 = arith.constant 0 : index
    %c0_43 = arith.constant 0 : index
    %72 = vector.load %arg13[%c0_42, %c0_43] : memref<1x128xf32, #tpu.memory_space<vmem>>, vector<1x128xf32>
    %73 = vector.broadcast %72 : vector<1x128xf32> to vector<32x128xf32>
    %74 = arith.addf %71, %73 : vector<32x128xf32>
    %cst_44 = arith.constant 0.000000e+00 : f32
    %cst_45 = arith.constant 6.000000e+00 : f32
    %75 = vector.broadcast %cst_44 : f32 to vector<32x128xf32>
    %76 = arith.maximumf %75, %74 : vector<32x128xf32>
    %77 = vector.broadcast %cst_45 : f32 to vector<32x128xf32>
    %78 = arith.minimumf %77, %76 : vector<32x128xf32>
    %79 = arith.truncf %78 : vector<32x128xf32> to vector<32x128xbf16>
    %c0_46 = arith.constant 0 : index
    %c0_47 = arith.constant 0 : index
    %80 = vector.load %arg14[%c0_46, %c0_47] : memref<32x128xbf16, #tpu.memory_space<vmem>>, vector<32x128xbf16>
    tpu.vector_store %arg14[%c0_46, %c0_47], %79 {strides = array<i32>} : memref<32x128xbf16, #tpu.memory_space<vmem>>, vector<32x128xbf16>,
    return
  }
  func.func @transform_0(%arg0: i32) -> (i32, i32) {
    %c0_i32 = arith.constant 0 : i32
    %c0_i32_0 = arith.constant 0 : i32
    return %arg0, %c0_i32 : i32, i32
  }
  func.func @transform_1(%arg0: i32) -> (i32, i32) {
    %c0_i32 = arith.constant 0 : i32
    %c0_i32_0 = arith.constant 0 : i32
    return %arg0, %c0_i32 : i32, i32
  }
  func.func @transform_2(%arg0: i32) -> (i32, i32) {
    %c0_i32 = arith.constant 0 : i32
    %c0_i32_0 = arith.constant 0 : i32
    return %arg0, %c0_i32 : i32, i32
  }
  func.func @transform_3(%arg0: i32) -> (i32, i32) {
    %c0_i32 = arith.constant 0 : i32
    %c0_i32_0 = arith.constant 0 : i32
    return %arg0, %c0_i32 : i32, i32
  }
  func.func @transform_4(%arg0: i32) -> (i32, i32) {
    %c0_i32 = arith.constant 0 : i32
    %c0_i32_0 = arith.constant 0 : i32
    return %arg0, %c0_i32 : i32, i32
  }
  func.func @transform_5(%arg0: i32) -> (i32, i32) {
    %c0_i32 = arith.constant 0 : i32
    %c0_i32_0 = arith.constant 0 : i32
    return %arg0, %c0_i32 : i32, i32
  }
  func.func @transform_6(%arg0: i32) -> (i32, i32) {
    %c0_i32 = arith.constant 0 : i32
    %c0_i32_0 = arith.constant 0 : i32
    return %arg0, %c0_i32 : i32, i32
  }
  func.func @transform_7(%arg0: i32) -> (i32, i32) {
    %c0_i32 = arith.constant 0 : i32
    %c0_i32_0 = arith.constant 0 : i32
    return %arg0, %c0_i32 : i32, i32
  }
  func.func @transform_8(%arg0: i32) -> (i32, i32) {
    %c0_i32 = arith.constant 0 : i32
    %c0_i32_0 = arith.constant 0 : i32
    return %arg0, %c0_i32 : i32, i32
  }
  func.func @transform_9(%arg0: i32) -> (i32, i32, i32) {
    %c0_i32 = arith.constant 0 : i32
    %c0_i32_0 = arith.constant 0 : i32
    %c0_i32_1 = arith.constant 0 : i32
    %c0_i32_2 = arith.constant 0 : i32
    return %c0_i32, %c0_i32_0, %c0_i32_1 : i32, i32, i32
  }
  func.func @transform_10(%arg0: i32) -> (i32, i32) {
    %c0_i32 = arith.constant 0 : i32
    %c0_i32_0 = arith.constant 0 : i32
    %c0_i32_1 = arith.constant 0 : i32
    return %c0_i32, %c0_i32_0 : i32, i32
  }
  func.func @transform_11(%arg0: i32) -> (i32, i32) {
    %c0_i32 = arith.constant 0 : i32
    %c0_i32_0 = arith.constant 0 : i32
    %c0_i32_1 = arith.constant 0 : i32
    return %c0_i32, %c0_i32_0 : i32, i32
  }
  func.func @transform_12(%arg0: i32) -> (i32, i32) {
    %c0_i32 = arith.constant 0 : i32
    %c0_i32_0 = arith.constant 0 : i32
    %c0_i32_1 = arith.constant 0 : i32
    return %c0_i32, %c0_i32_0 : i32, i32
  }
  func.func @transform_13(%arg0: i32) -> (i32, i32) {
    %c0_i32 = arith.constant 0 : i32
    %c0_i32_0 = arith.constant 0 : i32
    return %arg0, %c0_i32 : i32, i32
  }
}

module attributes {stable_mosaic.version = 11 : i64} {
  func.func @_dw_pw_kernel(%arg0: i32, %arg1: memref<16x128xbf16, #tpu.memory_space<vmem>>, %arg2: memref<16x128xbf16, #tpu.memory_space<vmem>>, %arg3: memref<16x128xbf16, #tpu.memory_space<vmem>>, %arg4: memref<16x128xbf16, #tpu.memory_space<vmem>>, %arg5: memref<16x128xbf16, #tpu.memory_space<vmem>>, %arg6: memref<16x128xbf16, #tpu.memory_space<vmem>>, %arg7: memref<16x128xbf16, #tpu.memory_space<vmem>>, %arg8: memref<16x128xbf16, #tpu.memory_space<vmem>>, %arg9: memref<16x128xbf16, #tpu.memory_space<vmem>>, %arg10: memref<9x1x128xf32, #tpu.memory_space<vmem>>, %arg11: memref<1x128xf32, #tpu.memory_space<vmem>>, %arg12: memref<128x128xbf16, #tpu.memory_space<vmem>>, %arg13: memref<1x128xf32, #tpu.memory_space<vmem>>, %arg14: memref<16x128xbf16, #tpu.memory_space<vmem>>) attributes {dimension_semantics = [#tpu.dimension_semantics<parallel>], iteration_bounds = array<i64: 1>, scalar_prefetch = 0 : i64, scratch_operands = 0 : i64, tpu.core_type = #tpu.core_type<tc>, window_params = [{transform_indices = @transform_0, window_bounds = array<i64: 16, 128>}, {transform_indices = @transform_1, window_bounds = array<i64: 16, 128>}, {transform_indices = @transform_2, window_bounds = array<i64: 16, 128>}, {transform_indices = @transform_3, window_bounds = array<i64: 16, 128>}, {transform_indices = @transform_4, window_bounds = array<i64: 16, 128>}, {transform_indices = @transform_5, window_bounds = array<i64: 16, 128>}, {transform_indices = @transform_6, window_bounds = array<i64: 16, 128>}, {transform_indices = @transform_7, window_bounds = array<i64: 16, 128>}, {transform_indices = @transform_8, window_bounds = array<i64: 16, 128>}, {pipeline_mode = #tpu.pipeline_mode<synchronous>, transform_indices = @transform_9, window_bounds = array<i64: 9, 1, 128>}, {pipeline_mode = #tpu.pipeline_mode<synchronous>, transform_indices = @transform_10, window_bounds = array<i64: 1, 128>}, {pipeline_mode = #tpu.pipeline_mode<synchronous>, transform_indices = @transform_11, window_bounds = array<i64: 128, 128>}, {pipeline_mode = #tpu.pipeline_mode<synchronous>, transform_indices = @transform_12, window_bounds = array<i64: 1, 128>}, {transform_indices = @transform_13, window_bounds = array<i64: 16, 128>}]} {
    %c0 = arith.constant 0 : index
    %c0_0 = arith.constant 0 : index
    %0 = vector.load %arg11[%c0, %c0_0] : memref<1x128xf32, #tpu.memory_space<vmem>>, vector<1x128xf32>
    %c0_1 = arith.constant 0 : index
    %c0_2 = arith.constant 0 : index
    %1 = vector.load %arg1[%c0_1, %c0_2] : memref<16x128xbf16, #tpu.memory_space<vmem>>, vector<16x128xbf16>
    %2 = arith.extf %1 : vector<16x128xbf16> to vector<16x128xf32>
    %c0_3 = arith.constant 0 : index
    %c0_4 = arith.constant 0 : index
    %c0_5 = arith.constant 0 : index
    %3 = vector.load %arg10[%c0_3, %c0_4, %c0_5] : memref<9x1x128xf32, #tpu.memory_space<vmem>>, vector<1x1x128xf32>
    %4 = vector.shape_cast %3 : vector<1x1x128xf32> to vector<1x128xf32>
    %5 = vector.broadcast %4 : vector<1x128xf32> to vector<16x128xf32>
    %6 = arith.mulf %2, %5 : vector<16x128xf32>
    %7 = vector.broadcast %0 : vector<1x128xf32> to vector<16x128xf32>
    %8 = arith.addf %7, %6 : vector<16x128xf32>
    %c0_6 = arith.constant 0 : index
    %c0_7 = arith.constant 0 : index
    %9 = vector.load %arg2[%c0_6, %c0_7] : memref<16x128xbf16, #tpu.memory_space<vmem>>, vector<16x128xbf16>
    %10 = arith.extf %9 : vector<16x128xbf16> to vector<16x128xf32>
    %c1 = arith.constant 1 : index
    %c0_8 = arith.constant 0 : index
    %c0_9 = arith.constant 0 : index
    %11 = vector.load %arg10[%c1, %c0_8, %c0_9] : memref<9x1x128xf32, #tpu.memory_space<vmem>>, vector<1x1x128xf32>
    %12 = vector.shape_cast %11 : vector<1x1x128xf32> to vector<1x128xf32>
    %13 = vector.broadcast %12 : vector<1x128xf32> to vector<16x128xf32>
    %14 = arith.mulf %10, %13 : vector<16x128xf32>
    %15 = arith.addf %8, %14 : vector<16x128xf32>
    %c0_10 = arith.constant 0 : index
    %c0_11 = arith.constant 0 : index
    %16 = vector.load %arg3[%c0_10, %c0_11] : memref<16x128xbf16, #tpu.memory_space<vmem>>, vector<16x128xbf16>
    %17 = arith.extf %16 : vector<16x128xbf16> to vector<16x128xf32>
    %c2 = arith.constant 2 : index
    %c0_12 = arith.constant 0 : index
    %c0_13 = arith.constant 0 : index
    %18 = vector.load %arg10[%c2, %c0_12, %c0_13] : memref<9x1x128xf32, #tpu.memory_space<vmem>>, vector<1x1x128xf32>
    %19 = vector.shape_cast %18 : vector<1x1x128xf32> to vector<1x128xf32>
    %20 = vector.broadcast %19 : vector<1x128xf32> to vector<16x128xf32>
    %21 = arith.mulf %17, %20 : vector<16x128xf32>
    %22 = arith.addf %15, %21 : vector<16x128xf32>
    %c0_14 = arith.constant 0 : index
    %c0_15 = arith.constant 0 : index
    %23 = vector.load %arg4[%c0_14, %c0_15] : memref<16x128xbf16, #tpu.memory_space<vmem>>, vector<16x128xbf16>
    %24 = arith.extf %23 : vector<16x128xbf16> to vector<16x128xf32>
    %c3 = arith.constant 3 : index
    %c0_16 = arith.constant 0 : index
    %c0_17 = arith.constant 0 : index
    %25 = vector.load %arg10[%c3, %c0_16, %c0_17] : memref<9x1x128xf32, #tpu.memory_space<vmem>>, vector<1x1x128xf32>
    %26 = vector.shape_cast %25 : vector<1x1x128xf32> to vector<1x128xf32>
    %27 = vector.broadcast %26 : vector<1x128xf32> to vector<16x128xf32>
    %28 = arith.mulf %24, %27 : vector<16x128xf32>
    %29 = arith.addf %22, %28 : vector<16x128xf32>
    %c0_18 = arith.constant 0 : index
    %c0_19 = arith.constant 0 : index
    %30 = vector.load %arg5[%c0_18, %c0_19] : memref<16x128xbf16, #tpu.memory_space<vmem>>, vector<16x128xbf16>
    %31 = arith.extf %30 : vector<16x128xbf16> to vector<16x128xf32>
    %c4 = arith.constant 4 : index
    %c0_20 = arith.constant 0 : index
    %c0_21 = arith.constant 0 : index
    %32 = vector.load %arg10[%c4, %c0_20, %c0_21] : memref<9x1x128xf32, #tpu.memory_space<vmem>>, vector<1x1x128xf32>
    %33 = vector.shape_cast %32 : vector<1x1x128xf32> to vector<1x128xf32>
    %34 = vector.broadcast %33 : vector<1x128xf32> to vector<16x128xf32>
    %35 = arith.mulf %31, %34 : vector<16x128xf32>
    %36 = arith.addf %29, %35 : vector<16x128xf32>
    %c0_22 = arith.constant 0 : index
    %c0_23 = arith.constant 0 : index
    %37 = vector.load %arg6[%c0_22, %c0_23] : memref<16x128xbf16, #tpu.memory_space<vmem>>, vector<16x128xbf16>
    %38 = arith.extf %37 : vector<16x128xbf16> to vector<16x128xf32>
    %c5 = arith.constant 5 : index
    %c0_24 = arith.constant 0 : index
    %c0_25 = arith.constant 0 : index
    %39 = vector.load %arg10[%c5, %c0_24, %c0_25] : memref<9x1x128xf32, #tpu.memory_space<vmem>>, vector<1x1x128xf32>
    %40 = vector.shape_cast %39 : vector<1x1x128xf32> to vector<1x128xf32>
    %41 = vector.broadcast %40 : vector<1x128xf32> to vector<16x128xf32>
    %42 = arith.mulf %38, %41 : vector<16x128xf32>
    %43 = arith.addf %36, %42 : vector<16x128xf32>
    %c0_26 = arith.constant 0 : index
    %c0_27 = arith.constant 0 : index
    %44 = vector.load %arg7[%c0_26, %c0_27] : memref<16x128xbf16, #tpu.memory_space<vmem>>, vector<16x128xbf16>
    %45 = arith.extf %44 : vector<16x128xbf16> to vector<16x128xf32>
    %c6 = arith.constant 6 : index
    %c0_28 = arith.constant 0 : index
    %c0_29 = arith.constant 0 : index
    %46 = vector.load %arg10[%c6, %c0_28, %c0_29] : memref<9x1x128xf32, #tpu.memory_space<vmem>>, vector<1x1x128xf32>
    %47 = vector.shape_cast %46 : vector<1x1x128xf32> to vector<1x128xf32>
    %48 = vector.broadcast %47 : vector<1x128xf32> to vector<16x128xf32>
    %49 = arith.mulf %45, %48 : vector<16x128xf32>
    %50 = arith.addf %43, %49 : vector<16x128xf32>
    %c0_30 = arith.constant 0 : index
    %c0_31 = arith.constant 0 : index
    %51 = vector.load %arg8[%c0_30, %c0_31] : memref<16x128xbf16, #tpu.memory_space<vmem>>, vector<16x128xbf16>
    %52 = arith.extf %51 : vector<16x128xbf16> to vector<16x128xf32>
    %c7 = arith.constant 7 : index
    %c0_32 = arith.constant 0 : index
    %c0_33 = arith.constant 0 : index
    %53 = vector.load %arg10[%c7, %c0_32, %c0_33] : memref<9x1x128xf32, #tpu.memory_space<vmem>>, vector<1x1x128xf32>
    %54 = vector.shape_cast %53 : vector<1x1x128xf32> to vector<1x128xf32>
    %55 = vector.broadcast %54 : vector<1x128xf32> to vector<16x128xf32>
    %56 = arith.mulf %52, %55 : vector<16x128xf32>
    %57 = arith.addf %50, %56 : vector<16x128xf32>
    %c0_34 = arith.constant 0 : index
    %c0_35 = arith.constant 0 : index
    %58 = vector.load %arg9[%c0_34, %c0_35] : memref<16x128xbf16, #tpu.memory_space<vmem>>, vector<16x128xbf16>
    %59 = arith.extf %58 : vector<16x128xbf16> to vector<16x128xf32>
    %c8 = arith.constant 8 : index
    %c0_36 = arith.constant 0 : index
    %c0_37 = arith.constant 0 : index
    %60 = vector.load %arg10[%c8, %c0_36, %c0_37] : memref<9x1x128xf32, #tpu.memory_space<vmem>>, vector<1x1x128xf32>
    %61 = vector.shape_cast %60 : vector<1x1x128xf32> to vector<1x128xf32>
    %62 = vector.broadcast %61 : vector<1x128xf32> to vector<16x128xf32>
    %63 = arith.mulf %59, %62 : vector<16x128xf32>
    %64 = arith.addf %57, %63 : vector<16x128xf32>
    %cst = arith.constant 0.000000e+00 : f32
    %cst_38 = arith.constant 6.000000e+00 : f32
    %65 = vector.broadcast %cst : f32 to vector<16x128xf32>
    %66 = arith.maximumf %65, %64 : vector<16x128xf32>
    %67 = vector.broadcast %cst_38 : f32 to vector<16x128xf32>
    %68 = arith.minimumf %67, %66 : vector<16x128xf32>
    %69 = arith.truncf %68 : vector<16x128xf32> to vector<16x128xbf16>
    %c0_39 = arith.constant 0 : index
    %c0_40 = arith.constant 0 : index
    %70 = vector.load %arg12[%c0_39, %c0_40] : memref<128x128xbf16, #tpu.memory_space<vmem>>, vector<128x128xbf16>
    %cst_41 = arith.constant dense<0.000000e+00> : vector<16x128xf32>
    %71 = tpu.matmul %69, %70, %cst_41 {dimension_numbers = #tpu.dot_dimension_numbers<[1], [0], [0], [1], [0, 0, 1, 1], [], []>} : vector<16x128xbf16>, vector<128x128xbf16>, vector<16x128xf32> -> vector<16x128xf32>
    %c0_42 = arith.constant 0 : index
    %c0_43 = arith.constant 0 : index
    %72 = vector.load %arg13[%c0_42, %c0_43] : memref<1x128xf32, #tpu.memory_space<vmem>>, vector<1x128xf32>
    %73 = vector.broadcast %72 : vector<1x128xf32> to vector<16x128xf32>
    %74 = arith.addf %71, %73 : vector<16x128xf32>
    %cst_44 = arith.constant 0.000000e+00 : f32
    %cst_45 = arith.constant 6.000000e+00 : f32
    %75 = vector.broadcast %cst_44 : f32 to vector<16x128xf32>
    %76 = arith.maximumf %75, %74 : vector<16x128xf32>
    %77 = vector.broadcast %cst_45 : f32 to vector<16x128xf32>
    %78 = arith.minimumf %77, %76 : vector<16x128xf32>
    %79 = arith.truncf %78 : vector<16x128xf32> to vector<16x128xbf16>
    %c0_46 = arith.constant 0 : index
    %c0_47 = arith.constant 0 : index
    %80 = vector.load %arg14[%c0_46, %c0_47] : memref<16x128xbf16, #tpu.memory_space<vmem>>, vector<16x128xbf16>
    tpu.vector_store %arg14[%c0_46, %c0_47], %79 {strides = array<i32>} : memref<16x128xbf16, #tpu.memory_space<vmem>>, vector<16x128xbf16>,
    return
  }
  func.func @transform_0(%arg0: i32) -> (i32, i32) {
    %c0_i32 = arith.constant 0 : i32
    %c0_i32_0 = arith.constant 0 : i32
    return %arg0, %c0_i32 : i32, i32
  }
  func.func @transform_1(%arg0: i32) -> (i32, i32) {
    %c0_i32 = arith.constant 0 : i32
    %c0_i32_0 = arith.constant 0 : i32
    return %arg0, %c0_i32 : i32, i32
  }
  func.func @transform_2(%arg0: i32) -> (i32, i32) {
    %c0_i32 = arith.constant 0 : i32
    %c0_i32_0 = arith.constant 0 : i32
    return %arg0, %c0_i32 : i32, i32
  }
  func.func @transform_3(%arg0: i32) -> (i32, i32) {
    %c0_i32 = arith.constant 0 : i32
    %c0_i32_0 = arith.constant 0 : i32
    return %arg0, %c0_i32 : i32, i32
  }
  func.func @transform_4(%arg0: i32) -> (i32, i32) {
    %c0_i32 = arith.constant 0 : i32
    %c0_i32_0 = arith.constant 0 : i32
    return %arg0, %c0_i32 : i32, i32
  }
  func.func @transform_5(%arg0: i32) -> (i32, i32) {
    %c0_i32 = arith.constant 0 : i32
    %c0_i32_0 = arith.constant 0 : i32
    return %arg0, %c0_i32 : i32, i32
  }
  func.func @transform_6(%arg0: i32) -> (i32, i32) {
    %c0_i32 = arith.constant 0 : i32
    %c0_i32_0 = arith.constant 0 : i32
    return %arg0, %c0_i32 : i32, i32
  }
  func.func @transform_7(%arg0: i32) -> (i32, i32) {
    %c0_i32 = arith.constant 0 : i32
    %c0_i32_0 = arith.constant 0 : i32
    return %arg0, %c0_i32 : i32, i32
  }
  func.func @transform_8(%arg0: i32) -> (i32, i32) {
    %c0_i32 = arith.constant 0 : i32
    %c0_i32_0 = arith.constant 0 : i32
    return %arg0, %c0_i32 : i32, i32
  }
  func.func @transform_9(%arg0: i32) -> (i32, i32, i32) {
    %c0_i32 = arith.constant 0 : i32
    %c0_i32_0 = arith.constant 0 : i32
    %c0_i32_1 = arith.constant 0 : i32
    %c0_i32_2 = arith.constant 0 : i32
    return %c0_i32, %c0_i32_0, %c0_i32_1 : i32, i32, i32
  }
  func.func @transform_10(%arg0: i32) -> (i32, i32) {
    %c0_i32 = arith.constant 0 : i32
    %c0_i32_0 = arith.constant 0 : i32
    %c0_i32_1 = arith.constant 0 : i32
    return %c0_i32, %c0_i32_0 : i32, i32
  }
  func.func @transform_11(%arg0: i32) -> (i32, i32) {
    %c0_i32 = arith.constant 0 : i32
    %c0_i32_0 = arith.constant 0 : i32
    %c0_i32_1 = arith.constant 0 : i32
    return %c0_i32, %c0_i32_0 : i32, i32
  }
  func.func @transform_12(%arg0: i32) -> (i32, i32) {
    %c0_i32 = arith.constant 0 : i32
    %c0_i32_0 = arith.constant 0 : i32
    %c0_i32_1 = arith.constant 0 : i32
    return %c0_i32, %c0_i32_0 : i32, i32
  }
  func.func @transform_13(%arg0: i32) -> (i32, i32) {
    %c0_i32 = arith.constant 0 : i32
    %c0_i32_0 = arith.constant 0 : i32
    return %arg0, %c0_i32 : i32, i32
  }
}

module attributes {stable_mosaic.version = 11 : i64} {
  func.func @_dw_pw_kernel(%arg0: i32, %arg1: memref<16x128xbf16, #tpu.memory_space<vmem>>, %arg2: memref<16x128xbf16, #tpu.memory_space<vmem>>, %arg3: memref<16x128xbf16, #tpu.memory_space<vmem>>, %arg4: memref<16x128xbf16, #tpu.memory_space<vmem>>, %arg5: memref<16x128xbf16, #tpu.memory_space<vmem>>, %arg6: memref<16x128xbf16, #tpu.memory_space<vmem>>, %arg7: memref<16x128xbf16, #tpu.memory_space<vmem>>, %arg8: memref<16x128xbf16, #tpu.memory_space<vmem>>, %arg9: memref<16x128xbf16, #tpu.memory_space<vmem>>, %arg10: memref<9x1x128xf32, #tpu.memory_space<vmem>>, %arg11: memref<1x128xf32, #tpu.memory_space<vmem>>, %arg12: memref<128x256xbf16, #tpu.memory_space<vmem>>, %arg13: memref<1x256xf32, #tpu.memory_space<vmem>>, %arg14: memref<16x256xbf16, #tpu.memory_space<vmem>>) attributes {dimension_semantics = [#tpu.dimension_semantics<parallel>], iteration_bounds = array<i64: 1>, scalar_prefetch = 0 : i64, scratch_operands = 0 : i64, tpu.core_type = #tpu.core_type<tc>, window_params = [{transform_indices = @transform_0, window_bounds = array<i64: 16, 128>}, {transform_indices = @transform_1, window_bounds = array<i64: 16, 128>}, {transform_indices = @transform_2, window_bounds = array<i64: 16, 128>}, {transform_indices = @transform_3, window_bounds = array<i64: 16, 128>}, {transform_indices = @transform_4, window_bounds = array<i64: 16, 128>}, {transform_indices = @transform_5, window_bounds = array<i64: 16, 128>}, {transform_indices = @transform_6, window_bounds = array<i64: 16, 128>}, {transform_indices = @transform_7, window_bounds = array<i64: 16, 128>}, {transform_indices = @transform_8, window_bounds = array<i64: 16, 128>}, {pipeline_mode = #tpu.pipeline_mode<synchronous>, transform_indices = @transform_9, window_bounds = array<i64: 9, 1, 128>}, {pipeline_mode = #tpu.pipeline_mode<synchronous>, transform_indices = @transform_10, window_bounds = array<i64: 1, 128>}, {pipeline_mode = #tpu.pipeline_mode<synchronous>, transform_indices = @transform_11, window_bounds = array<i64: 128, 256>}, {pipeline_mode = #tpu.pipeline_mode<synchronous>, transform_indices = @transform_12, window_bounds = array<i64: 1, 256>}, {transform_indices = @transform_13, window_bounds = array<i64: 16, 256>}]} {
    %c0 = arith.constant 0 : index
    %c0_0 = arith.constant 0 : index
    %0 = vector.load %arg11[%c0, %c0_0] : memref<1x128xf32, #tpu.memory_space<vmem>>, vector<1x128xf32>
    %c0_1 = arith.constant 0 : index
    %c0_2 = arith.constant 0 : index
    %1 = vector.load %arg1[%c0_1, %c0_2] : memref<16x128xbf16, #tpu.memory_space<vmem>>, vector<16x128xbf16>
    %2 = arith.extf %1 : vector<16x128xbf16> to vector<16x128xf32>
    %c0_3 = arith.constant 0 : index
    %c0_4 = arith.constant 0 : index
    %c0_5 = arith.constant 0 : index
    %3 = vector.load %arg10[%c0_3, %c0_4, %c0_5] : memref<9x1x128xf32, #tpu.memory_space<vmem>>, vector<1x1x128xf32>
    %4 = vector.shape_cast %3 : vector<1x1x128xf32> to vector<1x128xf32>
    %5 = vector.broadcast %4 : vector<1x128xf32> to vector<16x128xf32>
    %6 = arith.mulf %2, %5 : vector<16x128xf32>
    %7 = vector.broadcast %0 : vector<1x128xf32> to vector<16x128xf32>
    %8 = arith.addf %7, %6 : vector<16x128xf32>
    %c0_6 = arith.constant 0 : index
    %c0_7 = arith.constant 0 : index
    %9 = vector.load %arg2[%c0_6, %c0_7] : memref<16x128xbf16, #tpu.memory_space<vmem>>, vector<16x128xbf16>
    %10 = arith.extf %9 : vector<16x128xbf16> to vector<16x128xf32>
    %c1 = arith.constant 1 : index
    %c0_8 = arith.constant 0 : index
    %c0_9 = arith.constant 0 : index
    %11 = vector.load %arg10[%c1, %c0_8, %c0_9] : memref<9x1x128xf32, #tpu.memory_space<vmem>>, vector<1x1x128xf32>
    %12 = vector.shape_cast %11 : vector<1x1x128xf32> to vector<1x128xf32>
    %13 = vector.broadcast %12 : vector<1x128xf32> to vector<16x128xf32>
    %14 = arith.mulf %10, %13 : vector<16x128xf32>
    %15 = arith.addf %8, %14 : vector<16x128xf32>
    %c0_10 = arith.constant 0 : index
    %c0_11 = arith.constant 0 : index
    %16 = vector.load %arg3[%c0_10, %c0_11] : memref<16x128xbf16, #tpu.memory_space<vmem>>, vector<16x128xbf16>
    %17 = arith.extf %16 : vector<16x128xbf16> to vector<16x128xf32>
    %c2 = arith.constant 2 : index
    %c0_12 = arith.constant 0 : index
    %c0_13 = arith.constant 0 : index
    %18 = vector.load %arg10[%c2, %c0_12, %c0_13] : memref<9x1x128xf32, #tpu.memory_space<vmem>>, vector<1x1x128xf32>
    %19 = vector.shape_cast %18 : vector<1x1x128xf32> to vector<1x128xf32>
    %20 = vector.broadcast %19 : vector<1x128xf32> to vector<16x128xf32>
    %21 = arith.mulf %17, %20 : vector<16x128xf32>
    %22 = arith.addf %15, %21 : vector<16x128xf32>
    %c0_14 = arith.constant 0 : index
    %c0_15 = arith.constant 0 : index
    %23 = vector.load %arg4[%c0_14, %c0_15] : memref<16x128xbf16, #tpu.memory_space<vmem>>, vector<16x128xbf16>
    %24 = arith.extf %23 : vector<16x128xbf16> to vector<16x128xf32>
    %c3 = arith.constant 3 : index
    %c0_16 = arith.constant 0 : index
    %c0_17 = arith.constant 0 : index
    %25 = vector.load %arg10[%c3, %c0_16, %c0_17] : memref<9x1x128xf32, #tpu.memory_space<vmem>>, vector<1x1x128xf32>
    %26 = vector.shape_cast %25 : vector<1x1x128xf32> to vector<1x128xf32>
    %27 = vector.broadcast %26 : vector<1x128xf32> to vector<16x128xf32>
    %28 = arith.mulf %24, %27 : vector<16x128xf32>
    %29 = arith.addf %22, %28 : vector<16x128xf32>
    %c0_18 = arith.constant 0 : index
    %c0_19 = arith.constant 0 : index
    %30 = vector.load %arg5[%c0_18, %c0_19] : memref<16x128xbf16, #tpu.memory_space<vmem>>, vector<16x128xbf16>
    %31 = arith.extf %30 : vector<16x128xbf16> to vector<16x128xf32>
    %c4 = arith.constant 4 : index
    %c0_20 = arith.constant 0 : index
    %c0_21 = arith.constant 0 : index
    %32 = vector.load %arg10[%c4, %c0_20, %c0_21] : memref<9x1x128xf32, #tpu.memory_space<vmem>>, vector<1x1x128xf32>
    %33 = vector.shape_cast %32 : vector<1x1x128xf32> to vector<1x128xf32>
    %34 = vector.broadcast %33 : vector<1x128xf32> to vector<16x128xf32>
    %35 = arith.mulf %31, %34 : vector<16x128xf32>
    %36 = arith.addf %29, %35 : vector<16x128xf32>
    %c0_22 = arith.constant 0 : index
    %c0_23 = arith.constant 0 : index
    %37 = vector.load %arg6[%c0_22, %c0_23] : memref<16x128xbf16, #tpu.memory_space<vmem>>, vector<16x128xbf16>
    %38 = arith.extf %37 : vector<16x128xbf16> to vector<16x128xf32>
    %c5 = arith.constant 5 : index
    %c0_24 = arith.constant 0 : index
    %c0_25 = arith.constant 0 : index
    %39 = vector.load %arg10[%c5, %c0_24, %c0_25] : memref<9x1x128xf32, #tpu.memory_space<vmem>>, vector<1x1x128xf32>
    %40 = vector.shape_cast %39 : vector<1x1x128xf32> to vector<1x128xf32>
    %41 = vector.broadcast %40 : vector<1x128xf32> to vector<16x128xf32>
    %42 = arith.mulf %38, %41 : vector<16x128xf32>
    %43 = arith.addf %36, %42 : vector<16x128xf32>
    %c0_26 = arith.constant 0 : index
    %c0_27 = arith.constant 0 : index
    %44 = vector.load %arg7[%c0_26, %c0_27] : memref<16x128xbf16, #tpu.memory_space<vmem>>, vector<16x128xbf16>
    %45 = arith.extf %44 : vector<16x128xbf16> to vector<16x128xf32>
    %c6 = arith.constant 6 : index
    %c0_28 = arith.constant 0 : index
    %c0_29 = arith.constant 0 : index
    %46 = vector.load %arg10[%c6, %c0_28, %c0_29] : memref<9x1x128xf32, #tpu.memory_space<vmem>>, vector<1x1x128xf32>
    %47 = vector.shape_cast %46 : vector<1x1x128xf32> to vector<1x128xf32>
    %48 = vector.broadcast %47 : vector<1x128xf32> to vector<16x128xf32>
    %49 = arith.mulf %45, %48 : vector<16x128xf32>
    %50 = arith.addf %43, %49 : vector<16x128xf32>
    %c0_30 = arith.constant 0 : index
    %c0_31 = arith.constant 0 : index
    %51 = vector.load %arg8[%c0_30, %c0_31] : memref<16x128xbf16, #tpu.memory_space<vmem>>, vector<16x128xbf16>
    %52 = arith.extf %51 : vector<16x128xbf16> to vector<16x128xf32>
    %c7 = arith.constant 7 : index
    %c0_32 = arith.constant 0 : index
    %c0_33 = arith.constant 0 : index
    %53 = vector.load %arg10[%c7, %c0_32, %c0_33] : memref<9x1x128xf32, #tpu.memory_space<vmem>>, vector<1x1x128xf32>
    %54 = vector.shape_cast %53 : vector<1x1x128xf32> to vector<1x128xf32>
    %55 = vector.broadcast %54 : vector<1x128xf32> to vector<16x128xf32>
    %56 = arith.mulf %52, %55 : vector<16x128xf32>
    %57 = arith.addf %50, %56 : vector<16x128xf32>
    %c0_34 = arith.constant 0 : index
    %c0_35 = arith.constant 0 : index
    %58 = vector.load %arg9[%c0_34, %c0_35] : memref<16x128xbf16, #tpu.memory_space<vmem>>, vector<16x128xbf16>
    %59 = arith.extf %58 : vector<16x128xbf16> to vector<16x128xf32>
    %c8 = arith.constant 8 : index
    %c0_36 = arith.constant 0 : index
    %c0_37 = arith.constant 0 : index
    %60 = vector.load %arg10[%c8, %c0_36, %c0_37] : memref<9x1x128xf32, #tpu.memory_space<vmem>>, vector<1x1x128xf32>
    %61 = vector.shape_cast %60 : vector<1x1x128xf32> to vector<1x128xf32>
    %62 = vector.broadcast %61 : vector<1x128xf32> to vector<16x128xf32>
    %63 = arith.mulf %59, %62 : vector<16x128xf32>
    %64 = arith.addf %57, %63 : vector<16x128xf32>
    %cst = arith.constant 0.000000e+00 : f32
    %cst_38 = arith.constant 6.000000e+00 : f32
    %65 = vector.broadcast %cst : f32 to vector<16x128xf32>
    %66 = arith.maximumf %65, %64 : vector<16x128xf32>
    %67 = vector.broadcast %cst_38 : f32 to vector<16x128xf32>
    %68 = arith.minimumf %67, %66 : vector<16x128xf32>
    %69 = arith.truncf %68 : vector<16x128xf32> to vector<16x128xbf16>
    %c0_39 = arith.constant 0 : index
    %c0_40 = arith.constant 0 : index
    %70 = vector.load %arg12[%c0_39, %c0_40] : memref<128x256xbf16, #tpu.memory_space<vmem>>, vector<128x256xbf16>
    %cst_41 = arith.constant dense<0.000000e+00> : vector<16x256xf32>
    %71 = tpu.matmul %69, %70, %cst_41 {dimension_numbers = #tpu.dot_dimension_numbers<[1], [0], [0], [1], [0, 0, 1, 1], [], []>} : vector<16x128xbf16>, vector<128x256xbf16>, vector<16x256xf32> -> vector<16x256xf32>
    %c0_42 = arith.constant 0 : index
    %c0_43 = arith.constant 0 : index
    %72 = vector.load %arg13[%c0_42, %c0_43] : memref<1x256xf32, #tpu.memory_space<vmem>>, vector<1x256xf32>
    %73 = vector.broadcast %72 : vector<1x256xf32> to vector<16x256xf32>
    %74 = arith.addf %71, %73 : vector<16x256xf32>
    %cst_44 = arith.constant 0.000000e+00 : f32
    %cst_45 = arith.constant 6.000000e+00 : f32
    %75 = vector.broadcast %cst_44 : f32 to vector<16x256xf32>
    %76 = arith.maximumf %75, %74 : vector<16x256xf32>
    %77 = vector.broadcast %cst_45 : f32 to vector<16x256xf32>
    %78 = arith.minimumf %77, %76 : vector<16x256xf32>
    %79 = arith.truncf %78 : vector<16x256xf32> to vector<16x256xbf16>
    %c0_46 = arith.constant 0 : index
    %c0_47 = arith.constant 0 : index
    %80 = vector.load %arg14[%c0_46, %c0_47] : memref<16x256xbf16, #tpu.memory_space<vmem>>, vector<16x256xbf16>
    tpu.vector_store %arg14[%c0_46, %c0_47], %79 {strides = array<i32>} : memref<16x256xbf16, #tpu.memory_space<vmem>>, vector<16x256xbf16>,
    return
  }
  func.func @transform_0(%arg0: i32) -> (i32, i32) {
    %c0_i32 = arith.constant 0 : i32
    %c0_i32_0 = arith.constant 0 : i32
    return %arg0, %c0_i32 : i32, i32
  }
  func.func @transform_1(%arg0: i32) -> (i32, i32) {
    %c0_i32 = arith.constant 0 : i32
    %c0_i32_0 = arith.constant 0 : i32
    return %arg0, %c0_i32 : i32, i32
  }
  func.func @transform_2(%arg0: i32) -> (i32, i32) {
    %c0_i32 = arith.constant 0 : i32
    %c0_i32_0 = arith.constant 0 : i32
    return %arg0, %c0_i32 : i32, i32
  }
  func.func @transform_3(%arg0: i32) -> (i32, i32) {
    %c0_i32 = arith.constant 0 : i32
    %c0_i32_0 = arith.constant 0 : i32
    return %arg0, %c0_i32 : i32, i32
  }
  func.func @transform_4(%arg0: i32) -> (i32, i32) {
    %c0_i32 = arith.constant 0 : i32
    %c0_i32_0 = arith.constant 0 : i32
    return %arg0, %c0_i32 : i32, i32
  }
  func.func @transform_5(%arg0: i32) -> (i32, i32) {
    %c0_i32 = arith.constant 0 : i32
    %c0_i32_0 = arith.constant 0 : i32
    return %arg0, %c0_i32 : i32, i32
  }
  func.func @transform_6(%arg0: i32) -> (i32, i32) {
    %c0_i32 = arith.constant 0 : i32
    %c0_i32_0 = arith.constant 0 : i32
    return %arg0, %c0_i32 : i32, i32
  }
  func.func @transform_7(%arg0: i32) -> (i32, i32) {
    %c0_i32 = arith.constant 0 : i32
    %c0_i32_0 = arith.constant 0 : i32
    return %arg0, %c0_i32 : i32, i32
  }
  func.func @transform_8(%arg0: i32) -> (i32, i32) {
    %c0_i32 = arith.constant 0 : i32
    %c0_i32_0 = arith.constant 0 : i32
    return %arg0, %c0_i32 : i32, i32
  }
  func.func @transform_9(%arg0: i32) -> (i32, i32, i32) {
    %c0_i32 = arith.constant 0 : i32
    %c0_i32_0 = arith.constant 0 : i32
    %c0_i32_1 = arith.constant 0 : i32
    %c0_i32_2 = arith.constant 0 : i32
    return %c0_i32, %c0_i32_0, %c0_i32_1 : i32, i32, i32
  }
  func.func @transform_10(%arg0: i32) -> (i32, i32) {
    %c0_i32 = arith.constant 0 : i32
    %c0_i32_0 = arith.constant 0 : i32
    %c0_i32_1 = arith.constant 0 : i32
    return %c0_i32, %c0_i32_0 : i32, i32
  }
  func.func @transform_11(%arg0: i32) -> (i32, i32) {
    %c0_i32 = arith.constant 0 : i32
    %c0_i32_0 = arith.constant 0 : i32
    %c0_i32_1 = arith.constant 0 : i32
    return %c0_i32, %c0_i32_0 : i32, i32
  }
  func.func @transform_12(%arg0: i32) -> (i32, i32) {
    %c0_i32 = arith.constant 0 : i32
    %c0_i32_0 = arith.constant 0 : i32
    %c0_i32_1 = arith.constant 0 : i32
    return %c0_i32, %c0_i32_0 : i32, i32
  }
  func.func @transform_13(%arg0: i32) -> (i32, i32) {
    %c0_i32 = arith.constant 0 : i32
    %c0_i32_0 = arith.constant 0 : i32
    return %arg0, %c0_i32 : i32, i32
  }
}

module attributes {stable_mosaic.version = 11 : i64} {
  func.func @_gap_classifier_kernel(%arg0: i32, %arg1: memref<2x1x256xbf16, #tpu.memory_space<vmem>>, %arg2: memref<256x128xbf16, #tpu.memory_space<vmem>>, %arg3: memref<1x128xf32, #tpu.memory_space<vmem>>, %arg4: memref<2x128xf32, #tpu.memory_space<vmem>>) attributes {dimension_semantics = [#tpu.dimension_semantics<parallel>], iteration_bounds = array<i64: 1>, scalar_prefetch = 0 : i64, scratch_operands = 0 : i64, tpu.core_type = #tpu.core_type<tc>, window_params = [{transform_indices = @transform_0, window_bounds = array<i64: 2, 1, 256>}, {pipeline_mode = #tpu.pipeline_mode<synchronous>, transform_indices = @transform_1, window_bounds = array<i64: 256, 128>}, {pipeline_mode = #tpu.pipeline_mode<synchronous>, transform_indices = @transform_2, window_bounds = array<i64: 1, 128>}, {transform_indices = @transform_3, window_bounds = array<i64: 2, 128>}]} {
    %c0 = arith.constant 0 : index
    %c0_0 = arith.constant 0 : index
    %c0_1 = arith.constant 0 : index
    %0 = vector.load %arg1[%c0, %c0_0, %c0_1] : memref<2x1x256xbf16, #tpu.memory_space<vmem>>, vector<2x1x256xbf16>
    %1 = arith.extf %0 : vector<2x1x256xbf16> to vector<2x1x256xf32>
    %cst = arith.constant dense<0.000000e+00> : vector<2x256xf32>
    %2 = vector.multi_reduction <add>, %1, %cst [1] : vector<2x1x256xf32> to vector<2x256xf32>
    %cst_2 = arith.constant 1.000000e+00 : f32
    %3 = vector.broadcast %cst_2 : f32 to vector<2x256xf32>
    %4 = arith.mulf %2, %3 : vector<2x256xf32>
    %5 = arith.truncf %4 : vector<2x256xf32> to vector<2x256xbf16>
    %c0_3 = arith.constant 0 : index
    %c0_4 = arith.constant 0 : index
    %6 = vector.load %arg2[%c0_3, %c0_4] : memref<256x128xbf16, #tpu.memory_space<vmem>>, vector<256x128xbf16>
    %cst_5 = arith.constant dense<0.000000e+00> : vector<2x128xf32>
    %7 = tpu.matmul %5, %6, %cst_5 {dimension_numbers = #tpu.dot_dimension_numbers<[1], [0], [0], [1], [0, 0, 1, 1], [], []>} : vector<2x256xbf16>, vector<256x128xbf16>, vector<2x128xf32> -> vector<2x128xf32>
    %c0_6 = arith.constant 0 : index
    %c0_7 = arith.constant 0 : index
    %8 = vector.load %arg3[%c0_6, %c0_7] : memref<1x128xf32, #tpu.memory_space<vmem>>, vector<1x128xf32>
    %9 = vector.broadcast %8 : vector<1x128xf32> to vector<2x128xf32>
    %10 = arith.addf %7, %9 : vector<2x128xf32>
    %c0_8 = arith.constant 0 : index
    %c0_9 = arith.constant 0 : index
    %11 = vector.load %arg4[%c0_8, %c0_9] : memref<2x128xf32, #tpu.memory_space<vmem>>, vector<2x128xf32>
    tpu.vector_store %arg4[%c0_8, %c0_9], %10 {strides = array<i32>} : memref<2x128xf32, #tpu.memory_space<vmem>>, vector<2x128xf32>,
    return
  }
  func.func @transform_0(%arg0: i32) -> (i32, i32, i32) {
    %c0_i32 = arith.constant 0 : i32
    %c0_i32_0 = arith.constant 0 : i32
    %c0_i32_1 = arith.constant 0 : i32
    return %arg0, %c0_i32, %c0_i32_0 : i32, i32, i32
  }
  func.func @transform_1(%arg0: i32) -> (i32, i32) {
    %c0_i32 = arith.constant 0 : i32
    %c0_i32_0 = arith.constant 0 : i32
    %c0_i32_1 = arith.constant 0 : i32
    return %c0_i32, %c0_i32_0 : i32, i32
  }
  func.func @transform_2(%arg0: i32) -> (i32, i32) {
    %c0_i32 = arith.constant 0 : i32
    %c0_i32_0 = arith.constant 0 : i32
    %c0_i32_1 = arith.constant 0 : i32
    return %c0_i32, %c0_i32_0 : i32, i32
  }
  func.func @transform_3(%arg0: i32) -> (i32, i32) {
    %c0_i32 = arith.constant 0 : i32
    %c0_i32_0 = arith.constant 0 : i32
    return %arg0, %c0_i32 : i32, i32
  }
}

module attributes {stable_mosaic.version = 11 : i64} {
  func.func @_dw_pw_kernel(%arg0: i32, %arg1: memref<16x256xbf16, #tpu.memory_space<vmem>>, %arg2: memref<16x256xbf16, #tpu.memory_space<vmem>>, %arg3: memref<16x256xbf16, #tpu.memory_space<vmem>>, %arg4: memref<16x256xbf16, #tpu.memory_space<vmem>>, %arg5: memref<16x256xbf16, #tpu.memory_space<vmem>>, %arg6: memref<16x256xbf16, #tpu.memory_space<vmem>>, %arg7: memref<16x256xbf16, #tpu.memory_space<vmem>>, %arg8: memref<16x256xbf16, #tpu.memory_space<vmem>>, %arg9: memref<16x256xbf16, #tpu.memory_space<vmem>>, %arg10: memref<9x1x256xf32, #tpu.memory_space<vmem>>, %arg11: memref<1x256xf32, #tpu.memory_space<vmem>>, %arg12: memref<256x256xbf16, #tpu.memory_space<vmem>>, %arg13: memref<1x256xf32, #tpu.memory_space<vmem>>, %arg14: memref<16x256xbf16, #tpu.memory_space<vmem>>) attributes {dimension_semantics = [#tpu.dimension_semantics<parallel>], iteration_bounds = array<i64: 1>, scalar_prefetch = 0 : i64, scratch_operands = 0 : i64, tpu.core_type = #tpu.core_type<tc>, window_params = [{transform_indices = @transform_0, window_bounds = array<i64: 16, 256>}, {transform_indices = @transform_1, window_bounds = array<i64: 16, 256>}, {transform_indices = @transform_2, window_bounds = array<i64: 16, 256>}, {transform_indices = @transform_3, window_bounds = array<i64: 16, 256>}, {transform_indices = @transform_4, window_bounds = array<i64: 16, 256>}, {transform_indices = @transform_5, window_bounds = array<i64: 16, 256>}, {transform_indices = @transform_6, window_bounds = array<i64: 16, 256>}, {transform_indices = @transform_7, window_bounds = array<i64: 16, 256>}, {transform_indices = @transform_8, window_bounds = array<i64: 16, 256>}, {pipeline_mode = #tpu.pipeline_mode<synchronous>, transform_indices = @transform_9, window_bounds = array<i64: 9, 1, 256>}, {pipeline_mode = #tpu.pipeline_mode<synchronous>, transform_indices = @transform_10, window_bounds = array<i64: 1, 256>}, {pipeline_mode = #tpu.pipeline_mode<synchronous>, transform_indices = @transform_11, window_bounds = array<i64: 256, 256>}, {pipeline_mode = #tpu.pipeline_mode<synchronous>, transform_indices = @transform_12, window_bounds = array<i64: 1, 256>}, {transform_indices = @transform_13, window_bounds = array<i64: 16, 256>}]} {
    %c0 = arith.constant 0 : index
    %c0_0 = arith.constant 0 : index
    %0 = vector.load %arg11[%c0, %c0_0] : memref<1x256xf32, #tpu.memory_space<vmem>>, vector<1x256xf32>
    %c0_1 = arith.constant 0 : index
    %c0_2 = arith.constant 0 : index
    %1 = vector.load %arg1[%c0_1, %c0_2] : memref<16x256xbf16, #tpu.memory_space<vmem>>, vector<16x256xbf16>
    %2 = arith.extf %1 : vector<16x256xbf16> to vector<16x256xf32>
    %c0_3 = arith.constant 0 : index
    %c0_4 = arith.constant 0 : index
    %c0_5 = arith.constant 0 : index
    %3 = vector.load %arg10[%c0_3, %c0_4, %c0_5] : memref<9x1x256xf32, #tpu.memory_space<vmem>>, vector<1x1x256xf32>
    %4 = vector.shape_cast %3 : vector<1x1x256xf32> to vector<1x256xf32>
    %5 = vector.broadcast %4 : vector<1x256xf32> to vector<16x256xf32>
    %6 = arith.mulf %2, %5 : vector<16x256xf32>
    %7 = vector.broadcast %0 : vector<1x256xf32> to vector<16x256xf32>
    %8 = arith.addf %7, %6 : vector<16x256xf32>
    %c0_6 = arith.constant 0 : index
    %c0_7 = arith.constant 0 : index
    %9 = vector.load %arg2[%c0_6, %c0_7] : memref<16x256xbf16, #tpu.memory_space<vmem>>, vector<16x256xbf16>
    %10 = arith.extf %9 : vector<16x256xbf16> to vector<16x256xf32>
    %c1 = arith.constant 1 : index
    %c0_8 = arith.constant 0 : index
    %c0_9 = arith.constant 0 : index
    %11 = vector.load %arg10[%c1, %c0_8, %c0_9] : memref<9x1x256xf32, #tpu.memory_space<vmem>>, vector<1x1x256xf32>
    %12 = vector.shape_cast %11 : vector<1x1x256xf32> to vector<1x256xf32>
    %13 = vector.broadcast %12 : vector<1x256xf32> to vector<16x256xf32>
    %14 = arith.mulf %10, %13 : vector<16x256xf32>
    %15 = arith.addf %8, %14 : vector<16x256xf32>
    %c0_10 = arith.constant 0 : index
    %c0_11 = arith.constant 0 : index
    %16 = vector.load %arg3[%c0_10, %c0_11] : memref<16x256xbf16, #tpu.memory_space<vmem>>, vector<16x256xbf16>
    %17 = arith.extf %16 : vector<16x256xbf16> to vector<16x256xf32>
    %c2 = arith.constant 2 : index
    %c0_12 = arith.constant 0 : index
    %c0_13 = arith.constant 0 : index
    %18 = vector.load %arg10[%c2, %c0_12, %c0_13] : memref<9x1x256xf32, #tpu.memory_space<vmem>>, vector<1x1x256xf32>
    %19 = vector.shape_cast %18 : vector<1x1x256xf32> to vector<1x256xf32>
    %20 = vector.broadcast %19 : vector<1x256xf32> to vector<16x256xf32>
    %21 = arith.mulf %17, %20 : vector<16x256xf32>
    %22 = arith.addf %15, %21 : vector<16x256xf32>
    %c0_14 = arith.constant 0 : index
    %c0_15 = arith.constant 0 : index
    %23 = vector.load %arg4[%c0_14, %c0_15] : memref<16x256xbf16, #tpu.memory_space<vmem>>, vector<16x256xbf16>
    %24 = arith.extf %23 : vector<16x256xbf16> to vector<16x256xf32>
    %c3 = arith.constant 3 : index
    %c0_16 = arith.constant 0 : index
    %c0_17 = arith.constant 0 : index
    %25 = vector.load %arg10[%c3, %c0_16, %c0_17] : memref<9x1x256xf32, #tpu.memory_space<vmem>>, vector<1x1x256xf32>
    %26 = vector.shape_cast %25 : vector<1x1x256xf32> to vector<1x256xf32>
    %27 = vector.broadcast %26 : vector<1x256xf32> to vector<16x256xf32>
    %28 = arith.mulf %24, %27 : vector<16x256xf32>
    %29 = arith.addf %22, %28 : vector<16x256xf32>
    %c0_18 = arith.constant 0 : index
    %c0_19 = arith.constant 0 : index
    %30 = vector.load %arg5[%c0_18, %c0_19] : memref<16x256xbf16, #tpu.memory_space<vmem>>, vector<16x256xbf16>
    %31 = arith.extf %30 : vector<16x256xbf16> to vector<16x256xf32>
    %c4 = arith.constant 4 : index
    %c0_20 = arith.constant 0 : index
    %c0_21 = arith.constant 0 : index
    %32 = vector.load %arg10[%c4, %c0_20, %c0_21] : memref<9x1x256xf32, #tpu.memory_space<vmem>>, vector<1x1x256xf32>
    %33 = vector.shape_cast %32 : vector<1x1x256xf32> to vector<1x256xf32>
    %34 = vector.broadcast %33 : vector<1x256xf32> to vector<16x256xf32>
    %35 = arith.mulf %31, %34 : vector<16x256xf32>
    %36 = arith.addf %29, %35 : vector<16x256xf32>
    %c0_22 = arith.constant 0 : index
    %c0_23 = arith.constant 0 : index
    %37 = vector.load %arg6[%c0_22, %c0_23] : memref<16x256xbf16, #tpu.memory_space<vmem>>, vector<16x256xbf16>
    %38 = arith.extf %37 : vector<16x256xbf16> to vector<16x256xf32>
    %c5 = arith.constant 5 : index
    %c0_24 = arith.constant 0 : index
    %c0_25 = arith.constant 0 : index
    %39 = vector.load %arg10[%c5, %c0_24, %c0_25] : memref<9x1x256xf32, #tpu.memory_space<vmem>>, vector<1x1x256xf32>
    %40 = vector.shape_cast %39 : vector<1x1x256xf32> to vector<1x256xf32>
    %41 = vector.broadcast %40 : vector<1x256xf32> to vector<16x256xf32>
    %42 = arith.mulf %38, %41 : vector<16x256xf32>
    %43 = arith.addf %36, %42 : vector<16x256xf32>
    %c0_26 = arith.constant 0 : index
    %c0_27 = arith.constant 0 : index
    %44 = vector.load %arg7[%c0_26, %c0_27] : memref<16x256xbf16, #tpu.memory_space<vmem>>, vector<16x256xbf16>
    %45 = arith.extf %44 : vector<16x256xbf16> to vector<16x256xf32>
    %c6 = arith.constant 6 : index
    %c0_28 = arith.constant 0 : index
    %c0_29 = arith.constant 0 : index
    %46 = vector.load %arg10[%c6, %c0_28, %c0_29] : memref<9x1x256xf32, #tpu.memory_space<vmem>>, vector<1x1x256xf32>
    %47 = vector.shape_cast %46 : vector<1x1x256xf32> to vector<1x256xf32>
    %48 = vector.broadcast %47 : vector<1x256xf32> to vector<16x256xf32>
    %49 = arith.mulf %45, %48 : vector<16x256xf32>
    %50 = arith.addf %43, %49 : vector<16x256xf32>
    %c0_30 = arith.constant 0 : index
    %c0_31 = arith.constant 0 : index
    %51 = vector.load %arg8[%c0_30, %c0_31] : memref<16x256xbf16, #tpu.memory_space<vmem>>, vector<16x256xbf16>
    %52 = arith.extf %51 : vector<16x256xbf16> to vector<16x256xf32>
    %c7 = arith.constant 7 : index
    %c0_32 = arith.constant 0 : index
    %c0_33 = arith.constant 0 : index
    %53 = vector.load %arg10[%c7, %c0_32, %c0_33] : memref<9x1x256xf32, #tpu.memory_space<vmem>>, vector<1x1x256xf32>
    %54 = vector.shape_cast %53 : vector<1x1x256xf32> to vector<1x256xf32>
    %55 = vector.broadcast %54 : vector<1x256xf32> to vector<16x256xf32>
    %56 = arith.mulf %52, %55 : vector<16x256xf32>
    %57 = arith.addf %50, %56 : vector<16x256xf32>
    %c0_34 = arith.constant 0 : index
    %c0_35 = arith.constant 0 : index
    %58 = vector.load %arg9[%c0_34, %c0_35] : memref<16x256xbf16, #tpu.memory_space<vmem>>, vector<16x256xbf16>
    %59 = arith.extf %58 : vector<16x256xbf16> to vector<16x256xf32>
    %c8 = arith.constant 8 : index
    %c0_36 = arith.constant 0 : index
    %c0_37 = arith.constant 0 : index
    %60 = vector.load %arg10[%c8, %c0_36, %c0_37] : memref<9x1x256xf32, #tpu.memory_space<vmem>>, vector<1x1x256xf32>
    %61 = vector.shape_cast %60 : vector<1x1x256xf32> to vector<1x256xf32>
    %62 = vector.broadcast %61 : vector<1x256xf32> to vector<16x256xf32>
    %63 = arith.mulf %59, %62 : vector<16x256xf32>
    %64 = arith.addf %57, %63 : vector<16x256xf32>
    %cst = arith.constant 0.000000e+00 : f32
    %cst_38 = arith.constant 6.000000e+00 : f32
    %65 = vector.broadcast %cst : f32 to vector<16x256xf32>
    %66 = arith.maximumf %65, %64 : vector<16x256xf32>
    %67 = vector.broadcast %cst_38 : f32 to vector<16x256xf32>
    %68 = arith.minimumf %67, %66 : vector<16x256xf32>
    %69 = arith.truncf %68 : vector<16x256xf32> to vector<16x256xbf16>
    %c0_39 = arith.constant 0 : index
    %c0_40 = arith.constant 0 : index
    %70 = vector.load %arg12[%c0_39, %c0_40] : memref<256x256xbf16, #tpu.memory_space<vmem>>, vector<256x256xbf16>
    %cst_41 = arith.constant dense<0.000000e+00> : vector<16x256xf32>
    %71 = tpu.matmul %69, %70, %cst_41 {dimension_numbers = #tpu.dot_dimension_numbers<[1], [0], [0], [1], [0, 0, 1, 1], [], []>} : vector<16x256xbf16>, vector<256x256xbf16>, vector<16x256xf32> -> vector<16x256xf32>
    %c0_42 = arith.constant 0 : index
    %c0_43 = arith.constant 0 : index
    %72 = vector.load %arg13[%c0_42, %c0_43] : memref<1x256xf32, #tpu.memory_space<vmem>>, vector<1x256xf32>
    %73 = vector.broadcast %72 : vector<1x256xf32> to vector<16x256xf32>
    %74 = arith.addf %71, %73 : vector<16x256xf32>
    %cst_44 = arith.constant 0.000000e+00 : f32
    %cst_45 = arith.constant 6.000000e+00 : f32
    %75 = vector.broadcast %cst_44 : f32 to vector<16x256xf32>
    %76 = arith.maximumf %75, %74 : vector<16x256xf32>
    %77 = vector.broadcast %cst_45 : f32 to vector<16x256xf32>
    %78 = arith.minimumf %77, %76 : vector<16x256xf32>
    %79 = arith.truncf %78 : vector<16x256xf32> to vector<16x256xbf16>
    %c0_46 = arith.constant 0 : index
    %c0_47 = arith.constant 0 : index
    %80 = vector.load %arg14[%c0_46, %c0_47] : memref<16x256xbf16, #tpu.memory_space<vmem>>, vector<16x256xbf16>
    tpu.vector_store %arg14[%c0_46, %c0_47], %79 {strides = array<i32>} : memref<16x256xbf16, #tpu.memory_space<vmem>>, vector<16x256xbf16>,
    return
  }
  func.func @transform_0(%arg0: i32) -> (i32, i32) {
    %c0_i32 = arith.constant 0 : i32
    %c0_i32_0 = arith.constant 0 : i32
    return %arg0, %c0_i32 : i32, i32
  }
  func.func @transform_1(%arg0: i32) -> (i32, i32) {
    %c0_i32 = arith.constant 0 : i32
    %c0_i32_0 = arith.constant 0 : i32
    return %arg0, %c0_i32 : i32, i32
  }
  func.func @transform_2(%arg0: i32) -> (i32, i32) {
    %c0_i32 = arith.constant 0 : i32
    %c0_i32_0 = arith.constant 0 : i32
    return %arg0, %c0_i32 : i32, i32
  }
  func.func @transform_3(%arg0: i32) -> (i32, i32) {
    %c0_i32 = arith.constant 0 : i32
    %c0_i32_0 = arith.constant 0 : i32
    return %arg0, %c0_i32 : i32, i32
  }
  func.func @transform_4(%arg0: i32) -> (i32, i32) {
    %c0_i32 = arith.constant 0 : i32
    %c0_i32_0 = arith.constant 0 : i32
    return %arg0, %c0_i32 : i32, i32
  }
  func.func @transform_5(%arg0: i32) -> (i32, i32) {
    %c0_i32 = arith.constant 0 : i32
    %c0_i32_0 = arith.constant 0 : i32
    return %arg0, %c0_i32 : i32, i32
  }
  func.func @transform_6(%arg0: i32) -> (i32, i32) {
    %c0_i32 = arith.constant 0 : i32
    %c0_i32_0 = arith.constant 0 : i32
    return %arg0, %c0_i32 : i32, i32
  }
  func.func @transform_7(%arg0: i32) -> (i32, i32) {
    %c0_i32 = arith.constant 0 : i32
    %c0_i32_0 = arith.constant 0 : i32
    return %arg0, %c0_i32 : i32, i32
  }
  func.func @transform_8(%arg0: i32) -> (i32, i32) {
    %c0_i32 = arith.constant 0 : i32
    %c0_i32_0 = arith.constant 0 : i32
    return %arg0, %c0_i32 : i32, i32
  }
  func.func @transform_9(%arg0: i32) -> (i32, i32, i32) {
    %c0_i32 = arith.constant 0 : i32
    %c0_i32_0 = arith.constant 0 : i32
    %c0_i32_1 = arith.constant 0 : i32
    %c0_i32_2 = arith.constant 0 : i32
    return %c0_i32, %c0_i32_0, %c0_i32_1 : i32, i32, i32
  }
  func.func @transform_10(%arg0: i32) -> (i32, i32) {
    %c0_i32 = arith.constant 0 : i32
    %c0_i32_0 = arith.constant 0 : i32
    %c0_i32_1 = arith.constant 0 : i32
    return %c0_i32, %c0_i32_0 : i32, i32
  }
  func.func @transform_11(%arg0: i32) -> (i32, i32) {
    %c0_i32 = arith.constant 0 : i32
    %c0_i32_0 = arith.constant 0 : i32
    %c0_i32_1 = arith.constant 0 : i32
    return %c0_i32, %c0_i32_0 : i32, i32
  }
  func.func @transform_12(%arg0: i32) -> (i32, i32) {
    %c0_i32 = arith.constant 0 : i32
    %c0_i32_0 = arith.constant 0 : i32
    %c0_i32_1 = arith.constant 0 : i32
    return %c0_i32, %c0_i32_0 : i32, i32
  }
  func.func @transform_13(%arg0: i32) -> (i32, i32) {
    %c0_i32 = arith.constant 0 : i32
    %c0_i32_0 = arith.constant 0 : i32
    return %arg0, %c0_i32 : i32, i32
  }
}

</mosaic_0001>

<llo_original>
// kernel: mobilenet_forward.15
$region0: #{mobilenet_forward.15}
  #allocation0 [shape = 'u32[]', space=smem, size = 0x4, offset = 0x4, fixed_abs, tag = 'smem constant byte address 0x4 - core index']
  #allocation1 [shape = 'u32[144,128]{1,0:T(1,128)}', space=vmem, size = 0x12000, scoped, tag = 'internal scratch']
  %s0 = inlined_call_operand.vmem [shape: bf16[512,27], index: 0, kind: input, shape index: {}]
  %s1 = inlined_call_operand.vmem [shape: bf16[27,128], index: 1, kind: input, shape index: {}]
  %s2 = inlined_call_operand.vmem [shape: f32[1,128], index: 2, kind: input, shape index: {}]
  %s3 = inlined_call_operand.vmem [shape: bf16[512,128], index: 3, kind: output, shape index: {}]
  %s4 = sld [smem:[#allocation0]]
  $region22: #{mobilenet_forward.15} parent=0
    _
  %s6 = ssub.s32 1, %s4
  %s7 = scalar_select 0, %s6, %s4
  // Predicated region
  $region2: #{mobilenet_forward.15} parent=0 // pred_check
    _
  $region3: #{mobilenet_forward.15} parent=0 // pred_check_branch
    %9 = sbr.rel (0) target = $region5
  $region4: #{mobilenet_forward.15} parent=0 // pred_region
    _
  $region5: #{mobilenet_forward.15} parent=0 // pred_fallthru
    _
  // Predicated region
  $region6: #{mobilenet_forward.15} parent=0 // pred_check
    _
  $region7: #{mobilenet_forward.15} parent=0 // pred_check_branch
    %11 = sbr.rel (0) target = $region9
  $region8: #{mobilenet_forward.15} parent=0 // pred_region
    _
  $region9: #{mobilenet_forward.15} parent=0 // pred_fallthru
    _
  // Predicated region
  $region10: #{mobilenet_forward.15} parent=0 // pred_check
    _
  $region11: #{mobilenet_forward.15} parent=0 // pred_check_branch
    %13 = sbr.rel (0) target = $region13
  $region12: #{mobilenet_forward.15} parent=0 // pred_region
    _
  $region13: #{mobilenet_forward.15} parent=0 // pred_fallthru
    _
  %v15 = vld [vmem:[%s0] sm:$0xf]
  %v16 = vld [vmem:[%s0 + $0x4] sm:$0xf]
  %v17 = vld [vmem:[%s0 + $0x8] sm:$0xf]
  %v18 = vld [vmem:[%s0 + $0xc] sm:$0xf]
  %v19 = vld [vmem:[%s0 + $0x10] sm:$0xf]
  %v20 = vld [vmem:[%s0 + $0x14] sm:$0xf]
  %v21 = vld [vmem:[%s0 + $0x18] sm:$0xf]
  %v22 = vld [vmem:[%s0 + $0x1c] sm:$0xf]
  %v23 = vld [vmem:[%s0 + $0x20] sm:$0xf]
  %v24 = vld [vmem:[%s0 + $0x24] sm:$0xf]
  %v25 = vld [vmem:[%s0 + $0x28] sm:$0xf]
  %v26 = vld [vmem:[%s0 + $0x2c] sm:$0xf]
  %v27 = vld [vmem:[%s0 + $0x30] sm:$0xf]
  %v28 = vld [vmem:[%s0 + $0x34] sm:$0xf]
  %v29 = vld [vmem:[%s0 + $0x38] sm:$0xf]
  %v30 = vld [vmem:[%s0 + $0x3c] sm:$0xf]
  %v31 = vld [vmem:[%s0 + $0x40] sm:$0xf]
  %v32 = vld [vmem:[%s0 + $0x44] sm:$0xf]
  %v33 = vld [vmem:[%s0 + $0x48] sm:$0xf]
  %v34 = vld [vmem:[%s0 + $0x4c] sm:$0xf]
  %v35 = vld [vmem:[%s0 + $0x50] sm:$0xf]
  %v36 = vld [vmem:[%s0 + $0x54] sm:$0xf]
  %v37 = vld [vmem:[%s0 + $0x58] sm:$0xf]
  %v38 = vld [vmem:[%s0 + $0x5c] sm:$0xf]
  %v39 = vld [vmem:[%s0 + $0x60] sm:$0xf]
  %v40 = vld [vmem:[%s0 + $0x64] sm:$0xf]
  %v41 = vld [vmem:[%s0 + $0x68] sm:$0xf]
  %v42 = vld [vmem:[%s0 + $0x6c] sm:$0xf]
  %v43 = vld [vmem:[%s0 + $0x70] sm:$0xf]
  %v44 = vld [vmem:[%s0 + $0x74] sm:$0xf]
  %v45 = vld [vmem:[%s0 + $0x78] sm:$0xf]
  %v46 = vld [vmem:[%s0 + $0x7c] sm:$0xf]
  %v47 = vld [vmem:[%s0 + $0x80] sm:$0xf]
  %v48 = vld [vmem:[%s0 + $0x84] sm:$0xf]
  %v49 = vld [vmem:[%s0 + $0x88] sm:$0xf]
  %v50 = vld [vmem:[%s0 + $0x8c] sm:$0xf]
  %v51 = vld [vmem:[%s0 + $0x90] sm:$0xf]
  %v52 = vld [vmem:[%s0 + $0x94] sm:$0xf]
  %v53 = vld [vmem:[%s0 + $0x98] sm:$0xf]
  %v54 = vld [vmem:[%s0 + $0x9c] sm:$0xf]
  %v55 = vld [vmem:[%s0 + $0xa0] sm:$0xf]
  %v56 = vld [vmem:[%s0 + $0xa4] sm:$0xf]
  %v57 = vld [vmem:[%s0 + $0xa8] sm:$0xf]
  %v58 = vld [vmem:[%s0 + $0xac] sm:$0xf]
  %v59 = vld [vmem:[%s0 + $0xb0] sm:$0xf]
  %v60 = vld [vmem:[%s0 + $0xb4] sm:$0xf]
  %v61 = vld [vmem:[%s0 + $0xb8] sm:$0xf]
  %v62 = vld [vmem:[%s0 + $0xbc] sm:$0xf]
  %v63 = vld [vmem:[%s0 + $0xc0] sm:$0xf]
  %v64 = vld [vmem:[%s0 + $0xc4] sm:$0xf]
  %v65 = vld [vmem:[%s0 + $0xc8] sm:$0xf]
  %v66 = vld [vmem:[%s0 + $0xcc] sm:$0xf]
  %v67 = vld [vmem:[%s0 + $0xd0] sm:$0xf]
  %v68 = vld [vmem:[%s0 + $0xd4] sm:$0xf]
  %v69 = vld [vmem:[%s0 + $0xd8] sm:$0xf]
  %v70 = vld [vmem:[%s0 + $0xdc] sm:$0xf]
  %v71 = vld [vmem:[%s0 + $0xe0] sm:$0xf]
  %v72 = vld [vmem:[%s0 + $0xe4] sm:$0xf]
  %v73 = vld [vmem:[%s0 + $0xe8] sm:$0xf]
  %v74 = vld [vmem:[%s0 + $0xec] sm:$0xf]
  %v75 = vld [vmem:[%s0 + $0xf0] sm:$0xf]
  %v76 = vld [vmem:[%s0 + $0xf4] sm:$0xf]
  %v77 = vld [vmem:[%s0 + $0xf8] sm:$0xf]
  %v78 = vld [vmem:[%s0 + $0xfc] sm:$0xf]
  %v79 = vld [vmem:[%s1] sm:$0xf]
  %v80 = vld [vmem:[%s1 + $0x4] sm:$0xf]
  %v81 = vld [vmem:[%s1 + $0x8] sm:$0xf]
  %v82 = vld [vmem:[%s1 + $0xc] sm:$0x3]
  %v83 = vld [vmem:[%s2] sm:$0x1]
  %v85 = vlaneseq
  %v86 = vshrl.u32 %v85, 7
  %v87 = vsub.s32 0, %v86
  %v88 = vrot.slane %v83, %v87
  %v154 = vunpack.c.l.b16 %v15
  %v155 = vunpack.c.l.b16 %v16
  %v156 = vunpack.c.l.b16 %v17
  %v157 = vunpack.c.l.b16 %v18
  %v158 = vunpack.c.l.b16 %v19
  %v159 = vunpack.c.l.b16 %v20
  %v160 = vunpack.c.l.b16 %v21
  %v161 = vunpack.c.l.b16 %v22
  %v162 = vunpack.c.l.b16 %v23
  %v163 = vunpack.c.l.b16 %v24
  %v164 = vunpack.c.l.b16 %v25
  %v165 = vunpack.c.l.b16 %v26
  %v166 = vunpack.c.l.b16 %v27
  %v167 = vunpack.c.l.b16 %v28
  %v168 = vunpack.c.l.b16 %v29
  %v169 = vunpack.c.l.b16 %v30
  %v170 = vunpack.c.l.b16 %v31
  %v171 = vunpack.c.l.b16 %v32
  %v172 = vunpack.c.l.b16 %v33
  %v173 = vunpack.c.l.b16 %v34
  %v174 = vunpack.c.l.b16 %v35
  %v175 = vunpack.c.l.b16 %v36
  %v176 = vunpack.c.l.b16 %v37
  %v177 = vunpack.c.l.b16 %v38
  %v178 = vunpack.c.l.b16 %v39
  %v179 = vunpack.c.l.b16 %v40
  %v180 = vunpack.c.l.b16 %v41
  %v181 = vunpack.c.l.b16 %v42
  %v182 = vunpack.c.l.b16 %v43
  %v183 = vunpack.c.l.b16 %v44
  %v184 = vunpack.c.l.b16 %v45
  %v185 = vunpack.c.l.b16 %v46
  %v186 = vunpack.c.l.b16 %v47
  %v187 = vunpack.c.l.b16 %v48
  %v188 = vunpack.c.l.b16 %v49
  %v189 = vunpack.c.l.b16 %v50
  %v190 = vunpack.c.l.b16 %v51
  %v191 = vunpack.c.l.b16 %v52
  %v192 = vunpack.c.l.b16 %v53
  %v193 = vunpack.c.l.b16 %v54
  %v194 = vunpack.c.l.b16 %v55
  %v195 = vunpack.c.l.b16 %v56
  %v196 = vunpack.c.l.b16 %v57
  %v197 = vunpack.c.l.b16 %v58
  %v198 = vunpack.c.l.b16 %v59
  %v199 = vunpack.c.l.b16 %v60
  %v200 = vunpack.c.l.b16 %v61
  %v201 = vunpack.c.l.b16 %v62
  %v202 = vunpack.c.l.b16 %v63
  %v203 = vunpack.c.l.b16 %v64
  %v204 = vunpack.c.l.b16 %v65
  %v205 = vunpack.c.l.b16 %v66
  %v206 = vunpack.c.l.b16 %v67
  %v207 = vunpack.c.l.b16 %v68
  %v208 = vunpack.c.l.b16 %v69
  %v209 = vunpack.c.l.b16 %v70
  %v210 = vunpack.c.l.b16 %v71
  %v211 = vunpack.c.l.b16 %v72
  %v212 = vunpack.c.l.b16 %v73
  %v213 = vunpack.c.l.b16 %v74
  %v214 = vunpack.c.l.b16 %v75
  %v215 = vunpack.c.l.b16 %v76
  %v216 = vunpack.c.l.b16 %v77
  %v217 = vunpack.c.l.b16 %v78
  %v218 = vpack.c.b16 %v155, %v154
  %v219 = vpack.c.b16 %v157, %v156
  %v220 = vpack.c.b16 %v159, %v158
  %v221 = vpack.c.b16 %v161, %v160
  %v222 = vpack.c.b16 %v163, %v162
  %v223 = vpack.c.b16 %v165, %v164
  %v224 = vpack.c.b16 %v167, %v166
  %v225 = vpack.c.b16 %v169, %v168
  %v226 = vpack.c.b16 %v171, %v170
  %v227 = vpack.c.b16 %v173, %v172
  %v228 = vpack.c.b16 %v175, %v174
  %v229 = vpack.c.b16 %v177, %v176
  %v230 = vpack.c.b16 %v179, %v178
  %v231 = vpack.c.b16 %v181, %v180
  %v232 = vpack.c.b16 %v183, %v182
  %v233 = vpack.c.b16 %v185, %v184
  %v234 = vpack.c.b16 %v187, %v186
  %v235 = vpack.c.b16 %v189, %v188
  %v236 = vpack.c.b16 %v191, %v190
  %v237 = vpack.c.b16 %v193, %v192
  %v238 = vpack.c.b16 %v195, %v194
  %v239 = vpack.c.b16 %v197, %v196
  %v240 = vpack.c.b16 %v199, %v198
  %v241 = vpack.c.b16 %v201, %v200
  %v242 = vpack.c.b16 %v203, %v202
  %v243 = vpack.c.b16 %v205, %v204
  %v244 = vpack.c.b16 %v207, %v206
  %v245 = vpack.c.b16 %v209, %v208
  %v246 = vpack.c.b16 %v211, %v210
  %v247 = vpack.c.b16 %v213, %v212
  %v248 = vpack.c.b16 %v215, %v214
  %v249 = vpack.c.b16 %v217, %v216
  %v254 = vunpack.c.l.b16 %v79
  %v255 = vunpack.c.l.b16 %v80
  %v256 = vunpack.c.l.b16 %v81
  %v257 = vunpack.c.l.b16 %v82
  %v258 = vpack.c.b16 %v255, %v254
  %v259 = vpack.c.b16 %v257, %v256
  %vm261 = vcmask 220160
  %v263 = vsel %vm261, %v218, 0
  %v266 = vsel %vm261, %v219, 0
  %v269 = vsel %vm261, %v220, 0
  %v272 = vsel %vm261, %v221, 0
  %v275 = vsel %vm261, %v222, 0
  %v278 = vsel %vm261, %v223, 0
  %v281 = vsel %vm261, %v224, 0
  %v284 = vsel %vm261, %v225, 0
  %v287 = vsel %vm261, %v226, 0
  %v290 = vsel %vm261, %v227, 0
  %v293 = vsel %vm261, %v228, 0
  %v296 = vsel %vm261, %v229, 0
  %v299 = vsel %vm261, %v230, 0
  %v302 = vsel %vm261, %v231, 0
  %v305 = vsel %vm261, %v232, 0
  %v308 = vsel %vm261, %v233, 0
  %v311 = vsel %vm261, %v234, 0
  %v314 = vsel %vm261, %v235, 0
  %v317 = vsel %vm261, %v236, 0
  %v320 = vsel %vm261, %v237, 0
  %v323 = vsel %vm261, %v238, 0
  %v326 = vsel %vm261, %v239, 0
  %v329 = vsel %vm261, %v240, 0
  %v332 = vsel %vm261, %v241, 0
  %v335 = vsel %vm261, %v242, 0
  %v338 = vsel %vm261, %v243, 0
  %v341 = vsel %vm261, %v244, 0
  %v344 = vsel %vm261, %v245, 0
  %v347 = vsel %vm261, %v246, 0
  %v350 = vsel %vm261, %v247, 0
  %v353 = vsel %vm261, %v248, 0
  %v356 = vsel %vm261, %v249, 0
  %vm358 = vcmask 1044480
  %vm359 = vcmask 1045504
  %v360 = vsel %vm358, 4294967295, 65535
  %v361 = vsel %vm359, %v360, 0
  %v363 = vand.u32 %v259, %v361
  %365 = vmatprep.subr.bf16.mxu0 0
  %366 = vmatpush1.bf16.msra.mxu0 %v258
  %367 = vmatprep.subr.bf16.mxu0 0
  %368 = vmatpush1.bf16.msra.mxu0 %v363
  %369 = vmatprep.subr.bf16.mxu0 0
  %370 = vmatpush1.bf16.msra.mxu0 0
  %371 = vmatprep.subr.bf16.mxu0 0
  %372 = vmatpush1.bf16.msra.mxu0 0
  %373 = vmatprep.subr.bf16.mxu0 0
  %374 = vmatpush1.bf16.msra.mxu0 0
  %375 = vmatprep.subr.bf16.mxu0 0
  %376 = vmatpush1.bf16.msra.mxu0 0
  %377 = vmatprep.subr.bf16.mxu0 0
  %378 = vmatpush1.bf16.msra.mxu0 0
  %379 = vmatprep.subr.bf16.mxu0 0
  %380 = vmatpush1.bf16.msra.mxu0 0
  %381 = vmatprep.subr.bf16.mxu0 0
  %382 = vmatpush1.bf16.msra.mxu0 0
  %383 = vmatprep.subr.bf16.mxu0 0
  %384 = vmatpush1.bf16.msra.mxu0 0
  %385 = vmatprep.subr.bf16.mxu0 0
  %386 = vmatpush1.bf16.msra.mxu0 0
  %387 = vmatprep.subr.bf16.mxu0 0
  %388 = vmatpush1.bf16.msra.mxu0 0
  %389 = vmatprep.subr.bf16.mxu0 0
  %390 = vmatpush1.bf16.msra.mxu0 0
  %391 = vmatprep.subr.bf16.mxu0 0
  %392 = vmatpush1.bf16.msra.mxu0 0
  %393 = vmatprep.subr.bf16.mxu0 0
  %394 = vmatpush1.bf16.msra.mxu0 0
  %395 = vmatprep.subr.bf16.mxu0 0
  %396 = vmatpush1.bf16.msra.mxu0 0
  %397 = vmatprep.mubr.bf16.mxu0 0
  %398 = vmatmul.mubr.bf16.gmra.mrb[0].mxu0 %v263
  %v399 = vpop.f32.mrb[0].mxu0
  %v400 = vadd.f32 %v88, %v399
  %v401 = vpop.f32.mrb[0].mxu0
  %v402 = vpop.f32.mrb[0].mxu0
  %v403 = vadd.f32 %v88, %v402
  %v404 = vpop.f32.mrb[0].mxu0
  %405 = vmatprep.mubr.bf16.mxu0 0
  %406 = vmatmul.mubr.bf16.gmra.mrb[0].mxu0 %v266
  %v407 = vpop.f32.mrb[0].mxu0
  %v408 = vadd.f32 %v88, %v407
  %v409 = vpop.f32.mrb[0].mxu0
  %v410 = vpop.f32.mrb[0].mxu0
  %v411 = vadd.f32 %v88, %v410
  %v412 = vpop.f32.mrb[0].mxu0
  %413 = vmatprep.mubr.bf16.mxu0 0
  %414 = vmatmul.mubr.bf16.gmra.mrb[0].mxu0 %v269
  %v415 = vpop.f32.mrb[0].mxu0
  %v416 = vadd.f32 %v88, %v415
  %v417 = vpop.f32.mrb[0].mxu0
  %v418 = vpop.f32.mrb[0].mxu0
  %v419 = vadd.f32 %v88, %v418
  %v420 = vpop.f32.mrb[0].mxu0
  %421 = vmatprep.mubr.bf16.mxu0 0
  %422 = vmatmul.mubr.bf16.gmra.mrb[0].mxu0 %v272
  %v423 = vpop.f32.mrb[0].mxu0
  %v424 = vadd.f32 %v88, %v423
  %v425 = vpop.f32.mrb[0].mxu0
  %v426 = vpop.f32.mrb[0].mxu0
  %v427 = vadd.f32 %v88, %v426
  %v428 = vpop.f32.mrb[0].mxu0
  %429 = vmatprep.mubr.bf16.mxu0 0
  %430 = vmatmul.mubr.bf16.gmra.mrb[0].mxu0 %v275
  %v431 = vpop.f32.mrb[0].mxu0
  %v432 = vadd.f32 %v88, %v431
  %v433 = vpop.f32.mrb[0].mxu0
  %v434 = vpop.f32.mrb[0].mxu0
  %v435 = vadd.f32 %v88, %v434
  %v436 = vpop.f32.mrb[0].mxu0
  %437 = vmatprep.mubr.bf16.mxu0 0
  %438 = vmatmul.mubr.bf16.gmra.mrb[0].mxu0 %v278
  %v439 = vpop.f32.mrb[0].mxu0
  %v440 = vadd.f32 %v88, %v439
  %v441 = vpop.f32.mrb[0].mxu0
  %v442 = vpop.f32.mrb[0].mxu0
  %v443 = vadd.f32 %v88, %v442
  %v444 = vpop.f32.mrb[0].mxu0
  %445 = vmatprep.mubr.bf16.mxu0 0
  %446 = vmatmul.mubr.bf16.gmra.mrb[0].mxu0 %v281
  %v447 = vpop.f32.mrb[0].mxu0
  %v448 = vadd.f32 %v88, %v447
  %v449 = vpop.f32.mrb[0].mxu0
  %v450 = vpop.f32.mrb[0].mxu0
  %v451 = vadd.f32 %v88, %v450
  %v452 = vpop.f32.mrb[0].mxu0
  %453 = vmatprep.mubr.bf16.mxu0 0
  %454 = vmatmul.mubr.bf16.gmra.mrb[0].mxu0 %v284
  %v455 = vpop.f32.mrb[0].mxu0
  %v456 = vadd.f32 %v88, %v455
  %v457 = vpop.f32.mrb[0].mxu0
  %v458 = vpop.f32.mrb[0].mxu0
  %v459 = vadd.f32 %v88, %v458
  %v460 = vpop.f32.mrb[0].mxu0
  %461 = vmatprep.mubr.bf16.mxu0 0
  %462 = vmatmul.mubr.bf16.gmra.mrb[0].mxu0 %v287
  %v463 = vpop.f32.mrb[0].mxu0
  %v464 = vadd.f32 %v88, %v463
  %v465 = vpop.f32.mrb[0].mxu0
  %v466 = vpop.f32.mrb[0].mxu0
  %v467 = vadd.f32 %v88, %v466
  %v468 = vpop.f32.mrb[0].mxu0
  %469 = vmatprep.mubr.bf16.mxu0 0
  %470 = vmatmul.mubr.bf16.gmra.mrb[0].mxu0 %v290
  %v471 = vpop.f32.mrb[0].mxu0
  %v472 = vadd.f32 %v88, %v471
  %v473 = vpop.f32.mrb[0].mxu0
  %v474 = vpop.f32.mrb[0].mxu0
  %v475 = vadd.f32 %v88, %v474
  %v476 = vpop.f32.mrb[0].mxu0
  %477 = vmatprep.mubr.bf16.mxu0 0
  %478 = vmatmul.mubr.bf16.gmra.mrb[0].mxu0 %v293
  %v479 = vpop.f32.mrb[0].mxu0
  %v480 = vadd.f32 %v88, %v479
  %v481 = vpop.f32.mrb[0].mxu0
  %v482 = vpop.f32.mrb[0].mxu0
  %v483 = vadd.f32 %v88, %v482
  %v484 = vpop.f32.mrb[0].mxu0
  %485 = vmatprep.mubr.bf16.mxu0 0
  %486 = vmatmul.mubr.bf16.gmra.mrb[0].mxu0 %v296
  %v487 = vpop.f32.mrb[0].mxu0
  %v488 = vadd.f32 %v88, %v487
  %v489 = vpop.f32.mrb[0].mxu0
  %v490 = vpop.f32.mrb[0].mxu0
  %v491 = vadd.f32 %v88, %v490
  %v492 = vpop.f32.mrb[0].mxu0
  %493 = vmatprep.mubr.bf16.mxu0 0
  %494 = vmatmul.mubr.bf16.gmra.mrb[0].mxu0 %v299
  %v495 = vpop.f32.mrb[0].mxu0
  %v496 = vadd.f32 %v88, %v495
  %v497 = vpop.f32.mrb[0].mxu0
  %v498 = vpop.f32.mrb[0].mxu0
  %v499 = vadd.f32 %v88, %v498
  %v500 = vpop.f32.mrb[0].mxu0
  %501 = vmatprep.mubr.bf16.mxu0 0
  %502 = vmatmul.mubr.bf16.gmra.mrb[0].mxu0 %v302
  %v503 = vpop.f32.mrb[0].mxu0
  %v504 = vadd.f32 %v88, %v503
  %v505 = vpop.f32.mrb[0].mxu0
  %v506 = vpop.f32.mrb[0].mxu0
  %v507 = vadd.f32 %v88, %v506
  %v508 = vpop.f32.mrb[0].mxu0
  %509 = vmatprep.mubr.bf16.mxu0 0
  %510 = vmatmul.mubr.bf16.gmra.mrb[0].mxu0 %v305
  %v511 = vpop.f32.mrb[0].mxu0
  %v512 = vadd.f32 %v88, %v511
  %v513 = vpop.f32.mrb[0].mxu0
  %v514 = vpop.f32.mrb[0].mxu0
  %v515 = vadd.f32 %v88, %v514
  %v516 = vpop.f32.mrb[0].mxu0
  %517 = vmatprep.mubr.bf16.mxu0 0
  %518 = vmatmul.mubr.bf16.gmra.mrb[0].mxu0 %v308
  %v519 = vpop.f32.mrb[0].mxu0
  %v520 = vadd.f32 %v88, %v519
  %v521 = vpop.f32.mrb[0].mxu0
  %v522 = vpop.f32.mrb[0].mxu0
  %v523 = vadd.f32 %v88, %v522
  %v524 = vpop.f32.mrb[0].mxu0
  %525 = vmatprep.mubr.bf16.mxu0 0
  %526 = vmatmul.mubr.bf16.gmra.mrb[0].mxu0 %v311
  %v527 = vpop.f32.mrb[0].mxu0
  %v528 = vadd.f32 %v88, %v527
  %v529 = vpop.f32.mrb[0].mxu0
  %v530 = vpop.f32.mrb[0].mxu0
  %v531 = vadd.f32 %v88, %v530
  %v532 = vpop.f32.mrb[0].mxu0
  %533 = vmatprep.mubr.bf16.mxu0 0
  %534 = vmatmul.mubr.bf16.gmra.mrb[0].mxu0 %v314
  %v535 = vpop.f32.mrb[0].mxu0
  %v536 = vadd.f32 %v88, %v535
  %v537 = vpop.f32.mrb[0].mxu0
  %v538 = vpop.f32.mrb[0].mxu0
  %v539 = vadd.f32 %v88, %v538
  %v540 = vpop.f32.mrb[0].mxu0
  %541 = vmatprep.mubr.bf16.mxu0 0
  %542 = vmatmul.mubr.bf16.gmra.mrb[0].mxu0 %v317
  %v543 = vpop.f32.mrb[0].mxu0
  %v544 = vadd.f32 %v88, %v543
  %v545 = vpop.f32.mrb[0].mxu0
  %v546 = vpop.f32.mrb[0].mxu0
  %v547 = vadd.f32 %v88, %v546
  %v548 = vpop.f32.mrb[0].mxu0
  %549 = vmatprep.mubr.bf16.mxu0 0
  %550 = vmatmul.mubr.bf16.gmra.mrb[0].mxu0 %v320
  %v551 = vpop.f32.mrb[0].mxu0
  %v552 = vadd.f32 %v88, %v551
  %v553 = vpop.f32.mrb[0].mxu0
  %v554 = vpop.f32.mrb[0].mxu0
  %v555 = vadd.f32 %v88, %v554
  %v556 = vpop.f32.mrb[0].mxu0
  %557 = vmatprep.mubr.bf16.mxu0 0
  %558 = vmatmul.mubr.bf16.gmra.mrb[0].mxu0 %v323
  %v559 = vpop.f32.mrb[0].mxu0
  %v560 = vadd.f32 %v88, %v559
  %v561 = vpop.f32.mrb[0].mxu0
  %v562 = vpop.f32.mrb[0].mxu0
  %v563 = vadd.f32 %v88, %v562
  %v564 = vpop.f32.mrb[0].mxu0
  %565 = vmatprep.mubr.bf16.mxu0 0
  %566 = vmatmul.mubr.bf16.gmra.mrb[0].mxu0 %v326
  %v567 = vpop.f32.mrb[0].mxu0
  %v568 = vadd.f32 %v88, %v567
  %v569 = vpop.f32.mrb[0].mxu0
  %v570 = vpop.f32.mrb[0].mxu0
  %v571 = vadd.f32 %v88, %v570
  %v572 = vpop.f32.mrb[0].mxu0
  %573 = vmatprep.mubr.bf16.mxu0 0
  %574 = vmatmul.mubr.bf16.gmra.mrb[0].mxu0 %v329
  %v575 = vpop.f32.mrb[0].mxu0
  %v576 = vadd.f32 %v88, %v575
  %v577 = vpop.f32.mrb[0].mxu0
  %v578 = vpop.f32.mrb[0].mxu0
  %v579 = vadd.f32 %v88, %v578
  %v580 = vpop.f32.mrb[0].mxu0
  %581 = vmatprep.mubr.bf16.mxu0 0
  %582 = vmatmul.mubr.bf16.gmra.mrb[0].mxu0 %v332
  %v583 = vpop.f32.mrb[0].mxu0
  %v584 = vadd.f32 %v88, %v583
  %v585 = vpop.f32.mrb[0].mxu0
  %v586 = vpop.f32.mrb[0].mxu0
  %v587 = vadd.f32 %v88, %v586
  %v588 = vpop.f32.mrb[0].mxu0
  %589 = vmatprep.mubr.bf16.mxu0 0
  %590 = vmatmul.mubr.bf16.gmra.mrb[0].mxu0 %v335
  %v591 = vpop.f32.mrb[0].mxu0
  %v592 = vadd.f32 %v88, %v591
  %v593 = vpop.f32.mrb[0].mxu0
  %v594 = vpop.f32.mrb[0].mxu0
  %v595 = vadd.f32 %v88, %v594
  %v596 = vpop.f32.mrb[0].mxu0
  %597 = vmatprep.mubr.bf16.mxu0 0
  %598 = vmatmul.mubr.bf16.gmra.mrb[0].mxu0 %v338
  %v599 = vpop.f32.mrb[0].mxu0
  %v600 = vadd.f32 %v88, %v599
  %v601 = vpop.f32.mrb[0].mxu0
  %v602 = vpop.f32.mrb[0].mxu0
  %v603 = vadd.f32 %v88, %v602
  %v604 = vpop.f32.mrb[0].mxu0
  %605 = vmatprep.mubr.bf16.mxu0 0
  %606 = vmatmul.mubr.bf16.gmra.mrb[0].mxu0 %v341
  %v607 = vpop.f32.mrb[0].mxu0
  %v608 = vadd.f32 %v88, %v607
  %v609 = vpop.f32.mrb[0].mxu0
  %v610 = vpop.f32.mrb[0].mxu0
  %v611 = vadd.f32 %v88, %v610
  %v612 = vpop.f32.mrb[0].mxu0
  %613 = vmatprep.mubr.bf16.mxu0 0
  %614 = vmatmul.mubr.bf16.gmra.mrb[0].mxu0 %v344
  %v615 = vpop.f32.mrb[0].mxu0
  %v616 = vadd.f32 %v88, %v615
  %v617 = vpop.f32.mrb[0].mxu0
  %v618 = vpop.f32.mrb[0].mxu0
  %v619 = vadd.f32 %v88, %v618
  %v620 = vpop.f32.mrb[0].mxu0
  %621 = vmatprep.mubr.bf16.mxu0 0
  %622 = vmatmul.mubr.bf16.gmra.mrb[0].mxu0 %v347
  %v623 = vpop.f32.mrb[0].mxu0
  %v624 = vadd.f32 %v88, %v623
  %v625 = vpop.f32.mrb[0].mxu0
  %v626 = vpop.f32.mrb[0].mxu0
  %v627 = vadd.f32 %v88, %v626
  %v628 = vpop.f32.mrb[0].mxu0
  %629 = vmatprep.mubr.bf16.mxu0 0
  %630 = vmatmul.mubr.bf16.gmra.mrb[0].mxu0 %v350
  %v631 = vpop.f32.mrb[0].mxu0
  %v632 = vadd.f32 %v88, %v631
  %v633 = vpop.f32.mrb[0].mxu0
  %v634 = vpop.f32.mrb[0].mxu0
  %v635 = vadd.f32 %v88, %v634
  %v636 = vpop.f32.mrb[0].mxu0
  %637 = vmatprep.mubr.bf16.mxu0 0
  %638 = vmatmul.mubr.bf16.gmra.mrb[0].mxu0 %v353
  %v639 = vpop.f32.mrb[0].mxu0
  %v640 = vadd.f32 %v88, %v639
  %v641 = vpop.f32.mrb[0].mxu0
  %v642 = vpop.f32.mrb[0].mxu0
  %v643 = vadd.f32 %v88, %v642
  %v644 = vpop.f32.mrb[0].mxu0
  %645 = vmatprep.mubr.bf16.mxu0 0
  %646 = vmatmul.mubr.bf16.gmra.mrb[0].mxu0 %v356
  %v647 = vpop.f32.mrb[0].mxu0
  %v648 = vadd.f32 %v88, %v647
  %v649 = vpop.f32.mrb[0].mxu0
  %v650 = vpop.f32.mrb[0].mxu0
  %v651 = vadd.f32 %v88, %v650
  %v652 = vpop.f32.mrb[0].mxu0
  %653 = vdwg.mxu0
  %v654 = vmax.f32 %v400, 0.0
  %v655 = vmax.f32 %v403, 0.0
  %v656 = vmax.f32 %v408, 0.0
  %v657 = vmax.f32 %v411, 0.0
  %v658 = vmax.f32 %v416, 0.0
  %v659 = vmax.f32 %v419, 0.0
  %v660 = vmax.f32 %v424, 0.0
  %v661 = vmax.f32 %v427, 0.0
  %v662 = vmax.f32 %v432, 0.0
  %v663 = vmax.f32 %v435, 0.0
  %v664 = vmax.f32 %v440, 0.0
  %v665 = vmax.f32 %v443, 0.0
  %v666 = vmax.f32 %v448, 0.0
  %v667 = vmax.f32 %v451, 0.0
  %v668 = vmax.f32 %v456, 0.0
  %v669 = vmax.f32 %v459, 0.0
  %v670 = vmax.f32 %v464, 0.0
  %v671 = vmax.f32 %v467, 0.0
  %v672 = vmax.f32 %v472, 0.0
  %v673 = vmax.f32 %v475, 0.0
  %v674 = vmax.f32 %v480, 0.0
  %v675 = vmax.f32 %v483, 0.0
  %v676 = vmax.f32 %v488, 0.0
  %v677 = vmax.f32 %v491, 0.0
  %v678 = vmax.f32 %v496, 0.0
  %v679 = vmax.f32 %v499, 0.0
  %v680 = vmax.f32 %v504, 0.0
  %v681 = vmax.f32 %v507, 0.0
  %v682 = vmax.f32 %v512, 0.0
  %v683 = vmax.f32 %v515, 0.0
  %v684 = vmax.f32 %v520, 0.0
  %v685 = vmax.f32 %v523, 0.0
  %v686 = vmax.f32 %v528, 0.0
  %v687 = vmax.f32 %v531, 0.0
  %v688 = vmax.f32 %v536, 0.0
  %v689 = vmax.f32 %v539, 0.0
  %v690 = vmax.f32 %v544, 0.0
  %v691 = vmax.f32 %v547, 0.0
  %v692 = vmax.f32 %v552, 0.0
  %v693 = vmax.f32 %v555, 0.0
  %v694 = vmax.f32 %v560, 0.0
  %v695 = vmax.f32 %v563, 0.0
  %v696 = vmax.f32 %v568, 0.0
  %v697 = vmax.f32 %v571, 0.0
  %v698 = vmax.f32 %v576, 0.0
  %v699 = vmax.f32 %v579, 0.0
  %v700 = vmax.f32 %v584, 0.0
  %v701 = vmax.f32 %v587, 0.0
  %v702 = vmax.f32 %v592, 0.0
  %v703 = vmax.f32 %v595, 0.0
  %v704 = vmax.f32 %v600, 0.0
  %v705 = vmax.f32 %v603, 0.0
  %v706 = vmax.f32 %v608, 0.0
  %v707 = vmax.f32 %v611, 0.0
  %v708 = vmax.f32 %v616, 0.0
  %v709 = vmax.f32 %v619, 0.0
  %v710 = vmax.f32 %v624, 0.0
  %v711 = vmax.f32 %v627, 0.0
  %v712 = vmax.f32 %v632, 0.0
  %v713 = vmax.f32 %v635, 0.0
  %v714 = vmax.f32 %v640, 0.0
  %v715 = vmax.f32 %v643, 0.0
  %v716 = vmax.f32 %v648, 0.0
  %v717 = vmax.f32 %v651, 0.0
  %v718 = vmin.f32 %v654, 6.0
  %v719 = vmin.f32 %v655, 6.0
  %v720 = vmin.f32 %v656, 6.0
  %v721 = vmin.f32 %v657, 6.0
  %v722 = vmin.f32 %v658, 6.0
  %v723 = vmin.f32 %v659, 6.0
  %v724 = vmin.f32 %v660, 6.0
  %v725 = vmin.f32 %v661, 6.0
  %v726 = vmin.f32 %v662, 6.0
  %v727 = vmin.f32 %v663, 6.0
  %v728 = vmin.f32 %v664, 6.0
  %v729 = vmin.f32 %v665, 6.0
  %v730 = vmin.f32 %v666, 6.0
  %v731 = vmin.f32 %v667, 6.0
  %v732 = vmin.f32 %v668, 6.0
  %v733 = vmin.f32 %v669, 6.0
  %v734 = vmin.f32 %v670, 6.0
  %v735 = vmin.f32 %v671, 6.0
  %v736 = vmin.f32 %v672, 6.0
  %v737 = vmin.f32 %v673, 6.0
  %v738 = vmin.f32 %v674, 6.0
  %v739 = vmin.f32 %v675, 6.0
  %v740 = vmin.f32 %v676, 6.0
  %v741 = vmin.f32 %v677, 6.0
  %v742 = vmin.f32 %v678, 6.0
  %v743 = vmin.f32 %v679, 6.0
  %v744 = vmin.f32 %v680, 6.0
  %v745 = vmin.f32 %v681, 6.0
  %v746 = vmin.f32 %v682, 6.0
  %v747 = vmin.f32 %v683, 6.0
  %v748 = vmin.f32 %v684, 6.0
  %v749 = vmin.f32 %v685, 6.0
  %v750 = vmin.f32 %v686, 6.0
  %v751 = vmin.f32 %v687, 6.0
  %v752 = vmin.f32 %v688, 6.0
  %v753 = vmin.f32 %v689, 6.0
  %v754 = vmin.f32 %v690, 6.0
  %v755 = vmin.f32 %v691, 6.0
  %v756 = vmin.f32 %v692, 6.0
  %v757 = vmin.f32 %v693, 6.0
  %v758 = vmin.f32 %v694, 6.0
  %v759 = vmin.f32 %v695, 6.0
  %v760 = vmin.f32 %v696, 6.0
  %v761 = vmin.f32 %v697, 6.0
  %v762 = vmin.f32 %v698, 6.0
  %v763 = vmin.f32 %v699, 6.0
  %v764 = vmin.f32 %v700, 6.0
  %v765 = vmin.f32 %v701, 6.0
  %v766 = vmin.f32 %v702, 6.0
  %v767 = vmin.f32 %v703, 6.0
  %v768 = vmin.f32 %v704, 6.0
  %v769 = vmin.f32 %v705, 6.0
  %v770 = vmin.f32 %v706, 6.0
  %v771 = vmin.f32 %v707, 6.0
  %v772 = vmin.f32 %v708, 6.0
  %v773 = vmin.f32 %v709, 6.0
  %v774 = vmin.f32 %v710, 6.0
  %v775 = vmin.f32 %v711, 6.0
  %v776 = vmin.f32 %v712, 6.0
  %v777 = vmin.f32 %v713, 6.0
  %v778 = vmin.f32 %v714, 6.0
  %v779 = vmin.f32 %v715, 6.0
  %v780 = vmin.f32 %v716, 6.0
  %v781 = vmin.f32 %v717, 6.0
  %v782 = vpack.c.bf16 %v719, %v718
  %v783 = vpack.c.bf16 %v721, %v720
  %v784 = vpack.c.bf16 %v723, %v722
  %v785 = vpack.c.bf16 %v725, %v724
  %v786 = vpack.c.bf16 %v727, %v726
  %v787 = vpack.c.bf16 %v729, %v728
  %v788 = vpack.c.bf16 %v731, %v730
  %v789 = vpack.c.bf16 %v733, %v732
  %v790 = vpack.c.bf16 %v735, %v734
  %v791 = vpack.c.bf16 %v737, %v736
  %v792 = vpack.c.bf16 %v739, %v738
  %v793 = vpack.c.bf16 %v741, %v740
  %v794 = vpack.c.bf16 %v743, %v742
  %v795 = vpack.c.bf16 %v745, %v744
  %v796 = vpack.c.bf16 %v747, %v746
  %v797 = vpack.c.bf16 %v749, %v748
  %v798 = vpack.c.bf16 %v751, %v750
  %v799 = vpack.c.bf16 %v753, %v752
  %v800 = vpack.c.bf16 %v755, %v754
  %v801 = vpack.c.bf16 %v757, %v756
  %v802 = vpack.c.bf16 %v759, %v758
  %v803 = vpack.c.bf16 %v761, %v760
  %v804 = vpack.c.bf16 %v763, %v762
  %v805 = vpack.c.bf16 %v765, %v764
  %v806 = vpack.c.bf16 %v767, %v766
  %v807 = vpack.c.bf16 %v769, %v768
  %v808 = vpack.c.bf16 %v771, %v770
  %v809 = vpack.c.bf16 %v773, %v772
  %v810 = vpack.c.bf16 %v775, %v774
  %v811 = vpack.c.bf16 %v777, %v776
  %v812 = vpack.c.bf16 %v779, %v778
  %v813 = vpack.c.bf16 %v781, %v780
  %v846 = vunpack.c.l.b16 %v782
  %v847 = vunpack.c.h.b16 %v782
  %v848 = vunpack.c.l.b16 %v783
  %v849 = vunpack.c.h.b16 %v783
  %v850 = vunpack.c.l.b16 %v784
  %v851 = vunpack.c.h.b16 %v784
  %v852 = vunpack.c.l.b16 %v785
  %v853 = vunpack.c.h.b16 %v785
  %v854 = vunpack.c.l.b16 %v786
  %v855 = vunpack.c.h.b16 %v786
  %v856 = vunpack.c.l.b16 %v787
  %v857 = vunpack.c.h.b16 %v787
  %v858 = vunpack.c.l.b16 %v788
  %v859 = vunpack.c.h.b16 %v788
  %v860 = vunpack.c.l.b16 %v789
  %v861 = vunpack.c.h.b16 %v789
  %v862 = vunpack.c.l.b16 %v790
  %v863 = vunpack.c.h.b16 %v790
  %v864 = vunpack.c.l.b16 %v791
  %v865 = vunpack.c.h.b16 %v791
  %v866 = vunpack.c.l.b16 %v792
  %v867 = vunpack.c.h.b16 %v792
  %v868 = vunpack.c.l.b16 %v793
  %v869 = vunpack.c.h.b16 %v793
  %v870 = vunpack.c.l.b16 %v794
  %v871 = vunpack.c.h.b16 %v794
  %v872 = vunpack.c.l.b16 %v795
  %v873 = vunpack.c.h.b16 %v795
  %v874 = vunpack.c.l.b16 %v796
  %v875 = vunpack.c.h.b16 %v796
  %v876 = vunpack.c.l.b16 %v797
  %v877 = vunpack.c.h.b16 %v797
  %v878 = vunpack.c.l.b16 %v798
  %v879 = vunpack.c.h.b16 %v798
  %v880 = vunpack.c.l.b16 %v799
  %v881 = vunpack.c.h.b16 %v799
  %v882 = vunpack.c.l.b16 %v800
  %v883 = vunpack.c.h.b16 %v800
  %v884 = vunpack.c.l.b16 %v801
  %v885 = vunpack.c.h.b16 %v801
  %v886 = vunpack.c.l.b16 %v802
  %v887 = vunpack.c.h.b16 %v802
  %v888 = vunpack.c.l.b16 %v803
  %v889 = vunpack.c.h.b16 %v803
  %v890 = vunpack.c.l.b16 %v804
  %v891 = vunpack.c.h.b16 %v804
  %v892 = vunpack.c.l.b16 %v805
  %v893 = vunpack.c.h.b16 %v805
  %v894 = vunpack.c.l.b16 %v806
  %v895 = vunpack.c.h.b16 %v806
  %v896 = vunpack.c.l.b16 %v807
  %v897 = vunpack.c.h.b16 %v807
  %v898 = vunpack.c.l.b16 %v808
  %v899 = vunpack.c.h.b16 %v808
  %v900 = vunpack.c.l.b16 %v809
  %v901 = vunpack.c.h.b16 %v809
  %v902 = vunpack.c.l.b16 %v810
  %v903 = vunpack.c.h.b16 %v810
  %v904 = vunpack.c.l.b16 %v811
  %v905 = vunpack.c.h.b16 %v811
  %v906 = vunpack.c.l.b16 %v812
  %v907 = vunpack.c.h.b16 %v812
  %v908 = vunpack.c.l.b16 %v813
  %v909 = vunpack.c.h.b16 %v813
  %v910 = vpack.c.b16 %v846, %v846
  %v911 = vpack.c.b16 %v847, %v847
  %v912 = vpack.c.b16 %v848, %v848
  %v913 = vpack.c.b16 %v849, %v849
  %v914 = vpack.c.b16 %v850, %v850
  %v915 = vpack.c.b16 %v851, %v851
  %v916 = vpack.c.b16 %v852, %v852
  %v917 = vpack.c.b16 %v853, %v853
  %v918 = vpack.c.b16 %v854, %v854
  %v919 = vpack.c.b16 %v855, %v855
  %v920 = vpack.c.b16 %v856, %v856
  %v921 = vpack.c.b16 %v857, %v857
  %v922 = vpack.c.b16 %v858, %v858
  %v923 = vpack.c.b16 %v859, %v859
  %v924 = vpack.c.b16 %v860, %v860
  %v925 = vpack.c.b16 %v861, %v861
  %v926 = vpack.c.b16 %v862, %v862
  %v927 = vpack.c.b16 %v863, %v863
  %v928 = vpack.c.b16 %v864, %v864
  %v929 = vpack.c.b16 %v865, %v865
  %v930 = vpack.c.b16 %v866, %v866
  %v931 = vpack.c.b16 %v867, %v867
  %v932 = vpack.c.b16 %v868, %v868
  %v933 = vpack.c.b16 %v869, %v869
  %v934 = vpack.c.b16 %v870, %v870
  %v935 = vpack.c.b16 %v871, %v871
  %v936 = vpack.c.b16 %v872, %v872
  %v937 = vpack.c.b16 %v873, %v873
  %v938 = vpack.c.b16 %v874, %v874
  %v939 = vpack.c.b16 %v875, %v875
  %v940 = vpack.c.b16 %v876, %v876
  %v941 = vpack.c.b16 %v877, %v877
  %v942 = vpack.c.b16 %v878, %v878
  %v943 = vpack.c.b16 %v879, %v879
  %v944 = vpack.c.b16 %v880, %v880
  %v945 = vpack.c.b16 %v881, %v881
  %v946 = vpack.c.b16 %v882, %v882
  %v947 = vpack.c.b16 %v883, %v883
  %v948 = vpack.c.b16 %v884, %v884
  %v949 = vpack.c.b16 %v885, %v885
  %v950 = vpack.c.b16 %v886, %v886
  %v951 = vpack.c.b16 %v887, %v887
  %v952 = vpack.c.b16 %v888, %v888
  %v953 = vpack.c.b16 %v889, %v889
  %v954 = vpack.c.b16 %v890, %v890
  %v955 = vpack.c.b16 %v891, %v891
  %v956 = vpack.c.b16 %v892, %v892
  %v957 = vpack.c.b16 %v893, %v893
  %v958 = vpack.c.b16 %v894, %v894
  %v959 = vpack.c.b16 %v895, %v895
  %v960 = vpack.c.b16 %v896, %v896
  %v961 = vpack.c.b16 %v897, %v897
  %v962 = vpack.c.b16 %v898, %v898
  %v963 = vpack.c.b16 %v899, %v899
  %v964 = vpack.c.b16 %v900, %v900
  %v965 = vpack.c.b16 %v901, %v901
  %v966 = vpack.c.b16 %v902, %v902
  %v967 = vpack.c.b16 %v903, %v903
  %v968 = vpack.c.b16 %v904, %v904
  %v969 = vpack.c.b16 %v905, %v905
  %v970 = vpack.c.b16 %v906, %v906
  %v971 = vpack.c.b16 %v907, %v907
  %v972 = vpack.c.b16 %v908, %v908
  %v973 = vpack.c.b16 %v909, %v909
  %1038 = vst [vmem:[%s3] sm:$0xf] %v910
  %1039 = vst [vmem:[%s3 + $0x4] sm:$0xf] %v911
  %1040 = vst [vmem:[%s3 + $0x8] sm:$0xf] %v912
  %1041 = vst [vmem:[%s3 + $0xc] sm:$0xf] %v913
  %1042 = vst [vmem:[%s3 + $0x10] sm:$0xf] %v914
  %1043 = vst [vmem:[%s3 + $0x14] sm:$0xf] %v915
  %1044 = vst [vmem:[%s3 + $0x18] sm:$0xf] %v916
  %1045 = vst [vmem:[%s3 + $0x1c] sm:$0xf] %v917
  %1046 = vst [vmem:[%s3 + $0x20] sm:$0xf] %v918
  %1047 = vst [vmem:[%s3 + $0x24] sm:$0xf] %v919
  %1048 = vst [vmem:[%s3 + $0x28] sm:$0xf] %v920
  %1049 = vst [vmem:[%s3 + $0x2c] sm:$0xf] %v921
  %1050 = vst [vmem:[%s3 + $0x30] sm:$0xf] %v922
  %1051 = vst [vmem:[%s3 + $0x34] sm:$0xf] %v923
  %1052 = vst [vmem:[%s3 + $0x38] sm:$0xf] %v924
  %1053 = vst [vmem:[%s3 + $0x3c] sm:$0xf] %v925
  %1054 = vst [vmem:[%s3 + $0x40] sm:$0xf] %v926
  %1055 = vst [vmem:[%s3 + $0x44] sm:$0xf] %v927
  %1056 = vst [vmem:[%s3 + $0x48] sm:$0xf] %v928
  %1057 = vst [vmem:[%s3 + $0x4c] sm:$0xf] %v929
  %1058 = vst [vmem:[%s3 + $0x50] sm:$0xf] %v930
  %1059 = vst [vmem:[%s3 + $0x54] sm:$0xf] %v931
  %1060 = vst [vmem:[%s3 + $0x58] sm:$0xf] %v932
  %1061 = vst [vmem:[%s3 + $0x5c] sm:$0xf] %v933
  %1062 = vst [vmem:[%s3 + $0x60] sm:$0xf] %v934
  %1063 = vst [vmem:[%s3 + $0x64] sm:$0xf] %v935
  %1064 = vst [vmem:[%s3 + $0x68] sm:$0xf] %v936
  %1065 = vst [vmem:[%s3 + $0x6c] sm:$0xf] %v937
  %1066 = vst [vmem:[%s3 + $0x70] sm:$0xf] %v938
  %1067 = vst [vmem:[%s3 + $0x74] sm:$0xf] %v939
  %1068 = vst [vmem:[%s3 + $0x78] sm:$0xf] %v940
  %1069 = vst [vmem:[%s3 + $0x7c] sm:$0xf] %v941
  %1070 = vst [vmem:[%s3 + $0x80] sm:$0xf] %v942
  %1071 = vst [vmem:[%s3 + $0x84] sm:$0xf] %v943
  %1072 = vst [vmem:[%s3 + $0x88] sm:$0xf] %v944
  %1073 = vst [vmem:[%s3 + $0x8c] sm:$0xf] %v945
  %1074 = vst [vmem:[%s3 + $0x90] sm:$0xf] %v946
  %1075 = vst [vmem:[%s3 + $0x94] sm:$0xf] %v947
  %1076 = vst [vmem:[%s3 + $0x98] sm:$0xf] %v948
  %1077 = vst [vmem:[%s3 + $0x9c] sm:$0xf] %v949
  %1078 = vst [vmem:[%s3 + $0xa0] sm:$0xf] %v950
  %1079 = vst [vmem:[%s3 + $0xa4] sm:$0xf] %v951
  %1080 = vst [vmem:[%s3 + $0xa8] sm:$0xf] %v952
  %1081 = vst [vmem:[%s3 + $0xac] sm:$0xf] %v953
  %1082 = vst [vmem:[%s3 + $0xb0] sm:$0xf] %v954
  %1083 = vst [vmem:[%s3 + $0xb4] sm:$0xf] %v955
  %1084 = vst [vmem:[%s3 + $0xb8] sm:$0xf] %v956
  %1085 = vst [vmem:[%s3 + $0xbc] sm:$0xf] %v957
  %1086 = vst [vmem:[%s3 + $0xc0] sm:$0xf] %v958
  %1087 = vst [vmem:[%s3 + $0xc4] sm:$0xf] %v959
  %1088 = vst [vmem:[%s3 + $0xc8] sm:$0xf] %v960
  %1089 = vst [vmem:[%s3 + $0xcc] sm:$0xf] %v961
  %1090 = vst [vmem:[%s3 + $0xd0] sm:$0xf] %v962
  %1091 = vst [vmem:[%s3 + $0xd4] sm:$0xf] %v963
  %1092 = vst [vmem:[%s3 + $0xd8] sm:$0xf] %v964
  %1093 = vst [vmem:[%s3 + $0xdc] sm:$0xf] %v965
  %1094 = vst [vmem:[%s3 + $0xe0] sm:$0xf] %v966
  %1095 = vst [vmem:[%s3 + $0xe4] sm:$0xf] %v967
  %1096 = vst [vmem:[%s3 + $0xe8] sm:$0xf] %v968
  %1097 = vst [vmem:[%s3 + $0xec] sm:$0xf] %v969
  %1098 = vst [vmem:[%s3 + $0xf0] sm:$0xf] %v970
  %1099 = vst [vmem:[%s3 + $0xf4] sm:$0xf] %v971
  %1100 = vst [vmem:[%s3 + $0xf8] sm:$0xf] %v972
  %1101 = vst [vmem:[%s3 + $0xfc] sm:$0xf] %v973
  // Predicated region
  $region14: #{mobilenet_forward.15} parent=0 // pred_check
    _
  $region15: #{mobilenet_forward.15} parent=0 // pred_check_branch
    %1103 = sbr.rel (0) target = $region17
  $region16: #{mobilenet_forward.15} parent=0 // pred_region
    _
  $region17: #{mobilenet_forward.15} parent=0 // pred_fallthru
    _
  // Predicated region
  $region18: #{mobilenet_forward.15} parent=0 // pred_check
    _
  $region19: #{mobilenet_forward.15} parent=0 // pred_check_branch
    %1105 = sbr.rel (0) target = $region21
  $region20: #{mobilenet_forward.15} parent=0 // pred_region
    _
  $region21: #{mobilenet_forward.15} parent=0 // pred_fallthru
    _

// kernel: mobilenet_forward.16
$region0: #{mobilenet_forward.16}
  #allocation0 [shape = 'u32[]', space=smem, size = 0x4, offset = 0x4, fixed_abs, tag = 'smem constant byte address 0x4 - core index']
  #allocation1 [shape = 'u32[144,128]{1,0:T(1,128)}', space=vmem, size = 0x12000, scoped, tag = 'internal scratch']
  %s0 = inlined_call_operand.vmem [shape: bf16[512,128], index: 0, kind: input, shape index: {}]
  %s1 = inlined_call_operand.vmem [shape: bf16[512,128], index: 1, kind: input, shape index: {}]
  %s2 = inlined_call_operand.vmem [shape: bf16[512,128], index: 2, kind: input, shape index: {}]
  %s3 = inlined_call_operand.vmem [shape: bf16[512,128], index: 3, kind: input, shape index: {}]
  %s4 = inlined_call_operand.vmem [shape: bf16[512,128], index: 4, kind: input, shape index: {}]
  %s5 = inlined_call_operand.vmem [shape: bf16[512,128], index: 5, kind: input, shape index: {}]
  %s6 = inlined_call_operand.vmem [shape: bf16[512,128], index: 6, kind: input, shape index: {}]
  %s7 = inlined_call_operand.vmem [shape: bf16[512,128], index: 7, kind: input, shape index: {}]
  %s8 = inlined_call_operand.vmem [shape: bf16[512,128], index: 8, kind: input, shape index: {}]
  %s9 = inlined_call_operand.vmem [shape: f32[9,1,128], index: 9, kind: input, shape index: {}]
  %s10 = inlined_call_operand.vmem [shape: f32[1,128], index: 10, kind: input, shape index: {}]
  %s11 = inlined_call_operand.vmem [shape: bf16[128,128], index: 11, kind: input, shape index: {}]
  %s12 = inlined_call_operand.vmem [shape: f32[1,128], index: 12, kind: input, shape index: {}]
  %s13 = inlined_call_operand.vmem [shape: bf16[512,128], index: 13, kind: output, shape index: {}]
  %s14 = sld [smem:[#allocation0]]
  $region85: #{mobilenet_forward.16} parent=0
    _
  %s16 = ssub.s32 1, %s14
  %s17 = scalar_select 0, %s16, %s14
  loop: start=0, step=1, limit=4
  $region2: #{mobilenet_forward.16} parent=0 // loop_pre_header
    _
  $region3: #{mobilenet_forward.16} parent=0 // loop_header
    %s19 = sphi 0, %s23
    %p20 = scmp.ge.s32.totalorder %s19, 4
    %s29 = sphi 0, %s31
    %s32 = sphi 0, %s29
    %s33 = sphi 0, %s32
    %s49 = sphi 0, %s33
    %s55 = sphi 0, %s57
    %s58 = sphi 0, %s55
    %s59 = sphi 0, %s58
    %s75 = sphi 0, %s59
    %s81 = sphi 0, %s83
    %s84 = sphi 0, %s81
    %s85 = sphi 0, %s84
    %s101 = sphi 0, %s85
    %s107 = sphi 0, %s109
    %s110 = sphi 0, %s107
    %s111 = sphi 0, %s110
    %s127 = sphi 0, %s111
    %s133 = sphi 0, %s135
    %s136 = sphi 0, %s133
    %s137 = sphi 0, %s136
    %s153 = sphi 0, %s137
    %s159 = sphi 0, %s161
    %s162 = sphi 0, %s159
    %s163 = sphi 0, %s162
    %s179 = sphi 0, %s163
    %s185 = sphi 0, %s187
    %s188 = sphi 0, %s185
    %s189 = sphi 0, %s188
    %s205 = sphi 0, %s189
    %s211 = sphi 0, %s213
    %s214 = sphi 0, %s211
    %s215 = sphi 0, %s214
    %s231 = sphi 0, %s215
    %s237 = sphi 0, %s239
    %s240 = sphi 0, %s237
    %s241 = sphi 0, %s240
    %s257 = sphi 0, %s241
    %s261 = sphi 0, %s261
    %s263 = sphi 0, %s261
    %s264 = sphi 0, %s263
    %s278 = sphi 0, %s264
    %s282 = sphi 0, %s282
    %s284 = sphi 0, %s282
    %s285 = sphi 0, %s284
    %s299 = sphi 0, %s285
    %s303 = sphi 0, %s303
    %s305 = sphi 0, %s303
    %s306 = sphi 0, %s305
    %s320 = sphi 0, %s306
    %s324 = sphi 0, %s324
    %s326 = sphi 0, %s324
    %s327 = sphi 0, %s326
    %s341 = sphi 0, %s327
    %s347 = sphi 0, %s349
    %s350 = sphi 0, %s347
    %s351 = sphi 0, %s350
    %s367 = sphi 0, %s351
  $region4: #{mobilenet_forward.16} parent=0 // loop_header_branch
    %22 = sbr.rel (%p20) target = $region8
  $region5: #{mobilenet_forward.16} parent=0 // loop_body
    %s24 = ssub.s32 %s19, 1
    %s25 = ssub.s32 %s19, 2
    %s26 = sadd.s32 %s19, 1
    %s27 = ssub.s32 %s19, %s26
    %p28 = scmp.eq.s32.totalorder %s27, 0
    %s30 = sadd.s32 %s29, 1
    %s31 = scalar_select %p28, %s29, %s30
    %p34 = pneg %p28
    %p35 = scmp.eq.s32.totalorder %s19, 1
    %p36 = por %p34, %p35
    %p37 = scmp.ne.s32.totalorder %s29, %s32
    %p38 = scmp.eq.s32.totalorder %s19, 0
    %p39 = por %p37, %p38
    %p40 = scmp.ne.s32.totalorder %s29, %s32
    %p41 = scmp.eq.s32.totalorder %s24, 1
    %p42 = por %p40, %p41
    %p43 = scmp.ne.s32.totalorder %s32, %s33
    %p44 = scmp.eq.s32.totalorder %s24, 0
    %p45 = por %p43, %p44
    %p46 = scmp.ne.s32.totalorder %s32, %s33
    %p47 = scmp.eq.s32.totalorder %s25, 1
    %p48 = por %p46, %p47
    %p50 = scmp.ne.s32.totalorder %s33, %s49
    %p51 = scmp.eq.s32.totalorder %s25, 0
    %p52 = por %p50, %p51
    %s53 = ssub.s32 %s19, %s26
    %p54 = scmp.eq.s32.totalorder %s53, 0
    %s56 = sadd.s32 %s55, 1
    %s57 = scalar_select %p54, %s55, %s56
    %p60 = pneg %p54
    %p61 = scmp.eq.s32.totalorder %s19, 1
    %p62 = por %p60, %p61
    %p63 = scmp.ne.s32.totalorder %s55, %s58
    %p64 = scmp.eq.s32.totalorder %s19, 0
    %p65 = por %p63, %p64
    %p66 = scmp.ne.s32.totalorder %s55, %s58
    %p67 = scmp.eq.s32.totalorder %s24, 1
    %p68 = por %p66, %p67
    %p69 = scmp.ne.s32.totalorder %s58, %s59
    %p70 = scmp.eq.s32.totalorder %s24, 0
    %p71 = por %p69, %p70
    %p72 = scmp.ne.s32.totalorder %s58, %s59
    %p73 = scmp.eq.s32.totalorder %s25, 1
    %p74 = por %p72, %p73
    %p76 = scmp.ne.s32.totalorder %s59, %s75
    %p77 = scmp.eq.s32.totalorder %s25, 0
    %p78 = por %p76, %p77
    %s79 = ssub.s32 %s19, %s26
    %p80 = scmp.eq.s32.totalorder %s79, 0
    %s82 = sadd.s32 %s81, 1
    %s83 = scalar_select %p80, %s81, %s82
    %p86 = pneg %p80
    %p87 = scmp.eq.s32.totalorder %s19, 1
    %p88 = por %p86, %p87
    %p89 = scmp.ne.s32.totalorder %s81, %s84
    %p90 = scmp.eq.s32.totalorder %s19, 0
    %p91 = por %p89, %p90
    %p92 = scmp.ne.s32.totalorder %s81, %s84
    %p93 = scmp.eq.s32.totalorder %s24, 1
    %p94 = por %p92, %p93
    %p95 = scmp.ne.s32.totalorder %s84, %s85
    %p96 = scmp.eq.s32.totalorder %s24, 0
    %p97 = por %p95, %p96
    %p98 = scmp.ne.s32.totalorder %s84, %s85
    %p99 = scmp.eq.s32.totalorder %s25, 1
    %p100 = por %p98, %p99
    %p102 = scmp.ne.s32.totalorder %s85, %s101
    %p103 = scmp.eq.s32.totalorder %s25, 0
    %p104 = por %p102, %p103
    %s105 = ssub.s32 %s19, %s26
    %p106 = scmp.eq.s32.totalorder %s105, 0
    %s108 = sadd.s32 %s107, 1
    %s109 = scalar_select %p106, %s107, %s108
    %p112 = pneg %p106
    %p113 = scmp.eq.s32.totalorder %s19, 1
    %p114 = por %p112, %p113
    %p115 = scmp.ne.s32.totalorder %s107, %s110
    %p116 = scmp.eq.s32.totalorder %s19, 0
    %p117 = por %p115, %p116
    %p118 = scmp.ne.s32.totalorder %s107, %s110
    %p119 = scmp.eq.s32.totalorder %s24, 1
    %p120 = por %p118, %p119
    %p121 = scmp.ne.s32.totalorder %s110, %s111
    %p122 = scmp.eq.s32.totalorder %s24, 0
    %p123 = por %p121, %p122
    %p124 = scmp.ne.s32.totalorder %s110, %s111
    %p125 = scmp.eq.s32.totalorder %s25, 1
    %p126 = por %p124, %p125
    %p128 = scmp.ne.s32.totalorder %s111, %s127
    %p129 = scmp.eq.s32.totalorder %s25, 0
    %p130 = por %p128, %p129
    %s131 = ssub.s32 %s19, %s26
    %p132 = scmp.eq.s32.totalorder %s131, 0
    %s134 = sadd.s32 %s133, 1
    %s135 = scalar_select %p132, %s133, %s134
    %p138 = pneg %p132
    %p139 = scmp.eq.s32.totalorder %s19, 1
    %p140 = por %p138, %p139
    %p141 = scmp.ne.s32.totalorder %s133, %s136
    %p142 = scmp.eq.s32.totalorder %s19, 0
    %p143 = por %p141, %p142
    %p144 = scmp.ne.s32.totalorder %s133, %s136
    %p145 = scmp.eq.s32.totalorder %s24, 1
    %p146 = por %p144, %p145
    %p147 = scmp.ne.s32.totalorder %s136, %s137
    %p148 = scmp.eq.s32.totalorder %s24, 0
    %p149 = por %p147, %p148
    %p150 = scmp.ne.s32.totalorder %s136, %s137
    %p151 = scmp.eq.s32.totalorder %s25, 1
    %p152 = por %p150, %p151
    %p154 = scmp.ne.s32.totalorder %s137, %s153
    %p155 = scmp.eq.s32.totalorder %s25, 0
    %p156 = por %p154, %p155
    %s157 = ssub.s32 %s19, %s26
    %p158 = scmp.eq.s32.totalorder %s157, 0
    %s160 = sadd.s32 %s159, 1
    %s161 = scalar_select %p158, %s159, %s160
    %p164 = pneg %p158
    %p165 = scmp.eq.s32.totalorder %s19, 1
    %p166 = por %p164, %p165
    %p167 = scmp.ne.s32.totalorder %s159, %s162
    %p168 = scmp.eq.s32.totalorder %s19, 0
    %p169 = por %p167, %p168
    %p170 = scmp.ne.s32.totalorder %s159, %s162
    %p171 = scmp.eq.s32.totalorder %s24, 1
    %p172 = por %p170, %p171
    %p173 = scmp.ne.s32.totalorder %s162, %s163
    %p174 = scmp.eq.s32.totalorder %s24, 0
    %p175 = por %p173, %p174
    %p176 = scmp.ne.s32.totalorder %s162, %s163
    %p177 = scmp.eq.s32.totalorder %s25, 1
    %p178 = por %p176, %p177
    %p180 = scmp.ne.s32.totalorder %s163, %s179
    %p181 = scmp.eq.s32.totalorder %s25, 0
    %p182 = por %p180, %p181
    %s183 = ssub.s32 %s19, %s26
    %p184 = scmp.eq.s32.totalorder %s183, 0
    %s186 = sadd.s32 %s185, 1
    %s187 = scalar_select %p184, %s185, %s186
    %p190 = pneg %p184
    %p191 = scmp.eq.s32.totalorder %s19, 1
    %p192 = por %p190, %p191
    %p193 = scmp.ne.s32.totalorder %s185, %s188
    %p194 = scmp.eq.s32.totalorder %s19, 0
    %p195 = por %p193, %p194
    %p196 = scmp.ne.s32.totalorder %s185, %s188
    %p197 = scmp.eq.s32.totalorder %s24, 1
    %p198 = por %p196, %p197
    %p199 = scmp.ne.s32.totalorder %s188, %s189
    %p200 = scmp.eq.s32.totalorder %s24, 0
    %p201 = por %p199, %p200
    %p202 = scmp.ne.s32.totalorder %s188, %s189
    %p203 = scmp.eq.s32.totalorder %s25, 1
    %p204 = por %p202, %p203
    %p206 = scmp.ne.s32.totalorder %s189, %s205
    %p207 = scmp.eq.s32.totalorder %s25, 0
    %p208 = por %p206, %p207
    %s209 = ssub.s32 %s19, %s26
    %p210 = scmp.eq.s32.totalorder %s209, 0
    %s212 = sadd.s32 %s211, 1
    %s213 = scalar_select %p210, %s211, %s212
    %p216 = pneg %p210
    %p217 = scmp.eq.s32.totalorder %s19, 1
    %p218 = por %p216, %p217
    %p219 = scmp.ne.s32.totalorder %s211, %s214
    %p220 = scmp.eq.s32.totalorder %s19, 0
    %p221 = por %p219, %p220
    %p222 = scmp.ne.s32.totalorder %s211, %s214
    %p223 = scmp.eq.s32.totalorder %s24, 1
    %p224 = por %p222, %p223
    %p225 = scmp.ne.s32.totalorder %s214, %s215
    %p226 = scmp.eq.s32.totalorder %s24, 0
    %p227 = por %p225, %p226
    %p228 = scmp.ne.s32.totalorder %s214, %s215
    %p229 = scmp.eq.s32.totalorder %s25, 1
    %p230 = por %p228, %p229
    %p232 = scmp.ne.s32.totalorder %s215, %s231
    %p233 = scmp.eq.s32.totalorder %s25, 0
    %p234 = por %p232, %p233
    %s235 = ssub.s32 %s19, %s26
    %p236 = scmp.eq.s32.totalorder %s235, 0
    %s238 = sadd.s32 %s237, 1
    %s239 = scalar_select %p236, %s237, %s238
    %p242 = pneg %p236
    %p243 = scmp.eq.s32.totalorder %s19, 1
    %p244 = por %p242, %p243
    %p245 = scmp.ne.s32.totalorder %s237, %s240
    %p246 = scmp.eq.s32.totalorder %s19, 0
    %p247 = por %p245, %p246
    %p248 = scmp.ne.s32.totalorder %s237, %s240
    %p249 = scmp.eq.s32.totalorder %s24, 1
    %p250 = por %p248, %p249
    %p251 = scmp.ne.s32.totalorder %s240, %s241
    %p252 = scmp.eq.s32.totalorder %s24, 0
    %p253 = por %p251, %p252
    %p254 = scmp.ne.s32.totalorder %s240, %s241
    %p255 = scmp.eq.s32.totalorder %s25, 1
    %p256 = por %p254, %p255
    %p258 = scmp.ne.s32.totalorder %s241, %s257
    %p259 = scmp.eq.s32.totalorder %s25, 0
    %p260 = por %p258, %p259
    %s262 = sadd.s32 %s261, 1
    %p265 = scmp.eq.s32.totalorder %s19, 1
    %p266 = scmp.ne.s32.totalorder %s261, %s263
    %p267 = scmp.eq.s32.totalorder %s19, 0
    %p268 = por %p266, %p267
    %p269 = scmp.ne.s32.totalorder %s261, %s263
    %p270 = scmp.eq.s32.totalorder %s24, 1
    %p271 = por %p269, %p270
    %p272 = scmp.ne.s32.totalorder %s263, %s264
    %p273 = scmp.eq.s32.totalorder %s24, 0
    %p274 = por %p272, %p273
    %p275 = scmp.ne.s32.totalorder %s263, %s264
    %p276 = scmp.eq.s32.totalorder %s25, 1
    %p277 = por %p275, %p276
    %p279 = scmp.ne.s32.totalorder %s264, %s278
    %p280 = scmp.eq.s32.totalorder %s25, 0
    %p281 = por %p279, %p280
    %s283 = sadd.s32 %s282, 1
    %p286 = scmp.eq.s32.totalorder %s19, 1
    %p287 = scmp.ne.s32.totalorder %s282, %s284
    %p288 = scmp.eq.s32.totalorder %s19, 0
    %p289 = por %p287, %p288
    %p290 = scmp.ne.s32.totalorder %s282, %s284
    %p291 = scmp.eq.s32.totalorder %s24, 1
    %p292 = por %p290, %p291
    %p293 = scmp.ne.s32.totalorder %s284, %s285
    %p294 = scmp.eq.s32.totalorder %s24, 0
    %p295 = por %p293, %p294
    %p296 = scmp.ne.s32.totalorder %s284, %s285
    %p297 = scmp.eq.s32.totalorder %s25, 1
    %p298 = por %p296, %p297
    %p300 = scmp.ne.s32.totalorder %s285, %s299
    %p301 = scmp.eq.s32.totalorder %s25, 0
    %p302 = por %p300, %p301
    %s304 = sadd.s32 %s303, 1
    %p307 = scmp.eq.s32.totalorder %s19, 1
    %p308 = scmp.ne.s32.totalorder %s303, %s305
    %p309 = scmp.eq.s32.totalorder %s19, 0
    %p310 = por %p308, %p309
    %p311 = scmp.ne.s32.totalorder %s303, %s305
    %p312 = scmp.eq.s32.totalorder %s24, 1
    %p313 = por %p311, %p312
    %p314 = scmp.ne.s32.totalorder %s305, %s306
    %p315 = scmp.eq.s32.totalorder %s24, 0
    %p316 = por %p314, %p315
    %p317 = scmp.ne.s32.totalorder %s305, %s306
    %p318 = scmp.eq.s32.totalorder %s25, 1
    %p319 = por %p317, %p318
    %p321 = scmp.ne.s32.totalorder %s306, %s320
    %p322 = scmp.eq.s32.totalorder %s25, 0
    %p323 = por %p321, %p322
    %s325 = sadd.s32 %s324, 1
    %p328 = scmp.eq.s32.totalorder %s19, 1
    %p329 = scmp.ne.s32.totalorder %s324, %s326
    %p330 = scmp.eq.s32.totalorder %s19, 0
    %p331 = por %p329, %p330
    %p332 = scmp.ne.s32.totalorder %s324, %s326
    %p333 = scmp.eq.s32.totalorder %s24, 1
    %p334 = por %p332, %p333
    %p335 = scmp.ne.s32.totalorder %s326, %s327
    %p336 = scmp.eq.s32.totalorder %s24, 0
    %p337 = por %p335, %p336
    %p338 = scmp.ne.s32.totalorder %s326, %s327
    %p339 = scmp.eq.s32.totalorder %s25, 1
    %p340 = por %p338, %p339
    %p342 = scmp.ne.s32.totalorder %s327, %s341
    %p343 = scmp.eq.s32.totalorder %s25, 0
    %p344 = por %p342, %p343
    %s345 = ssub.s32 %s19, %s26
    %p346 = scmp.eq.s32.totalorder %s345, 0
    %s348 = sadd.s32 %s347, 1
    %s349 = scalar_select %p346, %s347, %s348
    %p352 = pneg %p346
    %p353 = scmp.eq.s32.totalorder %s19, 1
    %p354 = por %p352, %p353
    %p355 = scmp.ne.s32.totalorder %s347, %s350
    %p356 = scmp.eq.s32.totalorder %s19, 0
    %p357 = por %p355, %p356
    %p358 = scmp.ne.s32.totalorder %s347, %s350
    %p359 = scmp.eq.s32.totalorder %s24, 1
    %p360 = por %p358, %p359
    %p361 = scmp.ne.s32.totalorder %s350, %s351
    %p362 = scmp.eq.s32.totalorder %s24, 0
    %p363 = por %p361, %p362
    %p364 = scmp.ne.s32.totalorder %s350, %s351
    %p365 = scmp.eq.s32.totalorder %s25, 1
    %p366 = por %p364, %p365
    %p368 = scmp.ne.s32.totalorder %s351, %s367
    %p369 = scmp.eq.s32.totalorder %s25, 0
    %p370 = por %p368, %p369
    %p371 = scmp.le.s32.totalorder 1, %s19
    %p372 = scmp.lt.s32.totalorder %s19, 3
    %p373 = pnand %p371, %p372
    %p374 = pneg %p373
    // Predicated region
    $region9: #{mobilenet_forward.16} parent=5 // pred_check
      _
    $region10: #{mobilenet_forward.16} parent=5 // pred_check_branch
      %376 = sbr.rel (%p373) target = $region12
    $region11: #{mobilenet_forward.16} parent=5 // pred_region
      %s377 = ssub.s32 %s19, 1
      // Predicated region
      $region13: #{mobilenet_forward.16} parent=11 // pred_check
        %p378 = pneg %p274
      $region14: #{mobilenet_forward.16} parent=11 // pred_check_branch
        %380 = sbr.rel (%p378) target = $region16
      $region15: #{mobilenet_forward.16} parent=11 // pred_region
        _
      $region16: #{mobilenet_forward.16} parent=11 // pred_fallthru
        _
      // Predicated region
      $region17: #{mobilenet_forward.16} parent=11 // pred_check
        %p381 = pneg %p295
      $region18: #{mobilenet_forward.16} parent=11 // pred_check_branch
        %383 = sbr.rel (%p381) target = $region20
      $region19: #{mobilenet_forward.16} parent=11 // pred_region
        _
      $region20: #{mobilenet_forward.16} parent=11 // pred_fallthru
        _
      // Predicated region
      $region21: #{mobilenet_forward.16} parent=11 // pred_check
        %p384 = pneg %p316
      $region22: #{mobilenet_forward.16} parent=11 // pred_check_branch
        %386 = sbr.rel (%p384) target = $region24
      $region23: #{mobilenet_forward.16} parent=11 // pred_region
        _
      $region24: #{mobilenet_forward.16} parent=11 // pred_fallthru
        _
      // Predicated region
      $region25: #{mobilenet_forward.16} parent=11 // pred_check
        %p387 = pneg %p337
      $region26: #{mobilenet_forward.16} parent=11 // pred_check_branch
        %389 = sbr.rel (%p387) target = $region28
      $region27: #{mobilenet_forward.16} parent=11 // pred_region
        _
      $region28: #{mobilenet_forward.16} parent=11 // pred_fallthru
        _
    $region12: #{mobilenet_forward.16} parent=5 // pred_fallthru
      _
    %p390 = scmp.lt.s32.totalorder %s19, 2
    // Predicated region
    $region29: #{mobilenet_forward.16} parent=5 // pred_check
      %p391 = pneg %p390
    $region30: #{mobilenet_forward.16} parent=5 // pred_check_branch
      %393 = sbr.rel (%p391) target = $region32
    $region31: #{mobilenet_forward.16} parent=5 // pred_region
      // Predicated region
      $region33: #{mobilenet_forward.16} parent=31 // pred_check
        %p394 = pneg %p39
      $region34: #{mobilenet_forward.16} parent=31 // pred_check_branch
        %396 = sbr.rel (%p394) target = $region36
      $region35: #{mobilenet_forward.16} parent=31 // pred_region
        %s397 = smul.u32 32, %s19
        %p398 = scmp.lt.s32.totalorder %s397, 63
        %s399 = scalar_select %p398, %s397, 63
        %s400 = smul.addr %s399, 4
        %s401 = scalar_lea.vmem %s0, %s400
        %s402 = smul.u32 32, %s19
      $region36: #{mobilenet_forward.16} parent=31 // pred_fallthru
        _
      // Predicated region
      $region37: #{mobilenet_forward.16} parent=31 // pred_check
        %p403 = pneg %p65
      $region38: #{mobilenet_forward.16} parent=31 // pred_check_branch
        %405 = sbr.rel (%p403) target = $region40
      $region39: #{mobilenet_forward.16} parent=31 // pred_region
        %s406 = smul.u32 32, %s19
        %p407 = scmp.lt.s32.totalorder %s406, 63
        %s408 = scalar_select %p407, %s406, 63
        %s409 = smul.addr %s408, 4
        %s410 = scalar_lea.vmem %s1, %s409
        %s411 = smul.u32 32, %s19
      $region40: #{mobilenet_forward.16} parent=31 // pred_fallthru
        _
      // Predicated region
      $region41: #{mobilenet_forward.16} parent=31 // pred_check
        %p412 = pneg %p91
      $region42: #{mobilenet_forward.16} parent=31 // pred_check_branch
        %414 = sbr.rel (%p412) target = $region44
      $region43: #{mobilenet_forward.16} parent=31 // pred_region
        %s415 = smul.u32 32, %s19
        %p416 = scmp.lt.s32.totalorder %s415, 63
        %s417 = scalar_select %p416, %s415, 63
        %s418 = smul.addr %s417, 4
        %s419 = scalar_lea.vmem %s2, %s418
        %s420 = smul.u32 32, %s19
      $region44: #{mobilenet_forward.16} parent=31 // pred_fallthru
        _
      // Predicated region
      $region45: #{mobilenet_forward.16} parent=31 // pred_check
        %p421 = pneg %p117
      $region46: #{mobilenet_forward.16} parent=31 // pred_check_branch
        %423 = sbr.rel (%p421) target = $region48
      $region47: #{mobilenet_forward.16} parent=31 // pred_region
        %s424 = smul.u32 32, %s19
        %p425 = scmp.lt.s32.totalorder %s424, 63
        %s426 = scalar_select %p425, %s424, 63
        %s427 = smul.addr %s426, 4
        %s428 = scalar_lea.vmem %s3, %s427
        %s429 = smul.u32 32, %s19
      $region48: #{mobilenet_forward.16} parent=31 // pred_fallthru
        _
      // Predicated region
      $region49: #{mobilenet_forward.16} parent=31 // pred_check
        %p430 = pneg %p143
      $region50: #{mobilenet_forward.16} parent=31 // pred_check_branch
        %432 = sbr.rel (%p430) target = $region52
      $region51: #{mobilenet_forward.16} parent=31 // pred_region
        %s433 = smul.u32 32, %s19
        %p434 = scmp.lt.s32.totalorder %s433, 63
        %s435 = scalar_select %p434, %s433, 63
        %s436 = smul.addr %s435, 4
        %s437 = scalar_lea.vmem %s4, %s436
        %s438 = smul.u32 32, %s19
      $region52: #{mobilenet_forward.16} parent=31 // pred_fallthru
        _
      // Predicated region
      $region53: #{mobilenet_forward.16} parent=31 // pred_check
        %p439 = pneg %p169
      $region54: #{mobilenet_forward.16} parent=31 // pred_check_branch
        %441 = sbr.rel (%p439) target = $region56
      $region55: #{mobilenet_forward.16} parent=31 // pred_region
        %s442 = smul.u32 32, %s19
        %p443 = scmp.lt.s32.totalorder %s442, 63
        %s444 = scalar_select %p443, %s442, 63
        %s445 = smul.addr %s444, 4
        %s446 = scalar_lea.vmem %s5, %s445
        %s447 = smul.u32 32, %s19
      $region56: #{mobilenet_forward.16} parent=31 // pred_fallthru
        _
      // Predicated region
      $region57: #{mobilenet_forward.16} parent=31 // pred_check
        %p448 = pneg %p195
      $region58: #{mobilenet_forward.16} parent=31 // pred_check_branch
        %450 = sbr.rel (%p448) target = $region60
      $region59: #{mobilenet_forward.16} parent=31 // pred_region
        %s451 = smul.u32 32, %s19
        %p452 = scmp.lt.s32.totalorder %s451, 63
        %s453 = scalar_select %p452, %s451, 63
        %s454 = smul.addr %s453, 4
        %s455 = scalar_lea.vmem %s6, %s454
        %s456 = smul.u32 32, %s19
      $region60: #{mobilenet_forward.16} parent=31 // pred_fallthru
        _
      // Predicated region
      $region61: #{mobilenet_forward.16} parent=31 // pred_check
        %p457 = pneg %p221
      $region62: #{mobilenet_forward.16} parent=31 // pred_check_branch
        %459 = sbr.rel (%p457) target = $region64
      $region63: #{mobilenet_forward.16} parent=31 // pred_region
        %s460 = smul.u32 32, %s19
        %p461 = scmp.lt.s32.totalorder %s460, 63
        %s462 = scalar_select %p461, %s460, 63
        %s463 = smul.addr %s462, 4
        %s464 = scalar_lea.vmem %s7, %s463
        %s465 = smul.u32 32, %s19
      $region64: #{mobilenet_forward.16} parent=31 // pred_fallthru
        _
      // Predicated region
      $region65: #{mobilenet_forward.16} parent=31 // pred_check
        %p466 = pneg %p247
      $region66: #{mobilenet_forward.16} parent=31 // pred_check_branch
        %468 = sbr.rel (%p466) target = $region68
      $region67: #{mobilenet_forward.16} parent=31 // pred_region
        %s469 = smul.u32 32, %s19
        %p470 = scmp.lt.s32.totalorder %s469, 63
        %s471 = scalar_select %p470, %s469, 63
        %s472 = smul.addr %s471, 4
        %s473 = scalar_lea.vmem %s8, %s472
        %s474 = smul.u32 32, %s19
      $region68: #{mobilenet_forward.16} parent=31 // pred_fallthru
        _
    $region32: #{mobilenet_forward.16} parent=5 // pred_fallthru
      _
    %p475 = scmp.le.s32.totalorder 1, %s19
    %p476 = scmp.lt.s32.totalorder %s19, 3
    %p477 = pnand %p475, %p476
    %p478 = pneg %p477
    // Predicated region
    $region69: #{mobilenet_forward.16} parent=5 // pred_check
      _
    $region70: #{mobilenet_forward.16} parent=5 // pred_check_branch
      %480 = sbr.rel (%p477) target = $region72
    $region71: #{mobilenet_forward.16} parent=5 // pred_region
      %s481 = ssub.s32 %s19, 1
      %s482 = smul.u32 32, %s24
      %p483 = scmp.lt.s32.totalorder %s482, 63
      %s484 = scalar_select %p483, %s482, 63
      %s485 = smul.addr %s484, 4
      %s486 = scalar_lea.vmem %s0, %s485
      %p487 = pneg %p45
      %p488 = pneg %p42
      %s489 = smul.u32 32, %s24
      %p490 = scmp.lt.s32.totalorder %s489, 63
      %s491 = scalar_select %p490, %s489, 63
      %s492 = smul.addr %s491, 4
      %s493 = scalar_lea.vmem %s1, %s492
      %p494 = pneg %p71
      %p495 = pneg %p68
      %s496 = smul.u32 32, %s24
      %p497 = scmp.lt.s32.totalorder %s496, 63
      %s498 = scalar_select %p497, %s496, 63
      %s499 = smul.addr %s498, 4
      %s500 = scalar_lea.vmem %s2, %s499
      %p501 = pneg %p97
      %p502 = pneg %p94
      %s503 = smul.u32 32, %s24
      %p504 = scmp.lt.s32.totalorder %s503, 63
      %s505 = scalar_select %p504, %s503, 63
      %s506 = smul.addr %s505, 4
      %s507 = scalar_lea.vmem %s3, %s506
      %p508 = pneg %p123
      %p509 = pneg %p120
      %s510 = smul.u32 32, %s24
      %p511 = scmp.lt.s32.totalorder %s510, 63
      %s512 = scalar_select %p511, %s510, 63
      %s513 = smul.addr %s512, 4
      %s514 = scalar_lea.vmem %s4, %s513
      %p515 = pneg %p149
      %p516 = pneg %p146
      %s517 = smul.u32 32, %s24
      %p518 = scmp.lt.s32.totalorder %s517, 63
      %s519 = scalar_select %p518, %s517, 63
      %s520 = smul.addr %s519, 4
      %s521 = scalar_lea.vmem %s5, %s520
      %p522 = pneg %p175
      %p523 = pneg %p172
      %s524 = smul.u32 32, %s24
      %p525 = scmp.lt.s32.totalorder %s524, 63
      %s526 = scalar_select %p525, %s524, 63
      %s527 = smul.addr %s526, 4
      %s528 = scalar_lea.vmem %s6, %s527
      %p529 = pneg %p201
      %p530 = pneg %p198
      %s531 = smul.u32 32, %s24
      %p532 = scmp.lt.s32.totalorder %s531, 63
      %s533 = scalar_select %p532, %s531, 63
      %s534 = smul.addr %s533, 4
      %s535 = scalar_lea.vmem %s7, %s534
      %p536 = pneg %p227
      %p537 = pneg %p224
      %s538 = smul.u32 32, %s24
      %p539 = scmp.lt.s32.totalorder %s538, 63
      %s540 = scalar_select %p539, %s538, 63
      %s541 = smul.addr %s540, 4
      %s542 = scalar_lea.vmem %s8, %s541
      %p543 = pneg %p253
      %p544 = pneg %p250
      %p545 = pneg %p274
      %p546 = pneg %p271
      %p547 = pneg %p295
      %p548 = pneg %p292
      %p549 = pneg %p316
      %p550 = pneg %p313
      %p551 = pneg %p337
      %p552 = pneg %p334
      %p553 = pneg %p363
      %p554 = pneg %p360
      %s555 = smul.u32 32, %s24
      %p556 = scmp.lt.s32.totalorder %s555, 63
      %s557 = scalar_select %p556, %s555, 63
      %s558 = smul.addr %s557, 4
      %s559 = scalar_lea.vmem %s13, %s558
      %s560 = smul.u32 32, %s24
      %p561 = scmp.lt.s32.totalorder %s560, 63
      %s562 = scalar_select %p561, %s560, 63
      %s563 = smul.addr %s562, 4
      %s564 = scalar_lea.vmem %s0, %s563
      %s565 = smul.u32 32, %s24
      %s566 = smul.u32 32, %s24
      %p567 = scmp.lt.s32.totalorder %s566, 63
      %s568 = scalar_select %p567, %s566, 63
      %s569 = smul.addr %s568, 4
      %s570 = scalar_lea.vmem %s1, %s569
      %s571 = smul.u32 32, %s24
      %s572 = smul.u32 32, %s24
      %p573 = scmp.lt.s32.totalorder %s572, 63
      %s574 = scalar_select %p573, %s572, 63
      %s575 = smul.addr %s574, 4
      %s576 = scalar_lea.vmem %s2, %s575
      %s577 = smul.u32 32, %s24
      %s578 = smul.u32 32, %s24
      %p579 = scmp.lt.s32.totalorder %s578, 63
      %s580 = scalar_select %p579, %s578, 63
      %s581 = smul.addr %s580, 4
      %s582 = scalar_lea.vmem %s3, %s581
      %s583 = smul.u32 32, %s24
      %s584 = smul.u32 32, %s24
      %p585 = scmp.lt.s32.totalorder %s584, 63
      %s586 = scalar_select %p585, %s584, 63
      %s587 = smul.addr %s586, 4
      %s588 = scalar_lea.vmem %s4, %s587
      %s589 = smul.u32 32, %s24
      %s590 = smul.u32 32, %s24
      %p591 = scmp.lt.s32.totalorder %s590, 63
      %s592 = scalar_select %p591, %s590, 63
      %s593 = smul.addr %s592, 4
      %s594 = scalar_lea.vmem %s5, %s593
      %s595 = smul.u32 32, %s24
      %s596 = smul.u32 32, %s24
      %p597 = scmp.lt.s32.totalorder %s596, 63
      %s598 = scalar_select %p597, %s596, 63
      %s599 = smul.addr %s598, 4
      %s600 = scalar_lea.vmem %s6, %s599
      %s601 = smul.u32 32, %s24
      %s602 = smul.u32 32, %s24
      %p603 = scmp.lt.s32.totalorder %s602, 63
      %s604 = scalar_select %p603, %s602, 63
      %s605 = smul.addr %s604, 4
      %s606 = scalar_lea.vmem %s7, %s605
      %s607 = smul.u32 32, %s24
      %s608 = smul.u32 32, %s24
      %p609 = scmp.lt.s32.totalorder %s608, 63
      %s610 = scalar_select %p609, %s608, 63
      %s611 = smul.addr %s610, 4
      %s612 = scalar_lea.vmem %s8, %s611
      %s613 = smul.u32 32, %s24
      %s614 = smul.u32 32, %s24
      %p615 = scmp.lt.s32.totalorder %s614, 63
      %s616 = scalar_select %p615, %s614, 63
      %s617 = smul.addr %s616, 4
      %s618 = scalar_lea.vmem %s13, %s617
      %s619 = smul.u32 32, %s24
      %v621 = vld [vmem:[%s10] sm:$0x1]
      %v622 = vld [vmem:[%s564] sm:$0xf]
      %v623 = vld [vmem:[%s564 + $0x4] sm:$0xf]
      %v624 = vld [vmem:[%s564 + $0x8] sm:$0xf]
      %v625 = vld [vmem:[%s564 + $0xc] sm:$0xf]
      %v626 = vld [vmem:[%s564 + $0x10] sm:$0xf]
      %v627 = vld [vmem:[%s564 + $0x14] sm:$0xf]
      %v628 = vld [vmem:[%s564 + $0x18] sm:$0xf]
      %v629 = vld [vmem:[%s564 + $0x1c] sm:$0xf]
      %v630 = vld [vmem:[%s564 + $0x20] sm:$0xf]
      %v631 = vld [vmem:[%s564 + $0x24] sm:$0xf]
      %v632 = vld [vmem:[%s564 + $0x28] sm:$0xf]
      %v633 = vld [vmem:[%s564 + $0x2c] sm:$0xf]
      %v634 = vld [vmem:[%s564 + $0x30] sm:$0xf]
      %v635 = vld [vmem:[%s564 + $0x34] sm:$0xf]
      %v636 = vld [vmem:[%s564 + $0x38] sm:$0xf]
      %v637 = vld [vmem:[%s564 + $0x3c] sm:$0xf]
      %v638 = vld [vmem:[%s564 + $0x40] sm:$0xf]
      %v639 = vld [vmem:[%s564 + $0x44] sm:$0xf]
      %v640 = vld [vmem:[%s564 + $0x48] sm:$0xf]
      %v641 = vld [vmem:[%s564 + $0x4c] sm:$0xf]
      %v642 = vld [vmem:[%s564 + $0x50] sm:$0xf]
      %v643 = vld [vmem:[%s564 + $0x54] sm:$0xf]
      %v644 = vld [vmem:[%s564 + $0x58] sm:$0xf]
      %v645 = vld [vmem:[%s564 + $0x5c] sm:$0xf]
      %v646 = vld [vmem:[%s564 + $0x60] sm:$0xf]
      %v647 = vld [vmem:[%s564 + $0x64] sm:$0xf]
      %v648 = vld [vmem:[%s564 + $0x68] sm:$0xf]
      %v649 = vld [vmem:[%s564 + $0x6c] sm:$0xf]
      %v650 = vld [vmem:[%s564 + $0x70] sm:$0xf]
      %v651 = vld [vmem:[%s564 + $0x74] sm:$0xf]
      %v652 = vld [vmem:[%s564 + $0x78] sm:$0xf]
      %v653 = vld [vmem:[%s564 + $0x7c] sm:$0xf]
      %v654 = vunpack.c.l.bf16 %v622
      %v655 = vunpack.c.l.bf16 %v623
      %v656 = vunpack.c.l.bf16 %v624
      %v657 = vunpack.c.l.bf16 %v625
      %v658 = vunpack.c.l.bf16 %v626
      %v659 = vunpack.c.l.bf16 %v627
      %v660 = vunpack.c.l.bf16 %v628
      %v661 = vunpack.c.l.bf16 %v629
      %v662 = vunpack.c.l.bf16 %v630
      %v663 = vunpack.c.l.bf16 %v631
      %v664 = vunpack.c.l.bf16 %v632
      %v665 = vunpack.c.l.bf16 %v633
      %v666 = vunpack.c.l.bf16 %v634
      %v667 = vunpack.c.l.bf16 %v635
      %v668 = vunpack.c.l.bf16 %v636
      %v669 = vunpack.c.l.bf16 %v637
      %v670 = vunpack.c.l.bf16 %v638
      %v671 = vunpack.c.l.bf16 %v639
      %v672 = vunpack.c.l.bf16 %v640
      %v673 = vunpack.c.l.bf16 %v641
      %v674 = vunpack.c.l.bf16 %v642
      %v675 = vunpack.c.l.bf16 %v643
      %v676 = vunpack.c.l.bf16 %v644
      %v677 = vunpack.c.l.bf16 %v645
      %v678 = vunpack.c.l.bf16 %v646
      %v679 = vunpack.c.l.bf16 %v647
      %v680 = vunpack.c.l.bf16 %v648
      %v681 = vunpack.c.l.bf16 %v649
      %v682 = vunpack.c.l.bf16 %v650
      %v683 = vunpack.c.l.bf16 %v651
      %v684 = vunpack.c.l.bf16 %v652
      %v685 = vunpack.c.l.bf16 %v653
      %v686 = vld [vmem:[%s9] sm:$0x1]
      %v688 = vlaneseq
      %v689 = vshrl.u32 %v688, 7
      %v690 = vsub.s32 0, %v689
      %v691 = vrot.slane %v686, %v690
      %v693 = vmul.f32 %v654, %v691
      %v694 = vmul.f32 %v655, %v691
      %v695 = vmul.f32 %v656, %v691
      %v696 = vmul.f32 %v657, %v691
      %v697 = vmul.f32 %v658, %v691
      %v698 = vmul.f32 %v659, %v691
      %v699 = vmul.f32 %v660, %v691
      %v700 = vmul.f32 %v661, %v691
      %v701 = vmul.f32 %v662, %v691
      %v702 = vmul.f32 %v663, %v691
      %v703 = vmul.f32 %v664, %v691
      %v704 = vmul.f32 %v665, %v691
      %v705 = vmul.f32 %v666, %v691
      %v706 = vmul.f32 %v667, %v691
      %v707 = vmul.f32 %v668, %v691
      %v708 = vmul.f32 %v669, %v691
      %v709 = vmul.f32 %v670, %v691
      %v710 = vmul.f32 %v671, %v691
      %v711 = vmul.f32 %v672, %v691
      %v712 = vmul.f32 %v673, %v691
      %v713 = vmul.f32 %v674, %v691
      %v714 = vmul.f32 %v675, %v691
      %v715 = vmul.f32 %v676, %v691
      %v716 = vmul.f32 %v677, %v691
      %v717 = vmul.f32 %v678, %v691
      %v718 = vmul.f32 %v679, %v691
      %v719 = vmul.f32 %v680, %v691
      %v720 = vmul.f32 %v681, %v691
      %v721 = vmul.f32 %v682, %v691
      %v722 = vmul.f32 %v683, %v691
      %v723 = vmul.f32 %v684, %v691
      %v724 = vmul.f32 %v685, %v691
      %v726 = vlaneseq
      %v727 = vshrl.u32 %v726, 7
      %v728 = vsub.s32 0, %v727
      %v729 = vrot.slane %v621, %v728
      %v731 = vadd.f32 %v729, %v693
      %v732 = vadd.f32 %v729, %v694
      %v733 = vadd.f32 %v729, %v695
      %v734 = vadd.f32 %v729, %v696
      %v735 = vadd.f32 %v729, %v697
      %v736 = vadd.f32 %v729, %v698
      %v737 = vadd.f32 %v729, %v699
      %v738 = vadd.f32 %v729, %v700
      %v739 = vadd.f32 %v729, %v701
      %v740 = vadd.f32 %v729, %v702
      %v741 = vadd.f32 %v729, %v703
      %v742 = vadd.f32 %v729, %v704
      %v743 = vadd.f32 %v729, %v705
      %v744 = vadd.f32 %v729, %v706
      %v745 = vadd.f32 %v729, %v707
      %v746 = vadd.f32 %v729, %v708
      %v747 = vadd.f32 %v729, %v709
      %v748 = vadd.f32 %v729, %v710
      %v749 = vadd.f32 %v729, %v711
      %v750 = vadd.f32 %v729, %v712
      %v751 = vadd.f32 %v729, %v713
      %v752 = vadd.f32 %v729, %v714
      %v753 = vadd.f32 %v729, %v715
      %v754 = vadd.f32 %v729, %v716
      %v755 = vadd.f32 %v729, %v717
      %v756 = vadd.f32 %v729, %v718
      %v757 = vadd.f32 %v729, %v719
      %v758 = vadd.f32 %v729, %v720
      %v759 = vadd.f32 %v729, %v721
      %v760 = vadd.f32 %v729, %v722
      %v761 = vadd.f32 %v729, %v723
      %v762 = vadd.f32 %v729, %v724
      %v763 = vld [vmem:[%s570] sm:$0xf]
      %v764 = vld [vmem:[%s570 + $0x4] sm:$0xf]
      %v765 = vld [vmem:[%s570 + $0x8] sm:$0xf]
      %v766 = vld [vmem:[%s570 + $0xc] sm:$0xf]
      %v767 = vld [vmem:[%s570 + $0x10] sm:$0xf]
      %v768 = vld [vmem:[%s570 + $0x14] sm:$0xf]
      %v769 = vld [vmem:[%s570 + $0x18] sm:$0xf]
      %v770 = vld [vmem:[%s570 + $0x1c] sm:$0xf]
      %v771 = vld [vmem:[%s570 + $0x20] sm:$0xf]
      %v772 = vld [vmem:[%s570 + $0x24] sm:$0xf]
      %v773 = vld [vmem:[%s570 + $0x28] sm:$0xf]
      %v774 = vld [vmem:[%s570 + $0x2c] sm:$0xf]
      %v775 = vld [vmem:[%s570 + $0x30] sm:$0xf]
      %v776 = vld [vmem:[%s570 + $0x34] sm:$0xf]
      %v777 = vld [vmem:[%s570 + $0x38] sm:$0xf]
      %v778 = vld [vmem:[%s570 + $0x3c] sm:$0xf]
      %v779 = vld [vmem:[%s570 + $0x40] sm:$0xf]
      %v780 = vld [vmem:[%s570 + $0x44] sm:$0xf]
      %v781 = vld [vmem:[%s570 + $0x48] sm:$0xf]
      %v782 = vld [vmem:[%s570 + $0x4c] sm:$0xf]
      %v783 = vld [vmem:[%s570 + $0x50] sm:$0xf]
      %v784 = vld [vmem:[%s570 + $0x54] sm:$0xf]
      %v785 = vld [vmem:[%s570 + $0x58] sm:$0xf]
      %v786 = vld [vmem:[%s570 + $0x5c] sm:$0xf]
      %v787 = vld [vmem:[%s570 + $0x60] sm:$0xf]
      %v788 = vld [vmem:[%s570 + $0x64] sm:$0xf]
      %v789 = vld [vmem:[%s570 + $0x68] sm:$0xf]
      %v790 = vld [vmem:[%s570 + $0x6c] sm:$0xf]
      %v791 = vld [vmem:[%s570 + $0x70] sm:$0xf]
      %v792 = vld [vmem:[%s570 + $0x74] sm:$0xf]
      %v793 = vld [vmem:[%s570 + $0x78] sm:$0xf]
      %v794 = vld [vmem:[%s570 + $0x7c] sm:$0xf]
      %v795 = vunpack.c.l.bf16 %v763
      %v796 = vunpack.c.l.bf16 %v764
      %v797 = vunpack.c.l.bf16 %v765
      %v798 = vunpack.c.l.bf16 %v766
      %v799 = vunpack.c.l.bf16 %v767
      %v800 = vunpack.c.l.bf16 %v768
      %v801 = vunpack.c.l.bf16 %v769
      %v802 = vunpack.c.l.bf16 %v770
      %v803 = vunpack.c.l.bf16 %v771
      %v804 = vunpack.c.l.bf16 %v772
      %v805 = vunpack.c.l.bf16 %v773
      %v806 = vunpack.c.l.bf16 %v774
      %v807 = vunpack.c.l.bf16 %v775
      %v808 = vunpack.c.l.bf16 %v776
      %v809 = vunpack.c.l.bf16 %v777
      %v810 = vunpack.c.l.bf16 %v778
      %v811 = vunpack.c.l.bf16 %v779
      %v812 = vunpack.c.l.bf16 %v780
      %v813 = vunpack.c.l.bf16 %v781
      %v814 = vunpack.c.l.bf16 %v782
      %v815 = vunpack.c.l.bf16 %v783
      %v816 = vunpack.c.l.bf16 %v784
      %v817 = vunpack.c.l.bf16 %v785
      %v818 = vunpack.c.l.bf16 %v786
      %v819 = vunpack.c.l.bf16 %v787
      %v820 = vunpack.c.l.bf16 %v788
      %v821 = vunpack.c.l.bf16 %v789
      %v822 = vunpack.c.l.bf16 %v790
      %v823 = vunpack.c.l.bf16 %v791
      %v824 = vunpack.c.l.bf16 %v792
      %v825 = vunpack.c.l.bf16 %v793
      %v826 = vunpack.c.l.bf16 %v794
      %s827 = scalar_lea.vmem %s9, 1
      %v828 = vld [vmem:[%s827] sm:$0x1]
      %v830 = vlaneseq
      %v831 = vshrl.u32 %v830, 7
      %v832 = vsub.s32 0, %v831
      %v833 = vrot.slane %v828, %v832
      %v835 = vmul.f32 %v795, %v833
      %v836 = vmul.f32 %v796, %v833
      %v837 = vmul.f32 %v797, %v833
      %v838 = vmul.f32 %v798, %v833
      %v839 = vmul.f32 %v799, %v833
      %v840 = vmul.f32 %v800, %v833
      %v841 = vmul.f32 %v801, %v833
      %v842 = vmul.f32 %v802, %v833
      %v843 = vmul.f32 %v803, %v833
      %v844 = vmul.f32 %v804, %v833
      %v845 = vmul.f32 %v805, %v833
      %v846 = vmul.f32 %v806, %v833
      %v847 = vmul.f32 %v807, %v833
      %v848 = vmul.f32 %v808, %v833
      %v849 = vmul.f32 %v809, %v833
      %v850 = vmul.f32 %v810, %v833
      %v851 = vmul.f32 %v811, %v833
      %v852 = vmul.f32 %v812, %v833
      %v853 = vmul.f32 %v813, %v833
      %v854 = vmul.f32 %v814, %v833
      %v855 = vmul.f32 %v815, %v833
      %v856 = vmul.f32 %v816, %v833
      %v857 = vmul.f32 %v817, %v833
      %v858 = vmul.f32 %v818, %v833
      %v859 = vmul.f32 %v819, %v833
      %v860 = vmul.f32 %v820, %v833
      %v861 = vmul.f32 %v821, %v833
      %v862 = vmul.f32 %v822, %v833
      %v863 = vmul.f32 %v823, %v833
      %v864 = vmul.f32 %v824, %v833
      %v865 = vmul.f32 %v825, %v833
      %v866 = vmul.f32 %v826, %v833
      %v867 = vadd.f32 %v731, %v835
      %v868 = vadd.f32 %v732, %v836
      %v869 = vadd.f32 %v733, %v837
      %v870 = vadd.f32 %v734, %v838
      %v871 = vadd.f32 %v735, %v839
      %v872 = vadd.f32 %v736, %v840
      %v873 = vadd.f32 %v737, %v841
      %v874 = vadd.f32 %v738, %v842
      %v875 = vadd.f32 %v739, %v843
      %v876 = vadd.f32 %v740, %v844
      %v877 = vadd.f32 %v741, %v845
      %v878 = vadd.f32 %v742, %v846
      %v879 = vadd.f32 %v743, %v847
      %v880 = vadd.f32 %v744, %v848
      %v881 = vadd.f32 %v745, %v849
      %v882 = vadd.f32 %v746, %v850
      %v883 = vadd.f32 %v747, %v851
      %v884 = vadd.f32 %v748, %v852
      %v885 = vadd.f32 %v749, %v853
      %v886 = vadd.f32 %v750, %v854
      %v887 = vadd.f32 %v751, %v855
      %v888 = vadd.f32 %v752, %v856
      %v889 = vadd.f32 %v753, %v857
      %v890 = vadd.f32 %v754, %v858
      %v891 = vadd.f32 %v755, %v859
      %v892 = vadd.f32 %v756, %v860
      %v893 = vadd.f32 %v757, %v861
      %v894 = vadd.f32 %v758, %v862
      %v895 = vadd.f32 %v759, %v863
      %v896 = vadd.f32 %v760, %v864
      %v897 = vadd.f32 %v761, %v865
      %v898 = vadd.f32 %v762, %v866
      %v899 = vld [vmem:[%s576] sm:$0xf]
      %v900 = vld [vmem:[%s576 + $0x4] sm:$0xf]
      %v901 = vld [vmem:[%s576 + $0x8] sm:$0xf]
      %v902 = vld [vmem:[%s576 + $0xc] sm:$0xf]
      %v903 = vld [vmem:[%s576 + $0x10] sm:$0xf]
      %v904 = vld [vmem:[%s576 + $0x14] sm:$0xf]
      %v905 = vld [vmem:[%s576 + $0x18] sm:$0xf]
      %v906 = vld [vmem:[%s576 + $0x1c] sm:$0xf]
      %v907 = vld [vmem:[%s576 + $0x20] sm:$0xf]
      %v908 = vld [vmem:[%s576 + $0x24] sm:$0xf]
      %v909 = vld [vmem:[%s576 + $0x28] sm:$0xf]
      %v910 = vld [vmem:[%s576 + $0x2c] sm:$0xf]
      %v911 = vld [vmem:[%s576 + $0x30] sm:$0xf]
      %v912 = vld [vmem:[%s576 + $0x34] sm:$0xf]
      %v913 = vld [vmem:[%s576 + $0x38] sm:$0xf]
      %v914 = vld [vmem:[%s576 + $0x3c] sm:$0xf]
      %v915 = vld [vmem:[%s576 + $0x40] sm:$0xf]
      %v916 = vld [vmem:[%s576 + $0x44] sm:$0xf]
      %v917 = vld [vmem:[%s576 + $0x48] sm:$0xf]
      %v918 = vld [vmem:[%s576 + $0x4c] sm:$0xf]
      %v919 = vld [vmem:[%s576 + $0x50] sm:$0xf]
      %v920 = vld [vmem:[%s576 + $0x54] sm:$0xf]
      %v921 = vld [vmem:[%s576 + $0x58] sm:$0xf]
      %v922 = vld [vmem:[%s576 + $0x5c] sm:$0xf]
      %v923 = vld [vmem:[%s576 + $0x60] sm:$0xf]
      %v924 = vld [vmem:[%s576 + $0x64] sm:$0xf]
      %v925 = vld [vmem:[%s576 + $0x68] sm:$0xf]
      %v926 = vld [vmem:[%s576 + $0x6c] sm:$0xf]
      %v927 = vld [vmem:[%s576 + $0x70] sm:$0xf]
      %v928 = vld [vmem:[%s576 + $0x74] sm:$0xf]
      %v929 = vld [vmem:[%s576 + $0x78] sm:$0xf]
      %v930 = vld [vmem:[%s576 + $0x7c] sm:$0xf]
      %v931 = vunpack.c.l.bf16 %v899
      %v932 = vunpack.c.l.bf16 %v900
      %v933 = vunpack.c.l.bf16 %v901
      %v934 = vunpack.c.l.bf16 %v902
      %v935 = vunpack.c.l.bf16 %v903
      %v936 = vunpack.c.l.bf16 %v904
      %v937 = vunpack.c.l.bf16 %v905
      %v938 = vunpack.c.l.bf16 %v906
      %v939 = vunpack.c.l.bf16 %v907
      %v940 = vunpack.c.l.bf16 %v908
      %v941 = vunpack.c.l.bf16 %v909
      %v942 = vunpack.c.l.bf16 %v910
      %v943 = vunpack.c.l.bf16 %v911
      %v944 = vunpack.c.l.bf16 %v912
      %v945 = vunpack.c.l.bf16 %v913
      %v946 = vunpack.c.l.bf16 %v914
      %v947 = vunpack.c.l.bf16 %v915
      %v948 = vunpack.c.l.bf16 %v916
      %v949 = vunpack.c.l.bf16 %v917
      %v950 = vunpack.c.l.bf16 %v918
      %v951 = vunpack.c.l.bf16 %v919
      %v952 = vunpack.c.l.bf16 %v920
      %v953 = vunpack.c.l.bf16 %v921
      %v954 = vunpack.c.l.bf16 %v922
      %v955 = vunpack.c.l.bf16 %v923
      %v956 = vunpack.c.l.bf16 %v924
      %v957 = vunpack.c.l.bf16 %v925
      %v958 = vunpack.c.l.bf16 %v926
      %v959 = vunpack.c.l.bf16 %v927
      %v960 = vunpack.c.l.bf16 %v928
      %v961 = vunpack.c.l.bf16 %v929
      %v962 = vunpack.c.l.bf16 %v930
      %s963 = scalar_lea.vmem %s9, 2
      %v964 = vld [vmem:[%s963] sm:$0x1]
      %v966 = vlaneseq
      %v967 = vshrl.u32 %v966, 7
      %v968 = vsub.s32 0, %v967
      %v969 = vrot.slane %v964, %v968
      %v971 = vmul.f32 %v931, %v969
      %v972 = vmul.f32 %v932, %v969
      %v973 = vmul.f32 %v933, %v969
      %v974 = vmul.f32 %v934, %v969
      %v975 = vmul.f32 %v935, %v969
      %v976 = vmul.f32 %v936, %v969
      %v977 = vmul.f32 %v937, %v969
      %v978 = vmul.f32 %v938, %v969
      %v979 = vmul.f32 %v939, %v969
      %v980 = vmul.f32 %v940, %v969
      %v981 = vmul.f32 %v941, %v969
      %v982 = vmul.f32 %v942, %v969
      %v983 = vmul.f32 %v943, %v969
      %v984 = vmul.f32 %v944, %v969
      %v985 = vmul.f32 %v945, %v969
      %v986 = vmul.f32 %v946, %v969
      %v987 = vmul.f32 %v947, %v969
      %v988 = vmul.f32 %v948, %v969
      %v989 = vmul.f32 %v949, %v969
      %v990 = vmul.f32 %v950, %v969
      %v991 = vmul.f32 %v951, %v969
      %v992 = vmul.f32 %v952, %v969
      %v993 = vmul.f32 %v953, %v969
      %v994 = vmul.f32 %v954, %v969
      %v995 = vmul.f32 %v955, %v969
      %v996 = vmul.f32 %v956, %v969
      %v997 = vmul.f32 %v957, %v969
      %v998 = vmul.f32 %v958, %v969
      %v999 = vmul.f32 %v959, %v969
      %v1000 = vmul.f32 %v960, %v969
      %v1001 = vmul.f32 %v961, %v969
      %v1002 = vmul.f32 %v962, %v969
      %v1003 = vadd.f32 %v867, %v971
      %v1004 = vadd.f32 %v868, %v972
      %v1005 = vadd.f32 %v869, %v973
      %v1006 = vadd.f32 %v870, %v974
      %v1007 = vadd.f32 %v871, %v975
      %v1008 = vadd.f32 %v872, %v976
      %v1009 = vadd.f32 %v873, %v977
      %v1010 = vadd.f32 %v874, %v978
      %v1011 = vadd.f32 %v875, %v979
      %v1012 = vadd.f32 %v876, %v980
      %v1013 = vadd.f32 %v877, %v981
      %v1014 = vadd.f32 %v878, %v982
      %v1015 = vadd.f32 %v879, %v983
      %v1016 = vadd.f32 %v880, %v984
      %v1017 = vadd.f32 %v881, %v985
      %v1018 = vadd.f32 %v882, %v986
      %v1019 = vadd.f32 %v883, %v987
      %v1020 = vadd.f32 %v884, %v988
      %v1021 = vadd.f32 %v885, %v989
      %v1022 = vadd.f32 %v886, %v990
      %v1023 = vadd.f32 %v887, %v991
      %v1024 = vadd.f32 %v888, %v992
      %v1025 = vadd.f32 %v889, %v993
      %v1026 = vadd.f32 %v890, %v994
      %v1027 = vadd.f32 %v891, %v995
      %v1028 = vadd.f32 %v892, %v996
      %v1029 = vadd.f32 %v893, %v997
      %v1030 = vadd.f32 %v894, %v998
      %v1031 = vadd.f32 %v895, %v999
      %v1032 = vadd.f32 %v896, %v1000
      %v1033 = vadd.f32 %v897, %v1001
      %v1034 = vadd.f32 %v898, %v1002
      %v1035 = vld [vmem:[%s582] sm:$0xf]
      %v1036 = vld [vmem:[%s582 + $0x4] sm:$0xf]
      %v1037 = vld [vmem:[%s582 + $0x8] sm:$0xf]
      %v1038 = vld [vmem:[%s582 + $0xc] sm:$0xf]
      %v1039 = vld [vmem:[%s582 + $0x10] sm:$0xf]
      %v1040 = vld [vmem:[%s582 + $0x14] sm:$0xf]
      %v1041 = vld [vmem:[%s582 + $0x18] sm:$0xf]
      %v1042 = vld [vmem:[%s582 + $0x1c] sm:$0xf]
      %v1043 = vld [vmem:[%s582 + $0x20] sm:$0xf]
      %v1044 = vld [vmem:[%s582 + $0x24] sm:$0xf]
      %v1045 = vld [vmem:[%s582 + $0x28] sm:$0xf]
      %v1046 = vld [vmem:[%s582 + $0x2c] sm:$0xf]
      %v1047 = vld [vmem:[%s582 + $0x30] sm:$0xf]
      %v1048 = vld [vmem:[%s582 + $0x34] sm:$0xf]
      %v1049 = vld [vmem:[%s582 + $0x38] sm:$0xf]
      %v1050 = vld [vmem:[%s582 + $0x3c] sm:$0xf]
      %v1051 = vld [vmem:[%s582 + $0x40] sm:$0xf]
      %v1052 = vld [vmem:[%s582 + $0x44] sm:$0xf]
      %v1053 = vld [vmem:[%s582 + $0x48] sm:$0xf]
      %v1054 = vld [vmem:[%s582 + $0x4c] sm:$0xf]
      %v1055 = vld [vmem:[%s582 + $0x50] sm:$0xf]
      %v1056 = vld [vmem:[%s582 + $0x54] sm:$0xf]
      %v1057 = vld [vmem:[%s582 + $0x58] sm:$0xf]
      %v1058 = vld [vmem:[%s582 + $0x5c] sm:$0xf]
      %v1059 = vld [vmem:[%s582 + $0x60] sm:$0xf]
      %v1060 = vld [vmem:[%s582 + $0x64] sm:$0xf]
      %v1061 = vld [vmem:[%s582 + $0x68] sm:$0xf]
      %v1062 = vld [vmem:[%s582 + $0x6c] sm:$0xf]
      %v1063 = vld [vmem:[%s582 + $0x70] sm:$0xf]
      %v1064 = vld [vmem:[%s582 + $0x74] sm:$0xf]
      %v1065 = vld [vmem:[%s582 + $0x78] sm:$0xf]
      %v1066 = vld [vmem:[%s582 + $0x7c] sm:$0xf]
      %v1067 = vunpack.c.l.bf16 %v1035
      %v1068 = vunpack.c.l.bf16 %v1036
      %v1069 = vunpack.c.l.bf16 %v1037
      %v1070 = vunpack.c.l.bf16 %v1038
      %v1071 = vunpack.c.l.bf16 %v1039
      %v1072 = vunpack.c.l.bf16 %v1040
      %v1073 = vunpack.c.l.bf16 %v1041
      %v1074 = vunpack.c.l.bf16 %v1042
      %v1075 = vunpack.c.l.bf16 %v1043
      %v1076 = vunpack.c.l.bf16 %v1044
      %v1077 = vunpack.c.l.bf16 %v1045
      %v1078 = vunpack.c.l.bf16 %v1046
      %v1079 = vunpack.c.l.bf16 %v1047
      %v1080 = vunpack.c.l.bf16 %v1048
      %v1081 = vunpack.c.l.bf16 %v1049
      %v1082 = vunpack.c.l.bf16 %v1050
      %v1083 = vunpack.c.l.bf16 %v1051
      %v1084 = vunpack.c.l.bf16 %v1052
      %v1085 = vunpack.c.l.bf16 %v1053
      %v1086 = vunpack.c.l.bf16 %v1054
      %v1087 = vunpack.c.l.bf16 %v1055
      %v1088 = vunpack.c.l.bf16 %v1056
      %v1089 = vunpack.c.l.bf16 %v1057
      %v1090 = vunpack.c.l.bf16 %v1058
      %v1091 = vunpack.c.l.bf16 %v1059
      %v1092 = vunpack.c.l.bf16 %v1060
      %v1093 = vunpack.c.l.bf16 %v1061
      %v1094 = vunpack.c.l.bf16 %v1062
      %v1095 = vunpack.c.l.bf16 %v1063
      %v1096 = vunpack.c.l.bf16 %v1064
      %v1097 = vunpack.c.l.bf16 %v1065
      %v1098 = vunpack.c.l.bf16 %v1066
      %s1099 = scalar_lea.vmem %s9, 3
      %v1100 = vld [vmem:[%s1099] sm:$0x1]
      %v1102 = vlaneseq
      %v1103 = vshrl.u32 %v1102, 7
      %v1104 = vsub.s32 0, %v1103
      %v1105 = vrot.slane %v1100, %v1104
      %v1107 = vmul.f32 %v1067, %v1105
      %v1108 = vmul.f32 %v1068, %v1105
      %v1109 = vmul.f32 %v1069, %v1105
      %v1110 = vmul.f32 %v1070, %v1105
      %v1111 = vmul.f32 %v1071, %v1105
      %v1112 = vmul.f32 %v1072, %v1105
      %v1113 = vmul.f32 %v1073, %v1105
      %v1114 = vmul.f32 %v1074, %v1105
      %v1115 = vmul.f32 %v1075, %v1105
      %v1116 = vmul.f32 %v1076, %v1105
      %v1117 = vmul.f32 %v1077, %v1105
      %v1118 = vmul.f32 %v1078, %v1105
      %v1119 = vmul.f32 %v1079, %v1105
      %v1120 = vmul.f32 %v1080, %v1105
      %v1121 = vmul.f32 %v1081, %v1105
      %v1122 = vmul.f32 %v1082, %v1105
      %v1123 = vmul.f32 %v1083, %v1105
      %v1124 = vmul.f32 %v1084, %v1105
      %v1125 = vmul.f32 %v1085, %v1105
      %v1126 = vmul.f32 %v1086, %v1105
      %v1127 = vmul.f32 %v1087, %v1105
      %v1128 = vmul.f32 %v1088, %v1105
      %v1129 = vmul.f32 %v1089, %v1105
      %v1130 = vmul.f32 %v1090, %v1105
      %v1131 = vmul.f32 %v1091, %v1105
      %v1132 = vmul.f32 %v1092, %v1105
      %v1133 = vmul.f32 %v1093, %v1105
      %v1134 = vmul.f32 %v1094, %v1105
      %v1135 = vmul.f32 %v1095, %v1105
      %v1136 = vmul.f32 %v1096, %v1105
      %v1137 = vmul.f32 %v1097, %v1105
      %v1138 = vmul.f32 %v1098, %v1105
      %v1139 = vadd.f32 %v1003, %v1107
      %v1140 = vadd.f32 %v1004, %v1108
      %v1141 = vadd.f32 %v1005, %v1109
      %v1142 = vadd.f32 %v1006, %v1110
      %v1143 = vadd.f32 %v1007, %v1111
      %v1144 = vadd.f32 %v1008, %v1112
      %v1145 = vadd.f32 %v1009, %v1113
      %v1146 = vadd.f32 %v1010, %v1114
      %v1147 = vadd.f32 %v1011, %v1115
      %v1148 = vadd.f32 %v1012, %v1116
      %v1149 = vadd.f32 %v1013, %v1117
      %v1150 = vadd.f32 %v1014, %v1118
      %v1151 = vadd.f32 %v1015, %v1119
      %v1152 = vadd.f32 %v1016, %v1120
      %v1153 = vadd.f32 %v1017, %v1121
      %v1154 = vadd.f32 %v1018, %v1122
      %v1155 = vadd.f32 %v1019, %v1123
      %v1156 = vadd.f32 %v1020, %v1124
      %v1157 = vadd.f32 %v1021, %v1125
      %v1158 = vadd.f32 %v1022, %v1126
      %v1159 = vadd.f32 %v1023, %v1127
      %v1160 = vadd.f32 %v1024, %v1128
      %v1161 = vadd.f32 %v1025, %v1129
      %v1162 = vadd.f32 %v1026, %v1130
      %v1163 = vadd.f32 %v1027, %v1131
      %v1164 = vadd.f32 %v1028, %v1132
      %v1165 = vadd.f32 %v1029, %v1133
      %v1166 = vadd.f32 %v1030, %v1134
      %v1167 = vadd.f32 %v1031, %v1135
      %v1168 = vadd.f32 %v1032, %v1136
      %v1169 = vadd.f32 %v1033, %v1137
      %v1170 = vadd.f32 %v1034, %v1138
      %v1171 = vld [vmem:[%s588] sm:$0xf]
      %v1172 = vld [vmem:[%s588 + $0x4] sm:$0xf]
      %v1173 = vld [vmem:[%s588 + $0x8] sm:$0xf]
      %v1174 = vld [vmem:[%s588 + $0xc] sm:$0xf]
      %v1175 = vld [vmem:[%s588 + $0x10] sm:$0xf]
      %v1176 = vld [vmem:[%s588 + $0x14] sm:$0xf]
      %v1177 = vld [vmem:[%s588 + $0x18] sm:$0xf]
      %v1178 = vld [vmem:[%s588 + $0x1c] sm:$0xf]
      %v1179 = vld [vmem:[%s588 + $0x20] sm:$0xf]
      %v1180 = vld [vmem:[%s588 + $0x24] sm:$0xf]
      %v1181 = vld [vmem:[%s588 + $0x28] sm:$0xf]
      %v1182 = vld [vmem:[%s588 + $0x2c] sm:$0xf]
      %v1183 = vld [vmem:[%s588 + $0x30] sm:$0xf]
      %v1184 = vld [vmem:[%s588 + $0x34] sm:$0xf]
      %v1185 = vld [vmem:[%s588 + $0x38] sm:$0xf]
      %v1186 = vld [vmem:[%s588 + $0x3c] sm:$0xf]
      %v1187 = vld [vmem:[%s588 + $0x40] sm:$0xf]
      %v1188 = vld [vmem:[%s588 + $0x44] sm:$0xf]
      %v1189 = vld [vmem:[%s588 + $0x48] sm:$0xf]
      %v1190 = vld [vmem:[%s588 + $0x4c] sm:$0xf]
      %v1191 = vld [vmem:[%s588 + $0x50] sm:$0xf]
      %v1192 = vld [vmem:[%s588 + $0x54] sm:$0xf]
      %v1193 = vld [vmem:[%s588 + $0x58] sm:$0xf]
      %v1194 = vld [vmem:[%s588 + $0x5c] sm:$0xf]
      %v1195 = vld [vmem:[%s588 + $0x60] sm:$0xf]
      %v1196 = vld [vmem:[%s588 + $0x64] sm:$0xf]
      %v1197 = vld [vmem:[%s588 + $0x68] sm:$0xf]
      %v1198 = vld [vmem:[%s588 + $0x6c] sm:$0xf]
      %v1199 = vld [vmem:[%s588 + $0x70] sm:$0xf]
      %v1200 = vld [vmem:[%s588 + $0x74] sm:$0xf]
      %v1201 = vld [vmem:[%s588 + $0x78] sm:$0xf]
      %v1202 = vld [vmem:[%s588 + $0x7c] sm:$0xf]
      %v1203 = vunpack.c.l.bf16 %v1171
      %v1204 = vunpack.c.l.bf16 %v1172
      %v1205 = vunpack.c.l.bf16 %v1173
      %v1206 = vunpack.c.l.bf16 %v1174
      %v1207 = vunpack.c.l.bf16 %v1175
      %v1208 = vunpack.c.l.bf16 %v1176
      %v1209 = vunpack.c.l.bf16 %v1177
      %v1210 = vunpack.c.l.bf16 %v1178
      %v1211 = vunpack.c.l.bf16 %v1179
      %v1212 = vunpack.c.l.bf16 %v1180
      %v1213 = vunpack.c.l.bf16 %v1181
      %v1214 = vunpack.c.l.bf16 %v1182
      %v1215 = vunpack.c.l.bf16 %v1183
      %v1216 = vunpack.c.l.bf16 %v1184
      %v1217 = vunpack.c.l.bf16 %v1185
      %v1218 = vunpack.c.l.bf16 %v1186
      %v1219 = vunpack.c.l.bf16 %v1187
      %v1220 = vunpack.c.l.bf16 %v1188
      %v1221 = vunpack.c.l.bf16 %v1189
      %v1222 = vunpack.c.l.bf16 %v1190
      %v1223 = vunpack.c.l.bf16 %v1191
      %v1224 = vunpack.c.l.bf16 %v1192
      %v1225 = vunpack.c.l.bf16 %v1193
      %v1226 = vunpack.c.l.bf16 %v1194
      %v1227 = vunpack.c.l.bf16 %v1195
      %v1228 = vunpack.c.l.bf16 %v1196
      %v1229 = vunpack.c.l.bf16 %v1197
      %v1230 = vunpack.c.l.bf16 %v1198
      %v1231 = vunpack.c.l.bf16 %v1199
      %v1232 = vunpack.c.l.bf16 %v1200
      %v1233 = vunpack.c.l.bf16 %v1201
      %v1234 = vunpack.c.l.bf16 %v1202
      %s1235 = scalar_lea.vmem %s9, 4
      %v1236 = vld [vmem:[%s1235] sm:$0x1]
      %v1238 = vlaneseq
      %v1239 = vshrl.u32 %v1238, 7
      %v1240 = vsub.s32 0, %v1239
      %v1241 = vrot.slane %v1236, %v1240
      %v1243 = vmul.f32 %v1203, %v1241
      %v1244 = vmul.f32 %v1204, %v1241
      %v1245 = vmul.f32 %v1205, %v1241
      %v1246 = vmul.f32 %v1206, %v1241
      %v1247 = vmul.f32 %v1207, %v1241
      %v1248 = vmul.f32 %v1208, %v1241
      %v1249 = vmul.f32 %v1209, %v1241
      %v1250 = vmul.f32 %v1210, %v1241
      %v1251 = vmul.f32 %v1211, %v1241
      %v1252 = vmul.f32 %v1212, %v1241
      %v1253 = vmul.f32 %v1213, %v1241
      %v1254 = vmul.f32 %v1214, %v1241
      %v1255 = vmul.f32 %v1215, %v1241
      %v1256 = vmul.f32 %v1216, %v1241
      %v1257 = vmul.f32 %v1217, %v1241
      %v1258 = vmul.f32 %v1218, %v1241
      %v1259 = vmul.f32 %v1219, %v1241
      %v1260 = vmul.f32 %v1220, %v1241
      %v1261 = vmul.f32 %v1221, %v1241
      %v1262 = vmul.f32 %v1222, %v1241
      %v1263 = vmul.f32 %v1223, %v1241
      %v1264 = vmul.f32 %v1224, %v1241
      %v1265 = vmul.f32 %v1225, %v1241
      %v1266 = vmul.f32 %v1226, %v1241
      %v1267 = vmul.f32 %v1227, %v1241
      %v1268 = vmul.f32 %v1228, %v1241
      %v1269 = vmul.f32 %v1229, %v1241
      %v1270 = vmul.f32 %v1230, %v1241
      %v1271 = vmul.f32 %v1231, %v1241
      %v1272 = vmul.f32 %v1232, %v1241
      %v1273 = vmul.f32 %v1233, %v1241
      %v1274 = vmul.f32 %v1234, %v1241
      %v1275 = vadd.f32 %v1139, %v1243
      %v1276 = vadd.f32 %v1140, %v1244
      %v1277 = vadd.f32 %v1141, %v1245
      %v1278 = vadd.f32 %v1142, %v1246
      %v1279 = vadd.f32 %v1143, %v1247
      %v1280 = vadd.f32 %v1144, %v1248
      %v1281 = vadd.f32 %v1145, %v1249
      %v1282 = vadd.f32 %v1146, %v1250
      %v1283 = vadd.f32 %v1147, %v1251
      %v1284 = vadd.f32 %v1148, %v1252
      %v1285 = vadd.f32 %v1149, %v1253
      %v1286 = vadd.f32 %v1150, %v1254
      %v1287 = vadd.f32 %v1151, %v1255
      %v1288 = vadd.f32 %v1152, %v1256
      %v1289 = vadd.f32 %v1153, %v1257
      %v1290 = vadd.f32 %v1154, %v1258
      %v1291 = vadd.f32 %v1155, %v1259
      %v1292 = vadd.f32 %v1156, %v1260
      %v1293 = vadd.f32 %v1157, %v1261
      %v1294 = vadd.f32 %v1158, %v1262
      %v1295 = vadd.f32 %v1159, %v1263
      %v1296 = vadd.f32 %v1160, %v1264
      %v1297 = vadd.f32 %v1161, %v1265
      %v1298 = vadd.f32 %v1162, %v1266
      %v1299 = vadd.f32 %v1163, %v1267
      %v1300 = vadd.f32 %v1164, %v1268
      %v1301 = vadd.f32 %v1165, %v1269
      %v1302 = vadd.f32 %v1166, %v1270
      %v1303 = vadd.f32 %v1167, %v1271
      %v1304 = vadd.f32 %v1168, %v1272
      %v1305 = vadd.f32 %v1169, %v1273
      %v1306 = vadd.f32 %v1170, %v1274
      %v1307 = vld [vmem:[%s594] sm:$0xf]
      %v1308 = vld [vmem:[%s594 + $0x4] sm:$0xf]
      %v1309 = vld [vmem:[%s594 + $0x8] sm:$0xf]
      %v1310 = vld [vmem:[%s594 + $0xc] sm:$0xf]
      %v1311 = vld [vmem:[%s594 + $0x10] sm:$0xf]
      %v1312 = vld [vmem:[%s594 + $0x14] sm:$0xf]
      %v1313 = vld [vmem:[%s594 + $0x18] sm:$0xf]
      %v1314 = vld [vmem:[%s594 + $0x1c] sm:$0xf]
      %v1315 = vld [vmem:[%s594 + $0x20] sm:$0xf]
      %v1316 = vld [vmem:[%s594 + $0x24] sm:$0xf]
      %v1317 = vld [vmem:[%s594 + $0x28] sm:$0xf]
      %v1318 = vld [vmem:[%s594 + $0x2c] sm:$0xf]
      %v1319 = vld [vmem:[%s594 + $0x30] sm:$0xf]
      %v1320 = vld [vmem:[%s594 + $0x34] sm:$0xf]
      %v1321 = vld [vmem:[%s594 + $0x38] sm:$0xf]
      %v1322 = vld [vmem:[%s594 + $0x3c] sm:$0xf]
      %v1323 = vld [vmem:[%s594 + $0x40] sm:$0xf]
      %v1324 = vld [vmem:[%s594 + $0x44] sm:$0xf]
      %v1325 = vld [vmem:[%s594 + $0x48] sm:$0xf]
      %v1326 = vld [vmem:[%s594 + $0x4c] sm:$0xf]
      %v1327 = vld [vmem:[%s594 + $0x50] sm:$0xf]
      %v1328 = vld [vmem:[%s594 + $0x54] sm:$0xf]
      %v1329 = vld [vmem:[%s594 + $0x58] sm:$0xf]
      %v1330 = vld [vmem:[%s594 + $0x5c] sm:$0xf]
      %v1331 = vld [vmem:[%s594 + $0x60] sm:$0xf]
      %v1332 = vld [vmem:[%s594 + $0x64] sm:$0xf]
      %v1333 = vld [vmem:[%s594 + $0x68] sm:$0xf]
      %v1334 = vld [vmem:[%s594 + $0x6c] sm:$0xf]
      %v1335 = vld [vmem:[%s594 + $0x70] sm:$0xf]
      %v1336 = vld [vmem:[%s594 + $0x74] sm:$0xf]
      %v1337 = vld [vmem:[%s594 + $0x78] sm:$0xf]
      %v1338 = vld [vmem:[%s594 + $0x7c] sm:$0xf]
      %v1339 = vunpack.c.l.bf16 %v1307
      %v1340 = vunpack.c.l.bf16 %v1308
      %v1341 = vunpack.c.l.bf16 %v1309
      %v1342 = vunpack.c.l.bf16 %v1310
      %v1343 = vunpack.c.l.bf16 %v1311
      %v1344 = vunpack.c.l.bf16 %v1312
      %v1345 = vunpack.c.l.bf16 %v1313
      %v1346 = vunpack.c.l.bf16 %v1314
      %v1347 = vunpack.c.l.bf16 %v1315
      %v1348 = vunpack.c.l.bf16 %v1316
      %v1349 = vunpack.c.l.bf16 %v1317
      %v1350 = vunpack.c.l.bf16 %v1318
      %v1351 = vunpack.c.l.bf16 %v1319
      %v1352 = vunpack.c.l.bf16 %v1320
      %v1353 = vunpack.c.l.bf16 %v1321
      %v1354 = vunpack.c.l.bf16 %v1322
      %v1355 = vunpack.c.l.bf16 %v1323
      %v1356 = vunpack.c.l.bf16 %v1324
      %v1357 = vunpack.c.l.bf16 %v1325
      %v1358 = vunpack.c.l.bf16 %v1326
      %v1359 = vunpack.c.l.bf16 %v1327
      %v1360 = vunpack.c.l.bf16 %v1328
      %v1361 = vunpack.c.l.bf16 %v1329
      %v1362 = vunpack.c.l.bf16 %v1330
      %v1363 = vunpack.c.l.bf16 %v1331
      %v1364 = vunpack.c.l.bf16 %v1332
      %v1365 = vunpack.c.l.bf16 %v1333
      %v1366 = vunpack.c.l.bf16 %v1334
      %v1367 = vunpack.c.l.bf16 %v1335
      %v1368 = vunpack.c.l.bf16 %v1336
      %v1369 = vunpack.c.l.bf16 %v1337
      %v1370 = vunpack.c.l.bf16 %v1338
      %s1371 = scalar_lea.vmem %s9, 5
      %v1372 = vld [vmem:[%s1371] sm:$0x1]
      %v1374 = vlaneseq
      %v1375 = vshrl.u32 %v1374, 7
      %v1376 = vsub.s32 0, %v1375
      %v1377 = vrot.slane %v1372, %v1376
      %v1379 = vmul.f32 %v1339, %v1377
      %v1380 = vmul.f32 %v1340, %v1377
      %v1381 = vmul.f32 %v1341, %v1377
      %v1382 = vmul.f32 %v1342, %v1377
      %v1383 = vmul.f32 %v1343, %v1377
      %v1384 = vmul.f32 %v1344, %v1377
      %v1385 = vmul.f32 %v1345, %v1377
      %v1386 = vmul.f32 %v1346, %v1377
      %v1387 = vmul.f32 %v1347, %v1377
      %v1388 = vmul.f32 %v1348, %v1377
      %v1389 = vmul.f32 %v1349, %v1377
      %v1390 = vmul.f32 %v1350, %v1377
      %v1391 = vmul.f32 %v1351, %v1377
      %v1392 = vmul.f32 %v1352, %v1377
      %v1393 = vmul.f32 %v1353, %v1377
      %v1394 = vmul.f32 %v1354, %v1377
      %v1395 = vmul.f32 %v1355, %v1377
      %v1396 = vmul.f32 %v1356, %v1377
      %v1397 = vmul.f32 %v1357, %v1377
      %v1398 = vmul.f32 %v1358, %v1377
      %v1399 = vmul.f32 %v1359, %v1377
      %v1400 = vmul.f32 %v1360, %v1377
      %v1401 = vmul.f32 %v1361, %v1377
      %v1402 = vmul.f32 %v1362, %v1377
      %v1403 = vmul.f32 %v1363, %v1377
      %v1404 = vmul.f32 %v1364, %v1377
      %v1405 = vmul.f32 %v1365, %v1377
      %v1406 = vmul.f32 %v1366, %v1377
      %v1407 = vmul.f32 %v1367, %v1377
      %v1408 = vmul.f32 %v1368, %v1377
      %v1409 = vmul.f32 %v1369, %v1377
      %v1410 = vmul.f32 %v1370, %v1377
      %v1411 = vadd.f32 %v1275, %v1379
      %v1412 = vadd.f32 %v1276, %v1380
      %v1413 = vadd.f32 %v1277, %v1381
      %v1414 = vadd.f32 %v1278, %v1382
      %v1415 = vadd.f32 %v1279, %v1383
      %v1416 = vadd.f32 %v1280, %v1384
      %v1417 = vadd.f32 %v1281, %v1385
      %v1418 = vadd.f32 %v1282, %v1386
      %v1419 = vadd.f32 %v1283, %v1387
      %v1420 = vadd.f32 %v1284, %v1388
      %v1421 = vadd.f32 %v1285, %v1389
      %v1422 = vadd.f32 %v1286, %v1390
      %v1423 = vadd.f32 %v1287, %v1391
      %v1424 = vadd.f32 %v1288, %v1392
      %v1425 = vadd.f32 %v1289, %v1393
      %v1426 = vadd.f32 %v1290, %v1394
      %v1427 = vadd.f32 %v1291, %v1395
      %v1428 = vadd.f32 %v1292, %v1396
      %v1429 = vadd.f32 %v1293, %v1397
      %v1430 = vadd.f32 %v1294, %v1398
      %v1431 = vadd.f32 %v1295, %v1399
      %v1432 = vadd.f32 %v1296, %v1400
      %v1433 = vadd.f32 %v1297, %v1401
      %v1434 = vadd.f32 %v1298, %v1402
      %v1435 = vadd.f32 %v1299, %v1403
      %v1436 = vadd.f32 %v1300, %v1404
      %v1437 = vadd.f32 %v1301, %v1405
      %v1438 = vadd.f32 %v1302, %v1406
      %v1439 = vadd.f32 %v1303, %v1407
      %v1440 = vadd.f32 %v1304, %v1408
      %v1441 = vadd.f32 %v1305, %v1409
      %v1442 = vadd.f32 %v1306, %v1410
      %v1443 = vld [vmem:[%s600] sm:$0xf]
      %v1444 = vld [vmem:[%s600 + $0x4] sm:$0xf]
      %v1445 = vld [vmem:[%s600 + $0x8] sm:$0xf]
      %v1446 = vld [vmem:[%s600 + $0xc] sm:$0xf]
      %v1447 = vld [vmem:[%s600 + $0x10] sm:$0xf]
      %v1448 = vld [vmem:[%s600 + $0x14] sm:$0xf]
      %v1449 = vld [vmem:[%s600 + $0x18] sm:$0xf]
      %v1450 = vld [vmem:[%s600 + $0x1c] sm:$0xf]
      %v1451 = vld [vmem:[%s600 + $0x20] sm:$0xf]
      %v1452 = vld [vmem:[%s600 + $0x24] sm:$0xf]
      %v1453 = vld [vmem:[%s600 + $0x28] sm:$0xf]
      %v1454 = vld [vmem:[%s600 + $0x2c] sm:$0xf]
      %v1455 = vld [vmem:[%s600 + $0x30] sm:$0xf]
      %v1456 = vld [vmem:[%s600 + $0x34] sm:$0xf]
      %v1457 = vld [vmem:[%s600 + $0x38] sm:$0xf]
      %v1458 = vld [vmem:[%s600 + $0x3c] sm:$0xf]
      %v1459 = vld [vmem:[%s600 + $0x40] sm:$0xf]
      %v1460 = vld [vmem:[%s600 + $0x44] sm:$0xf]
      %v1461 = vld [vmem:[%s600 + $0x48] sm:$0xf]
      %v1462 = vld [vmem:[%s600 + $0x4c] sm:$0xf]
      %v1463 = vld [vmem:[%s600 + $0x50] sm:$0xf]
      %v1464 = vld [vmem:[%s600 + $0x54] sm:$0xf]
      %v1465 = vld [vmem:[%s600 + $0x58] sm:$0xf]
      %v1466 = vld [vmem:[%s600 + $0x5c] sm:$0xf]
      %v1467 = vld [vmem:[%s600 + $0x60] sm:$0xf]
      %v1468 = vld [vmem:[%s600 + $0x64] sm:$0xf]
      %v1469 = vld [vmem:[%s600 + $0x68] sm:$0xf]
      %v1470 = vld [vmem:[%s600 + $0x6c] sm:$0xf]
      %v1471 = vld [vmem:[%s600 + $0x70] sm:$0xf]
      %v1472 = vld [vmem:[%s600 + $0x74] sm:$0xf]
      %v1473 = vld [vmem:[%s600 + $0x78] sm:$0xf]
      %v1474 = vld [vmem:[%s600 + $0x7c] sm:$0xf]
      %v1475 = vunpack.c.l.bf16 %v1443
      %v1476 = vunpack.c.l.bf16 %v1444
      %v1477 = vunpack.c.l.bf16 %v1445
      %v1478 = vunpack.c.l.bf16 %v1446
      %v1479 = vunpack.c.l.bf16 %v1447
      %v1480 = vunpack.c.l.bf16 %v1448
      %v1481 = vunpack.c.l.bf16 %v1449
      %v1482 = vunpack.c.l.bf16 %v1450
      %v1483 = vunpack.c.l.bf16 %v1451
      %v1484 = vunpack.c.l.bf16 %v1452
      %v1485 = vunpack.c.l.bf16 %v1453
      %v1486 = vunpack.c.l.bf16 %v1454
      %v1487 = vunpack.c.l.bf16 %v1455
      %v1488 = vunpack.c.l.bf16 %v1456
      %v1489 = vunpack.c.l.bf16 %v1457
      %v1490 = vunpack.c.l.bf16 %v1458
      %v1491 = vunpack.c.l.bf16 %v1459
      %v1492 = vunpack.c.l.bf16 %v1460
      %v1493 = vunpack.c.l.bf16 %v1461
      %v1494 = vunpack.c.l.bf16 %v1462
      %v1495 = vunpack.c.l.bf16 %v1463
      %v1496 = vunpack.c.l.bf16 %v1464
      %v1497 = vunpack.c.l.bf16 %v1465
      %v1498 = vunpack.c.l.bf16 %v1466
      %v1499 = vunpack.c.l.bf16 %v1467
      %v1500 = vunpack.c.l.bf16 %v1468
      %v1501 = vunpack.c.l.bf16 %v1469
      %v1502 = vunpack.c.l.bf16 %v1470
      %v1503 = vunpack.c.l.bf16 %v1471
      %v1504 = vunpack.c.l.bf16 %v1472
      %v1505 = vunpack.c.l.bf16 %v1473
      %v1506 = vunpack.c.l.bf16 %v1474
      %s1507 = scalar_lea.vmem %s9, 6
      %v1508 = vld [vmem:[%s1507] sm:$0x1]
      %v1510 = vlaneseq
      %v1511 = vshrl.u32 %v1510, 7
      %v1512 = vsub.s32 0, %v1511
      %v1513 = vrot.slane %v1508, %v1512
      %v1515 = vmul.f32 %v1475, %v1513
      %v1516 = vmul.f32 %v1476, %v1513
      %v1517 = vmul.f32 %v1477, %v1513
      %v1518 = vmul.f32 %v1478, %v1513
      %v1519 = vmul.f32 %v1479, %v1513
      %v1520 = vmul.f32 %v1480, %v1513
      %v1521 = vmul.f32 %v1481, %v1513
      %v1522 = vmul.f32 %v1482, %v1513
      %v1523 = vmul.f32 %v1483, %v1513
      %v1524 = vmul.f32 %v1484, %v1513
      %v1525 = vmul.f32 %v1485, %v1513
      %v1526 = vmul.f32 %v1486, %v1513
      %v1527 = vmul.f32 %v1487, %v1513
      %v1528 = vmul.f32 %v1488, %v1513
      %v1529 = vmul.f32 %v1489, %v1513
      %v1530 = vmul.f32 %v1490, %v1513
      %v1531 = vmul.f32 %v1491, %v1513
      %v1532 = vmul.f32 %v1492, %v1513
      %v1533 = vmul.f32 %v1493, %v1513
      %v1534 = vmul.f32 %v1494, %v1513
      %v1535 = vmul.f32 %v1495, %v1513
      %v1536 = vmul.f32 %v1496, %v1513
      %v1537 = vmul.f32 %v1497, %v1513
      %v1538 = vmul.f32 %v1498, %v1513
      %v1539 = vmul.f32 %v1499, %v1513
      %v1540 = vmul.f32 %v1500, %v1513
      %v1541 = vmul.f32 %v1501, %v1513
      %v1542 = vmul.f32 %v1502, %v1513
      %v1543 = vmul.f32 %v1503, %v1513
      %v1544 = vmul.f32 %v1504, %v1513
      %v1545 = vmul.f32 %v1505, %v1513
      %v1546 = vmul.f32 %v1506, %v1513
      %v1547 = vadd.f32 %v1411, %v1515
      %v1548 = vadd.f32 %v1412, %v1516
      %v1549 = vadd.f32 %v1413, %v1517
      %v1550 = vadd.f32 %v1414, %v1518
      %v1551 = vadd.f32 %v1415, %v1519
      %v1552 = vadd.f32 %v1416, %v1520
      %v1553 = vadd.f32 %v1417, %v1521
      %v1554 = vadd.f32 %v1418, %v1522
      %v1555 = vadd.f32 %v1419, %v1523
      %v1556 = vadd.f32 %v1420, %v1524
      %v1557 = vadd.f32 %v1421, %v1525
      %v1558 = vadd.f32 %v1422, %v1526
      %v1559 = vadd.f32 %v1423, %v1527
      %v1560 = vadd.f32 %v1424, %v1528
      %v1561 = vadd.f32 %v1425, %v1529
      %v1562 = vadd.f32 %v1426, %v1530
      %v1563 = vadd.f32 %v1427, %v1531
      %v1564 = vadd.f32 %v1428, %v1532
      %v1565 = vadd.f32 %v1429, %v1533
      %v1566 = vadd.f32 %v1430, %v1534
      %v1567 = vadd.f32 %v1431, %v1535
      %v1568 = vadd.f32 %v1432, %v1536
      %v1569 = vadd.f32 %v1433, %v1537
      %v1570 = vadd.f32 %v1434, %v1538
      %v1571 = vadd.f32 %v1435, %v1539
      %v1572 = vadd.f32 %v1436, %v1540
      %v1573 = vadd.f32 %v1437, %v1541
      %v1574 = vadd.f32 %v1438, %v1542
      %v1575 = vadd.f32 %v1439, %v1543
      %v1576 = vadd.f32 %v1440, %v1544
      %v1577 = vadd.f32 %v1441, %v1545
      %v1578 = vadd.f32 %v1442, %v1546
      %v1579 = vld [vmem:[%s606] sm:$0xf]
      %v1580 = vld [vmem:[%s606 + $0x4] sm:$0xf]
      %v1581 = vld [vmem:[%s606 + $0x8] sm:$0xf]
      %v1582 = vld [vmem:[%s606 + $0xc] sm:$0xf]
      %v1583 = vld [vmem:[%s606 + $0x10] sm:$0xf]
      %v1584 = vld [vmem:[%s606 + $0x14] sm:$0xf]
      %v1585 = vld [vmem:[%s606 + $0x18] sm:$0xf]
      %v1586 = vld [vmem:[%s606 + $0x1c] sm:$0xf]
      %v1587 = vld [vmem:[%s606 + $0x20] sm:$0xf]
      %v1588 = vld [vmem:[%s606 + $0x24] sm:$0xf]
      %v1589 = vld [vmem:[%s606 + $0x28] sm:$0xf]
      %v1590 = vld [vmem:[%s606 + $0x2c] sm:$0xf]
      %v1591 = vld [vmem:[%s606 + $0x30] sm:$0xf]
      %v1592 = vld [vmem:[%s606 + $0x34] sm:$0xf]
      %v1593 = vld [vmem:[%s606 + $0x38] sm:$0xf]
      %v1594 = vld [vmem:[%s606 + $0x3c] sm:$0xf]
      %v1595 = vld [vmem:[%s606 + $0x40] sm:$0xf]
      %v1596 = vld [vmem:[%s606 + $0x44] sm:$0xf]
      %v1597 = vld [vmem:[%s606 + $0x48] sm:$0xf]
      %v1598 = vld [vmem:[%s606 + $0x4c] sm:$0xf]
      %v1599 = vld [vmem:[%s606 + $0x50] sm:$0xf]
      %v1600 = vld [vmem:[%s606 + $0x54] sm:$0xf]
      %v1601 = vld [vmem:[%s606 + $0x58] sm:$0xf]
      %v1602 = vld [vmem:[%s606 + $0x5c] sm:$0xf]
      %v1603 = vld [vmem:[%s606 + $0x60] sm:$0xf]
      %v1604 = vld [vmem:[%s606 + $0x64] sm:$0xf]
      %v1605 = vld [vmem:[%s606 + $0x68] sm:$0xf]
      %v1606 = vld [vmem:[%s606 + $0x6c] sm:$0xf]
      %v1607 = vld [vmem:[%s606 + $0x70] sm:$0xf]
      %v1608 = vld [vmem:[%s606 + $0x74] sm:$0xf]
      %v1609 = vld [vmem:[%s606 + $0x78] sm:$0xf]
      %v1610 = vld [vmem:[%s606 + $0x7c] sm:$0xf]
      %v1611 = vunpack.c.l.bf16 %v1579
      %v1612 = vunpack.c.l.bf16 %v1580
      %v1613 = vunpack.c.l.bf16 %v1581
      %v1614 = vunpack.c.l.bf16 %v1582
      %v1615 = vunpack.c.l.bf16 %v1583
      %v1616 = vunpack.c.l.bf16 %v1584
      %v1617 = vunpack.c.l.bf16 %v1585
      %v1618 = vunpack.c.l.bf16 %v1586
      %v1619 = vunpack.c.l.bf16 %v1587
      %v1620 = vunpack.c.l.bf16 %v1588
      %v1621 = vunpack.c.l.bf16 %v1589
      %v1622 = vunpack.c.l.bf16 %v1590
      %v1623 = vunpack.c.l.bf16 %v1591
      %v1624 = vunpack.c.l.bf16 %v1592
      %v1625 = vunpack.c.l.bf16 %v1593
      %v1626 = vunpack.c.l.bf16 %v1594
      %v1627 = vunpack.c.l.bf16 %v1595
      %v1628 = vunpack.c.l.bf16 %v1596
      %v1629 = vunpack.c.l.bf16 %v1597
      %v1630 = vunpack.c.l.bf16 %v1598
      %v1631 = vunpack.c.l.bf16 %v1599
      %v1632 = vunpack.c.l.bf16 %v1600
      %v1633 = vunpack.c.l.bf16 %v1601
      %v1634 = vunpack.c.l.bf16 %v1602
      %v1635 = vunpack.c.l.bf16 %v1603
      %v1636 = vunpack.c.l.bf16 %v1604
      %v1637 = vunpack.c.l.bf16 %v1605
      %v1638 = vunpack.c.l.bf16 %v1606
      %v1639 = vunpack.c.l.bf16 %v1607
      %v1640 = vunpack.c.l.bf16 %v1608
      %v1641 = vunpack.c.l.bf16 %v1609
      %v1642 = vunpack.c.l.bf16 %v1610
      %s1643 = scalar_lea.vmem %s9, 7
      %v1644 = vld [vmem:[%s1643] sm:$0x1]
      %v1646 = vlaneseq
      %v1647 = vshrl.u32 %v1646, 7
      %v1648 = vsub.s32 0, %v1647
      %v1649 = vrot.slane %v1644, %v1648
      %v1651 = vmul.f32 %v1611, %v1649
      %v1652 = vmul.f32 %v1612, %v1649
      %v1653 = vmul.f32 %v1613, %v1649
      %v1654 = vmul.f32 %v1614, %v1649
      %v1655 = vmul.f32 %v1615, %v1649
      %v1656 = vmul.f32 %v1616, %v1649
      %v1657 = vmul.f32 %v1617, %v1649
      %v1658 = vmul.f32 %v1618, %v1649
      %v1659 = vmul.f32 %v1619, %v1649
      %v1660 = vmul.f32 %v1620, %v1649
      %v1661 = vmul.f32 %v1621, %v1649
      %v1662 = vmul.f32 %v1622, %v1649
      %v1663 = vmul.f32 %v1623, %v1649
      %v1664 = vmul.f32 %v1624, %v1649
      %v1665 = vmul.f32 %v1625, %v1649
      %v1666 = vmul.f32 %v1626, %v1649
      %v1667 = vmul.f32 %v1627, %v1649
      %v1668 = vmul.f32 %v1628, %v1649
      %v1669 = vmul.f32 %v1629, %v1649
      %v1670 = vmul.f32 %v1630, %v1649
      %v1671 = vmul.f32 %v1631, %v1649
      %v1672 = vmul.f32 %v1632, %v1649
      %v1673 = vmul.f32 %v1633, %v1649
      %v1674 = vmul.f32 %v1634, %v1649
      %v1675 = vmul.f32 %v1635, %v1649
      %v1676 = vmul.f32 %v1636, %v1649
      %v1677 = vmul.f32 %v1637, %v1649
      %v1678 = vmul.f32 %v1638, %v1649
      %v1679 = vmul.f32 %v1639, %v1649
      %v1680 = vmul.f32 %v1640, %v1649
      %v1681 = vmul.f32 %v1641, %v1649
      %v1682 = vmul.f32 %v1642, %v1649
      %v1683 = vadd.f32 %v1547, %v1651
      %v1684 = vadd.f32 %v1548, %v1652
      %v1685 = vadd.f32 %v1549, %v1653
      %v1686 = vadd.f32 %v1550, %v1654
      %v1687 = vadd.f32 %v1551, %v1655
      %v1688 = vadd.f32 %v1552, %v1656
      %v1689 = vadd.f32 %v1553, %v1657
      %v1690 = vadd.f32 %v1554, %v1658
      %v1691 = vadd.f32 %v1555, %v1659
      %v1692 = vadd.f32 %v1556, %v1660
      %v1693 = vadd.f32 %v1557, %v1661
      %v1694 = vadd.f32 %v1558, %v1662
      %v1695 = vadd.f32 %v1559, %v1663
      %v1696 = vadd.f32 %v1560, %v1664
      %v1697 = vadd.f32 %v1561, %v1665
      %v1698 = vadd.f32 %v1562, %v1666
      %v1699 = vadd.f32 %v1563, %v1667
      %v1700 = vadd.f32 %v1564, %v1668
      %v1701 = vadd.f32 %v1565, %v1669
      %v1702 = vadd.f32 %v1566, %v1670
      %v1703 = vadd.f32 %v1567, %v1671
      %v1704 = vadd.f32 %v1568, %v1672
      %v1705 = vadd.f32 %v1569, %v1673
      %v1706 = vadd.f32 %v1570, %v1674
      %v1707 = vadd.f32 %v1571, %v1675
      %v1708 = vadd.f32 %v1572, %v1676
      %v1709 = vadd.f32 %v1573, %v1677
      %v1710 = vadd.f32 %v1574, %v1678
      %v1711 = vadd.f32 %v1575, %v1679
      %v1712 = vadd.f32 %v1576, %v1680
      %v1713 = vadd.f32 %v1577, %v1681
      %v1714 = vadd.f32 %v1578, %v1682
      %v1715 = vld [vmem:[%s612] sm:$0xf]
      %v1716 = vld [vmem:[%s612 + $0x4] sm:$0xf]
      %v1717 = vld [vmem:[%s612 + $0x8] sm:$0xf]
      %v1718 = vld [vmem:[%s612 + $0xc] sm:$0xf]
      %v1719 = vld [vmem:[%s612 + $0x10] sm:$0xf]
      %v1720 = vld [vmem:[%s612 + $0x14] sm:$0xf]
      %v1721 = vld [vmem:[%s612 + $0x18] sm:$0xf]
      %v1722 = vld [vmem:[%s612 + $0x1c] sm:$0xf]
      %v1723 = vld [vmem:[%s612 + $0x20] sm:$0xf]
      %v1724 = vld [vmem:[%s612 + $0x24] sm:$0xf]
      %v1725 = vld [vmem:[%s612 + $0x28] sm:$0xf]
      %v1726 = vld [vmem:[%s612 + $0x2c] sm:$0xf]
      %v1727 = vld [vmem:[%s612 + $0x30] sm:$0xf]
      %v1728 = vld [vmem:[%s612 + $0x34] sm:$0xf]
      %v1729 = vld [vmem:[%s612 + $0x38] sm:$0xf]
      %v1730 = vld [vmem:[%s612 + $0x3c] sm:$0xf]
      %v1731 = vld [vmem:[%s612 + $0x40] sm:$0xf]
      %v1732 = vld [vmem:[%s612 + $0x44] sm:$0xf]
      %v1733 = vld [vmem:[%s612 + $0x48] sm:$0xf]
      %v1734 = vld [vmem:[%s612 + $0x4c] sm:$0xf]
      %v1735 = vld [vmem:[%s612 + $0x50] sm:$0xf]
      %v1736 = vld [vmem:[%s612 + $0x54] sm:$0xf]
      %v1737 = vld [vmem:[%s612 + $0x58] sm:$0xf]
      %v1738 = vld [vmem:[%s612 + $0x5c] sm:$0xf]
      %v1739 = vld [vmem:[%s612 + $0x60] sm:$0xf]
      %v1740 = vld [vmem:[%s612 + $0x64] sm:$0xf]
      %v1741 = vld [vmem:[%s612 + $0x68] sm:$0xf]
      %v1742 = vld [vmem:[%s612 + $0x6c] sm:$0xf]
      %v1743 = vld [vmem:[%s612 + $0x70] sm:$0xf]
      %v1744 = vld [vmem:[%s612 + $0x74] sm:$0xf]
      %v1745 = vld [vmem:[%s612 + $0x78] sm:$0xf]
      %v1746 = vld [vmem:[%s612 + $0x7c] sm:$0xf]
      %v1747 = vunpack.c.l.bf16 %v1715
      %v1748 = vunpack.c.l.bf16 %v1716
      %v1749 = vunpack.c.l.bf16 %v1717
      %v1750 = vunpack.c.l.bf16 %v1718
      %v1751 = vunpack.c.l.bf16 %v1719
      %v1752 = vunpack.c.l.bf16 %v1720
      %v1753 = vunpack.c.l.bf16 %v1721
      %v1754 = vunpack.c.l.bf16 %v1722
      %v1755 = vunpack.c.l.bf16 %v1723
      %v1756 = vunpack.c.l.bf16 %v1724
      %v1757 = vunpack.c.l.bf16 %v1725
      %v1758 = vunpack.c.l.bf16 %v1726
      %v1759 = vunpack.c.l.bf16 %v1727
      %v1760 = vunpack.c.l.bf16 %v1728
      %v1761 = vunpack.c.l.bf16 %v1729
      %v1762 = vunpack.c.l.bf16 %v1730
      %v1763 = vunpack.c.l.bf16 %v1731
      %v1764 = vunpack.c.l.bf16 %v1732
      %v1765 = vunpack.c.l.bf16 %v1733
      %v1766 = vunpack.c.l.bf16 %v1734
      %v1767 = vunpack.c.l.bf16 %v1735
      %v1768 = vunpack.c.l.bf16 %v1736
      %v1769 = vunpack.c.l.bf16 %v1737
      %v1770 = vunpack.c.l.bf16 %v1738
      %v1771 = vunpack.c.l.bf16 %v1739
      %v1772 = vunpack.c.l.bf16 %v1740
      %v1773 = vunpack.c.l.bf16 %v1741
      %v1774 = vunpack.c.l.bf16 %v1742
      %v1775 = vunpack.c.l.bf16 %v1743
      %v1776 = vunpack.c.l.bf16 %v1744
      %v1777 = vunpack.c.l.bf16 %v1745
      %v1778 = vunpack.c.l.bf16 %v1746
      %s1779 = scalar_lea.vmem %s9, 8
      %v1780 = vld [vmem:[%s1779] sm:$0x1]
      %v1782 = vlaneseq
      %v1783 = vshrl.u32 %v1782, 7
      %v1784 = vsub.s32 0, %v1783
      %v1785 = vrot.slane %v1780, %v1784
      %v1787 = vmul.f32 %v1747, %v1785
      %v1788 = vmul.f32 %v1748, %v1785
      %v1789 = vmul.f32 %v1749, %v1785
      %v1790 = vmul.f32 %v1750, %v1785
      %v1791 = vmul.f32 %v1751, %v1785
      %v1792 = vmul.f32 %v1752, %v1785
      %v1793 = vmul.f32 %v1753, %v1785
      %v1794 = vmul.f32 %v1754, %v1785
      %v1795 = vmul.f32 %v1755, %v1785
      %v1796 = vmul.f32 %v1756, %v1785
      %v1797 = vmul.f32 %v1757, %v1785
      %v1798 = vmul.f32 %v1758, %v1785
      %v1799 = vmul.f32 %v1759, %v1785
      %v1800 = vmul.f32 %v1760, %v1785
      %v1801 = vmul.f32 %v1761, %v1785
      %v1802 = vmul.f32 %v1762, %v1785
      %v1803 = vmul.f32 %v1763, %v1785
      %v1804 = vmul.f32 %v1764, %v1785
      %v1805 = vmul.f32 %v1765, %v1785
      %v1806 = vmul.f32 %v1766, %v1785
      %v1807 = vmul.f32 %v1767, %v1785
      %v1808 = vmul.f32 %v1768, %v1785
      %v1809 = vmul.f32 %v1769, %v1785
      %v1810 = vmul.f32 %v1770, %v1785
      %v1811 = vmul.f32 %v1771, %v1785
      %v1812 = vmul.f32 %v1772, %v1785
      %v1813 = vmul.f32 %v1773, %v1785
      %v1814 = vmul.f32 %v1774, %v1785
      %v1815 = vmul.f32 %v1775, %v1785
      %v1816 = vmul.f32 %v1776, %v1785
      %v1817 = vmul.f32 %v1777, %v1785
      %v1818 = vmul.f32 %v1778, %v1785
      %v1819 = vadd.f32 %v1683, %v1787
      %v1820 = vadd.f32 %v1684, %v1788
      %v1821 = vadd.f32 %v1685, %v1789
      %v1822 = vadd.f32 %v1686, %v1790
      %v1823 = vadd.f32 %v1687, %v1791
      %v1824 = vadd.f32 %v1688, %v1792
      %v1825 = vadd.f32 %v1689, %v1793
      %v1826 = vadd.f32 %v1690, %v1794
      %v1827 = vadd.f32 %v1691, %v1795
      %v1828 = vadd.f32 %v1692, %v1796
      %v1829 = vadd.f32 %v1693, %v1797
      %v1830 = vadd.f32 %v1694, %v1798
      %v1831 = vadd.f32 %v1695, %v1799
      %v1832 = vadd.f32 %v1696, %v1800
      %v1833 = vadd.f32 %v1697, %v1801
      %v1834 = vadd.f32 %v1698, %v1802
      %v1835 = vadd.f32 %v1699, %v1803
      %v1836 = vadd.f32 %v1700, %v1804
      %v1837 = vadd.f32 %v1701, %v1805
      %v1838 = vadd.f32 %v1702, %v1806
      %v1839 = vadd.f32 %v1703, %v1807
      %v1840 = vadd.f32 %v1704, %v1808
      %v1841 = vadd.f32 %v1705, %v1809
      %v1842 = vadd.f32 %v1706, %v1810
      %v1843 = vadd.f32 %v1707, %v1811
      %v1844 = vadd.f32 %v1708, %v1812
      %v1845 = vadd.f32 %v1709, %v1813
      %v1846 = vadd.f32 %v1710, %v1814
      %v1847 = vadd.f32 %v1711, %v1815
      %v1848 = vadd.f32 %v1712, %v1816
      %v1849 = vadd.f32 %v1713, %v1817
      %v1850 = vadd.f32 %v1714, %v1818
      %v1851 = vmax.f32 %v1819, 0.0
      %v1852 = vmax.f32 %v1820, 0.0
      %v1853 = vmax.f32 %v1821, 0.0
      %v1854 = vmax.f32 %v1822, 0.0
      %v1855 = vmax.f32 %v1823, 0.0
      %v1856 = vmax.f32 %v1824, 0.0
      %v1857 = vmax.f32 %v1825, 0.0
      %v1858 = vmax.f32 %v1826, 0.0
      %v1859 = vmax.f32 %v1827, 0.0
      %v1860 = vmax.f32 %v1828, 0.0
      %v1861 = vmax.f32 %v1829, 0.0
      %v1862 = vmax.f32 %v1830, 0.0
      %v1863 = vmax.f32 %v1831, 0.0
      %v1864 = vmax.f32 %v1832, 0.0
      %v1865 = vmax.f32 %v1833, 0.0
      %v1866 = vmax.f32 %v1834, 0.0
      %v1867 = vmax.f32 %v1835, 0.0
      %v1868 = vmax.f32 %v1836, 0.0
      %v1869 = vmax.f32 %v1837, 0.0
      %v1870 = vmax.f32 %v1838, 0.0
      %v1871 = vmax.f32 %v1839, 0.0
      %v1872 = vmax.f32 %v1840, 0.0
      %v1873 = vmax.f32 %v1841, 0.0
      %v1874 = vmax.f32 %v1842, 0.0
      %v1875 = vmax.f32 %v1843, 0.0
      %v1876 = vmax.f32 %v1844, 0.0
      %v1877 = vmax.f32 %v1845, 0.0
      %v1878 = vmax.f32 %v1846, 0.0
      %v1879 = vmax.f32 %v1847, 0.0
      %v1880 = vmax.f32 %v1848, 0.0
      %v1881 = vmax.f32 %v1849, 0.0
      %v1882 = vmax.f32 %v1850, 0.0
      %v1883 = vmin.f32 %v1851, 6.0
      %v1884 = vmin.f32 %v1852, 6.0
      %v1885 = vmin.f32 %v1853, 6.0
      %v1886 = vmin.f32 %v1854, 6.0
      %v1887 = vmin.f32 %v1855, 6.0
      %v1888 = vmin.f32 %v1856, 6.0
      %v1889 = vmin.f32 %v1857, 6.0
      %v1890 = vmin.f32 %v1858, 6.0
      %v1891 = vmin.f32 %v1859, 6.0
      %v1892 = vmin.f32 %v1860, 6.0
      %v1893 = vmin.f32 %v1861, 6.0
      %v1894 = vmin.f32 %v1862, 6.0
      %v1895 = vmin.f32 %v1863, 6.0
      %v1896 = vmin.f32 %v1864, 6.0
      %v1897 = vmin.f32 %v1865, 6.0
      %v1898 = vmin.f32 %v1866, 6.0
      %v1899 = vmin.f32 %v1867, 6.0
      %v1900 = vmin.f32 %v1868, 6.0
      %v1901 = vmin.f32 %v1869, 6.0
      %v1902 = vmin.f32 %v1870, 6.0
      %v1903 = vmin.f32 %v1871, 6.0
      %v1904 = vmin.f32 %v1872, 6.0
      %v1905 = vmin.f32 %v1873, 6.0
      %v1906 = vmin.f32 %v1874, 6.0
      %v1907 = vmin.f32 %v1875, 6.0
      %v1908 = vmin.f32 %v1876, 6.0
      %v1909 = vmin.f32 %v1877, 6.0
      %v1910 = vmin.f32 %v1878, 6.0
      %v1911 = vmin.f32 %v1879, 6.0
      %v1912 = vmin.f32 %v1880, 6.0
      %v1913 = vmin.f32 %v1881, 6.0
      %v1914 = vmin.f32 %v1882, 6.0
      %v1915 = vpack.c.bf16 %v1884, %v1883
      %v1916 = vpack.c.bf16 %v1886, %v1885
      %v1917 = vpack.c.bf16 %v1888, %v1887
      %v1918 = vpack.c.bf16 %v1890, %v1889
      %v1919 = vpack.c.bf16 %v1892, %v1891
      %v1920 = vpack.c.bf16 %v1894, %v1893
      %v1921 = vpack.c.bf16 %v1896, %v1895
      %v1922 = vpack.c.bf16 %v1898, %v1897
      %v1923 = vpack.c.bf16 %v1900, %v1899
      %v1924 = vpack.c.bf16 %v1902, %v1901
      %v1925 = vpack.c.bf16 %v1904, %v1903
      %v1926 = vpack.c.bf16 %v1906, %v1905
      %v1927 = vpack.c.bf16 %v1908, %v1907
      %v1928 = vpack.c.bf16 %v1910, %v1909
      %v1929 = vpack.c.bf16 %v1912, %v1911
      %v1930 = vpack.c.bf16 %v1914, %v1913
      %v1931 = vld [vmem:[%s11] sm:$0xf]
      %v1932 = vld [vmem:[%s11 + $0x4] sm:$0xf]
      %v1933 = vld [vmem:[%s11 + $0x8] sm:$0xf]
      %v1934 = vld [vmem:[%s11 + $0xc] sm:$0xf]
      %v1935 = vld [vmem:[%s11 + $0x10] sm:$0xf]
      %v1936 = vld [vmem:[%s11 + $0x14] sm:$0xf]
      %v1937 = vld [vmem:[%s11 + $0x18] sm:$0xf]
      %v1938 = vld [vmem:[%s11 + $0x1c] sm:$0xf]
      %v1939 = vld [vmem:[%s11 + $0x20] sm:$0xf]
      %v1940 = vld [vmem:[%s11 + $0x24] sm:$0xf]
      %v1941 = vld [vmem:[%s11 + $0x28] sm:$0xf]
      %v1942 = vld [vmem:[%s11 + $0x2c] sm:$0xf]
      %v1943 = vld [vmem:[%s11 + $0x30] sm:$0xf]
      %v1944 = vld [vmem:[%s11 + $0x34] sm:$0xf]
      %v1945 = vld [vmem:[%s11 + $0x38] sm:$0xf]
      %v1946 = vld [vmem:[%s11 + $0x3c] sm:$0xf]
      %v1947 = vld [vmem:[%s12] sm:$0x1]
      %v1949 = vlaneseq
      %v1950 = vshrl.u32 %v1949, 7
      %v1951 = vsub.s32 0, %v1950
      %v1952 = vrot.slane %v1947, %v1951
      %v1970 = vunpack.c.l.b16 %v1931
      %v1971 = vunpack.c.l.b16 %v1932
      %v1972 = vunpack.c.l.b16 %v1933
      %v1973 = vunpack.c.l.b16 %v1934
      %v1974 = vunpack.c.l.b16 %v1935
      %v1975 = vunpack.c.l.b16 %v1936
      %v1976 = vunpack.c.l.b16 %v1937
      %v1977 = vunpack.c.l.b16 %v1938
      %v1978 = vunpack.c.l.b16 %v1939
      %v1979 = vunpack.c.l.b16 %v1940
      %v1980 = vunpack.c.l.b16 %v1941
      %v1981 = vunpack.c.l.b16 %v1942
      %v1982 = vunpack.c.l.b16 %v1943
      %v1983 = vunpack.c.l.b16 %v1944
      %v1984 = vunpack.c.l.b16 %v1945
      %v1985 = vunpack.c.l.b16 %v1946
      %v1986 = vpack.c.b16 %v1971, %v1970
      %v1987 = vpack.c.b16 %v1973, %v1972
      %v1988 = vpack.c.b16 %v1975, %v1974
      %v1989 = vpack.c.b16 %v1977, %v1976
      %v1990 = vpack.c.b16 %v1979, %v1978
      %v1991 = vpack.c.b16 %v1981, %v1980
      %v1992 = vpack.c.b16 %v1983, %v1982
      %v1993 = vpack.c.b16 %v1985, %v1984
      %2002 = vmatprep.subr.bf16.mxu0 0
      %2003 = vmatpush1.bf16.msra.mxu0 %v1986
      %2004 = vmatprep.subr.bf16.mxu0 0
      %2005 = vmatpush1.bf16.msra.mxu0 %v1987
      %2006 = vmatprep.subr.bf16.mxu0 0
      %2007 = vmatpush1.bf16.msra.mxu0 %v1988
      %2008 = vmatprep.subr.bf16.mxu0 0
      %2009 = vmatpush1.bf16.msra.mxu0 %v1989
      %2010 = vmatprep.subr.bf16.mxu0 0
      %2011 = vmatpush1.bf16.msra.mxu0 %v1990
      %2012 = vmatprep.subr.bf16.mxu0 0
      %2013 = vmatpush1.bf16.msra.mxu0 %v1991
      %2014 = vmatprep.subr.bf16.mxu0 0
      %2015 = vmatpush1.bf16.msra.mxu0 %v1992
      %2016 = vmatprep.subr.bf16.mxu0 0
      %2017 = vmatpush1.bf16.msra.mxu0 %v1993
      %2018 = vmatprep.subr.bf16.mxu0 0
      %2019 = vmatpush1.bf16.msra.mxu0 0
      %2020 = vmatprep.subr.bf16.mxu0 0
      %2021 = vmatpush1.bf16.msra.mxu0 0
      %2022 = vmatprep.subr.bf16.mxu0 0
      %2023 = vmatpush1.bf16.msra.mxu0 0
      %2024 = vmatprep.subr.bf16.mxu0 0
      %2025 = vmatpush1.bf16.msra.mxu0 0
      %2026 = vmatprep.subr.bf16.mxu0 0
      %2027 = vmatpush1.bf16.msra.mxu0 0
      %2028 = vmatprep.subr.bf16.mxu0 0
      %2029 = vmatpush1.bf16.msra.mxu0 0
      %2030 = vmatprep.subr.bf16.mxu0 0
      %2031 = vmatpush1.bf16.msra.mxu0 0
      %2032 = vmatprep.subr.bf16.mxu0 0
      %2033 = vmatpush1.bf16.msra.mxu0 0
      %2034 = vmatprep.mubr.bf16.mxu0 0
      %2035 = vmatmul.mubr.bf16.gmra.mrb[0].mxu0 %v1915
      %v2036 = vpop.f32.mrb[0].mxu0
      %v2037 = vadd.f32 %v1952, %v2036
      %v2038 = vpop.f32.mrb[0].mxu0
      %v2039 = vpop.f32.mrb[0].mxu0
      %v2040 = vadd.f32 %v1952, %v2039
      %v2041 = vpop.f32.mrb[0].mxu0
      %2042 = vmatprep.mubr.bf16.mxu0 0
      %2043 = vmatmul.mubr.bf16.gmra.mrb[0].mxu0 %v1916
      %v2044 = vpop.f32.mrb[0].mxu0
      %v2045 = vadd.f32 %v1952, %v2044
      %v2046 = vpop.f32.mrb[0].mxu0
      %v2047 = vpop.f32.mrb[0].mxu0
      %v2048 = vadd.f32 %v1952, %v2047
      %v2049 = vpop.f32.mrb[0].mxu0
      %2050 = vmatprep.mubr.bf16.mxu0 0
      %2051 = vmatmul.mubr.bf16.gmra.mrb[0].mxu0 %v1917
      %v2052 = vpop.f32.mrb[0].mxu0
      %v2053 = vadd.f32 %v1952, %v2052
      %v2054 = vpop.f32.mrb[0].mxu0
      %v2055 = vpop.f32.mrb[0].mxu0
      %v2056 = vadd.f32 %v1952, %v2055
      %v2057 = vpop.f32.mrb[0].mxu0
      %2058 = vmatprep.mubr.bf16.mxu0 0
      %2059 = vmatmul.mubr.bf16.gmra.mrb[0].mxu0 %v1918
      %v2060 = vpop.f32.mrb[0].mxu0
      %v2061 = vadd.f32 %v1952, %v2060
      %v2062 = vpop.f32.mrb[0].mxu0
      %v2063 = vpop.f32.mrb[0].mxu0
      %v2064 = vadd.f32 %v1952, %v2063
      %v2065 = vpop.f32.mrb[0].mxu0
      %2066 = vmatprep.mubr.bf16.mxu0 0
      %2067 = vmatmul.mubr.bf16.gmra.mrb[0].mxu0 %v1919
      %v2068 = vpop.f32.mrb[0].mxu0
      %v2069 = vadd.f32 %v1952, %v2068
      %v2070 = vpop.f32.mrb[0].mxu0
      %v2071 = vpop.f32.mrb[0].mxu0
      %v2072 = vadd.f32 %v1952, %v2071
      %v2073 = vpop.f32.mrb[0].mxu0
      %2074 = vmatprep.mubr.bf16.mxu0 0
      %2075 = vmatmul.mubr.bf16.gmra.mrb[0].mxu0 %v1920
      %v2076 = vpop.f32.mrb[0].mxu0
      %v2077 = vadd.f32 %v1952, %v2076
      %v2078 = vpop.f32.mrb[0].mxu0
      %v2079 = vpop.f32.mrb[0].mxu0
      %v2080 = vadd.f32 %v1952, %v2079
      %v2081 = vpop.f32.mrb[0].mxu0
      %2082 = vmatprep.mubr.bf16.mxu0 0
      %2083 = vmatmul.mubr.bf16.gmra.mrb[0].mxu0 %v1921
      %v2084 = vpop.f32.mrb[0].mxu0
      %v2085 = vadd.f32 %v1952, %v2084
      %v2086 = vpop.f32.mrb[0].mxu0
      %v2087 = vpop.f32.mrb[0].mxu0
      %v2088 = vadd.f32 %v1952, %v2087
      %v2089 = vpop.f32.mrb[0].mxu0
      %2090 = vmatprep.mubr.bf16.mxu0 0
      %2091 = vmatmul.mubr.bf16.gmra.mrb[0].mxu0 %v1922
      %v2092 = vpop.f32.mrb[0].mxu0
      %v2093 = vadd.f32 %v1952, %v2092
      %v2094 = vpop.f32.mrb[0].mxu0
      %v2095 = vpop.f32.mrb[0].mxu0
      %v2096 = vadd.f32 %v1952, %v2095
      %v2097 = vpop.f32.mrb[0].mxu0
      %2098 = vmatprep.mubr.bf16.mxu0 0
      %2099 = vmatmul.mubr.bf16.gmra.mrb[0].mxu0 %v1923
      %v2100 = vpop.f32.mrb[0].mxu0
      %v2101 = vadd.f32 %v1952, %v2100
      %v2102 = vpop.f32.mrb[0].mxu0
      %v2103 = vpop.f32.mrb[0].mxu0
      %v2104 = vadd.f32 %v1952, %v2103
      %v2105 = vpop.f32.mrb[0].mxu0
      %2106 = vmatprep.mubr.bf16.mxu0 0
      %2107 = vmatmul.mubr.bf16.gmra.mrb[0].mxu0 %v1924
      %v2108 = vpop.f32.mrb[0].mxu0
      %v2109 = vadd.f32 %v1952, %v2108
      %v2110 = vpop.f32.mrb[0].mxu0
      %v2111 = vpop.f32.mrb[0].mxu0
      %v2112 = vadd.f32 %v1952, %v2111
      %v2113 = vpop.f32.mrb[0].mxu0
      %2114 = vmatprep.mubr.bf16.mxu0 0
      %2115 = vmatmul.mubr.bf16.gmra.mrb[0].mxu0 %v1925
      %v2116 = vpop.f32.mrb[0].mxu0
      %v2117 = vadd.f32 %v1952, %v2116
      %v2118 = vpop.f32.mrb[0].mxu0
      %v2119 = vpop.f32.mrb[0].mxu0
      %v2120 = vadd.f32 %v1952, %v2119
      %v2121 = vpop.f32.mrb[0].mxu0
      %2122 = vmatprep.mubr.bf16.mxu0 0
      %2123 = vmatmul.mubr.bf16.gmra.mrb[0].mxu0 %v1926
      %v2124 = vpop.f32.mrb[0].mxu0
      %v2125 = vadd.f32 %v1952, %v2124
      %v2126 = vpop.f32.mrb[0].mxu0
      %v2127 = vpop.f32.mrb[0].mxu0
      %v2128 = vadd.f32 %v1952, %v2127
      %v2129 = vpop.f32.mrb[0].mxu0
      %2130 = vmatprep.mubr.bf16.mxu0 0
      %2131 = vmatmul.mubr.bf16.gmra.mrb[0].mxu0 %v1927
      %v2132 = vpop.f32.mrb[0].mxu0
      %v2133 = vadd.f32 %v1952, %v2132
      %v2134 = vpop.f32.mrb[0].mxu0
      %v2135 = vpop.f32.mrb[0].mxu0
      %v2136 = vadd.f32 %v1952, %v2135
      %v2137 = vpop.f32.mrb[0].mxu0
      %2138 = vmatprep.mubr.bf16.mxu0 0
      %2139 = vmatmul.mubr.bf16.gmra.mrb[0].mxu0 %v1928
      %v2140 = vpop.f32.mrb[0].mxu0
      %v2141 = vadd.f32 %v1952, %v2140
      %v2142 = vpop.f32.mrb[0].mxu0
      %v2143 = vpop.f32.mrb[0].mxu0
      %v2144 = vadd.f32 %v1952, %v2143
      %v2145 = vpop.f32.mrb[0].mxu0
      %2146 = vmatprep.mubr.bf16.mxu0 0
      %2147 = vmatmul.mubr.bf16.gmra.mrb[0].mxu0 %v1929
      %v2148 = vpop.f32.mrb[0].mxu0
      %v2149 = vadd.f32 %v1952, %v2148
      %v2150 = vpop.f32.mrb[0].mxu0
      %v2151 = vpop.f32.mrb[0].mxu0
      %v2152 = vadd.f32 %v1952, %v2151
      %v2153 = vpop.f32.mrb[0].mxu0
      %2154 = vmatprep.mubr.bf16.mxu0 0
      %2155 = vmatmul.mubr.bf16.gmra.mrb[0].mxu0 %v1930
      %v2156 = vpop.f32.mrb[0].mxu0
      %v2157 = vadd.f32 %v1952, %v2156
      %v2158 = vpop.f32.mrb[0].mxu0
      %v2159 = vpop.f32.mrb[0].mxu0
      %v2160 = vadd.f32 %v1952, %v2159
      %v2161 = vpop.f32.mrb[0].mxu0
      %2162 = vdwg.mxu0
      %v2163 = vmax.f32 %v2037, 0.0
      %v2164 = vmax.f32 %v2040, 0.0
      %v2165 = vmax.f32 %v2045, 0.0
      %v2166 = vmax.f32 %v2048, 0.0
      %v2167 = vmax.f32 %v2053, 0.0
      %v2168 = vmax.f32 %v2056, 0.0
      %v2169 = vmax.f32 %v2061, 0.0
      %v2170 = vmax.f32 %v2064, 0.0
      %v2171 = vmax.f32 %v2069, 0.0
      %v2172 = vmax.f32 %v2072, 0.0
      %v2173 = vmax.f32 %v2077, 0.0
      %v2174 = vmax.f32 %v2080, 0.0
      %v2175 = vmax.f32 %v2085, 0.0
      %v2176 = vmax.f32 %v2088, 0.0
      %v2177 = vmax.f32 %v2093, 0.0
      %v2178 = vmax.f32 %v2096, 0.0
      %v2179 = vmax.f32 %v2101, 0.0
      %v2180 = vmax.f32 %v2104, 0.0
      %v2181 = vmax.f32 %v2109, 0.0
      %v2182 = vmax.f32 %v2112, 0.0
      %v2183 = vmax.f32 %v2117, 0.0
      %v2184 = vmax.f32 %v2120, 0.0
      %v2185 = vmax.f32 %v2125, 0.0
      %v2186 = vmax.f32 %v2128, 0.0
      %v2187 = vmax.f32 %v2133, 0.0
      %v2188 = vmax.f32 %v2136, 0.0
      %v2189 = vmax.f32 %v2141, 0.0
      %v2190 = vmax.f32 %v2144, 0.0
      %v2191 = vmax.f32 %v2149, 0.0
      %v2192 = vmax.f32 %v2152, 0.0
      %v2193 = vmax.f32 %v2157, 0.0
      %v2194 = vmax.f32 %v2160, 0.0
      %v2195 = vmin.f32 %v2163, 6.0
      %v2196 = vmin.f32 %v2164, 6.0
      %v2197 = vmin.f32 %v2165, 6.0
      %v2198 = vmin.f32 %v2166, 6.0
      %v2199 = vmin.f32 %v2167, 6.0
      %v2200 = vmin.f32 %v2168, 6.0
      %v2201 = vmin.f32 %v2169, 6.0
      %v2202 = vmin.f32 %v2170, 6.0
      %v2203 = vmin.f32 %v2171, 6.0
      %v2204 = vmin.f32 %v2172, 6.0
      %v2205 = vmin.f32 %v2173, 6.0
      %v2206 = vmin.f32 %v2174, 6.0
      %v2207 = vmin.f32 %v2175, 6.0
      %v2208 = vmin.f32 %v2176, 6.0
      %v2209 = vmin.f32 %v2177, 6.0
      %v2210 = vmin.f32 %v2178, 6.0
      %v2211 = vmin.f32 %v2179, 6.0
      %v2212 = vmin.f32 %v2180, 6.0
      %v2213 = vmin.f32 %v2181, 6.0
      %v2214 = vmin.f32 %v2182, 6.0
      %v2215 = vmin.f32 %v2183, 6.0
      %v2216 = vmin.f32 %v2184, 6.0
      %v2217 = vmin.f32 %v2185, 6.0
      %v2218 = vmin.f32 %v2186, 6.0
      %v2219 = vmin.f32 %v2187, 6.0
      %v2220 = vmin.f32 %v2188, 6.0
      %v2221 = vmin.f32 %v2189, 6.0
      %v2222 = vmin.f32 %v2190, 6.0
      %v2223 = vmin.f32 %v2191, 6.0
      %v2224 = vmin.f32 %v2192, 6.0
      %v2225 = vmin.f32 %v2193, 6.0
      %v2226 = vmin.f32 %v2194, 6.0
      %v2227 = vpack.c.bf16 %v2196, %v2195
      %v2228 = vpack.c.bf16 %v2198, %v2197
      %v2229 = vpack.c.bf16 %v2200, %v2199
      %v2230 = vpack.c.bf16 %v2202, %v2201
      %v2231 = vpack.c.bf16 %v2204, %v2203
      %v2232 = vpack.c.bf16 %v2206, %v2205
      %v2233 = vpack.c.bf16 %v2208, %v2207
      %v2234 = vpack.c.bf16 %v2210, %v2209
      %v2235 = vpack.c.bf16 %v2212, %v2211
      %v2236 = vpack.c.bf16 %v2214, %v2213
      %v2237 = vpack.c.bf16 %v2216, %v2215
      %v2238 = vpack.c.bf16 %v2218, %v2217
      %v2239 = vpack.c.bf16 %v2220, %v2219
      %v2240 = vpack.c.bf16 %v2222, %v2221
      %v2241 = vpack.c.bf16 %v2224, %v2223
      %v2242 = vpack.c.bf16 %v2226, %v2225
      %v2259 = vunpack.c.l.b16 %v2227
      %v2260 = vunpack.c.h.b16 %v2227
      %v2261 = vunpack.c.l.b16 %v2228
      %v2262 = vunpack.c.h.b16 %v2228
      %v2263 = vunpack.c.l.b16 %v2229
      %v2264 = vunpack.c.h.b16 %v2229
      %v2265 = vunpack.c.l.b16 %v2230
      %v2266 = vunpack.c.h.b16 %v2230
      %v2267 = vunpack.c.l.b16 %v2231
      %v2268 = vunpack.c.h.b16 %v2231
      %v2269 = vunpack.c.l.b16 %v2232
      %v2270 = vunpack.c.h.b16 %v2232
      %v2271 = vunpack.c.l.b16 %v2233
      %v2272 = vunpack.c.h.b16 %v2233
      %v2273 = vunpack.c.l.b16 %v2234
      %v2274 = vunpack.c.h.b16 %v2234
      %v2275 = vunpack.c.l.b16 %v2235
      %v2276 = vunpack.c.h.b16 %v2235
      %v2277 = vunpack.c.l.b16 %v2236
      %v2278 = vunpack.c.h.b16 %v2236
      %v2279 = vunpack.c.l.b16 %v2237
      %v2280 = vunpack.c.h.b16 %v2237
      %v2281 = vunpack.c.l.b16 %v2238
      %v2282 = vunpack.c.h.b16 %v2238
      %v2283 = vunpack.c.l.b16 %v2239
      %v2284 = vunpack.c.h.b16 %v2239
      %v2285 = vunpack.c.l.b16 %v2240
      %v2286 = vunpack.c.h.b16 %v2240
      %v2287 = vunpack.c.l.b16 %v2241
      %v2288 = vunpack.c.h.b16 %v2241
      %v2289 = vunpack.c.l.b16 %v2242
      %v2290 = vunpack.c.h.b16 %v2242
      %v2291 = vpack.c.b16 %v2259, %v2259
      %v2292 = vpack.c.b16 %v2260, %v2260
      %v2293 = vpack.c.b16 %v2261, %v2261
      %v2294 = vpack.c.b16 %v2262, %v2262
      %v2295 = vpack.c.b16 %v2263, %v2263
      %v2296 = vpack.c.b16 %v2264, %v2264
      %v2297 = vpack.c.b16 %v2265, %v2265
      %v2298 = vpack.c.b16 %v2266, %v2266
      %v2299 = vpack.c.b16 %v2267, %v2267
      %v2300 = vpack.c.b16 %v2268, %v2268
      %v2301 = vpack.c.b16 %v2269, %v2269
      %v2302 = vpack.c.b16 %v2270, %v2270
      %v2303 = vpack.c.b16 %v2271, %v2271
      %v2304 = vpack.c.b16 %v2272, %v2272
      %v2305 = vpack.c.b16 %v2273, %v2273
      %v2306 = vpack.c.b16 %v2274, %v2274
      %v2307 = vpack.c.b16 %v2275, %v2275
      %v2308 = vpack.c.b16 %v2276, %v2276
      %v2309 = vpack.c.b16 %v2277, %v2277
      %v2310 = vpack.c.b16 %v2278, %v2278
      %v2311 = vpack.c.b16 %v2279, %v2279
      %v2312 = vpack.c.b16 %v2280, %v2280
      %v2313 = vpack.c.b16 %v2281, %v2281
      %v2314 = vpack.c.b16 %v2282, %v2282
      %v2315 = vpack.c.b16 %v2283, %v2283
      %v2316 = vpack.c.b16 %v2284, %v2284
      %v2317 = vpack.c.b16 %v2285, %v2285
      %v2318 = vpack.c.b16 %v2286, %v2286
      %v2319 = vpack.c.b16 %v2287, %v2287
      %v2320 = vpack.c.b16 %v2288, %v2288
      %v2321 = vpack.c.b16 %v2289, %v2289
      %v2322 = vpack.c.b16 %v2290, %v2290
      %2355 = vst [vmem:[%s618] sm:$0xf] %v2291
      %2356 = vst [vmem:[%s618 + $0x4] sm:$0xf] %v2292
      %2357 = vst [vmem:[%s618 + $0x8] sm:$0xf] %v2293
      %2358 = vst [vmem:[%s618 + $0xc] sm:$0xf] %v2294
      %2359 = vst [vmem:[%s618 + $0x10] sm:$0xf] %v2295
      %2360 = vst [vmem:[%s618 + $0x14] sm:$0xf] %v2296
      %2361 = vst [vmem:[%s618 + $0x18] sm:$0xf] %v2297
      %2362 = vst [vmem:[%s618 + $0x1c] sm:$0xf] %v2298
      %2363 = vst [vmem:[%s618 + $0x20] sm:$0xf] %v2299
      %2364 = vst [vmem:[%s618 + $0x24] sm:$0xf] %v2300
      %2365 = vst [vmem:[%s618 + $0x28] sm:$0xf] %v2301
      %2366 = vst [vmem:[%s618 + $0x2c] sm:$0xf] %v2302
      %2367 = vst [vmem:[%s618 + $0x30] sm:$0xf] %v2303
      %2368 = vst [vmem:[%s618 + $0x34] sm:$0xf] %v2304
      %2369 = vst [vmem:[%s618 + $0x38] sm:$0xf] %v2305
      %2370 = vst [vmem:[%s618 + $0x3c] sm:$0xf] %v2306
      %2371 = vst [vmem:[%s618 + $0x40] sm:$0xf] %v2307
      %2372 = vst [vmem:[%s618 + $0x44] sm:$0xf] %v2308
      %2373 = vst [vmem:[%s618 + $0x48] sm:$0xf] %v2309
      %2374 = vst [vmem:[%s618 + $0x4c] sm:$0xf] %v2310
      %2375 = vst [vmem:[%s618 + $0x50] sm:$0xf] %v2311
      %2376 = vst [vmem:[%s618 + $0x54] sm:$0xf] %v2312
      %2377 = vst [vmem:[%s618 + $0x58] sm:$0xf] %v2313
      %2378 = vst [vmem:[%s618 + $0x5c] sm:$0xf] %v2314
      %2379 = vst [vmem:[%s618 + $0x60] sm:$0xf] %v2315
      %2380 = vst [vmem:[%s618 + $0x64] sm:$0xf] %v2316
      %2381 = vst [vmem:[%s618 + $0x68] sm:$0xf] %v2317
      %2382 = vst [vmem:[%s618 + $0x6c] sm:$0xf] %v2318
      %2383 = vst [vmem:[%s618 + $0x70] sm:$0xf] %v2319
      %2384 = vst [vmem:[%s618 + $0x74] sm:$0xf] %v2320
      %2385 = vst [vmem:[%s618 + $0x78] sm:$0xf] %v2321
      %2386 = vst [vmem:[%s618 + $0x7c] sm:$0xf] %v2322
      %s2387 = smul.u32 32, %s24
      %p2388 = scmp.lt.s32.totalorder %s2387, 63
      %s2389 = scalar_select %p2388, %s2387, 63
      %s2390 = smul.addr %s2389, 4
      %s2391 = scalar_lea.vmem %s13, %s2390
      // Predicated region
      $region73: #{mobilenet_forward.16} parent=71 // pred_check
        %p2392 = pneg %p360
      $region74: #{mobilenet_forward.16} parent=71 // pred_check_branch
        %2394 = sbr.rel (%p2392) target = $region76
      $region75: #{mobilenet_forward.16} parent=71 // pred_region
        %s2395 = smul.u32 32, %s24
      $region76: #{mobilenet_forward.16} parent=71 // pred_fallthru
        _
    $region72: #{mobilenet_forward.16} parent=5 // pred_fallthru
      _
    %p2396 = scmp.le.s32.totalorder 2, %s19
    // Predicated region
    $region77: #{mobilenet_forward.16} parent=5 // pred_check
      %p2397 = pneg %p2396
    $region78: #{mobilenet_forward.16} parent=5 // pred_check_branch
      %2399 = sbr.rel (%p2397) target = $region80
    $region79: #{mobilenet_forward.16} parent=5 // pred_region
      %s2400 = ssub.s32 %s19, 2
      // Predicated region
      $region81: #{mobilenet_forward.16} parent=79 // pred_check
        %p2401 = pneg %p366
      $region82: #{mobilenet_forward.16} parent=79 // pred_check_branch
        %2403 = sbr.rel (%p2401) target = $region84
      $region83: #{mobilenet_forward.16} parent=79 // pred_region
        %s2404 = smul.u32 32, %s25
        %p2405 = scmp.lt.s32.totalorder %s2404, 63
        %s2406 = scalar_select %p2405, %s2404, 63
        %s2407 = smul.addr %s2406, 4
        %s2408 = scalar_lea.vmem %s13, %s2407
      $region84: #{mobilenet_forward.16} parent=79 // pred_fallthru
        _
    $region80: #{mobilenet_forward.16} parent=5 // pred_fallthru
      _
  $region6: #{mobilenet_forward.16} parent=0 // loop_footer
    %s23 = sadd.s32 1, %s19
  $region7: #{mobilenet_forward.16} parent=0 // loop_footer_branch
    %18 = sbr.rel target = $region3
  $region8: #{mobilenet_forward.16} parent=0 // loop_exit
    _

// kernel: mobilenet_forward.17
$region0: #{mobilenet_forward.17}
  #allocation0 [shape = 'u32[]', space=smem, size = 0x4, offset = 0x4, fixed_abs, tag = 'smem constant byte address 0x4 - core index']
  #allocation1 [shape = 'u32[144,128]{1,0:T(1,128)}', space=vmem, size = 0x12000, scoped, tag = 'internal scratch']
  %s0 = inlined_call_operand.vmem [shape: bf16[128,128], index: 0, kind: input, shape index: {}]
  %s1 = inlined_call_operand.vmem [shape: bf16[128,128], index: 1, kind: input, shape index: {}]
  %s2 = inlined_call_operand.vmem [shape: bf16[128,128], index: 2, kind: input, shape index: {}]
  %s3 = inlined_call_operand.vmem [shape: bf16[128,128], index: 3, kind: input, shape index: {}]
  %s4 = inlined_call_operand.vmem [shape: bf16[128,128], index: 4, kind: input, shape index: {}]
  %s5 = inlined_call_operand.vmem [shape: bf16[128,128], index: 5, kind: input, shape index: {}]
  %s6 = inlined_call_operand.vmem [shape: bf16[128,128], index: 6, kind: input, shape index: {}]
  %s7 = inlined_call_operand.vmem [shape: bf16[128,128], index: 7, kind: input, shape index: {}]
  %s8 = inlined_call_operand.vmem [shape: bf16[128,128], index: 8, kind: input, shape index: {}]
  %s9 = inlined_call_operand.vmem [shape: f32[9,1,128], index: 9, kind: input, shape index: {}]
  %s10 = inlined_call_operand.vmem [shape: f32[1,128], index: 10, kind: input, shape index: {}]
  %s11 = inlined_call_operand.vmem [shape: bf16[128,128], index: 11, kind: input, shape index: {}]
  %s12 = inlined_call_operand.vmem [shape: f32[1,128], index: 12, kind: input, shape index: {}]
  %s13 = inlined_call_operand.vmem [shape: bf16[128,128], index: 13, kind: output, shape index: {}]
  %s14 = sld [smem:[#allocation0]]
  $region62: #{mobilenet_forward.17} parent=0
    _
  %s16 = ssub.s32 1, %s14
  %s17 = scalar_select 0, %s16, %s14
  // Predicated region
  $region2: #{mobilenet_forward.17} parent=0 // pred_check
    _
  $region3: #{mobilenet_forward.17} parent=0 // pred_check_branch
    %19 = sbr.rel (0) target = $region5
  $region4: #{mobilenet_forward.17} parent=0 // pred_region
    _
  $region5: #{mobilenet_forward.17} parent=0 // pred_fallthru
    _
  // Predicated region
  $region6: #{mobilenet_forward.17} parent=0 // pred_check
    _
  $region7: #{mobilenet_forward.17} parent=0 // pred_check_branch
    %21 = sbr.rel (0) target = $region9
  $region8: #{mobilenet_forward.17} parent=0 // pred_region
    _
  $region9: #{mobilenet_forward.17} parent=0 // pred_fallthru
    _
  // Predicated region
  $region10: #{mobilenet_forward.17} parent=0 // pred_check
    _
  $region11: #{mobilenet_forward.17} parent=0 // pred_check_branch
    %23 = sbr.rel (0) target = $region13
  $region12: #{mobilenet_forward.17} parent=0 // pred_region
    _
  $region13: #{mobilenet_forward.17} parent=0 // pred_fallthru
    _
  // Predicated region
  $region14: #{mobilenet_forward.17} parent=0 // pred_check
    _
  $region15: #{mobilenet_forward.17} parent=0 // pred_check_branch
    %25 = sbr.rel (0) target = $region17
  $region16: #{mobilenet_forward.17} parent=0 // pred_region
    _
  $region17: #{mobilenet_forward.17} parent=0 // pred_fallthru
    _
  // Predicated region
  $region18: #{mobilenet_forward.17} parent=0 // pred_check
    _
  $region19: #{mobilenet_forward.17} parent=0 // pred_check_branch
    %27 = sbr.rel (0) target = $region21
  $region20: #{mobilenet_forward.17} parent=0 // pred_region
    _
  $region21: #{mobilenet_forward.17} parent=0 // pred_fallthru
    _
  // Predicated region
  $region22: #{mobilenet_forward.17} parent=0 // pred_check
    _
  $region23: #{mobilenet_forward.17} parent=0 // pred_check_branch
    %29 = sbr.rel (0) target = $region25
  $region24: #{mobilenet_forward.17} parent=0 // pred_region
    _
  $region25: #{mobilenet_forward.17} parent=0 // pred_fallthru
    _
  // Predicated region
  $region26: #{mobilenet_forward.17} parent=0 // pred_check
    _
  $region27: #{mobilenet_forward.17} parent=0 // pred_check_branch
    %31 = sbr.rel (0) target = $region29
  $region28: #{mobilenet_forward.17} parent=0 // pred_region
    _
  $region29: #{mobilenet_forward.17} parent=0 // pred_fallthru
    _
  // Predicated region
  $region30: #{mobilenet_forward.17} parent=0 // pred_check
    _
  $region31: #{mobilenet_forward.17} parent=0 // pred_check_branch
    %33 = sbr.rel (0) target = $region33
  $region32: #{mobilenet_forward.17} parent=0 // pred_region
    _
  $region33: #{mobilenet_forward.17} parent=0 // pred_fallthru
    _
  // Predicated region
  $region34: #{mobilenet_forward.17} parent=0 // pred_check
    _
  $region35: #{mobilenet_forward.17} parent=0 // pred_check_branch
    %35 = sbr.rel (0) target = $region37
  $region36: #{mobilenet_forward.17} parent=0 // pred_region
    _
  $region37: #{mobilenet_forward.17} parent=0 // pred_fallthru
    _
  // Predicated region
  $region38: #{mobilenet_forward.17} parent=0 // pred_check
    _
  $region39: #{mobilenet_forward.17} parent=0 // pred_check_branch
    %37 = sbr.rel (0) target = $region41
  $region40: #{mobilenet_forward.17} parent=0 // pred_region
    _
  $region41: #{mobilenet_forward.17} parent=0 // pred_fallthru
    _
  // Predicated region
  $region42: #{mobilenet_forward.17} parent=0 // pred_check
    _
  $region43: #{mobilenet_forward.17} parent=0 // pred_check_branch
    %39 = sbr.rel (0) target = $region45
  $region44: #{mobilenet_forward.17} parent=0 // pred_region
    _
  $region45: #{mobilenet_forward.17} parent=0 // pred_fallthru
    _
  // Predicated region
  $region46: #{mobilenet_forward.17} parent=0 // pred_check
    _
  $region47: #{mobilenet_forward.17} parent=0 // pred_check_branch
    %41 = sbr.rel (0) target = $region49
  $region48: #{mobilenet_forward.17} parent=0 // pred_region
    _
  $region49: #{mobilenet_forward.17} parent=0 // pred_fallthru
    _
  // Predicated region
  $region50: #{mobilenet_forward.17} parent=0 // pred_check
    _
  $region51: #{mobilenet_forward.17} parent=0 // pred_check_branch
    %43 = sbr.rel (0) target = $region53
  $region52: #{mobilenet_forward.17} parent=0 // pred_region
    _
  $region53: #{mobilenet_forward.17} parent=0 // pred_fallthru
    _
  %v45 = vld [vmem:[%s10] sm:$0x1]
  %v46 = vld [vmem:[%s0] sm:$0xf]
  %v47 = vld [vmem:[%s0 + $0x4] sm:$0xf]
  %v48 = vld [vmem:[%s0 + $0x8] sm:$0xf]
  %v49 = vld [vmem:[%s0 + $0xc] sm:$0xf]
  %v50 = vld [vmem:[%s0 + $0x10] sm:$0xf]
  %v51 = vld [vmem:[%s0 + $0x14] sm:$0xf]
  %v52 = vld [vmem:[%s0 + $0x18] sm:$0xf]
  %v53 = vld [vmem:[%s0 + $0x1c] sm:$0xf]
  %v54 = vld [vmem:[%s0 + $0x20] sm:$0xf]
  %v55 = vld [vmem:[%s0 + $0x24] sm:$0xf]
  %v56 = vld [vmem:[%s0 + $0x28] sm:$0xf]
  %v57 = vld [vmem:[%s0 + $0x2c] sm:$0xf]
  %v58 = vld [vmem:[%s0 + $0x30] sm:$0xf]
  %v59 = vld [vmem:[%s0 + $0x34] sm:$0xf]
  %v60 = vld [vmem:[%s0 + $0x38] sm:$0xf]
  %v61 = vld [vmem:[%s0 + $0x3c] sm:$0xf]
  %v62 = vunpack.c.l.bf16 %v46
  %v63 = vunpack.c.l.bf16 %v47
  %v64 = vunpack.c.l.bf16 %v48
  %v65 = vunpack.c.l.bf16 %v49
  %v66 = vunpack.c.l.bf16 %v50
  %v67 = vunpack.c.l.bf16 %v51
  %v68 = vunpack.c.l.bf16 %v52
  %v69 = vunpack.c.l.bf16 %v53
  %v70 = vunpack.c.l.bf16 %v54
  %v71 = vunpack.c.l.bf16 %v55
  %v72 = vunpack.c.l.bf16 %v56
  %v73 = vunpack.c.l.bf16 %v57
  %v74 = vunpack.c.l.bf16 %v58
  %v75 = vunpack.c.l.bf16 %v59
  %v76 = vunpack.c.l.bf16 %v60
  %v77 = vunpack.c.l.bf16 %v61
  %v78 = vld [vmem:[%s9] sm:$0x1]
  %v80 = vlaneseq
  %v81 = vshrl.u32 %v80, 7
  %v82 = vsub.s32 0, %v81
  %v83 = vrot.slane %v78, %v82
  %v85 = vmul.f32 %v62, %v83
  %v86 = vmul.f32 %v63, %v83
  %v87 = vmul.f32 %v64, %v83
  %v88 = vmul.f32 %v65, %v83
  %v89 = vmul.f32 %v66, %v83
  %v90 = vmul.f32 %v67, %v83
  %v91 = vmul.f32 %v68, %v83
  %v92 = vmul.f32 %v69, %v83
  %v93 = vmul.f32 %v70, %v83
  %v94 = vmul.f32 %v71, %v83
  %v95 = vmul.f32 %v72, %v83
  %v96 = vmul.f32 %v73, %v83
  %v97 = vmul.f32 %v74, %v83
  %v98 = vmul.f32 %v75, %v83
  %v99 = vmul.f32 %v76, %v83
  %v100 = vmul.f32 %v77, %v83
  %v102 = vlaneseq
  %v103 = vshrl.u32 %v102, 7
  %v104 = vsub.s32 0, %v103
  %v105 = vrot.slane %v45, %v104
  %v107 = vadd.f32 %v105, %v85
  %v108 = vadd.f32 %v105, %v86
  %v109 = vadd.f32 %v105, %v87
  %v110 = vadd.f32 %v105, %v88
  %v111 = vadd.f32 %v105, %v89
  %v112 = vadd.f32 %v105, %v90
  %v113 = vadd.f32 %v105, %v91
  %v114 = vadd.f32 %v105, %v92
  %v115 = vadd.f32 %v105, %v93
  %v116 = vadd.f32 %v105, %v94
  %v117 = vadd.f32 %v105, %v95
  %v118 = vadd.f32 %v105, %v96
  %v119 = vadd.f32 %v105, %v97
  %v120 = vadd.f32 %v105, %v98
  %v121 = vadd.f32 %v105, %v99
  %v122 = vadd.f32 %v105, %v100
  %v123 = vld [vmem:[%s1] sm:$0xf]
  %v124 = vld [vmem:[%s1 + $0x4] sm:$0xf]
  %v125 = vld [vmem:[%s1 + $0x8] sm:$0xf]
  %v126 = vld [vmem:[%s1 + $0xc] sm:$0xf]
  %v127 = vld [vmem:[%s1 + $0x10] sm:$0xf]
  %v128 = vld [vmem:[%s1 + $0x14] sm:$0xf]
  %v129 = vld [vmem:[%s1 + $0x18] sm:$0xf]
  %v130 = vld [vmem:[%s1 + $0x1c] sm:$0xf]
  %v131 = vld [vmem:[%s1 + $0x20] sm:$0xf]
  %v132 = vld [vmem:[%s1 + $0x24] sm:$0xf]
  %v133 = vld [vmem:[%s1 + $0x28] sm:$0xf]
  %v134 = vld [vmem:[%s1 + $0x2c] sm:$0xf]
  %v135 = vld [vmem:[%s1 + $0x30] sm:$0xf]
  %v136 = vld [vmem:[%s1 + $0x34] sm:$0xf]
  %v137 = vld [vmem:[%s1 + $0x38] sm:$0xf]
  %v138 = vld [vmem:[%s1 + $0x3c] sm:$0xf]
  %v139 = vunpack.c.l.bf16 %v123
  %v140 = vunpack.c.l.bf16 %v124
  %v141 = vunpack.c.l.bf16 %v125
  %v142 = vunpack.c.l.bf16 %v126
  %v143 = vunpack.c.l.bf16 %v127
  %v144 = vunpack.c.l.bf16 %v128
  %v145 = vunpack.c.l.bf16 %v129
  %v146 = vunpack.c.l.bf16 %v130
  %v147 = vunpack.c.l.bf16 %v131
  %v148 = vunpack.c.l.bf16 %v132
  %v149 = vunpack.c.l.bf16 %v133
  %v150 = vunpack.c.l.bf16 %v134
  %v151 = vunpack.c.l.bf16 %v135
  %v152 = vunpack.c.l.bf16 %v136
  %v153 = vunpack.c.l.bf16 %v137
  %v154 = vunpack.c.l.bf16 %v138
  %s155 = scalar_lea.vmem %s9, 1
  %v156 = vld [vmem:[%s155] sm:$0x1]
  %v158 = vlaneseq
  %v159 = vshrl.u32 %v158, 7
  %v160 = vsub.s32 0, %v159
  %v161 = vrot.slane %v156, %v160
  %v163 = vmul.f32 %v139, %v161
  %v164 = vmul.f32 %v140, %v161
  %v165 = vmul.f32 %v141, %v161
  %v166 = vmul.f32 %v142, %v161
  %v167 = vmul.f32 %v143, %v161
  %v168 = vmul.f32 %v144, %v161
  %v169 = vmul.f32 %v145, %v161
  %v170 = vmul.f32 %v146, %v161
  %v171 = vmul.f32 %v147, %v161
  %v172 = vmul.f32 %v148, %v161
  %v173 = vmul.f32 %v149, %v161
  %v174 = vmul.f32 %v150, %v161
  %v175 = vmul.f32 %v151, %v161
  %v176 = vmul.f32 %v152, %v161
  %v177 = vmul.f32 %v153, %v161
  %v178 = vmul.f32 %v154, %v161
  %v179 = vadd.f32 %v107, %v163
  %v180 = vadd.f32 %v108, %v164
  %v181 = vadd.f32 %v109, %v165
  %v182 = vadd.f32 %v110, %v166
  %v183 = vadd.f32 %v111, %v167
  %v184 = vadd.f32 %v112, %v168
  %v185 = vadd.f32 %v113, %v169
  %v186 = vadd.f32 %v114, %v170
  %v187 = vadd.f32 %v115, %v171
  %v188 = vadd.f32 %v116, %v172
  %v189 = vadd.f32 %v117, %v173
  %v190 = vadd.f32 %v118, %v174
  %v191 = vadd.f32 %v119, %v175
  %v192 = vadd.f32 %v120, %v176
  %v193 = vadd.f32 %v121, %v177
  %v194 = vadd.f32 %v122, %v178
  %v195 = vld [vmem:[%s2] sm:$0xf]
  %v196 = vld [vmem:[%s2 + $0x4] sm:$0xf]
  %v197 = vld [vmem:[%s2 + $0x8] sm:$0xf]
  %v198 = vld [vmem:[%s2 + $0xc] sm:$0xf]
  %v199 = vld [vmem:[%s2 + $0x10] sm:$0xf]
  %v200 = vld [vmem:[%s2 + $0x14] sm:$0xf]
  %v201 = vld [vmem:[%s2 + $0x18] sm:$0xf]
  %v202 = vld [vmem:[%s2 + $0x1c] sm:$0xf]
  %v203 = vld [vmem:[%s2 + $0x20] sm:$0xf]
  %v204 = vld [vmem:[%s2 + $0x24] sm:$0xf]
  %v205 = vld [vmem:[%s2 + $0x28] sm:$0xf]
  %v206 = vld [vmem:[%s2 + $0x2c] sm:$0xf]
  %v207 = vld [vmem:[%s2 + $0x30] sm:$0xf]
  %v208 = vld [vmem:[%s2 + $0x34] sm:$0xf]
  %v209 = vld [vmem:[%s2 + $0x38] sm:$0xf]
  %v210 = vld [vmem:[%s2 + $0x3c] sm:$0xf]
  %v211 = vunpack.c.l.bf16 %v195
  %v212 = vunpack.c.l.bf16 %v196
  %v213 = vunpack.c.l.bf16 %v197
  %v214 = vunpack.c.l.bf16 %v198
  %v215 = vunpack.c.l.bf16 %v199
  %v216 = vunpack.c.l.bf16 %v200
  %v217 = vunpack.c.l.bf16 %v201
  %v218 = vunpack.c.l.bf16 %v202
  %v219 = vunpack.c.l.bf16 %v203
  %v220 = vunpack.c.l.bf16 %v204
  %v221 = vunpack.c.l.bf16 %v205
  %v222 = vunpack.c.l.bf16 %v206
  %v223 = vunpack.c.l.bf16 %v207
  %v224 = vunpack.c.l.bf16 %v208
  %v225 = vunpack.c.l.bf16 %v209
  %v226 = vunpack.c.l.bf16 %v210
  %s227 = scalar_lea.vmem %s9, 2
  %v228 = vld [vmem:[%s227] sm:$0x1]
  %v230 = vlaneseq
  %v231 = vshrl.u32 %v230, 7
  %v232 = vsub.s32 0, %v231
  %v233 = vrot.slane %v228, %v232
  %v235 = vmul.f32 %v211, %v233
  %v236 = vmul.f32 %v212, %v233
  %v237 = vmul.f32 %v213, %v233
  %v238 = vmul.f32 %v214, %v233
  %v239 = vmul.f32 %v215, %v233
  %v240 = vmul.f32 %v216, %v233
  %v241 = vmul.f32 %v217, %v233
  %v242 = vmul.f32 %v218, %v233
  %v243 = vmul.f32 %v219, %v233
  %v244 = vmul.f32 %v220, %v233
  %v245 = vmul.f32 %v221, %v233
  %v246 = vmul.f32 %v222, %v233
  %v247 = vmul.f32 %v223, %v233
  %v248 = vmul.f32 %v224, %v233
  %v249 = vmul.f32 %v225, %v233
  %v250 = vmul.f32 %v226, %v233
  %v251 = vadd.f32 %v179, %v235
  %v252 = vadd.f32 %v180, %v236
  %v253 = vadd.f32 %v181, %v237
  %v254 = vadd.f32 %v182, %v238
  %v255 = vadd.f32 %v183, %v239
  %v256 = vadd.f32 %v184, %v240
  %v257 = vadd.f32 %v185, %v241
  %v258 = vadd.f32 %v186, %v242
  %v259 = vadd.f32 %v187, %v243
  %v260 = vadd.f32 %v188, %v244
  %v261 = vadd.f32 %v189, %v245
  %v262 = vadd.f32 %v190, %v246
  %v263 = vadd.f32 %v191, %v247
  %v264 = vadd.f32 %v192, %v248
  %v265 = vadd.f32 %v193, %v249
  %v266 = vadd.f32 %v194, %v250
  %v267 = vld [vmem:[%s3] sm:$0xf]
  %v268 = vld [vmem:[%s3 + $0x4] sm:$0xf]
  %v269 = vld [vmem:[%s3 + $0x8] sm:$0xf]
  %v270 = vld [vmem:[%s3 + $0xc] sm:$0xf]
  %v271 = vld [vmem:[%s3 + $0x10] sm:$0xf]
  %v272 = vld [vmem:[%s3 + $0x14] sm:$0xf]
  %v273 = vld [vmem:[%s3 + $0x18] sm:$0xf]
  %v274 = vld [vmem:[%s3 + $0x1c] sm:$0xf]
  %v275 = vld [vmem:[%s3 + $0x20] sm:$0xf]
  %v276 = vld [vmem:[%s3 + $0x24] sm:$0xf]
  %v277 = vld [vmem:[%s3 + $0x28] sm:$0xf]
  %v278 = vld [vmem:[%s3 + $0x2c] sm:$0xf]
  %v279 = vld [vmem:[%s3 + $0x30] sm:$0xf]
  %v280 = vld [vmem:[%s3 + $0x34] sm:$0xf]
  %v281 = vld [vmem:[%s3 + $0x38] sm:$0xf]
  %v282 = vld [vmem:[%s3 + $0x3c] sm:$0xf]
  %v283 = vunpack.c.l.bf16 %v267
  %v284 = vunpack.c.l.bf16 %v268
  %v285 = vunpack.c.l.bf16 %v269
  %v286 = vunpack.c.l.bf16 %v270
  %v287 = vunpack.c.l.bf16 %v271
  %v288 = vunpack.c.l.bf16 %v272
  %v289 = vunpack.c.l.bf16 %v273
  %v290 = vunpack.c.l.bf16 %v274
  %v291 = vunpack.c.l.bf16 %v275
  %v292 = vunpack.c.l.bf16 %v276
  %v293 = vunpack.c.l.bf16 %v277
  %v294 = vunpack.c.l.bf16 %v278
  %v295 = vunpack.c.l.bf16 %v279
  %v296 = vunpack.c.l.bf16 %v280
  %v297 = vunpack.c.l.bf16 %v281
  %v298 = vunpack.c.l.bf16 %v282
  %s299 = scalar_lea.vmem %s9, 3
  %v300 = vld [vmem:[%s299] sm:$0x1]
  %v302 = vlaneseq
  %v303 = vshrl.u32 %v302, 7
  %v304 = vsub.s32 0, %v303
  %v305 = vrot.slane %v300, %v304
  %v307 = vmul.f32 %v283, %v305
  %v308 = vmul.f32 %v284, %v305
  %v309 = vmul.f32 %v285, %v305
  %v310 = vmul.f32 %v286, %v305
  %v311 = vmul.f32 %v287, %v305
  %v312 = vmul.f32 %v288, %v305
  %v313 = vmul.f32 %v289, %v305
  %v314 = vmul.f32 %v290, %v305
  %v315 = vmul.f32 %v291, %v305
  %v316 = vmul.f32 %v292, %v305
  %v317 = vmul.f32 %v293, %v305
  %v318 = vmul.f32 %v294, %v305
  %v319 = vmul.f32 %v295, %v305
  %v320 = vmul.f32 %v296, %v305
  %v321 = vmul.f32 %v297, %v305
  %v322 = vmul.f32 %v298, %v305
  %v323 = vadd.f32 %v251, %v307
  %v324 = vadd.f32 %v252, %v308
  %v325 = vadd.f32 %v253, %v309
  %v326 = vadd.f32 %v254, %v310
  %v327 = vadd.f32 %v255, %v311
  %v328 = vadd.f32 %v256, %v312
  %v329 = vadd.f32 %v257, %v313
  %v330 = vadd.f32 %v258, %v314
  %v331 = vadd.f32 %v259, %v315
  %v332 = vadd.f32 %v260, %v316
  %v333 = vadd.f32 %v261, %v317
  %v334 = vadd.f32 %v262, %v318
  %v335 = vadd.f32 %v263, %v319
  %v336 = vadd.f32 %v264, %v320
  %v337 = vadd.f32 %v265, %v321
  %v338 = vadd.f32 %v266, %v322
  %v339 = vld [vmem:[%s4] sm:$0xf]
  %v340 = vld [vmem:[%s4 + $0x4] sm:$0xf]
  %v341 = vld [vmem:[%s4 + $0x8] sm:$0xf]
  %v342 = vld [vmem:[%s4 + $0xc] sm:$0xf]
  %v343 = vld [vmem:[%s4 + $0x10] sm:$0xf]
  %v344 = vld [vmem:[%s4 + $0x14] sm:$0xf]
  %v345 = vld [vmem:[%s4 + $0x18] sm:$0xf]
  %v346 = vld [vmem:[%s4 + $0x1c] sm:$0xf]
  %v347 = vld [vmem:[%s4 + $0x20] sm:$0xf]
  %v348 = vld [vmem:[%s4 + $0x24] sm:$0xf]
  %v349 = vld [vmem:[%s4 + $0x28] sm:$0xf]
  %v350 = vld [vmem:[%s4 + $0x2c] sm:$0xf]
  %v351 = vld [vmem:[%s4 + $0x30] sm:$0xf]
  %v352 = vld [vmem:[%s4 + $0x34] sm:$0xf]
  %v353 = vld [vmem:[%s4 + $0x38] sm:$0xf]
  %v354 = vld [vmem:[%s4 + $0x3c] sm:$0xf]
  %v355 = vunpack.c.l.bf16 %v339
  %v356 = vunpack.c.l.bf16 %v340
  %v357 = vunpack.c.l.bf16 %v341
  %v358 = vunpack.c.l.bf16 %v342
  %v359 = vunpack.c.l.bf16 %v343
  %v360 = vunpack.c.l.bf16 %v344
  %v361 = vunpack.c.l.bf16 %v345
  %v362 = vunpack.c.l.bf16 %v346
  %v363 = vunpack.c.l.bf16 %v347
  %v364 = vunpack.c.l.bf16 %v348
  %v365 = vunpack.c.l.bf16 %v349
  %v366 = vunpack.c.l.bf16 %v350
  %v367 = vunpack.c.l.bf16 %v351
  %v368 = vunpack.c.l.bf16 %v352
  %v369 = vunpack.c.l.bf16 %v353
  %v370 = vunpack.c.l.bf16 %v354
  %s371 = scalar_lea.vmem %s9, 4
  %v372 = vld [vmem:[%s371] sm:$0x1]
  %v374 = vlaneseq
  %v375 = vshrl.u32 %v374, 7
  %v376 = vsub.s32 0, %v375
  %v377 = vrot.slane %v372, %v376
  %v379 = vmul.f32 %v355, %v377
  %v380 = vmul.f32 %v356, %v377
  %v381 = vmul.f32 %v357, %v377
  %v382 = vmul.f32 %v358, %v377
  %v383 = vmul.f32 %v359, %v377
  %v384 = vmul.f32 %v360, %v377
  %v385 = vmul.f32 %v361, %v377
  %v386 = vmul.f32 %v362, %v377
  %v387 = vmul.f32 %v363, %v377
  %v388 = vmul.f32 %v364, %v377
  %v389 = vmul.f32 %v365, %v377
  %v390 = vmul.f32 %v366, %v377
  %v391 = vmul.f32 %v367, %v377
  %v392 = vmul.f32 %v368, %v377
  %v393 = vmul.f32 %v369, %v377
  %v394 = vmul.f32 %v370, %v377
  %v395 = vadd.f32 %v323, %v379
  %v396 = vadd.f32 %v324, %v380
  %v397 = vadd.f32 %v325, %v381
  %v398 = vadd.f32 %v326, %v382
  %v399 = vadd.f32 %v327, %v383
  %v400 = vadd.f32 %v328, %v384
  %v401 = vadd.f32 %v329, %v385
  %v402 = vadd.f32 %v330, %v386
  %v403 = vadd.f32 %v331, %v387
  %v404 = vadd.f32 %v332, %v388
  %v405 = vadd.f32 %v333, %v389
  %v406 = vadd.f32 %v334, %v390
  %v407 = vadd.f32 %v335, %v391
  %v408 = vadd.f32 %v336, %v392
  %v409 = vadd.f32 %v337, %v393
  %v410 = vadd.f32 %v338, %v394
  %v411 = vld [vmem:[%s5] sm:$0xf]
  %v412 = vld [vmem:[%s5 + $0x4] sm:$0xf]
  %v413 = vld [vmem:[%s5 + $0x8] sm:$0xf]
  %v414 = vld [vmem:[%s5 + $0xc] sm:$0xf]
  %v415 = vld [vmem:[%s5 + $0x10] sm:$0xf]
  %v416 = vld [vmem:[%s5 + $0x14] sm:$0xf]
  %v417 = vld [vmem:[%s5 + $0x18] sm:$0xf]
  %v418 = vld [vmem:[%s5 + $0x1c] sm:$0xf]
  %v419 = vld [vmem:[%s5 + $0x20] sm:$0xf]
  %v420 = vld [vmem:[%s5 + $0x24] sm:$0xf]
  %v421 = vld [vmem:[%s5 + $0x28] sm:$0xf]
  %v422 = vld [vmem:[%s5 + $0x2c] sm:$0xf]
  %v423 = vld [vmem:[%s5 + $0x30] sm:$0xf]
  %v424 = vld [vmem:[%s5 + $0x34] sm:$0xf]
  %v425 = vld [vmem:[%s5 + $0x38] sm:$0xf]
  %v426 = vld [vmem:[%s5 + $0x3c] sm:$0xf]
  %v427 = vunpack.c.l.bf16 %v411
  %v428 = vunpack.c.l.bf16 %v412
  %v429 = vunpack.c.l.bf16 %v413
  %v430 = vunpack.c.l.bf16 %v414
  %v431 = vunpack.c.l.bf16 %v415
  %v432 = vunpack.c.l.bf16 %v416
  %v433 = vunpack.c.l.bf16 %v417
  %v434 = vunpack.c.l.bf16 %v418
  %v435 = vunpack.c.l.bf16 %v419
  %v436 = vunpack.c.l.bf16 %v420
  %v437 = vunpack.c.l.bf16 %v421
  %v438 = vunpack.c.l.bf16 %v422
  %v439 = vunpack.c.l.bf16 %v423
  %v440 = vunpack.c.l.bf16 %v424
  %v441 = vunpack.c.l.bf16 %v425
  %v442 = vunpack.c.l.bf16 %v426
  %s443 = scalar_lea.vmem %s9, 5
  %v444 = vld [vmem:[%s443] sm:$0x1]
  %v446 = vlaneseq
  %v447 = vshrl.u32 %v446, 7
  %v448 = vsub.s32 0, %v447
  %v449 = vrot.slane %v444, %v448
  %v451 = vmul.f32 %v427, %v449
  %v452 = vmul.f32 %v428, %v449
  %v453 = vmul.f32 %v429, %v449
  %v454 = vmul.f32 %v430, %v449
  %v455 = vmul.f32 %v431, %v449
  %v456 = vmul.f32 %v432, %v449
  %v457 = vmul.f32 %v433, %v449
  %v458 = vmul.f32 %v434, %v449
  %v459 = vmul.f32 %v435, %v449
  %v460 = vmul.f32 %v436, %v449
  %v461 = vmul.f32 %v437, %v449
  %v462 = vmul.f32 %v438, %v449
  %v463 = vmul.f32 %v439, %v449
  %v464 = vmul.f32 %v440, %v449
  %v465 = vmul.f32 %v441, %v449
  %v466 = vmul.f32 %v442, %v449
  %v467 = vadd.f32 %v395, %v451
  %v468 = vadd.f32 %v396, %v452
  %v469 = vadd.f32 %v397, %v453
  %v470 = vadd.f32 %v398, %v454
  %v471 = vadd.f32 %v399, %v455
  %v472 = vadd.f32 %v400, %v456
  %v473 = vadd.f32 %v401, %v457
  %v474 = vadd.f32 %v402, %v458
  %v475 = vadd.f32 %v403, %v459
  %v476 = vadd.f32 %v404, %v460
  %v477 = vadd.f32 %v405, %v461
  %v478 = vadd.f32 %v406, %v462
  %v479 = vadd.f32 %v407, %v463
  %v480 = vadd.f32 %v408, %v464
  %v481 = vadd.f32 %v409, %v465
  %v482 = vadd.f32 %v410, %v466
  %v483 = vld [vmem:[%s6] sm:$0xf]
  %v484 = vld [vmem:[%s6 + $0x4] sm:$0xf]
  %v485 = vld [vmem:[%s6 + $0x8] sm:$0xf]
  %v486 = vld [vmem:[%s6 + $0xc] sm:$0xf]
  %v487 = vld [vmem:[%s6 + $0x10] sm:$0xf]
  %v488 = vld [vmem:[%s6 + $0x14] sm:$0xf]
  %v489 = vld [vmem:[%s6 + $0x18] sm:$0xf]
  %v490 = vld [vmem:[%s6 + $0x1c] sm:$0xf]
  %v491 = vld [vmem:[%s6 + $0x20] sm:$0xf]
  %v492 = vld [vmem:[%s6 + $0x24] sm:$0xf]
  %v493 = vld [vmem:[%s6 + $0x28] sm:$0xf]
  %v494 = vld [vmem:[%s6 + $0x2c] sm:$0xf]
  %v495 = vld [vmem:[%s6 + $0x30] sm:$0xf]
  %v496 = vld [vmem:[%s6 + $0x34] sm:$0xf]
  %v497 = vld [vmem:[%s6 + $0x38] sm:$0xf]
  %v498 = vld [vmem:[%s6 + $0x3c] sm:$0xf]
  %v499 = vunpack.c.l.bf16 %v483
  %v500 = vunpack.c.l.bf16 %v484
  %v501 = vunpack.c.l.bf16 %v485
  %v502 = vunpack.c.l.bf16 %v486
  %v503 = vunpack.c.l.bf16 %v487
  %v504 = vunpack.c.l.bf16 %v488
  %v505 = vunpack.c.l.bf16 %v489
  %v506 = vunpack.c.l.bf16 %v490
  %v507 = vunpack.c.l.bf16 %v491
  %v508 = vunpack.c.l.bf16 %v492
  %v509 = vunpack.c.l.bf16 %v493
  %v510 = vunpack.c.l.bf16 %v494
  %v511 = vunpack.c.l.bf16 %v495
  %v512 = vunpack.c.l.bf16 %v496
  %v513 = vunpack.c.l.bf16 %v497
  %v514 = vunpack.c.l.bf16 %v498
  %s515 = scalar_lea.vmem %s9, 6
  %v516 = vld [vmem:[%s515] sm:$0x1]
  %v518 = vlaneseq
  %v519 = vshrl.u32 %v518, 7
  %v520 = vsub.s32 0, %v519
  %v521 = vrot.slane %v516, %v520
  %v523 = vmul.f32 %v499, %v521
  %v524 = vmul.f32 %v500, %v521
  %v525 = vmul.f32 %v501, %v521
  %v526 = vmul.f32 %v502, %v521
  %v527 = vmul.f32 %v503, %v521
  %v528 = vmul.f32 %v504, %v521
  %v529 = vmul.f32 %v505, %v521
  %v530 = vmul.f32 %v506, %v521
  %v531 = vmul.f32 %v507, %v521
  %v532 = vmul.f32 %v508, %v521
  %v533 = vmul.f32 %v509, %v521
  %v534 = vmul.f32 %v510, %v521
  %v535 = vmul.f32 %v511, %v521
  %v536 = vmul.f32 %v512, %v521
  %v537 = vmul.f32 %v513, %v521
  %v538 = vmul.f32 %v514, %v521
  %v539 = vadd.f32 %v467, %v523
  %v540 = vadd.f32 %v468, %v524
  %v541 = vadd.f32 %v469, %v525
  %v542 = vadd.f32 %v470, %v526
  %v543 = vadd.f32 %v471, %v527
  %v544 = vadd.f32 %v472, %v528
  %v545 = vadd.f32 %v473, %v529
  %v546 = vadd.f32 %v474, %v530
  %v547 = vadd.f32 %v475, %v531
  %v548 = vadd.f32 %v476, %v532
  %v549 = vadd.f32 %v477, %v533
  %v550 = vadd.f32 %v478, %v534
  %v551 = vadd.f32 %v479, %v535
  %v552 = vadd.f32 %v480, %v536
  %v553 = vadd.f32 %v481, %v537
  %v554 = vadd.f32 %v482, %v538
  %v555 = vld [vmem:[%s7] sm:$0xf]
  %v556 = vld [vmem:[%s7 + $0x4] sm:$0xf]
  %v557 = vld [vmem:[%s7 + $0x8] sm:$0xf]
  %v558 = vld [vmem:[%s7 + $0xc] sm:$0xf]
  %v559 = vld [vmem:[%s7 + $0x10] sm:$0xf]
  %v560 = vld [vmem:[%s7 + $0x14] sm:$0xf]
  %v561 = vld [vmem:[%s7 + $0x18] sm:$0xf]
  %v562 = vld [vmem:[%s7 + $0x1c] sm:$0xf]
  %v563 = vld [vmem:[%s7 + $0x20] sm:$0xf]
  %v564 = vld [vmem:[%s7 + $0x24] sm:$0xf]
  %v565 = vld [vmem:[%s7 + $0x28] sm:$0xf]
  %v566 = vld [vmem:[%s7 + $0x2c] sm:$0xf]
  %v567 = vld [vmem:[%s7 + $0x30] sm:$0xf]
  %v568 = vld [vmem:[%s7 + $0x34] sm:$0xf]
  %v569 = vld [vmem:[%s7 + $0x38] sm:$0xf]
  %v570 = vld [vmem:[%s7 + $0x3c] sm:$0xf]
  %v571 = vunpack.c.l.bf16 %v555
  %v572 = vunpack.c.l.bf16 %v556
  %v573 = vunpack.c.l.bf16 %v557
  %v574 = vunpack.c.l.bf16 %v558
  %v575 = vunpack.c.l.bf16 %v559
  %v576 = vunpack.c.l.bf16 %v560
  %v577 = vunpack.c.l.bf16 %v561
  %v578 = vunpack.c.l.bf16 %v562
  %v579 = vunpack.c.l.bf16 %v563
  %v580 = vunpack.c.l.bf16 %v564
  %v581 = vunpack.c.l.bf16 %v565
  %v582 = vunpack.c.l.bf16 %v566
  %v583 = vunpack.c.l.bf16 %v567
  %v584 = vunpack.c.l.bf16 %v568
  %v585 = vunpack.c.l.bf16 %v569
  %v586 = vunpack.c.l.bf16 %v570
  %s587 = scalar_lea.vmem %s9, 7
  %v588 = vld [vmem:[%s587] sm:$0x1]
  %v590 = vlaneseq
  %v591 = vshrl.u32 %v590, 7
  %v592 = vsub.s32 0, %v591
  %v593 = vrot.slane %v588, %v592
  %v595 = vmul.f32 %v571, %v593
  %v596 = vmul.f32 %v572, %v593
  %v597 = vmul.f32 %v573, %v593
  %v598 = vmul.f32 %v574, %v593
  %v599 = vmul.f32 %v575, %v593
  %v600 = vmul.f32 %v576, %v593
  %v601 = vmul.f32 %v577, %v593
  %v602 = vmul.f32 %v578, %v593
  %v603 = vmul.f32 %v579, %v593
  %v604 = vmul.f32 %v580, %v593
  %v605 = vmul.f32 %v581, %v593
  %v606 = vmul.f32 %v582, %v593
  %v607 = vmul.f32 %v583, %v593
  %v608 = vmul.f32 %v584, %v593
  %v609 = vmul.f32 %v585, %v593
  %v610 = vmul.f32 %v586, %v593
  %v611 = vadd.f32 %v539, %v595
  %v612 = vadd.f32 %v540, %v596
  %v613 = vadd.f32 %v541, %v597
  %v614 = vadd.f32 %v542, %v598
  %v615 = vadd.f32 %v543, %v599
  %v616 = vadd.f32 %v544, %v600
  %v617 = vadd.f32 %v545, %v601
  %v618 = vadd.f32 %v546, %v602
  %v619 = vadd.f32 %v547, %v603
  %v620 = vadd.f32 %v548, %v604
  %v621 = vadd.f32 %v549, %v605
  %v622 = vadd.f32 %v550, %v606
  %v623 = vadd.f32 %v551, %v607
  %v624 = vadd.f32 %v552, %v608
  %v625 = vadd.f32 %v553, %v609
  %v626 = vadd.f32 %v554, %v610
  %v627 = vld [vmem:[%s8] sm:$0xf]
  %v628 = vld [vmem:[%s8 + $0x4] sm:$0xf]
  %v629 = vld [vmem:[%s8 + $0x8] sm:$0xf]
  %v630 = vld [vmem:[%s8 + $0xc] sm:$0xf]
  %v631 = vld [vmem:[%s8 + $0x10] sm:$0xf]
  %v632 = vld [vmem:[%s8 + $0x14] sm:$0xf]
  %v633 = vld [vmem:[%s8 + $0x18] sm:$0xf]
  %v634 = vld [vmem:[%s8 + $0x1c] sm:$0xf]
  %v635 = vld [vmem:[%s8 + $0x20] sm:$0xf]
  %v636 = vld [vmem:[%s8 + $0x24] sm:$0xf]
  %v637 = vld [vmem:[%s8 + $0x28] sm:$0xf]
  %v638 = vld [vmem:[%s8 + $0x2c] sm:$0xf]
  %v639 = vld [vmem:[%s8 + $0x30] sm:$0xf]
  %v640 = vld [vmem:[%s8 + $0x34] sm:$0xf]
  %v641 = vld [vmem:[%s8 + $0x38] sm:$0xf]
  %v642 = vld [vmem:[%s8 + $0x3c] sm:$0xf]
  %v643 = vunpack.c.l.bf16 %v627
  %v644 = vunpack.c.l.bf16 %v628
  %v645 = vunpack.c.l.bf16 %v629
  %v646 = vunpack.c.l.bf16 %v630
  %v647 = vunpack.c.l.bf16 %v631
  %v648 = vunpack.c.l.bf16 %v632
  %v649 = vunpack.c.l.bf16 %v633
  %v650 = vunpack.c.l.bf16 %v634
  %v651 = vunpack.c.l.bf16 %v635
  %v652 = vunpack.c.l.bf16 %v636
  %v653 = vunpack.c.l.bf16 %v637
  %v654 = vunpack.c.l.bf16 %v638
  %v655 = vunpack.c.l.bf16 %v639
  %v656 = vunpack.c.l.bf16 %v640
  %v657 = vunpack.c.l.bf16 %v641
  %v658 = vunpack.c.l.bf16 %v642
  %s659 = scalar_lea.vmem %s9, 8
  %v660 = vld [vmem:[%s659] sm:$0x1]
  %v662 = vlaneseq
  %v663 = vshrl.u32 %v662, 7
  %v664 = vsub.s32 0, %v663
  %v665 = vrot.slane %v660, %v664
  %v667 = vmul.f32 %v643, %v665
  %v668 = vmul.f32 %v644, %v665
  %v669 = vmul.f32 %v645, %v665
  %v670 = vmul.f32 %v646, %v665
  %v671 = vmul.f32 %v647, %v665
  %v672 = vmul.f32 %v648, %v665
  %v673 = vmul.f32 %v649, %v665
  %v674 = vmul.f32 %v650, %v665
  %v675 = vmul.f32 %v651, %v665
  %v676 = vmul.f32 %v652, %v665
  %v677 = vmul.f32 %v653, %v665
  %v678 = vmul.f32 %v654, %v665
  %v679 = vmul.f32 %v655, %v665
  %v680 = vmul.f32 %v656, %v665
  %v681 = vmul.f32 %v657, %v665
  %v682 = vmul.f32 %v658, %v665
  %v683 = vadd.f32 %v611, %v667
  %v684 = vadd.f32 %v612, %v668
  %v685 = vadd.f32 %v613, %v669
  %v686 = vadd.f32 %v614, %v670
  %v687 = vadd.f32 %v615, %v671
  %v688 = vadd.f32 %v616, %v672
  %v689 = vadd.f32 %v617, %v673
  %v690 = vadd.f32 %v618, %v674
  %v691 = vadd.f32 %v619, %v675
  %v692 = vadd.f32 %v620, %v676
  %v693 = vadd.f32 %v621, %v677
  %v694 = vadd.f32 %v622, %v678
  %v695 = vadd.f32 %v623, %v679
  %v696 = vadd.f32 %v624, %v680
  %v697 = vadd.f32 %v625, %v681
  %v698 = vadd.f32 %v626, %v682
  %v699 = vmax.f32 %v683, 0.0
  %v700 = vmax.f32 %v684, 0.0
  %v701 = vmax.f32 %v685, 0.0
  %v702 = vmax.f32 %v686, 0.0
  %v703 = vmax.f32 %v687, 0.0
  %v704 = vmax.f32 %v688, 0.0
  %v705 = vmax.f32 %v689, 0.0
  %v706 = vmax.f32 %v690, 0.0
  %v707 = vmax.f32 %v691, 0.0
  %v708 = vmax.f32 %v692, 0.0
  %v709 = vmax.f32 %v693, 0.0
  %v710 = vmax.f32 %v694, 0.0
  %v711 = vmax.f32 %v695, 0.0
  %v712 = vmax.f32 %v696, 0.0
  %v713 = vmax.f32 %v697, 0.0
  %v714 = vmax.f32 %v698, 0.0
  %v715 = vmin.f32 %v699, 6.0
  %v716 = vmin.f32 %v700, 6.0
  %v717 = vmin.f32 %v701, 6.0
  %v718 = vmin.f32 %v702, 6.0
  %v719 = vmin.f32 %v703, 6.0
  %v720 = vmin.f32 %v704, 6.0
  %v721 = vmin.f32 %v705, 6.0
  %v722 = vmin.f32 %v706, 6.0
  %v723 = vmin.f32 %v707, 6.0
  %v724 = vmin.f32 %v708, 6.0
  %v725 = vmin.f32 %v709, 6.0
  %v726 = vmin.f32 %v710, 6.0
  %v727 = vmin.f32 %v711, 6.0
  %v728 = vmin.f32 %v712, 6.0
  %v729 = vmin.f32 %v713, 6.0
  %v730 = vmin.f32 %v714, 6.0
  %v731 = vpack.c.bf16 %v716, %v715
  %v732 = vpack.c.bf16 %v718, %v717
  %v733 = vpack.c.bf16 %v720, %v719
  %v734 = vpack.c.bf16 %v722, %v721
  %v735 = vpack.c.bf16 %v724, %v723
  %v736 = vpack.c.bf16 %v726, %v725
  %v737 = vpack.c.bf16 %v728, %v727
  %v738 = vpack.c.bf16 %v730, %v729
  %v739 = vld [vmem:[%s11] sm:$0xf]
  %v740 = vld [vmem:[%s11 + $0x4] sm:$0xf]
  %v741 = vld [vmem:[%s11 + $0x8] sm:$0xf]
  %v742 = vld [vmem:[%s11 + $0xc] sm:$0xf]
  %v743 = vld [vmem:[%s11 + $0x10] sm:$0xf]
  %v744 = vld [vmem:[%s11 + $0x14] sm:$0xf]
  %v745 = vld [vmem:[%s11 + $0x18] sm:$0xf]
  %v746 = vld [vmem:[%s11 + $0x1c] sm:$0xf]
  %v747 = vld [vmem:[%s11 + $0x20] sm:$0xf]
  %v748 = vld [vmem:[%s11 + $0x24] sm:$0xf]
  %v749 = vld [vmem:[%s11 + $0x28] sm:$0xf]
  %v750 = vld [vmem:[%s11 + $0x2c] sm:$0xf]
  %v751 = vld [vmem:[%s11 + $0x30] sm:$0xf]
  %v752 = vld [vmem:[%s11 + $0x34] sm:$0xf]
  %v753 = vld [vmem:[%s11 + $0x38] sm:$0xf]
  %v754 = vld [vmem:[%s11 + $0x3c] sm:$0xf]
  %v755 = vld [vmem:[%s12] sm:$0x1]
  %v757 = vlaneseq
  %v758 = vshrl.u32 %v757, 7
  %v759 = vsub.s32 0, %v758
  %v760 = vrot.slane %v755, %v759
  %v778 = vunpack.c.l.b16 %v739
  %v779 = vunpack.c.l.b16 %v740
  %v780 = vunpack.c.l.b16 %v741
  %v781 = vunpack.c.l.b16 %v742
  %v782 = vunpack.c.l.b16 %v743
  %v783 = vunpack.c.l.b16 %v744
  %v784 = vunpack.c.l.b16 %v745
  %v785 = vunpack.c.l.b16 %v746
  %v786 = vunpack.c.l.b16 %v747
  %v787 = vunpack.c.l.b16 %v748
  %v788 = vunpack.c.l.b16 %v749
  %v789 = vunpack.c.l.b16 %v750
  %v790 = vunpack.c.l.b16 %v751
  %v791 = vunpack.c.l.b16 %v752
  %v792 = vunpack.c.l.b16 %v753
  %v793 = vunpack.c.l.b16 %v754
  %v794 = vpack.c.b16 %v779, %v778
  %v795 = vpack.c.b16 %v781, %v780
  %v796 = vpack.c.b16 %v783, %v782
  %v797 = vpack.c.b16 %v785, %v784
  %v798 = vpack.c.b16 %v787, %v786
  %v799 = vpack.c.b16 %v789, %v788
  %v800 = vpack.c.b16 %v791, %v790
  %v801 = vpack.c.b16 %v793, %v792
  %810 = vmatprep.subr.bf16.mxu0 0
  %811 = vmatpush1.bf16.msra.mxu0 %v794
  %812 = vmatprep.subr.bf16.mxu0 0
  %813 = vmatpush1.bf16.msra.mxu0 %v795
  %814 = vmatprep.subr.bf16.mxu0 0
  %815 = vmatpush1.bf16.msra.mxu0 %v796
  %816 = vmatprep.subr.bf16.mxu0 0
  %817 = vmatpush1.bf16.msra.mxu0 %v797
  %818 = vmatprep.subr.bf16.mxu0 0
  %819 = vmatpush1.bf16.msra.mxu0 %v798
  %820 = vmatprep.subr.bf16.mxu0 0
  %821 = vmatpush1.bf16.msra.mxu0 %v799
  %822 = vmatprep.subr.bf16.mxu0 0
  %823 = vmatpush1.bf16.msra.mxu0 %v800
  %824 = vmatprep.subr.bf16.mxu0 0
  %825 = vmatpush1.bf16.msra.mxu0 %v801
  %826 = vmatprep.subr.bf16.mxu0 0
  %827 = vmatpush1.bf16.msra.mxu0 0
  %828 = vmatprep.subr.bf16.mxu0 0
  %829 = vmatpush1.bf16.msra.mxu0 0
  %830 = vmatprep.subr.bf16.mxu0 0
  %831 = vmatpush1.bf16.msra.mxu0 0
  %832 = vmatprep.subr.bf16.mxu0 0
  %833 = vmatpush1.bf16.msra.mxu0 0
  %834 = vmatprep.subr.bf16.mxu0 0
  %835 = vmatpush1.bf16.msra.mxu0 0
  %836 = vmatprep.subr.bf16.mxu0 0
  %837 = vmatpush1.bf16.msra.mxu0 0
  %838 = vmatprep.subr.bf16.mxu0 0
  %839 = vmatpush1.bf16.msra.mxu0 0
  %840 = vmatprep.subr.bf16.mxu0 0
  %841 = vmatpush1.bf16.msra.mxu0 0
  %842 = vmatprep.mubr.bf16.mxu0 0
  %843 = vmatmul.mubr.bf16.gmra.mrb[0].mxu0 %v731
  %v844 = vpop.f32.mrb[0].mxu0
  %v845 = vadd.f32 %v760, %v844
  %v846 = vpop.f32.mrb[0].mxu0
  %v847 = vpop.f32.mrb[0].mxu0
  %v848 = vadd.f32 %v760, %v847
  %v849 = vpop.f32.mrb[0].mxu0
  %850 = vmatprep.mubr.bf16.mxu0 0
  %851 = vmatmul.mubr.bf16.gmra.mrb[0].mxu0 %v732
  %v852 = vpop.f32.mrb[0].mxu0
  %v853 = vadd.f32 %v760, %v852
  %v854 = vpop.f32.mrb[0].mxu0
  %v855 = vpop.f32.mrb[0].mxu0
  %v856 = vadd.f32 %v760, %v855
  %v857 = vpop.f32.mrb[0].mxu0
  %858 = vmatprep.mubr.bf16.mxu0 0
  %859 = vmatmul.mubr.bf16.gmra.mrb[0].mxu0 %v733
  %v860 = vpop.f32.mrb[0].mxu0
  %v861 = vadd.f32 %v760, %v860
  %v862 = vpop.f32.mrb[0].mxu0
  %v863 = vpop.f32.mrb[0].mxu0
  %v864 = vadd.f32 %v760, %v863
  %v865 = vpop.f32.mrb[0].mxu0
  %866 = vmatprep.mubr.bf16.mxu0 0
  %867 = vmatmul.mubr.bf16.gmra.mrb[0].mxu0 %v734
  %v868 = vpop.f32.mrb[0].mxu0
  %v869 = vadd.f32 %v760, %v868
  %v870 = vpop.f32.mrb[0].mxu0
  %v871 = vpop.f32.mrb[0].mxu0
  %v872 = vadd.f32 %v760, %v871
  %v873 = vpop.f32.mrb[0].mxu0
  %874 = vmatprep.mubr.bf16.mxu0 0
  %875 = vmatmul.mubr.bf16.gmra.mrb[0].mxu0 %v735
  %v876 = vpop.f32.mrb[0].mxu0
  %v877 = vadd.f32 %v760, %v876
  %v878 = vpop.f32.mrb[0].mxu0
  %v879 = vpop.f32.mrb[0].mxu0
  %v880 = vadd.f32 %v760, %v879
  %v881 = vpop.f32.mrb[0].mxu0
  %882 = vmatprep.mubr.bf16.mxu0 0
  %883 = vmatmul.mubr.bf16.gmra.mrb[0].mxu0 %v736
  %v884 = vpop.f32.mrb[0].mxu0
  %v885 = vadd.f32 %v760, %v884
  %v886 = vpop.f32.mrb[0].mxu0
  %v887 = vpop.f32.mrb[0].mxu0
  %v888 = vadd.f32 %v760, %v887
  %v889 = vpop.f32.mrb[0].mxu0
  %890 = vmatprep.mubr.bf16.mxu0 0
  %891 = vmatmul.mubr.bf16.gmra.mrb[0].mxu0 %v737
  %v892 = vpop.f32.mrb[0].mxu0
  %v893 = vadd.f32 %v760, %v892
  %v894 = vpop.f32.mrb[0].mxu0
  %v895 = vpop.f32.mrb[0].mxu0
  %v896 = vadd.f32 %v760, %v895
  %v897 = vpop.f32.mrb[0].mxu0
  %898 = vmatprep.mubr.bf16.mxu0 0
  %899 = vmatmul.mubr.bf16.gmra.mrb[0].mxu0 %v738
  %v900 = vpop.f32.mrb[0].mxu0
  %v901 = vadd.f32 %v760, %v900
  %v902 = vpop.f32.mrb[0].mxu0
  %v903 = vpop.f32.mrb[0].mxu0
  %v904 = vadd.f32 %v760, %v903
  %v905 = vpop.f32.mrb[0].mxu0
  %906 = vdwg.mxu0
  %v907 = vmax.f32 %v845, 0.0
  %v908 = vmax.f32 %v848, 0.0
  %v909 = vmax.f32 %v853, 0.0
  %v910 = vmax.f32 %v856, 0.0
  %v911 = vmax.f32 %v861, 0.0
  %v912 = vmax.f32 %v864, 0.0
  %v913 = vmax.f32 %v869, 0.0
  %v914 = vmax.f32 %v872, 0.0
  %v915 = vmax.f32 %v877, 0.0
  %v916 = vmax.f32 %v880, 0.0
  %v917 = vmax.f32 %v885, 0.0
  %v918 = vmax.f32 %v888, 0.0
  %v919 = vmax.f32 %v893, 0.0
  %v920 = vmax.f32 %v896, 0.0
  %v921 = vmax.f32 %v901, 0.0
  %v922 = vmax.f32 %v904, 0.0
  %v923 = vmin.f32 %v907, 6.0
  %v924 = vmin.f32 %v908, 6.0
  %v925 = vmin.f32 %v909, 6.0
  %v926 = vmin.f32 %v910, 6.0
  %v927 = vmin.f32 %v911, 6.0
  %v928 = vmin.f32 %v912, 6.0
  %v929 = vmin.f32 %v913, 6.0
  %v930 = vmin.f32 %v914, 6.0
  %v931 = vmin.f32 %v915, 6.0
  %v932 = vmin.f32 %v916, 6.0
  %v933 = vmin.f32 %v917, 6.0
  %v934 = vmin.f32 %v918, 6.0
  %v935 = vmin.f32 %v919, 6.0
  %v936 = vmin.f32 %v920, 6.0
  %v937 = vmin.f32 %v921, 6.0
  %v938 = vmin.f32 %v922, 6.0
  %v939 = vpack.c.bf16 %v924, %v923
  %v940 = vpack.c.bf16 %v926, %v925
  %v941 = vpack.c.bf16 %v928, %v927
  %v942 = vpack.c.bf16 %v930, %v929
  %v943 = vpack.c.bf16 %v932, %v931
  %v944 = vpack.c.bf16 %v934, %v933
  %v945 = vpack.c.bf16 %v936, %v935
  %v946 = vpack.c.bf16 %v938, %v937
  %v955 = vunpack.c.l.b16 %v939
  %v956 = vunpack.c.h.b16 %v939
  %v957 = vunpack.c.l.b16 %v940
  %v958 = vunpack.c.h.b16 %v940
  %v959 = vunpack.c.l.b16 %v941
  %v960 = vunpack.c.h.b16 %v941
  %v961 = vunpack.c.l.b16 %v942
  %v962 = vunpack.c.h.b16 %v942
  %v963 = vunpack.c.l.b16 %v943
  %v964 = vunpack.c.h.b16 %v943
  %v965 = vunpack.c.l.b16 %v944
  %v966 = vunpack.c.h.b16 %v944
  %v967 = vunpack.c.l.b16 %v945
  %v968 = vunpack.c.h.b16 %v945
  %v969 = vunpack.c.l.b16 %v946
  %v970 = vunpack.c.h.b16 %v946
  %v971 = vpack.c.b16 %v955, %v955
  %v972 = vpack.c.b16 %v956, %v956
  %v973 = vpack.c.b16 %v957, %v957
  %v974 = vpack.c.b16 %v958, %v958
  %v975 = vpack.c.b16 %v959, %v959
  %v976 = vpack.c.b16 %v960, %v960
  %v977 = vpack.c.b16 %v961, %v961
  %v978 = vpack.c.b16 %v962, %v962
  %v979 = vpack.c.b16 %v963, %v963
  %v980 = vpack.c.b16 %v964, %v964
  %v981 = vpack.c.b16 %v965, %v965
  %v982 = vpack.c.b16 %v966, %v966
  %v983 = vpack.c.b16 %v967, %v967
  %v984 = vpack.c.b16 %v968, %v968
  %v985 = vpack.c.b16 %v969, %v969
  %v986 = vpack.c.b16 %v970, %v970
  %1003 = vst [vmem:[%s13] sm:$0xf] %v971
  %1004 = vst [vmem:[%s13 + $0x4] sm:$0xf] %v972
  %1005 = vst [vmem:[%s13 + $0x8] sm:$0xf] %v973
  %1006 = vst [vmem:[%s13 + $0xc] sm:$0xf] %v974
  %1007 = vst [vmem:[%s13 + $0x10] sm:$0xf] %v975
  %1008 = vst [vmem:[%s13 + $0x14] sm:$0xf] %v976
  %1009 = vst [vmem:[%s13 + $0x18] sm:$0xf] %v977
  %1010 = vst [vmem:[%s13 + $0x1c] sm:$0xf] %v978
  %1011 = vst [vmem:[%s13 + $0x20] sm:$0xf] %v979
  %1012 = vst [vmem:[%s13 + $0x24] sm:$0xf] %v980
  %1013 = vst [vmem:[%s13 + $0x28] sm:$0xf] %v981
  %1014 = vst [vmem:[%s13 + $0x2c] sm:$0xf] %v982
  %1015 = vst [vmem:[%s13 + $0x30] sm:$0xf] %v983
  %1016 = vst [vmem:[%s13 + $0x34] sm:$0xf] %v984
  %1017 = vst [vmem:[%s13 + $0x38] sm:$0xf] %v985
  %1018 = vst [vmem:[%s13 + $0x3c] sm:$0xf] %v986
  // Predicated region
  $region54: #{mobilenet_forward.17} parent=0 // pred_check
    _
  $region55: #{mobilenet_forward.17} parent=0 // pred_check_branch
    %1020 = sbr.rel (0) target = $region57
  $region56: #{mobilenet_forward.17} parent=0 // pred_region
    _
  $region57: #{mobilenet_forward.17} parent=0 // pred_fallthru
    _
  // Predicated region
  $region58: #{mobilenet_forward.17} parent=0 // pred_check
    _
  $region59: #{mobilenet_forward.17} parent=0 // pred_check_branch
    %1022 = sbr.rel (0) target = $region61
  $region60: #{mobilenet_forward.17} parent=0 // pred_region
    _
  $region61: #{mobilenet_forward.17} parent=0 // pred_fallthru
    _

// kernel: mobilenet_forward.19
$region0: #{mobilenet_forward.19}
  #allocation0 [shape = 'u32[]', space=smem, size = 0x4, offset = 0x4, fixed_abs, tag = 'smem constant byte address 0x4 - core index']
  #allocation1 [shape = 'u32[144,128]{1,0:T(1,128)}', space=vmem, size = 0x12000, scoped, tag = 'internal scratch']
  %s0 = inlined_call_operand.vmem [shape: bf16[32,128], index: 0, kind: input, shape index: {}]
  %s1 = inlined_call_operand.vmem [shape: bf16[32,128], index: 1, kind: input, shape index: {}]
  %s2 = inlined_call_operand.vmem [shape: bf16[32,128], index: 2, kind: input, shape index: {}]
  %s3 = inlined_call_operand.vmem [shape: bf16[32,128], index: 3, kind: input, shape index: {}]
  %s4 = inlined_call_operand.vmem [shape: bf16[32,128], index: 4, kind: input, shape index: {}]
  %s5 = inlined_call_operand.vmem [shape: bf16[32,128], index: 5, kind: input, shape index: {}]
  %s6 = inlined_call_operand.vmem [shape: bf16[32,128], index: 6, kind: input, shape index: {}]
  %s7 = inlined_call_operand.vmem [shape: bf16[32,128], index: 7, kind: input, shape index: {}]
  %s8 = inlined_call_operand.vmem [shape: bf16[32,128], index: 8, kind: input, shape index: {}]
  %s9 = inlined_call_operand.vmem [shape: f32[9,1,128], index: 9, kind: input, shape index: {}]
  %s10 = inlined_call_operand.vmem [shape: f32[1,128], index: 10, kind: input, shape index: {}]
  %s11 = inlined_call_operand.vmem [shape: bf16[128,128], index: 11, kind: input, shape index: {}]
  %s12 = inlined_call_operand.vmem [shape: f32[1,128], index: 12, kind: input, shape index: {}]
  %s13 = inlined_call_operand.vmem [shape: bf16[32,128], index: 13, kind: output, shape index: {}]
  %s14 = sld [smem:[#allocation0]]
  $region62: #{mobilenet_forward.19} parent=0
    _
  %s16 = ssub.s32 1, %s14
  %s17 = scalar_select 0, %s16, %s14
  // Predicated region
  $region2: #{mobilenet_forward.19} parent=0 // pred_check
    _
  $region3: #{mobilenet_forward.19} parent=0 // pred_check_branch
    %19 = sbr.rel (0) target = $region5
  $region4: #{mobilenet_forward.19} parent=0 // pred_region
    _
  $region5: #{mobilenet_forward.19} parent=0 // pred_fallthru
    _
  // Predicated region
  $region6: #{mobilenet_forward.19} parent=0 // pred_check
    _
  $region7: #{mobilenet_forward.19} parent=0 // pred_check_branch
    %21 = sbr.rel (0) target = $region9
  $region8: #{mobilenet_forward.19} parent=0 // pred_region
    _
  $region9: #{mobilenet_forward.19} parent=0 // pred_fallthru
    _
  // Predicated region
  $region10: #{mobilenet_forward.19} parent=0 // pred_check
    _
  $region11: #{mobilenet_forward.19} parent=0 // pred_check_branch
    %23 = sbr.rel (0) target = $region13
  $region12: #{mobilenet_forward.19} parent=0 // pred_region
    _
  $region13: #{mobilenet_forward.19} parent=0 // pred_fallthru
    _
  // Predicated region
  $region14: #{mobilenet_forward.19} parent=0 // pred_check
    _
  $region15: #{mobilenet_forward.19} parent=0 // pred_check_branch
    %25 = sbr.rel (0) target = $region17
  $region16: #{mobilenet_forward.19} parent=0 // pred_region
    _
  $region17: #{mobilenet_forward.19} parent=0 // pred_fallthru
    _
  // Predicated region
  $region18: #{mobilenet_forward.19} parent=0 // pred_check
    _
  $region19: #{mobilenet_forward.19} parent=0 // pred_check_branch
    %27 = sbr.rel (0) target = $region21
  $region20: #{mobilenet_forward.19} parent=0 // pred_region
    _
  $region21: #{mobilenet_forward.19} parent=0 // pred_fallthru
    _
  // Predicated region
  $region22: #{mobilenet_forward.19} parent=0 // pred_check
    _
  $region23: #{mobilenet_forward.19} parent=0 // pred_check_branch
    %29 = sbr.rel (0) target = $region25
  $region24: #{mobilenet_forward.19} parent=0 // pred_region
    _
  $region25: #{mobilenet_forward.19} parent=0 // pred_fallthru
    _
  // Predicated region
  $region26: #{mobilenet_forward.19} parent=0 // pred_check
    _
  $region27: #{mobilenet_forward.19} parent=0 // pred_check_branch
    %31 = sbr.rel (0) target = $region29
  $region28: #{mobilenet_forward.19} parent=0 // pred_region
    _
  $region29: #{mobilenet_forward.19} parent=0 // pred_fallthru
    _
  // Predicated region
  $region30: #{mobilenet_forward.19} parent=0 // pred_check
    _
  $region31: #{mobilenet_forward.19} parent=0 // pred_check_branch
    %33 = sbr.rel (0) target = $region33
  $region32: #{mobilenet_forward.19} parent=0 // pred_region
    _
  $region33: #{mobilenet_forward.19} parent=0 // pred_fallthru
    _
  // Predicated region
  $region34: #{mobilenet_forward.19} parent=0 // pred_check
    _
  $region35: #{mobilenet_forward.19} parent=0 // pred_check_branch
    %35 = sbr.rel (0) target = $region37
  $region36: #{mobilenet_forward.19} parent=0 // pred_region
    _
  $region37: #{mobilenet_forward.19} parent=0 // pred_fallthru
    _
  // Predicated region
  $region38: #{mobilenet_forward.19} parent=0 // pred_check
    _
  $region39: #{mobilenet_forward.19} parent=0 // pred_check_branch
    %37 = sbr.rel (0) target = $region41
  $region40: #{mobilenet_forward.19} parent=0 // pred_region
    _
  $region41: #{mobilenet_forward.19} parent=0 // pred_fallthru
    _
  // Predicated region
  $region42: #{mobilenet_forward.19} parent=0 // pred_check
    _
  $region43: #{mobilenet_forward.19} parent=0 // pred_check_branch
    %39 = sbr.rel (0) target = $region45
  $region44: #{mobilenet_forward.19} parent=0 // pred_region
    _
  $region45: #{mobilenet_forward.19} parent=0 // pred_fallthru
    _
  // Predicated region
  $region46: #{mobilenet_forward.19} parent=0 // pred_check
    _
  $region47: #{mobilenet_forward.19} parent=0 // pred_check_branch
    %41 = sbr.rel (0) target = $region49
  $region48: #{mobilenet_forward.19} parent=0 // pred_region
    _
  $region49: #{mobilenet_forward.19} parent=0 // pred_fallthru
    _
  // Predicated region
  $region50: #{mobilenet_forward.19} parent=0 // pred_check
    _
  $region51: #{mobilenet_forward.19} parent=0 // pred_check_branch
    %43 = sbr.rel (0) target = $region53
  $region52: #{mobilenet_forward.19} parent=0 // pred_region
    _
  $region53: #{mobilenet_forward.19} parent=0 // pred_fallthru
    _
  %v45 = vld [vmem:[%s10] sm:$0x1]
  %v46 = vld [vmem:[%s0] sm:$0xf]
  %v47 = vld [vmem:[%s0 + $0x4] sm:$0xf]
  %v48 = vld [vmem:[%s0 + $0x8] sm:$0xf]
  %v49 = vld [vmem:[%s0 + $0xc] sm:$0xf]
  %v50 = vunpack.c.l.bf16 %v46
  %v51 = vunpack.c.l.bf16 %v47
  %v52 = vunpack.c.l.bf16 %v48
  %v53 = vunpack.c.l.bf16 %v49
  %v54 = vld [vmem:[%s9] sm:$0x1]
  %v56 = vlaneseq
  %v57 = vshrl.u32 %v56, 7
  %v58 = vsub.s32 0, %v57
  %v59 = vrot.slane %v54, %v58
  %v61 = vmul.f32 %v50, %v59
  %v62 = vmul.f32 %v51, %v59
  %v63 = vmul.f32 %v52, %v59
  %v64 = vmul.f32 %v53, %v59
  %v66 = vlaneseq
  %v67 = vshrl.u32 %v66, 7
  %v68 = vsub.s32 0, %v67
  %v69 = vrot.slane %v45, %v68
  %v71 = vadd.f32 %v69, %v61
  %v72 = vadd.f32 %v69, %v62
  %v73 = vadd.f32 %v69, %v63
  %v74 = vadd.f32 %v69, %v64
  %v75 = vld [vmem:[%s1] sm:$0xf]
  %v76 = vld [vmem:[%s1 + $0x4] sm:$0xf]
  %v77 = vld [vmem:[%s1 + $0x8] sm:$0xf]
  %v78 = vld [vmem:[%s1 + $0xc] sm:$0xf]
  %v79 = vunpack.c.l.bf16 %v75
  %v80 = vunpack.c.l.bf16 %v76
  %v81 = vunpack.c.l.bf16 %v77
  %v82 = vunpack.c.l.bf16 %v78
  %s83 = scalar_lea.vmem %s9, 1
  %v84 = vld [vmem:[%s83] sm:$0x1]
  %v86 = vlaneseq
  %v87 = vshrl.u32 %v86, 7
  %v88 = vsub.s32 0, %v87
  %v89 = vrot.slane %v84, %v88
  %v91 = vmul.f32 %v79, %v89
  %v92 = vmul.f32 %v80, %v89
  %v93 = vmul.f32 %v81, %v89
  %v94 = vmul.f32 %v82, %v89
  %v95 = vadd.f32 %v71, %v91
  %v96 = vadd.f32 %v72, %v92
  %v97 = vadd.f32 %v73, %v93
  %v98 = vadd.f32 %v74, %v94
  %v99 = vld [vmem:[%s2] sm:$0xf]
  %v100 = vld [vmem:[%s2 + $0x4] sm:$0xf]
  %v101 = vld [vmem:[%s2 + $0x8] sm:$0xf]
  %v102 = vld [vmem:[%s2 + $0xc] sm:$0xf]
  %v103 = vunpack.c.l.bf16 %v99
  %v104 = vunpack.c.l.bf16 %v100
  %v105 = vunpack.c.l.bf16 %v101
  %v106 = vunpack.c.l.bf16 %v102
  %s107 = scalar_lea.vmem %s9, 2
  %v108 = vld [vmem:[%s107] sm:$0x1]
  %v110 = vlaneseq
  %v111 = vshrl.u32 %v110, 7
  %v112 = vsub.s32 0, %v111
  %v113 = vrot.slane %v108, %v112
  %v115 = vmul.f32 %v103, %v113
  %v116 = vmul.f32 %v104, %v113
  %v117 = vmul.f32 %v105, %v113
  %v118 = vmul.f32 %v106, %v113
  %v119 = vadd.f32 %v95, %v115
  %v120 = vadd.f32 %v96, %v116
  %v121 = vadd.f32 %v97, %v117
  %v122 = vadd.f32 %v98, %v118
  %v123 = vld [vmem:[%s3] sm:$0xf]
  %v124 = vld [vmem:[%s3 + $0x4] sm:$0xf]
  %v125 = vld [vmem:[%s3 + $0x8] sm:$0xf]
  %v126 = vld [vmem:[%s3 + $0xc] sm:$0xf]
  %v127 = vunpack.c.l.bf16 %v123
  %v128 = vunpack.c.l.bf16 %v124
  %v129 = vunpack.c.l.bf16 %v125
  %v130 = vunpack.c.l.bf16 %v126
  %s131 = scalar_lea.vmem %s9, 3
  %v132 = vld [vmem:[%s131] sm:$0x1]
  %v134 = vlaneseq
  %v135 = vshrl.u32 %v134, 7
  %v136 = vsub.s32 0, %v135
  %v137 = vrot.slane %v132, %v136
  %v139 = vmul.f32 %v127, %v137
  %v140 = vmul.f32 %v128, %v137
  %v141 = vmul.f32 %v129, %v137
  %v142 = vmul.f32 %v130, %v137
  %v143 = vadd.f32 %v119, %v139
  %v144 = vadd.f32 %v120, %v140
  %v145 = vadd.f32 %v121, %v141
  %v146 = vadd.f32 %v122, %v142
  %v147 = vld [vmem:[%s4] sm:$0xf]
  %v148 = vld [vmem:[%s4 + $0x4] sm:$0xf]
  %v149 = vld [vmem:[%s4 + $0x8] sm:$0xf]
  %v150 = vld [vmem:[%s4 + $0xc] sm:$0xf]
  %v151 = vunpack.c.l.bf16 %v147
  %v152 = vunpack.c.l.bf16 %v148
  %v153 = vunpack.c.l.bf16 %v149
  %v154 = vunpack.c.l.bf16 %v150
  %s155 = scalar_lea.vmem %s9, 4
  %v156 = vld [vmem:[%s155] sm:$0x1]
  %v158 = vlaneseq
  %v159 = vshrl.u32 %v158, 7
  %v160 = vsub.s32 0, %v159
  %v161 = vrot.slane %v156, %v160
  %v163 = vmul.f32 %v151, %v161
  %v164 = vmul.f32 %v152, %v161
  %v165 = vmul.f32 %v153, %v161
  %v166 = vmul.f32 %v154, %v161
  %v167 = vadd.f32 %v143, %v163
  %v168 = vadd.f32 %v144, %v164
  %v169 = vadd.f32 %v145, %v165
  %v170 = vadd.f32 %v146, %v166
  %v171 = vld [vmem:[%s5] sm:$0xf]
  %v172 = vld [vmem:[%s5 + $0x4] sm:$0xf]
  %v173 = vld [vmem:[%s5 + $0x8] sm:$0xf]
  %v174 = vld [vmem:[%s5 + $0xc] sm:$0xf]
  %v175 = vunpack.c.l.bf16 %v171
  %v176 = vunpack.c.l.bf16 %v172
  %v177 = vunpack.c.l.bf16 %v173
  %v178 = vunpack.c.l.bf16 %v174
  %s179 = scalar_lea.vmem %s9, 5
  %v180 = vld [vmem:[%s179] sm:$0x1]
  %v182 = vlaneseq
  %v183 = vshrl.u32 %v182, 7
  %v184 = vsub.s32 0, %v183
  %v185 = vrot.slane %v180, %v184
  %v187 = vmul.f32 %v175, %v185
  %v188 = vmul.f32 %v176, %v185
  %v189 = vmul.f32 %v177, %v185
  %v190 = vmul.f32 %v178, %v185
  %v191 = vadd.f32 %v167, %v187
  %v192 = vadd.f32 %v168, %v188
  %v193 = vadd.f32 %v169, %v189
  %v194 = vadd.f32 %v170, %v190
  %v195 = vld [vmem:[%s6] sm:$0xf]
  %v196 = vld [vmem:[%s6 + $0x4] sm:$0xf]
  %v197 = vld [vmem:[%s6 + $0x8] sm:$0xf]
  %v198 = vld [vmem:[%s6 + $0xc] sm:$0xf]
  %v199 = vunpack.c.l.bf16 %v195
  %v200 = vunpack.c.l.bf16 %v196
  %v201 = vunpack.c.l.bf16 %v197
  %v202 = vunpack.c.l.bf16 %v198
  %s203 = scalar_lea.vmem %s9, 6
  %v204 = vld [vmem:[%s203] sm:$0x1]
  %v206 = vlaneseq
  %v207 = vshrl.u32 %v206, 7
  %v208 = vsub.s32 0, %v207
  %v209 = vrot.slane %v204, %v208
  %v211 = vmul.f32 %v199, %v209
  %v212 = vmul.f32 %v200, %v209
  %v213 = vmul.f32 %v201, %v209
  %v214 = vmul.f32 %v202, %v209
  %v215 = vadd.f32 %v191, %v211
  %v216 = vadd.f32 %v192, %v212
  %v217 = vadd.f32 %v193, %v213
  %v218 = vadd.f32 %v194, %v214
  %v219 = vld [vmem:[%s7] sm:$0xf]
  %v220 = vld [vmem:[%s7 + $0x4] sm:$0xf]
  %v221 = vld [vmem:[%s7 + $0x8] sm:$0xf]
  %v222 = vld [vmem:[%s7 + $0xc] sm:$0xf]
  %v223 = vunpack.c.l.bf16 %v219
  %v224 = vunpack.c.l.bf16 %v220
  %v225 = vunpack.c.l.bf16 %v221
  %v226 = vunpack.c.l.bf16 %v222
  %s227 = scalar_lea.vmem %s9, 7
  %v228 = vld [vmem:[%s227] sm:$0x1]
  %v230 = vlaneseq
  %v231 = vshrl.u32 %v230, 7
  %v232 = vsub.s32 0, %v231
  %v233 = vrot.slane %v228, %v232
  %v235 = vmul.f32 %v223, %v233
  %v236 = vmul.f32 %v224, %v233
  %v237 = vmul.f32 %v225, %v233
  %v238 = vmul.f32 %v226, %v233
  %v239 = vadd.f32 %v215, %v235
  %v240 = vadd.f32 %v216, %v236
  %v241 = vadd.f32 %v217, %v237
  %v242 = vadd.f32 %v218, %v238
  %v243 = vld [vmem:[%s8] sm:$0xf]
  %v244 = vld [vmem:[%s8 + $0x4] sm:$0xf]
  %v245 = vld [vmem:[%s8 + $0x8] sm:$0xf]
  %v246 = vld [vmem:[%s8 + $0xc] sm:$0xf]
  %v247 = vunpack.c.l.bf16 %v243
  %v248 = vunpack.c.l.bf16 %v244
  %v249 = vunpack.c.l.bf16 %v245
  %v250 = vunpack.c.l.bf16 %v246
  %s251 = scalar_lea.vmem %s9, 8
  %v252 = vld [vmem:[%s251] sm:$0x1]
  %v254 = vlaneseq
  %v255 = vshrl.u32 %v254, 7
  %v256 = vsub.s32 0, %v255
  %v257 = vrot.slane %v252, %v256
  %v259 = vmul.f32 %v247, %v257
  %v260 = vmul.f32 %v248, %v257
  %v261 = vmul.f32 %v249, %v257
  %v262 = vmul.f32 %v250, %v257
  %v263 = vadd.f32 %v239, %v259
  %v264 = vadd.f32 %v240, %v260
  %v265 = vadd.f32 %v241, %v261
  %v266 = vadd.f32 %v242, %v262
  %v267 = vmax.f32 %v263, 0.0
  %v268 = vmax.f32 %v264, 0.0
  %v269 = vmax.f32 %v265, 0.0
  %v270 = vmax.f32 %v266, 0.0
  %v271 = vmin.f32 %v267, 6.0
  %v272 = vmin.f32 %v268, 6.0
  %v273 = vmin.f32 %v269, 6.0
  %v274 = vmin.f32 %v270, 6.0
  %v275 = vpack.c.bf16 %v272, %v271
  %v276 = vpack.c.bf16 %v274, %v273
  %v277 = vld [vmem:[%s11] sm:$0xf]
  %v278 = vld [vmem:[%s11 + $0x4] sm:$0xf]
  %v279 = vld [vmem:[%s11 + $0x8] sm:$0xf]
  %v280 = vld [vmem:[%s11 + $0xc] sm:$0xf]
  %v281 = vld [vmem:[%s11 + $0x10] sm:$0xf]
  %v282 = vld [vmem:[%s11 + $0x14] sm:$0xf]
  %v283 = vld [vmem:[%s11 + $0x18] sm:$0xf]
  %v284 = vld [vmem:[%s11 + $0x1c] sm:$0xf]
  %v285 = vld [vmem:[%s11 + $0x20] sm:$0xf]
  %v286 = vld [vmem:[%s11 + $0x24] sm:$0xf]
  %v287 = vld [vmem:[%s11 + $0x28] sm:$0xf]
  %v288 = vld [vmem:[%s11 + $0x2c] sm:$0xf]
  %v289 = vld [vmem:[%s11 + $0x30] sm:$0xf]
  %v290 = vld [vmem:[%s11 + $0x34] sm:$0xf]
  %v291 = vld [vmem:[%s11 + $0x38] sm:$0xf]
  %v292 = vld [vmem:[%s11 + $0x3c] sm:$0xf]
  %v293 = vld [vmem:[%s12] sm:$0x1]
  %v295 = vlaneseq
  %v296 = vshrl.u32 %v295, 7
  %v297 = vsub.s32 0, %v296
  %v298 = vrot.slane %v293, %v297
  %v316 = vunpack.c.l.b16 %v277
  %v317 = vunpack.c.l.b16 %v278
  %v318 = vunpack.c.l.b16 %v279
  %v319 = vunpack.c.l.b16 %v280
  %v320 = vunpack.c.l.b16 %v281
  %v321 = vunpack.c.l.b16 %v282
  %v322 = vunpack.c.l.b16 %v283
  %v323 = vunpack.c.l.b16 %v284
  %v324 = vunpack.c.l.b16 %v285
  %v325 = vunpack.c.l.b16 %v286
  %v326 = vunpack.c.l.b16 %v287
  %v327 = vunpack.c.l.b16 %v288
  %v328 = vunpack.c.l.b16 %v289
  %v329 = vunpack.c.l.b16 %v290
  %v330 = vunpack.c.l.b16 %v291
  %v331 = vunpack.c.l.b16 %v292
  %v332 = vpack.c.b16 %v317, %v316
  %v333 = vpack.c.b16 %v319, %v318
  %v334 = vpack.c.b16 %v321, %v320
  %v335 = vpack.c.b16 %v323, %v322
  %v336 = vpack.c.b16 %v325, %v324
  %v337 = vpack.c.b16 %v327, %v326
  %v338 = vpack.c.b16 %v329, %v328
  %v339 = vpack.c.b16 %v331, %v330
  %348 = vmatprep.subr.bf16.mxu0 0
  %349 = vmatpush1.bf16.msra.mxu0 %v332
  %350 = vmatprep.subr.bf16.mxu0 0
  %351 = vmatpush1.bf16.msra.mxu0 %v333
  %352 = vmatprep.subr.bf16.mxu0 0
  %353 = vmatpush1.bf16.msra.mxu0 %v334
  %354 = vmatprep.subr.bf16.mxu0 0
  %355 = vmatpush1.bf16.msra.mxu0 %v335
  %356 = vmatprep.subr.bf16.mxu0 0
  %357 = vmatpush1.bf16.msra.mxu0 %v336
  %358 = vmatprep.subr.bf16.mxu0 0
  %359 = vmatpush1.bf16.msra.mxu0 %v337
  %360 = vmatprep.subr.bf16.mxu0 0
  %361 = vmatpush1.bf16.msra.mxu0 %v338
  %362 = vmatprep.subr.bf16.mxu0 0
  %363 = vmatpush1.bf16.msra.mxu0 %v339
  %364 = vmatprep.subr.bf16.mxu0 0
  %365 = vmatpush1.bf16.msra.mxu0 0
  %366 = vmatprep.subr.bf16.mxu0 0
  %367 = vmatpush1.bf16.msra.mxu0 0
  %368 = vmatprep.subr.bf16.mxu0 0
  %369 = vmatpush1.bf16.msra.mxu0 0
  %370 = vmatprep.subr.bf16.mxu0 0
  %371 = vmatpush1.bf16.msra.mxu0 0
  %372 = vmatprep.subr.bf16.mxu0 0
  %373 = vmatpush1.bf16.msra.mxu0 0
  %374 = vmatprep.subr.bf16.mxu0 0
  %375 = vmatpush1.bf16.msra.mxu0 0
  %376 = vmatprep.subr.bf16.mxu0 0
  %377 = vmatpush1.bf16.msra.mxu0 0
  %378 = vmatprep.subr.bf16.mxu0 0
  %379 = vmatpush1.bf16.msra.mxu0 0
  %380 = vmatprep.mubr.bf16.mxu0 0
  %381 = vmatmul.mubr.bf16.gmra.mrb[0].mxu0 %v275
  %v382 = vpop.f32.mrb[0].mxu0
  %v383 = vadd.f32 %v298, %v382
  %v384 = vpop.f32.mrb[0].mxu0
  %v385 = vpop.f32.mrb[0].mxu0
  %v386 = vadd.f32 %v298, %v385
  %v387 = vpop.f32.mrb[0].mxu0
  %388 = vmatprep.mubr.bf16.mxu0 0
  %389 = vmatmul.mubr.bf16.gmra.mrb[0].mxu0 %v276
  %v390 = vpop.f32.mrb[0].mxu0
  %v391 = vadd.f32 %v298, %v390
  %v392 = vpop.f32.mrb[0].mxu0
  %v393 = vpop.f32.mrb[0].mxu0
  %v394 = vadd.f32 %v298, %v393
  %v395 = vpop.f32.mrb[0].mxu0
  %396 = vdwg.mxu0
  %v397 = vmax.f32 %v383, 0.0
  %v398 = vmax.f32 %v386, 0.0
  %v399 = vmax.f32 %v391, 0.0
  %v400 = vmax.f32 %v394, 0.0
  %v401 = vmin.f32 %v397, 6.0
  %v402 = vmin.f32 %v398, 6.0
  %v403 = vmin.f32 %v399, 6.0
  %v404 = vmin.f32 %v400, 6.0
  %v405 = vpack.c.bf16 %v402, %v401
  %v406 = vpack.c.bf16 %v404, %v403
  %v409 = vunpack.c.l.b16 %v405
  %v410 = vunpack.c.h.b16 %v405
  %v411 = vunpack.c.l.b16 %v406
  %v412 = vunpack.c.h.b16 %v406
  %v413 = vpack.c.b16 %v409, %v409
  %v414 = vpack.c.b16 %v410, %v410
  %v415 = vpack.c.b16 %v411, %v411
  %v416 = vpack.c.b16 %v412, %v412
  %421 = vst [vmem:[%s13] sm:$0xf] %v413
  %422 = vst [vmem:[%s13 + $0x4] sm:$0xf] %v414
  %423 = vst [vmem:[%s13 + $0x8] sm:$0xf] %v415
  %424 = vst [vmem:[%s13 + $0xc] sm:$0xf] %v416
  // Predicated region
  $region54: #{mobilenet_forward.19} parent=0 // pred_check
    _
  $region55: #{mobilenet_forward.19} parent=0 // pred_check_branch
    %426 = sbr.rel (0) target = $region57
  $region56: #{mobilenet_forward.19} parent=0 // pred_region
    _
  $region57: #{mobilenet_forward.19} parent=0 // pred_fallthru
    _
  // Predicated region
  $region58: #{mobilenet_forward.19} parent=0 // pred_check
    _
  $region59: #{mobilenet_forward.19} parent=0 // pred_check_branch
    %428 = sbr.rel (0) target = $region61
  $region60: #{mobilenet_forward.19} parent=0 // pred_region
    _
  $region61: #{mobilenet_forward.19} parent=0 // pred_fallthru
    _

// kernel: mobilenet_forward.21
$region0: #{mobilenet_forward.21}
  #allocation0 [shape = 'u32[]', space=smem, size = 0x4, offset = 0x4, fixed_abs, tag = 'smem constant byte address 0x4 - core index']
  #allocation1 [shape = 'u32[144,128]{1,0:T(1,128)}', space=vmem, size = 0x12000, scoped, tag = 'internal scratch']
  %s0 = inlined_call_operand.vmem [shape: bf16[16,128], index: 0, kind: input, shape index: {}]
  %s1 = inlined_call_operand.vmem [shape: bf16[16,128], index: 1, kind: input, shape index: {}]
  %s2 = inlined_call_operand.vmem [shape: bf16[16,128], index: 2, kind: input, shape index: {}]
  %s3 = inlined_call_operand.vmem [shape: bf16[16,128], index: 3, kind: input, shape index: {}]
  %s4 = inlined_call_operand.vmem [shape: bf16[16,128], index: 4, kind: input, shape index: {}]
  %s5 = inlined_call_operand.vmem [shape: bf16[16,128], index: 5, kind: input, shape index: {}]
  %s6 = inlined_call_operand.vmem [shape: bf16[16,128], index: 6, kind: input, shape index: {}]
  %s7 = inlined_call_operand.vmem [shape: bf16[16,128], index: 7, kind: input, shape index: {}]
  %s8 = inlined_call_operand.vmem [shape: bf16[16,128], index: 8, kind: input, shape index: {}]
  %s9 = inlined_call_operand.vmem [shape: f32[9,1,128], index: 9, kind: input, shape index: {}]
  %s10 = inlined_call_operand.vmem [shape: f32[1,128], index: 10, kind: input, shape index: {}]
  %s11 = inlined_call_operand.vmem [shape: bf16[128,128], index: 11, kind: input, shape index: {}]
  %s12 = inlined_call_operand.vmem [shape: f32[1,128], index: 12, kind: input, shape index: {}]
  %s13 = inlined_call_operand.vmem [shape: bf16[16,128], index: 13, kind: output, shape index: {}]
  %s14 = sld [smem:[#allocation0]]
  $region62: #{mobilenet_forward.21} parent=0
    _
  %s16 = ssub.s32 1, %s14
  %s17 = scalar_select 0, %s16, %s14
  // Predicated region
  $region2: #{mobilenet_forward.21} parent=0 // pred_check
    _
  $region3: #{mobilenet_forward.21} parent=0 // pred_check_branch
    %19 = sbr.rel (0) target = $region5
  $region4: #{mobilenet_forward.21} parent=0 // pred_region
    _
  $region5: #{mobilenet_forward.21} parent=0 // pred_fallthru
    _
  // Predicated region
  $region6: #{mobilenet_forward.21} parent=0 // pred_check
    _
  $region7: #{mobilenet_forward.21} parent=0 // pred_check_branch
    %21 = sbr.rel (0) target = $region9
  $region8: #{mobilenet_forward.21} parent=0 // pred_region
    _
  $region9: #{mobilenet_forward.21} parent=0 // pred_fallthru
    _
  // Predicated region
  $region10: #{mobilenet_forward.21} parent=0 // pred_check
    _
  $region11: #{mobilenet_forward.21} parent=0 // pred_check_branch
    %23 = sbr.rel (0) target = $region13
  $region12: #{mobilenet_forward.21} parent=0 // pred_region
    _
  $region13: #{mobilenet_forward.21} parent=0 // pred_fallthru
    _
  // Predicated region
  $region14: #{mobilenet_forward.21} parent=0 // pred_check
    _
  $region15: #{mobilenet_forward.21} parent=0 // pred_check_branch
    %25 = sbr.rel (0) target = $region17
  $region16: #{mobilenet_forward.21} parent=0 // pred_region
    _
  $region17: #{mobilenet_forward.21} parent=0 // pred_fallthru
    _
  // Predicated region
  $region18: #{mobilenet_forward.21} parent=0 // pred_check
    _
  $region19: #{mobilenet_forward.21} parent=0 // pred_check_branch
    %27 = sbr.rel (0) target = $region21
  $region20: #{mobilenet_forward.21} parent=0 // pred_region
    _
  $region21: #{mobilenet_forward.21} parent=0 // pred_fallthru
    _
  // Predicated region
  $region22: #{mobilenet_forward.21} parent=0 // pred_check
    _
  $region23: #{mobilenet_forward.21} parent=0 // pred_check_branch
    %29 = sbr.rel (0) target = $region25
  $region24: #{mobilenet_forward.21} parent=0 // pred_region
    _
  $region25: #{mobilenet_forward.21} parent=0 // pred_fallthru
    _
  // Predicated region
  $region26: #{mobilenet_forward.21} parent=0 // pred_check
    _
  $region27: #{mobilenet_forward.21} parent=0 // pred_check_branch
    %31 = sbr.rel (0) target = $region29
  $region28: #{mobilenet_forward.21} parent=0 // pred_region
    _
  $region29: #{mobilenet_forward.21} parent=0 // pred_fallthru
    _
  // Predicated region
  $region30: #{mobilenet_forward.21} parent=0 // pred_check
    _
  $region31: #{mobilenet_forward.21} parent=0 // pred_check_branch
    %33 = sbr.rel (0) target = $region33
  $region32: #{mobilenet_forward.21} parent=0 // pred_region
    _
  $region33: #{mobilenet_forward.21} parent=0 // pred_fallthru
    _
  // Predicated region
  $region34: #{mobilenet_forward.21} parent=0 // pred_check
    _
  $region35: #{mobilenet_forward.21} parent=0 // pred_check_branch
    %35 = sbr.rel (0) target = $region37
  $region36: #{mobilenet_forward.21} parent=0 // pred_region
    _
  $region37: #{mobilenet_forward.21} parent=0 // pred_fallthru
    _
  // Predicated region
  $region38: #{mobilenet_forward.21} parent=0 // pred_check
    _
  $region39: #{mobilenet_forward.21} parent=0 // pred_check_branch
    %37 = sbr.rel (0) target = $region41
  $region40: #{mobilenet_forward.21} parent=0 // pred_region
    _
  $region41: #{mobilenet_forward.21} parent=0 // pred_fallthru
    _
  // Predicated region
  $region42: #{mobilenet_forward.21} parent=0 // pred_check
    _
  $region43: #{mobilenet_forward.21} parent=0 // pred_check_branch
    %39 = sbr.rel (0) target = $region45
  $region44: #{mobilenet_forward.21} parent=0 // pred_region
    _
  $region45: #{mobilenet_forward.21} parent=0 // pred_fallthru
    _
  // Predicated region
  $region46: #{mobilenet_forward.21} parent=0 // pred_check
    _
  $region47: #{mobilenet_forward.21} parent=0 // pred_check_branch
    %41 = sbr.rel (0) target = $region49
  $region48: #{mobilenet_forward.21} parent=0 // pred_region
    _
  $region49: #{mobilenet_forward.21} parent=0 // pred_fallthru
    _
  // Predicated region
  $region50: #{mobilenet_forward.21} parent=0 // pred_check
    _
  $region51: #{mobilenet_forward.21} parent=0 // pred_check_branch
    %43 = sbr.rel (0) target = $region53
  $region52: #{mobilenet_forward.21} parent=0 // pred_region
    _
  $region53: #{mobilenet_forward.21} parent=0 // pred_fallthru
    _
  %v45 = vld [vmem:[%s10] sm:$0x1]
  %v46 = vld [vmem:[%s0] sm:$0xf]
  %v47 = vld [vmem:[%s0 + $0x4] sm:$0xf]
  %v48 = vunpack.c.l.bf16 %v46
  %v49 = vunpack.c.l.bf16 %v47
  %v50 = vld [vmem:[%s9] sm:$0x1]
  %v52 = vlaneseq
  %v53 = vshrl.u32 %v52, 7
  %v54 = vsub.s32 0, %v53
  %v55 = vrot.slane %v50, %v54
  %v57 = vmul.f32 %v48, %v55
  %v58 = vmul.f32 %v49, %v55
  %v60 = vlaneseq
  %v61 = vshrl.u32 %v60, 7
  %v62 = vsub.s32 0, %v61
  %v63 = vrot.slane %v45, %v62
  %v65 = vadd.f32 %v63, %v57
  %v66 = vadd.f32 %v63, %v58
  %v67 = vld [vmem:[%s1] sm:$0xf]
  %v68 = vld [vmem:[%s1 + $0x4] sm:$0xf]
  %v69 = vunpack.c.l.bf16 %v67
  %v70 = vunpack.c.l.bf16 %v68
  %s71 = scalar_lea.vmem %s9, 1
  %v72 = vld [vmem:[%s71] sm:$0x1]
  %v74 = vlaneseq
  %v75 = vshrl.u32 %v74, 7
  %v76 = vsub.s32 0, %v75
  %v77 = vrot.slane %v72, %v76
  %v79 = vmul.f32 %v69, %v77
  %v80 = vmul.f32 %v70, %v77
  %v81 = vadd.f32 %v65, %v79
  %v82 = vadd.f32 %v66, %v80
  %v83 = vld [vmem:[%s2] sm:$0xf]
  %v84 = vld [vmem:[%s2 + $0x4] sm:$0xf]
  %v85 = vunpack.c.l.bf16 %v83
  %v86 = vunpack.c.l.bf16 %v84
  %s87 = scalar_lea.vmem %s9, 2
  %v88 = vld [vmem:[%s87] sm:$0x1]
  %v90 = vlaneseq
  %v91 = vshrl.u32 %v90, 7
  %v92 = vsub.s32 0, %v91
  %v93 = vrot.slane %v88, %v92
  %v95 = vmul.f32 %v85, %v93
  %v96 = vmul.f32 %v86, %v93
  %v97 = vadd.f32 %v81, %v95
  %v98 = vadd.f32 %v82, %v96
  %v99 = vld [vmem:[%s3] sm:$0xf]
  %v100 = vld [vmem:[%s3 + $0x4] sm:$0xf]
  %v101 = vunpack.c.l.bf16 %v99
  %v102 = vunpack.c.l.bf16 %v100
  %s103 = scalar_lea.vmem %s9, 3
  %v104 = vld [vmem:[%s103] sm:$0x1]
  %v106 = vlaneseq
  %v107 = vshrl.u32 %v106, 7
  %v108 = vsub.s32 0, %v107
  %v109 = vrot.slane %v104, %v108
  %v111 = vmul.f32 %v101, %v109
  %v112 = vmul.f32 %v102, %v109
  %v113 = vadd.f32 %v97, %v111
  %v114 = vadd.f32 %v98, %v112
  %v115 = vld [vmem:[%s4] sm:$0xf]
  %v116 = vld [vmem:[%s4 + $0x4] sm:$0xf]
  %v117 = vunpack.c.l.bf16 %v115
  %v118 = vunpack.c.l.bf16 %v116
  %s119 = scalar_lea.vmem %s9, 4
  %v120 = vld [vmem:[%s119] sm:$0x1]
  %v122 = vlaneseq
  %v123 = vshrl.u32 %v122, 7
  %v124 = vsub.s32 0, %v123
  %v125 = vrot.slane %v120, %v124
  %v127 = vmul.f32 %v117, %v125
  %v128 = vmul.f32 %v118, %v125
  %v129 = vadd.f32 %v113, %v127
  %v130 = vadd.f32 %v114, %v128
  %v131 = vld [vmem:[%s5] sm:$0xf]
  %v132 = vld [vmem:[%s5 + $0x4] sm:$0xf]
  %v133 = vunpack.c.l.bf16 %v131
  %v134 = vunpack.c.l.bf16 %v132
  %s135 = scalar_lea.vmem %s9, 5
  %v136 = vld [vmem:[%s135] sm:$0x1]
  %v138 = vlaneseq
  %v139 = vshrl.u32 %v138, 7
  %v140 = vsub.s32 0, %v139
  %v141 = vrot.slane %v136, %v140
  %v143 = vmul.f32 %v133, %v141
  %v144 = vmul.f32 %v134, %v141
  %v145 = vadd.f32 %v129, %v143
  %v146 = vadd.f32 %v130, %v144
  %v147 = vld [vmem:[%s6] sm:$0xf]
  %v148 = vld [vmem:[%s6 + $0x4] sm:$0xf]
  %v149 = vunpack.c.l.bf16 %v147
  %v150 = vunpack.c.l.bf16 %v148
  %s151 = scalar_lea.vmem %s9, 6
  %v152 = vld [vmem:[%s151] sm:$0x1]
  %v154 = vlaneseq
  %v155 = vshrl.u32 %v154, 7
  %v156 = vsub.s32 0, %v155
  %v157 = vrot.slane %v152, %v156
  %v159 = vmul.f32 %v149, %v157
  %v160 = vmul.f32 %v150, %v157
  %v161 = vadd.f32 %v145, %v159
  %v162 = vadd.f32 %v146, %v160
  %v163 = vld [vmem:[%s7] sm:$0xf]
  %v164 = vld [vmem:[%s7 + $0x4] sm:$0xf]
  %v165 = vunpack.c.l.bf16 %v163
  %v166 = vunpack.c.l.bf16 %v164
  %s167 = scalar_lea.vmem %s9, 7
  %v168 = vld [vmem:[%s167] sm:$0x1]
  %v170 = vlaneseq
  %v171 = vshrl.u32 %v170, 7
  %v172 = vsub.s32 0, %v171
  %v173 = vrot.slane %v168, %v172
  %v175 = vmul.f32 %v165, %v173
  %v176 = vmul.f32 %v166, %v173
  %v177 = vadd.f32 %v161, %v175
  %v178 = vadd.f32 %v162, %v176
  %v179 = vld [vmem:[%s8] sm:$0xf]
  %v180 = vld [vmem:[%s8 + $0x4] sm:$0xf]
  %v181 = vunpack.c.l.bf16 %v179
  %v182 = vunpack.c.l.bf16 %v180
  %s183 = scalar_lea.vmem %s9, 8
  %v184 = vld [vmem:[%s183] sm:$0x1]
  %v186 = vlaneseq
  %v187 = vshrl.u32 %v186, 7
  %v188 = vsub.s32 0, %v187
  %v189 = vrot.slane %v184, %v188
  %v191 = vmul.f32 %v181, %v189
  %v192 = vmul.f32 %v182, %v189
  %v193 = vadd.f32 %v177, %v191
  %v194 = vadd.f32 %v178, %v192
  %v195 = vmax.f32 %v193, 0.0
  %v196 = vmax.f32 %v194, 0.0
  %v197 = vmin.f32 %v195, 6.0
  %v198 = vmin.f32 %v196, 6.0
  %v199 = vpack.c.bf16 %v198, %v197
  %v200 = vld [vmem:[%s11] sm:$0xf]
  %v201 = vld [vmem:[%s11 + $0x4] sm:$0xf]
  %v202 = vld [vmem:[%s11 + $0x8] sm:$0xf]
  %v203 = vld [vmem:[%s11 + $0xc] sm:$0xf]
  %v204 = vld [vmem:[%s11 + $0x10] sm:$0xf]
  %v205 = vld [vmem:[%s11 + $0x14] sm:$0xf]
  %v206 = vld [vmem:[%s11 + $0x18] sm:$0xf]
  %v207 = vld [vmem:[%s11 + $0x1c] sm:$0xf]
  %v208 = vld [vmem:[%s11 + $0x20] sm:$0xf]
  %v209 = vld [vmem:[%s11 + $0x24] sm:$0xf]
  %v210 = vld [vmem:[%s11 + $0x28] sm:$0xf]
  %v211 = vld [vmem:[%s11 + $0x2c] sm:$0xf]
  %v212 = vld [vmem:[%s11 + $0x30] sm:$0xf]
  %v213 = vld [vmem:[%s11 + $0x34] sm:$0xf]
  %v214 = vld [vmem:[%s11 + $0x38] sm:$0xf]
  %v215 = vld [vmem:[%s11 + $0x3c] sm:$0xf]
  %v216 = vld [vmem:[%s12] sm:$0x1]
  %v218 = vlaneseq
  %v219 = vshrl.u32 %v218, 7
  %v220 = vsub.s32 0, %v219
  %v221 = vrot.slane %v216, %v220
  %v239 = vunpack.c.l.b16 %v200
  %v240 = vunpack.c.l.b16 %v201
  %v241 = vunpack.c.l.b16 %v202
  %v242 = vunpack.c.l.b16 %v203
  %v243 = vunpack.c.l.b16 %v204
  %v244 = vunpack.c.l.b16 %v205
  %v245 = vunpack.c.l.b16 %v206
  %v246 = vunpack.c.l.b16 %v207
  %v247 = vunpack.c.l.b16 %v208
  %v248 = vunpack.c.l.b16 %v209
  %v249 = vunpack.c.l.b16 %v210
  %v250 = vunpack.c.l.b16 %v211
  %v251 = vunpack.c.l.b16 %v212
  %v252 = vunpack.c.l.b16 %v213
  %v253 = vunpack.c.l.b16 %v214
  %v254 = vunpack.c.l.b16 %v215
  %v255 = vpack.c.b16 %v240, %v239
  %v256 = vpack.c.b16 %v242, %v241
  %v257 = vpack.c.b16 %v244, %v243
  %v258 = vpack.c.b16 %v246, %v245
  %v259 = vpack.c.b16 %v248, %v247
  %v260 = vpack.c.b16 %v250, %v249
  %v261 = vpack.c.b16 %v252, %v251
  %v262 = vpack.c.b16 %v254, %v253
  %271 = vmatprep.subr.bf16.mxu0 0
  %272 = vmatpush1.bf16.msra.mxu0 %v255
  %273 = vmatprep.subr.bf16.mxu0 0
  %274 = vmatpush1.bf16.msra.mxu0 %v256
  %275 = vmatprep.subr.bf16.mxu0 0
  %276 = vmatpush1.bf16.msra.mxu0 %v257
  %277 = vmatprep.subr.bf16.mxu0 0
  %278 = vmatpush1.bf16.msra.mxu0 %v258
  %279 = vmatprep.subr.bf16.mxu0 0
  %280 = vmatpush1.bf16.msra.mxu0 %v259
  %281 = vmatprep.subr.bf16.mxu0 0
  %282 = vmatpush1.bf16.msra.mxu0 %v260
  %283 = vmatprep.subr.bf16.mxu0 0
  %284 = vmatpush1.bf16.msra.mxu0 %v261
  %285 = vmatprep.subr.bf16.mxu0 0
  %286 = vmatpush1.bf16.msra.mxu0 %v262
  %287 = vmatprep.subr.bf16.mxu0 0
  %288 = vmatpush1.bf16.msra.mxu0 0
  %289 = vmatprep.subr.bf16.mxu0 0
  %290 = vmatpush1.bf16.msra.mxu0 0
  %291 = vmatprep.subr.bf16.mxu0 0
  %292 = vmatpush1.bf16.msra.mxu0 0
  %293 = vmatprep.subr.bf16.mxu0 0
  %294 = vmatpush1.bf16.msra.mxu0 0
  %295 = vmatprep.subr.bf16.mxu0 0
  %296 = vmatpush1.bf16.msra.mxu0 0
  %297 = vmatprep.subr.bf16.mxu0 0
  %298 = vmatpush1.bf16.msra.mxu0 0
  %299 = vmatprep.subr.bf16.mxu0 0
  %300 = vmatpush1.bf16.msra.mxu0 0
  %301 = vmatprep.subr.bf16.mxu0 0
  %302 = vmatpush1.bf16.msra.mxu0 0
  %303 = vmatprep.mubr.bf16.mxu0 0
  %304 = vmatmul.mubr.bf16.gmra.mrb[0].mxu0 %v199
  %v305 = vpop.f32.mrb[0].mxu0
  %v306 = vadd.f32 %v221, %v305
  %v307 = vpop.f32.mrb[0].mxu0
  %v308 = vpop.f32.mrb[0].mxu0
  %v309 = vadd.f32 %v221, %v308
  %v310 = vpop.f32.mrb[0].mxu0
  %311 = vdwg.mxu0
  %v312 = vmax.f32 %v306, 0.0
  %v313 = vmax.f32 %v309, 0.0
  %v314 = vmin.f32 %v312, 6.0
  %v315 = vmin.f32 %v313, 6.0
  %v316 = vpack.c.bf16 %v315, %v314
  %v318 = vunpack.c.l.b16 %v316
  %v319 = vunpack.c.h.b16 %v316
  %v320 = vpack.c.b16 %v318, %v318
  %v321 = vpack.c.b16 %v319, %v319
  %324 = vst [vmem:[%s13] sm:$0xf] %v320
  %325 = vst [vmem:[%s13 + $0x4] sm:$0xf] %v321
  // Predicated region
  $region54: #{mobilenet_forward.21} parent=0 // pred_check
    _
  $region55: #{mobilenet_forward.21} parent=0 // pred_check_branch
    %327 = sbr.rel (0) target = $region57
  $region56: #{mobilenet_forward.21} parent=0 // pred_region
    _
  $region57: #{mobilenet_forward.21} parent=0 // pred_fallthru
    _
  // Predicated region
  $region58: #{mobilenet_forward.21} parent=0 // pred_check
    _
  $region59: #{mobilenet_forward.21} parent=0 // pred_check_branch
    %329 = sbr.rel (0) target = $region61
  $region60: #{mobilenet_forward.21} parent=0 // pred_region
    _
  $region61: #{mobilenet_forward.21} parent=0 // pred_fallthru
    _

// kernel: mobilenet_forward.29
$region0: #{mobilenet_forward.29}
  #allocation0 [shape = 'u32[]', space=smem, size = 0x4, offset = 0x4, fixed_abs, tag = 'smem constant byte address 0x4 - core index']
  #allocation1 [shape = 'u32[144,128]{1,0:T(1,128)}', space=vmem, size = 0x12000, scoped, tag = 'internal scratch']
  %s0 = inlined_call_operand.vmem [shape: bf16[2,1,256], index: 0, kind: input, shape index: {}]
  %s1 = inlined_call_operand.vmem [shape: bf16[256,128], index: 1, kind: input, shape index: {}]
  %s2 = inlined_call_operand.vmem [shape: f32[1,128], index: 2, kind: input, shape index: {}]
  %s3 = inlined_call_operand.hbm [shape: f32[2,128], index: 3, kind: output, shape index: {}]
  %s4 = sld [smem:[#allocation0]]
  $region22: #{mobilenet_forward.29} parent=0
    _
  %s6 = ssub.s32 1, %s4
  %s7 = scalar_select 0, %s6, %s4
  $region1: #{mobilenet_forward.29} parent=0
    #allocation2 [shape = 'u8[1024]{0}', space=vmem, size = 0x400, scoped, tag = 'output window, operand 0, single buffered']
    #allocation3 [shape = 's32[1]{0}', space=sflag, size = 0x4, scoped, tag = 'scoped memory for mobilenet_forward.29']
    %8 = vsyncpa [#allocation3], 0
    // Predicated region
    $region2: #{mobilenet_forward.29} parent=1 // pred_check
      _
    $region3: #{mobilenet_forward.29} parent=1 // pred_check_branch
      %10 = sbr.rel (0) target = $region5
    $region4: #{mobilenet_forward.29} parent=1 // pred_region
      _
    $region5: #{mobilenet_forward.29} parent=1 // pred_fallthru
      _
    // Predicated region
    $region6: #{mobilenet_forward.29} parent=1 // pred_check
      _
    $region7: #{mobilenet_forward.29} parent=1 // pred_check_branch
      %12 = sbr.rel (0) target = $region9
    $region8: #{mobilenet_forward.29} parent=1 // pred_region
      _
    $region9: #{mobilenet_forward.29} parent=1 // pred_fallthru
      _
    // Predicated region
    $region10: #{mobilenet_forward.29} parent=1 // pred_check
      _
    $region11: #{mobilenet_forward.29} parent=1 // pred_check_branch
      %14 = sbr.rel (0) target = $region13
    $region12: #{mobilenet_forward.29} parent=1 // pred_region
      _
    $region13: #{mobilenet_forward.29} parent=1 // pred_fallthru
      _
    %v16 = vld [vmem:[%s0] sm:$0x3]
    %v17 = vld [vmem:[%s0 + $0x2] sm:$0x3]
    %v18 = vunpack.c.l.bf16 %v16
    %v19 = vunpack.c.l.bf16 %v17
    %v20 = vadd.f32 %v18, 0.0
    %v21 = vadd.f32 %v19, 0.0
    %v24 = vlaneseq
    %v25 = vshrl.u32 %v24, 7
    %v26 = vsub.s32 0, %v25
    %v27 = vrot.slane %v20, %v26
    %v28 = vlaneseq
    %v29 = vshrl.u32 %v28, 7
    %v30 = vsub.s32 2, %v29
    %v31 = vrot.slane %v20, %v30
    %v32 = vlaneseq
    %v33 = vshrl.u32 %v32, 7
    %v34 = vsub.s32 0, %v33
    %v35 = vrot.slane %v21, %v34
    %v36 = vlaneseq
    %v37 = vshrl.u32 %v36, 7
    %v38 = vsub.s32 2, %v37
    %v39 = vrot.slane %v21, %v38
    %v44 = vpack.c.bf16 %v27, %v27
    %v45 = vpack.c.bf16 %v31, %v31
    %v46 = vpack.c.bf16 %v35, %v35
    %v47 = vpack.c.bf16 %v39, %v39
    %v48 = vld [vmem:[%s1] sm:$0xf]
    %v49 = vld [vmem:[%s1 + $0x4] sm:$0xf]
    %v50 = vld [vmem:[%s1 + $0x8] sm:$0xf]
    %v51 = vld [vmem:[%s1 + $0xc] sm:$0xf]
    %v52 = vld [vmem:[%s1 + $0x10] sm:$0xf]
    %v53 = vld [vmem:[%s1 + $0x14] sm:$0xf]
    %v54 = vld [vmem:[%s1 + $0x18] sm:$0xf]
    %v55 = vld [vmem:[%s1 + $0x1c] sm:$0xf]
    %v56 = vld [vmem:[%s1 + $0x20] sm:$0xf]
    %v57 = vld [vmem:[%s1 + $0x24] sm:$0xf]
    %v58 = vld [vmem:[%s1 + $0x28] sm:$0xf]
    %v59 = vld [vmem:[%s1 + $0x2c] sm:$0xf]
    %v60 = vld [vmem:[%s1 + $0x30] sm:$0xf]
    %v61 = vld [vmem:[%s1 + $0x34] sm:$0xf]
    %v62 = vld [vmem:[%s1 + $0x38] sm:$0xf]
    %v63 = vld [vmem:[%s1 + $0x3c] sm:$0xf]
    %v64 = vld [vmem:[%s1 + $0x40] sm:$0xf]
    %v65 = vld [vmem:[%s1 + $0x44] sm:$0xf]
    %v66 = vld [vmem:[%s1 + $0x48] sm:$0xf]
    %v67 = vld [vmem:[%s1 + $0x4c] sm:$0xf]
    %v68 = vld [vmem:[%s1 + $0x50] sm:$0xf]
    %v69 = vld [vmem:[%s1 + $0x54] sm:$0xf]
    %v70 = vld [vmem:[%s1 + $0x58] sm:$0xf]
    %v71 = vld [vmem:[%s1 + $0x5c] sm:$0xf]
    %v72 = vld [vmem:[%s1 + $0x60] sm:$0xf]
    %v73 = vld [vmem:[%s1 + $0x64] sm:$0xf]
    %v74 = vld [vmem:[%s1 + $0x68] sm:$0xf]
    %v75 = vld [vmem:[%s1 + $0x6c] sm:$0xf]
    %v76 = vld [vmem:[%s1 + $0x70] sm:$0xf]
    %v77 = vld [vmem:[%s1 + $0x74] sm:$0xf]
    %v78 = vld [vmem:[%s1 + $0x78] sm:$0xf]
    %v79 = vld [vmem:[%s1 + $0x7c] sm:$0xf]
    %v80 = vld [vmem:[%s2] sm:$0x1]
    %v82 = vlaneseq
    %v83 = vshrl.u32 %v82, 7
    %v84 = vsub.s32 0, %v83
    %v85 = vrot.slane %v80, %v84
    %v91 = vunpack.c.l.b16 %v44
    %v92 = vunpack.c.l.b16 %v45
    %v93 = vunpack.c.l.b16 %v46
    %v94 = vunpack.c.l.b16 %v47
    %v95 = vrot.slane %v93, 7
    %vm96 = vcmask 1041409
    %v97 = vsel %vm96, %v95, %v91
    %v98 = vrot.slane %v94, 7
    %v99 = vsel %vm96, %v98, %v92
    %v100 = vpack.c.b16 %v97, %v97
    %v101 = vpack.c.b16 %v99, %v99
    %v136 = vunpack.c.l.b16 %v48
    %v137 = vunpack.c.l.b16 %v49
    %v138 = vunpack.c.l.b16 %v50
    %v139 = vunpack.c.l.b16 %v51
    %v140 = vunpack.c.l.b16 %v52
    %v141 = vunpack.c.l.b16 %v53
    %v142 = vunpack.c.l.b16 %v54
    %v143 = vunpack.c.l.b16 %v55
    %v144 = vunpack.c.l.b16 %v56
    %v145 = vunpack.c.l.b16 %v57
    %v146 = vunpack.c.l.b16 %v58
    %v147 = vunpack.c.l.b16 %v59
    %v148 = vunpack.c.l.b16 %v60
    %v149 = vunpack.c.l.b16 %v61
    %v150 = vunpack.c.l.b16 %v62
    %v151 = vunpack.c.l.b16 %v63
    %v152 = vunpack.c.l.b16 %v64
    %v153 = vunpack.c.l.b16 %v65
    %v154 = vunpack.c.l.b16 %v66
    %v155 = vunpack.c.l.b16 %v67
    %v156 = vunpack.c.l.b16 %v68
    %v157 = vunpack.c.l.b16 %v69
    %v158 = vunpack.c.l.b16 %v70
    %v159 = vunpack.c.l.b16 %v71
    %v160 = vunpack.c.l.b16 %v72
    %v161 = vunpack.c.l.b16 %v73
    %v162 = vunpack.c.l.b16 %v74
    %v163 = vunpack.c.l.b16 %v75
    %v164 = vunpack.c.l.b16 %v76
    %v165 = vunpack.c.l.b16 %v77
    %v166 = vunpack.c.l.b16 %v78
    %v167 = vunpack.c.l.b16 %v79
    %v168 = vpack.c.b16 %v137, %v136
    %v169 = vpack.c.b16 %v139, %v138
    %v170 = vpack.c.b16 %v141, %v140
    %v171 = vpack.c.b16 %v143, %v142
    %v172 = vpack.c.b16 %v145, %v144
    %v173 = vpack.c.b16 %v147, %v146
    %v174 = vpack.c.b16 %v149, %v148
    %v175 = vpack.c.b16 %v151, %v150
    %v176 = vpack.c.b16 %v153, %v152
    %v177 = vpack.c.b16 %v155, %v154
    %v178 = vpack.c.b16 %v157, %v156
    %v179 = vpack.c.b16 %v159, %v158
    %v180 = vpack.c.b16 %v161, %v160
    %v181 = vpack.c.b16 %v163, %v162
    %v182 = vpack.c.b16 %v165, %v164
    %v183 = vpack.c.b16 %v167, %v166
    %200 = vmatprep.subr.bf16.mxu0 0
    %201 = vmatpush1.bf16.msra.mxu0 %v168
    %202 = vmatprep.subr.bf16.mxu0 0
    %203 = vmatpush1.bf16.msra.mxu0 %v169
    %204 = vmatprep.subr.bf16.mxu0 0
    %205 = vmatpush1.bf16.msra.mxu0 %v170
    %206 = vmatprep.subr.bf16.mxu0 0
    %207 = vmatpush1.bf16.msra.mxu0 %v171
    %208 = vmatprep.subr.bf16.mxu0 0
    %209 = vmatpush1.bf16.msra.mxu0 %v172
    %210 = vmatprep.subr.bf16.mxu0 0
    %211 = vmatpush1.bf16.msra.mxu0 %v173
    %212 = vmatprep.subr.bf16.mxu0 0
    %213 = vmatpush1.bf16.msra.mxu0 %v174
    %214 = vmatprep.subr.bf16.mxu0 0
    %215 = vmatpush1.bf16.msra.mxu0 %v175
    %216 = vmatprep.subr.bf16.mxu0 0
    %217 = vmatpush1.bf16.msra.mxu0 %v176
    %218 = vmatprep.subr.bf16.mxu0 0
    %219 = vmatpush1.bf16.msra.mxu0 %v177
    %220 = vmatprep.subr.bf16.mxu0 0
    %221 = vmatpush1.bf16.msra.mxu0 %v178
    %222 = vmatprep.subr.bf16.mxu0 0
    %223 = vmatpush1.bf16.msra.mxu0 %v179
    %224 = vmatprep.subr.bf16.mxu0 0
    %225 = vmatpush1.bf16.msra.mxu0 %v180
    %226 = vmatprep.subr.bf16.mxu0 0
    %227 = vmatpush1.bf16.msra.mxu0 %v181
    %228 = vmatprep.subr.bf16.mxu0 0
    %229 = vmatpush1.bf16.msra.mxu0 %v182
    %230 = vmatprep.subr.bf16.mxu0 0
    %231 = vmatpush1.bf16.msra.mxu0 %v183
    %232 = vmatprep.mubr.bf16.mxu0 %v101
    %233 = vmatmul.mubr.bf16.gmra.mrb[0].mxu0 %v100
    %v234 = vpop.f32.mrb[0].mxu0
    %v235 = vadd.f32 %v85, %v234
    %v236 = vpop.f32.mrb[0].mxu0
    %v237 = vpop.f32.mrb[0].mxu0
    %v238 = vpop.f32.mrb[0].mxu0
    %239 = vdwg.mxu0
    %240 = vst [vmem:[#allocation2] sm:$0x3] %v235
    // Predicated region
    $region14: #{mobilenet_forward.29} parent=1 // pred_check
      _
    $region15: #{mobilenet_forward.29} parent=1 // pred_check_branch
      %242 = sbr.rel (0) target = $region17
    $region16: #{mobilenet_forward.29} parent=1 // pred_region
      %s244 = ssub.s32 32, 32
      %245 = vsyncadd [#allocation3], %s244
      %s247 = sshll.u32 [#allocation2], 4
      %s248 = int_to_ptr.vmem [resolvable:$true] %s247
      %250 = dma.vmem_to_hbm [thread:$0]  %s248, 32, %s3, [#allocation3]
    $region17: #{mobilenet_forward.29} parent=1 // pred_fallthru
      _
    // Predicated region
    $region18: #{mobilenet_forward.29} parent=1 // pred_check
      _
    $region19: #{mobilenet_forward.29} parent=1 // pred_check_branch
      %252 = sbr.rel (0) target = $region21
    $region20: #{mobilenet_forward.29} parent=1 // pred_region
      %253 = dma.done [#allocation3], 32
    $region21: #{mobilenet_forward.29} parent=1 // pred_fallthru
      _
    %254 = vsyncpa [#allocation3], 1

// kernel: mobilenet_forward.27
$region0: #{mobilenet_forward.27}
  #allocation0 [shape = 'u32[]', space=smem, size = 0x4, offset = 0x4, fixed_abs, tag = 'smem constant byte address 0x4 - core index']
  #allocation1 [shape = 'u32[144,128]{1,0:T(1,128)}', space=vmem, size = 0x12000, scoped, tag = 'internal scratch']
  %s0 = inlined_call_operand.vmem [shape: bf16[16,128], index: 0, kind: input, shape index: {}]
  %s1 = inlined_call_operand.vmem [shape: bf16[16,128], index: 1, kind: input, shape index: {}]
  %s2 = inlined_call_operand.vmem [shape: bf16[16,128], index: 2, kind: input, shape index: {}, may-alias: {2,5,6,7,8}]
  %s3 = inlined_call_operand.vmem [shape: bf16[16,128], index: 3, kind: input, shape index: {}]
  %s4 = inlined_call_operand.vmem [shape: bf16[16,128], index: 4, kind: input, shape index: {}]
  %s5 = inlined_call_operand.vmem [shape: bf16[16,128], index: 5, kind: input, shape index: {}, may-alias: {2,5,6,7,8}]
  %s6 = inlined_call_operand.vmem [shape: bf16[16,128], index: 6, kind: input, shape index: {}, may-alias: {2,5,6,7,8}]
  %s7 = inlined_call_operand.vmem [shape: bf16[16,128], index: 7, kind: input, shape index: {}, may-alias: {2,5,6,7,8}]
  %s8 = inlined_call_operand.vmem [shape: bf16[16,128], index: 8, kind: input, shape index: {}, may-alias: {2,5,6,7,8}]
  %s9 = inlined_call_operand.vmem [shape: f32[9,1,128], index: 9, kind: input, shape index: {}]
  %s10 = inlined_call_operand.vmem [shape: f32[1,128], index: 10, kind: input, shape index: {}]
  %s11 = inlined_call_operand.vmem [shape: bf16[128,256], index: 11, kind: input, shape index: {}]
  %s12 = inlined_call_operand.vmem [shape: f32[1,256], index: 12, kind: input, shape index: {}]
  %s13 = inlined_call_operand.vmem [shape: bf16[16,256], index: 13, kind: output, shape index: {}]
  %s14 = sld [smem:[#allocation0]]
  $region62: #{mobilenet_forward.27} parent=0
    _
  %s16 = ssub.s32 1, %s14
  %s17 = scalar_select 0, %s16, %s14
  // Predicated region
  $region2: #{mobilenet_forward.27} parent=0 // pred_check
    _
  $region3: #{mobilenet_forward.27} parent=0 // pred_check_branch
    %19 = sbr.rel (0) target = $region5
  $region4: #{mobilenet_forward.27} parent=0 // pred_region
    _
  $region5: #{mobilenet_forward.27} parent=0 // pred_fallthru
    _
  // Predicated region
  $region6: #{mobilenet_forward.27} parent=0 // pred_check
    _
  $region7: #{mobilenet_forward.27} parent=0 // pred_check_branch
    %21 = sbr.rel (0) target = $region9
  $region8: #{mobilenet_forward.27} parent=0 // pred_region
    _
  $region9: #{mobilenet_forward.27} parent=0 // pred_fallthru
    _
  // Predicated region
  $region10: #{mobilenet_forward.27} parent=0 // pred_check
    _
  $region11: #{mobilenet_forward.27} parent=0 // pred_check_branch
    %23 = sbr.rel (0) target = $region13
  $region12: #{mobilenet_forward.27} parent=0 // pred_region
    _
  $region13: #{mobilenet_forward.27} parent=0 // pred_fallthru
    _
  // Predicated region
  $region14: #{mobilenet_forward.27} parent=0 // pred_check
    _
  $region15: #{mobilenet_forward.27} parent=0 // pred_check_branch
    %25 = sbr.rel (0) target = $region17
  $region16: #{mobilenet_forward.27} parent=0 // pred_region
    _
  $region17: #{mobilenet_forward.27} parent=0 // pred_fallthru
    _
  // Predicated region
  $region18: #{mobilenet_forward.27} parent=0 // pred_check
    _
  $region19: #{mobilenet_forward.27} parent=0 // pred_check_branch
    %27 = sbr.rel (0) target = $region21
  $region20: #{mobilenet_forward.27} parent=0 // pred_region
    _
  $region21: #{mobilenet_forward.27} parent=0 // pred_fallthru
    _
  // Predicated region
  $region22: #{mobilenet_forward.27} parent=0 // pred_check
    _
  $region23: #{mobilenet_forward.27} parent=0 // pred_check_branch
    %29 = sbr.rel (0) target = $region25
  $region24: #{mobilenet_forward.27} parent=0 // pred_region
    _
  $region25: #{mobilenet_forward.27} parent=0 // pred_fallthru
    _
  // Predicated region
  $region26: #{mobilenet_forward.27} parent=0 // pred_check
    _
  $region27: #{mobilenet_forward.27} parent=0 // pred_check_branch
    %31 = sbr.rel (0) target = $region29
  $region28: #{mobilenet_forward.27} parent=0 // pred_region
    _
  $region29: #{mobilenet_forward.27} parent=0 // pred_fallthru
    _
  // Predicated region
  $region30: #{mobilenet_forward.27} parent=0 // pred_check
    _
  $region31: #{mobilenet_forward.27} parent=0 // pred_check_branch
    %33 = sbr.rel (0) target = $region33
  $region32: #{mobilenet_forward.27} parent=0 // pred_region
    _
  $region33: #{mobilenet_forward.27} parent=0 // pred_fallthru
    _
  // Predicated region
  $region34: #{mobilenet_forward.27} parent=0 // pred_check
    _
  $region35: #{mobilenet_forward.27} parent=0 // pred_check_branch
    %35 = sbr.rel (0) target = $region37
  $region36: #{mobilenet_forward.27} parent=0 // pred_region
    _
  $region37: #{mobilenet_forward.27} parent=0 // pred_fallthru
    _
  // Predicated region
  $region38: #{mobilenet_forward.27} parent=0 // pred_check
    _
  $region39: #{mobilenet_forward.27} parent=0 // pred_check_branch
    %37 = sbr.rel (0) target = $region41
  $region40: #{mobilenet_forward.27} parent=0 // pred_region
    _
  $region41: #{mobilenet_forward.27} parent=0 // pred_fallthru
    _
  // Predicated region
  $region42: #{mobilenet_forward.27} parent=0 // pred_check
    _
  $region43: #{mobilenet_forward.27} parent=0 // pred_check_branch
    %39 = sbr.rel (0) target = $region45
  $region44: #{mobilenet_forward.27} parent=0 // pred_region
    _
  $region45: #{mobilenet_forward.27} parent=0 // pred_fallthru
    _
  // Predicated region
  $region46: #{mobilenet_forward.27} parent=0 // pred_check
    _
  $region47: #{mobilenet_forward.27} parent=0 // pred_check_branch
    %41 = sbr.rel (0) target = $region49
  $region48: #{mobilenet_forward.27} parent=0 // pred_region
    _
  $region49: #{mobilenet_forward.27} parent=0 // pred_fallthru
    _
  // Predicated region
  $region50: #{mobilenet_forward.27} parent=0 // pred_check
    _
  $region51: #{mobilenet_forward.27} parent=0 // pred_check_branch
    %43 = sbr.rel (0) target = $region53
  $region52: #{mobilenet_forward.27} parent=0 // pred_region
    _
  $region53: #{mobilenet_forward.27} parent=0 // pred_fallthru
    _
  %v45 = vld [vmem:[%s10] sm:$0x1]
  %v46 = vld [vmem:[%s0] sm:$0xf]
  %v47 = vld [vmem:[%s0 + $0x4] sm:$0xf]
  %v48 = vunpack.c.l.bf16 %v46
  %v49 = vunpack.c.l.bf16 %v47
  %v50 = vld [vmem:[%s9] sm:$0x1]
  %v52 = vlaneseq
  %v53 = vshrl.u32 %v52, 7
  %v54 = vsub.s32 0, %v53
  %v55 = vrot.slane %v50, %v54
  %v57 = vmul.f32 %v48, %v55
  %v58 = vmul.f32 %v49, %v55
  %v60 = vlaneseq
  %v61 = vshrl.u32 %v60, 7
  %v62 = vsub.s32 0, %v61
  %v63 = vrot.slane %v45, %v62
  %v65 = vadd.f32 %v63, %v57
  %v66 = vadd.f32 %v63, %v58
  %v67 = vld [vmem:[%s1] sm:$0xf]
  %v68 = vld [vmem:[%s1 + $0x4] sm:$0xf]
  %v69 = vunpack.c.l.bf16 %v67
  %v70 = vunpack.c.l.bf16 %v68
  %s71 = scalar_lea.vmem %s9, 1
  %v72 = vld [vmem:[%s71] sm:$0x1]
  %v74 = vlaneseq
  %v75 = vshrl.u32 %v74, 7
  %v76 = vsub.s32 0, %v75
  %v77 = vrot.slane %v72, %v76
  %v79 = vmul.f32 %v69, %v77
  %v80 = vmul.f32 %v70, %v77
  %v81 = vadd.f32 %v65, %v79
  %v82 = vadd.f32 %v66, %v80
  %v83 = vld [vmem:[%s2] sm:$0xf]
  %v84 = vld [vmem:[%s2 + $0x4] sm:$0xf]
  %v85 = vunpack.c.l.bf16 %v83
  %v86 = vunpack.c.l.bf16 %v84
  %s87 = scalar_lea.vmem %s9, 2
  %v88 = vld [vmem:[%s87] sm:$0x1]
  %v90 = vlaneseq
  %v91 = vshrl.u32 %v90, 7
  %v92 = vsub.s32 0, %v91
  %v93 = vrot.slane %v88, %v92
  %v95 = vmul.f32 %v85, %v93
  %v96 = vmul.f32 %v86, %v93
  %v97 = vadd.f32 %v81, %v95
  %v98 = vadd.f32 %v82, %v96
  %v99 = vld [vmem:[%s3] sm:$0xf]
  %v100 = vld [vmem:[%s3 + $0x4] sm:$0xf]
  %v101 = vunpack.c.l.bf16 %v99
  %v102 = vunpack.c.l.bf16 %v100
  %s103 = scalar_lea.vmem %s9, 3
  %v104 = vld [vmem:[%s103] sm:$0x1]
  %v106 = vlaneseq
  %v107 = vshrl.u32 %v106, 7
  %v108 = vsub.s32 0, %v107
  %v109 = vrot.slane %v104, %v108
  %v111 = vmul.f32 %v101, %v109
  %v112 = vmul.f32 %v102, %v109
  %v113 = vadd.f32 %v97, %v111
  %v114 = vadd.f32 %v98, %v112
  %v115 = vld [vmem:[%s4] sm:$0xf]
  %v116 = vld [vmem:[%s4 + $0x4] sm:$0xf]
  %v117 = vunpack.c.l.bf16 %v115
  %v118 = vunpack.c.l.bf16 %v116
  %s119 = scalar_lea.vmem %s9, 4
  %v120 = vld [vmem:[%s119] sm:$0x1]
  %v122 = vlaneseq
  %v123 = vshrl.u32 %v122, 7
  %v124 = vsub.s32 0, %v123
  %v125 = vrot.slane %v120, %v124
  %v127 = vmul.f32 %v117, %v125
  %v128 = vmul.f32 %v118, %v125
  %v129 = vadd.f32 %v113, %v127
  %v130 = vadd.f32 %v114, %v128
  %v131 = vld [vmem:[%s5] sm:$0xf]
  %v132 = vld [vmem:[%s5 + $0x4] sm:$0xf]
  %v133 = vunpack.c.l.bf16 %v131
  %v134 = vunpack.c.l.bf16 %v132
  %s135 = scalar_lea.vmem %s9, 5
  %v136 = vld [vmem:[%s135] sm:$0x1]
  %v138 = vlaneseq
  %v139 = vshrl.u32 %v138, 7
  %v140 = vsub.s32 0, %v139
  %v141 = vrot.slane %v136, %v140
  %v143 = vmul.f32 %v133, %v141
  %v144 = vmul.f32 %v134, %v141
  %v145 = vadd.f32 %v129, %v143
  %v146 = vadd.f32 %v130, %v144
  %v147 = vld [vmem:[%s6] sm:$0xf]
  %v148 = vld [vmem:[%s6 + $0x4] sm:$0xf]
  %v149 = vunpack.c.l.bf16 %v147
  %v150 = vunpack.c.l.bf16 %v148
  %s151 = scalar_lea.vmem %s9, 6
  %v152 = vld [vmem:[%s151] sm:$0x1]
  %v154 = vlaneseq
  %v155 = vshrl.u32 %v154, 7
  %v156 = vsub.s32 0, %v155
  %v157 = vrot.slane %v152, %v156
  %v159 = vmul.f32 %v149, %v157
  %v160 = vmul.f32 %v150, %v157
  %v161 = vadd.f32 %v145, %v159
  %v162 = vadd.f32 %v146, %v160
  %v163 = vld [vmem:[%s7] sm:$0xf]
  %v164 = vld [vmem:[%s7 + $0x4] sm:$0xf]
  %v165 = vunpack.c.l.bf16 %v163
  %v166 = vunpack.c.l.bf16 %v164
  %s167 = scalar_lea.vmem %s9, 7
  %v168 = vld [vmem:[%s167] sm:$0x1]
  %v170 = vlaneseq
  %v171 = vshrl.u32 %v170, 7
  %v172 = vsub.s32 0, %v171
  %v173 = vrot.slane %v168, %v172
  %v175 = vmul.f32 %v165, %v173
  %v176 = vmul.f32 %v166, %v173
  %v177 = vadd.f32 %v161, %v175
  %v178 = vadd.f32 %v162, %v176
  %v179 = vld [vmem:[%s8] sm:$0xf]
  %v180 = vld [vmem:[%s8 + $0x4] sm:$0xf]
  %v181 = vunpack.c.l.bf16 %v179
  %v182 = vunpack.c.l.bf16 %v180
  %s183 = scalar_lea.vmem %s9, 8
  %v184 = vld [vmem:[%s183] sm:$0x1]
  %v186 = vlaneseq
  %v187 = vshrl.u32 %v186, 7
  %v188 = vsub.s32 0, %v187
  %v189 = vrot.slane %v184, %v188
  %v191 = vmul.f32 %v181, %v189
  %v192 = vmul.f32 %v182, %v189
  %v193 = vadd.f32 %v177, %v191
  %v194 = vadd.f32 %v178, %v192
  %v195 = vmax.f32 %v193, 0.0
  %v196 = vmax.f32 %v194, 0.0
  %v197 = vmin.f32 %v195, 6.0
  %v198 = vmin.f32 %v196, 6.0
  %v199 = vpack.c.bf16 %v198, %v197
  %v200 = vld [vmem:[%s11] sm:$0xff]
  %v201 = vld [vmem:[%s11 + $0x8] sm:$0xff]
  %v202 = vld [vmem:[%s11 + $0x10] sm:$0xff]
  %v203 = vld [vmem:[%s11 + $0x18] sm:$0xff]
  %v204 = vld [vmem:[%s11 + $0x20] sm:$0xff]
  %v205 = vld [vmem:[%s11 + $0x28] sm:$0xff]
  %v206 = vld [vmem:[%s11 + $0x30] sm:$0xff]
  %v207 = vld [vmem:[%s11 + $0x38] sm:$0xff]
  %v208 = vld [vmem:[%s11 + $0x40] sm:$0xff]
  %v209 = vld [vmem:[%s11 + $0x48] sm:$0xff]
  %v210 = vld [vmem:[%s11 + $0x50] sm:$0xff]
  %v211 = vld [vmem:[%s11 + $0x58] sm:$0xff]
  %v212 = vld [vmem:[%s11 + $0x60] sm:$0xff]
  %v213 = vld [vmem:[%s11 + $0x68] sm:$0xff]
  %v214 = vld [vmem:[%s11 + $0x70] sm:$0xff]
  %v215 = vld [vmem:[%s11 + $0x78] sm:$0xff]
  %v216 = vld [vmem:[%s12] sm:$0x3]
  %v218 = vlaneseq
  %v219 = vshrl.u32 %v218, 7
  %v220 = vsub.s32 0, %v219
  %v221 = vrot.slane %v216, %v220
  %v222 = vlaneseq
  %v223 = vshrl.u32 %v222, 7
  %v224 = vsub.s32 1, %v223
  %v225 = vrot.slane %v216, %v224
  %v244 = vunpack.c.l.b16 %v200
  %v245 = vunpack.c.h.b16 %v200
  %v246 = vunpack.c.l.b16 %v201
  %v247 = vunpack.c.h.b16 %v201
  %v248 = vunpack.c.l.b16 %v202
  %v249 = vunpack.c.h.b16 %v202
  %v250 = vunpack.c.l.b16 %v203
  %v251 = vunpack.c.h.b16 %v203
  %v252 = vunpack.c.l.b16 %v204
  %v253 = vunpack.c.h.b16 %v204
  %v254 = vunpack.c.l.b16 %v205
  %v255 = vunpack.c.h.b16 %v205
  %v256 = vunpack.c.l.b16 %v206
  %v257 = vunpack.c.h.b16 %v206
  %v258 = vunpack.c.l.b16 %v207
  %v259 = vunpack.c.h.b16 %v207
  %v260 = vunpack.c.l.b16 %v208
  %v261 = vunpack.c.h.b16 %v208
  %v262 = vunpack.c.l.b16 %v209
  %v263 = vunpack.c.h.b16 %v209
  %v264 = vunpack.c.l.b16 %v210
  %v265 = vunpack.c.h.b16 %v210
  %v266 = vunpack.c.l.b16 %v211
  %v267 = vunpack.c.h.b16 %v211
  %v268 = vunpack.c.l.b16 %v212
  %v269 = vunpack.c.h.b16 %v212
  %v270 = vunpack.c.l.b16 %v213
  %v271 = vunpack.c.h.b16 %v213
  %v272 = vunpack.c.l.b16 %v214
  %v273 = vunpack.c.h.b16 %v214
  %v274 = vunpack.c.l.b16 %v215
  %v275 = vunpack.c.h.b16 %v215
  %v276 = vpack.c.b16 %v246, %v244
  %v277 = vpack.c.b16 %v247, %v245
  %v278 = vpack.c.b16 %v250, %v248
  %v279 = vpack.c.b16 %v251, %v249
  %v280 = vpack.c.b16 %v254, %v252
  %v281 = vpack.c.b16 %v255, %v253
  %v282 = vpack.c.b16 %v258, %v256
  %v283 = vpack.c.b16 %v259, %v257
  %v284 = vpack.c.b16 %v262, %v260
  %v285 = vpack.c.b16 %v263, %v261
  %v286 = vpack.c.b16 %v266, %v264
  %v287 = vpack.c.b16 %v267, %v265
  %v288 = vpack.c.b16 %v270, %v268
  %v289 = vpack.c.b16 %v271, %v269
  %v290 = vpack.c.b16 %v274, %v272
  %v291 = vpack.c.b16 %v275, %v273
  %308 = vmatprep.subr.bf16.mxu0 %v277
  %309 = vmatpush1.bf16.msra.mxu0 %v276
  %310 = vmatprep.subr.bf16.mxu0 %v279
  %311 = vmatpush1.bf16.msra.mxu0 %v278
  %312 = vmatprep.subr.bf16.mxu0 %v281
  %313 = vmatpush1.bf16.msra.mxu0 %v280
  %314 = vmatprep.subr.bf16.mxu0 %v283
  %315 = vmatpush1.bf16.msra.mxu0 %v282
  %316 = vmatprep.subr.bf16.mxu0 %v285
  %317 = vmatpush1.bf16.msra.mxu0 %v284
  %318 = vmatprep.subr.bf16.mxu0 %v287
  %319 = vmatpush1.bf16.msra.mxu0 %v286
  %320 = vmatprep.subr.bf16.mxu0 %v289
  %321 = vmatpush1.bf16.msra.mxu0 %v288
  %322 = vmatprep.subr.bf16.mxu0 %v291
  %323 = vmatpush1.bf16.msra.mxu0 %v290
  %324 = vmatprep.subr.bf16.mxu0 0
  %325 = vmatpush1.bf16.msra.mxu0 0
  %326 = vmatprep.subr.bf16.mxu0 0
  %327 = vmatpush1.bf16.msra.mxu0 0
  %328 = vmatprep.subr.bf16.mxu0 0
  %329 = vmatpush1.bf16.msra.mxu0 0
  %330 = vmatprep.subr.bf16.mxu0 0
  %331 = vmatpush1.bf16.msra.mxu0 0
  %332 = vmatprep.subr.bf16.mxu0 0
  %333 = vmatpush1.bf16.msra.mxu0 0
  %334 = vmatprep.subr.bf16.mxu0 0
  %335 = vmatpush1.bf16.msra.mxu0 0
  %336 = vmatprep.subr.bf16.mxu0 0
  %337 = vmatpush1.bf16.msra.mxu0 0
  %338 = vmatprep.subr.bf16.mxu0 0
  %339 = vmatpush1.bf16.msra.mxu0 0
  %340 = vmatprep.mubr.bf16.mxu0 0
  %341 = vmatmul.mubr.bf16.gmra.mrb[0].mxu0 %v199
  %v342 = vpop.f32.mrb[0].mxu0
  %v343 = vadd.f32 %v221, %v342
  %v344 = vpop.f32.mrb[0].mxu0
  %v345 = vadd.f32 %v225, %v344
  %v346 = vpop.f32.mrb[0].mxu0
  %v347 = vadd.f32 %v221, %v346
  %v348 = vpop.f32.mrb[0].mxu0
  %v349 = vadd.f32 %v225, %v348
  %350 = vdwg.mxu0
  %v351 = vmax.f32 %v343, 0.0
  %v352 = vmax.f32 %v345, 0.0
  %v353 = vmax.f32 %v347, 0.0
  %v354 = vmax.f32 %v349, 0.0
  %v355 = vmin.f32 %v351, 6.0
  %v356 = vmin.f32 %v352, 6.0
  %v357 = vmin.f32 %v353, 6.0
  %v358 = vmin.f32 %v354, 6.0
  %v359 = vpack.c.bf16 %v357, %v355
  %v360 = vpack.c.bf16 %v358, %v356
  %v363 = vunpack.c.l.b16 %v359
  %v364 = vunpack.c.l.b16 %v360
  %v365 = vunpack.c.h.b16 %v359
  %v366 = vunpack.c.h.b16 %v360
  %v367 = vpack.c.b16 %v364, %v363
  %v368 = vpack.c.b16 %v366, %v365
  %371 = vst [vmem:[%s13] sm:$0xff] %v367
  %372 = vst [vmem:[%s13 + $0x8] sm:$0xff] %v368
  // Predicated region
  $region54: #{mobilenet_forward.27} parent=0 // pred_check
    _
  $region55: #{mobilenet_forward.27} parent=0 // pred_check_branch
    %374 = sbr.rel (0) target = $region57
  $region56: #{mobilenet_forward.27} parent=0 // pred_region
    _
  $region57: #{mobilenet_forward.27} parent=0 // pred_fallthru
    _
  // Predicated region
  $region58: #{mobilenet_forward.27} parent=0 // pred_check
    _
  $region59: #{mobilenet_forward.27} parent=0 // pred_check_branch
    %376 = sbr.rel (0) target = $region61
  $region60: #{mobilenet_forward.27} parent=0 // pred_region
    _
  $region61: #{mobilenet_forward.27} parent=0 // pred_fallthru
    _

// kernel: mobilenet_forward.28
$region0: #{mobilenet_forward.28}
  #allocation0 [shape = 'u32[]', space=smem, size = 0x4, offset = 0x4, fixed_abs, tag = 'smem constant byte address 0x4 - core index']
  #allocation1 [shape = 'u32[144,128]{1,0:T(1,128)}', space=vmem, size = 0x12000, scoped, tag = 'internal scratch']
  %s0 = inlined_call_operand.vmem [shape: bf16[16,256], index: 0, kind: input, shape index: {}, may-alias: {0,1,2,3,5,6,7,8}]
  %s1 = inlined_call_operand.vmem [shape: bf16[16,256], index: 1, kind: input, shape index: {}, may-alias: {0,1,2,3,5,6,7,8}]
  %s2 = inlined_call_operand.vmem [shape: bf16[16,256], index: 2, kind: input, shape index: {}, may-alias: {0,1,2,3,5,6,7,8}]
  %s3 = inlined_call_operand.vmem [shape: bf16[16,256], index: 3, kind: input, shape index: {}, may-alias: {0,1,2,3,5,6,7,8}]
  %s4 = inlined_call_operand.vmem [shape: bf16[16,256], index: 4, kind: input, shape index: {}]
  %s5 = inlined_call_operand.vmem [shape: bf16[16,256], index: 5, kind: input, shape index: {}, may-alias: {0,1,2,3,5,6,7,8}]
  %s6 = inlined_call_operand.vmem [shape: bf16[16,256], index: 6, kind: input, shape index: {}, may-alias: {0,1,2,3,5,6,7,8}]
  %s7 = inlined_call_operand.vmem [shape: bf16[16,256], index: 7, kind: input, shape index: {}, may-alias: {0,1,2,3,5,6,7,8}]
  %s8 = inlined_call_operand.vmem [shape: bf16[16,256], index: 8, kind: input, shape index: {}, may-alias: {0,1,2,3,5,6,7,8}]
  %s9 = inlined_call_operand.vmem [shape: f32[9,1,256], index: 9, kind: input, shape index: {}]
  %s10 = inlined_call_operand.vmem [shape: f32[1,256], index: 10, kind: input, shape index: {}]
  %s11 = inlined_call_operand.vmem [shape: bf16[256,256], index: 11, kind: input, shape index: {}]
  %s12 = inlined_call_operand.vmem [shape: f32[1,256], index: 12, kind: input, shape index: {}]
  %s13 = inlined_call_operand.vmem [shape: bf16[16,256], index: 13, kind: output, shape index: {}]
  %s14 = sld [smem:[#allocation0]]
  $region62: #{mobilenet_forward.28} parent=0
    _
  %s16 = ssub.s32 1, %s14
  %s17 = scalar_select 0, %s16, %s14
  // Predicated region
  $region2: #{mobilenet_forward.28} parent=0 // pred_check
    _
  $region3: #{mobilenet_forward.28} parent=0 // pred_check_branch
    %19 = sbr.rel (0) target = $region5
  $region4: #{mobilenet_forward.28} parent=0 // pred_region
    _
  $region5: #{mobilenet_forward.28} parent=0 // pred_fallthru
    _
  // Predicated region
  $region6: #{mobilenet_forward.28} parent=0 // pred_check
    _
  $region7: #{mobilenet_forward.28} parent=0 // pred_check_branch
    %21 = sbr.rel (0) target = $region9
  $region8: #{mobilenet_forward.28} parent=0 // pred_region
    _
  $region9: #{mobilenet_forward.28} parent=0 // pred_fallthru
    _
  // Predicated region
  $region10: #{mobilenet_forward.28} parent=0 // pred_check
    _
  $region11: #{mobilenet_forward.28} parent=0 // pred_check_branch
    %23 = sbr.rel (0) target = $region13
  $region12: #{mobilenet_forward.28} parent=0 // pred_region
    _
  $region13: #{mobilenet_forward.28} parent=0 // pred_fallthru
    _
  // Predicated region
  $region14: #{mobilenet_forward.28} parent=0 // pred_check
    _
  $region15: #{mobilenet_forward.28} parent=0 // pred_check_branch
    %25 = sbr.rel (0) target = $region17
  $region16: #{mobilenet_forward.28} parent=0 // pred_region
    _
  $region17: #{mobilenet_forward.28} parent=0 // pred_fallthru
    _
  // Predicated region
  $region18: #{mobilenet_forward.28} parent=0 // pred_check
    _
  $region19: #{mobilenet_forward.28} parent=0 // pred_check_branch
    %27 = sbr.rel (0) target = $region21
  $region20: #{mobilenet_forward.28} parent=0 // pred_region
    _
  $region21: #{mobilenet_forward.28} parent=0 // pred_fallthru
    _
  // Predicated region
  $region22: #{mobilenet_forward.28} parent=0 // pred_check
    _
  $region23: #{mobilenet_forward.28} parent=0 // pred_check_branch
    %29 = sbr.rel (0) target = $region25
  $region24: #{mobilenet_forward.28} parent=0 // pred_region
    _
  $region25: #{mobilenet_forward.28} parent=0 // pred_fallthru
    _
  // Predicated region
  $region26: #{mobilenet_forward.28} parent=0 // pred_check
    _
  $region27: #{mobilenet_forward.28} parent=0 // pred_check_branch
    %31 = sbr.rel (0) target = $region29
  $region28: #{mobilenet_forward.28} parent=0 // pred_region
    _
  $region29: #{mobilenet_forward.28} parent=0 // pred_fallthru
    _
  // Predicated region
  $region30: #{mobilenet_forward.28} parent=0 // pred_check
    _
  $region31: #{mobilenet_forward.28} parent=0 // pred_check_branch
    %33 = sbr.rel (0) target = $region33
  $region32: #{mobilenet_forward.28} parent=0 // pred_region
    _
  $region33: #{mobilenet_forward.28} parent=0 // pred_fallthru
    _
  // Predicated region
  $region34: #{mobilenet_forward.28} parent=0 // pred_check
    _
  $region35: #{mobilenet_forward.28} parent=0 // pred_check_branch
    %35 = sbr.rel (0) target = $region37
  $region36: #{mobilenet_forward.28} parent=0 // pred_region
    _
  $region37: #{mobilenet_forward.28} parent=0 // pred_fallthru
    _
  // Predicated region
  $region38: #{mobilenet_forward.28} parent=0 // pred_check
    _
  $region39: #{mobilenet_forward.28} parent=0 // pred_check_branch
    %37 = sbr.rel (0) target = $region41
  $region40: #{mobilenet_forward.28} parent=0 // pred_region
    _
  $region41: #{mobilenet_forward.28} parent=0 // pred_fallthru
    _
  // Predicated region
  $region42: #{mobilenet_forward.28} parent=0 // pred_check
    _
  $region43: #{mobilenet_forward.28} parent=0 // pred_check_branch
    %39 = sbr.rel (0) target = $region45
  $region44: #{mobilenet_forward.28} parent=0 // pred_region
    _
  $region45: #{mobilenet_forward.28} parent=0 // pred_fallthru
    _
  // Predicated region
  $region46: #{mobilenet_forward.28} parent=0 // pred_check
    _
  $region47: #{mobilenet_forward.28} parent=0 // pred_check_branch
    %41 = sbr.rel (0) target = $region49
  $region48: #{mobilenet_forward.28} parent=0 // pred_region
    _
  $region49: #{mobilenet_forward.28} parent=0 // pred_fallthru
    _
  // Predicated region
  $region50: #{mobilenet_forward.28} parent=0 // pred_check
    _
  $region51: #{mobilenet_forward.28} parent=0 // pred_check_branch
    %43 = sbr.rel (0) target = $region53
  $region52: #{mobilenet_forward.28} parent=0 // pred_region
    _
  $region53: #{mobilenet_forward.28} parent=0 // pred_fallthru
    _
  %v44 = vld [vmem:[%s10] sm:$0x3]
  %v45 = vld [vmem:[%s0] sm:$0xff]
  %v46 = vld [vmem:[%s0 + $0x8] sm:$0xff]
  %v47 = vunpack.c.l.bf16 %v45
  %v48 = vunpack.c.h.bf16 %v45
  %v49 = vunpack.c.l.bf16 %v46
  %v50 = vunpack.c.h.bf16 %v46
  %v51 = vld [vmem:[%s9] sm:$0x3]
  %v53 = vlaneseq
  %v54 = vshrl.u32 %v53, 7
  %v55 = vsub.s32 0, %v54
  %v56 = vrot.slane %v51, %v55
  %v57 = vlaneseq
  %v58 = vshrl.u32 %v57, 7
  %v59 = vsub.s32 1, %v58
  %v60 = vrot.slane %v51, %v59
  %v63 = vmul.f32 %v47, %v56
  %v64 = vmul.f32 %v48, %v60
  %v65 = vmul.f32 %v49, %v56
  %v66 = vmul.f32 %v50, %v60
  %v68 = vlaneseq
  %v69 = vshrl.u32 %v68, 7
  %v70 = vsub.s32 0, %v69
  %v71 = vrot.slane %v44, %v70
  %v72 = vlaneseq
  %v73 = vshrl.u32 %v72, 7
  %v74 = vsub.s32 1, %v73
  %v75 = vrot.slane %v44, %v74
  %v78 = vadd.f32 %v71, %v63
  %v79 = vadd.f32 %v75, %v64
  %v80 = vadd.f32 %v71, %v65
  %v81 = vadd.f32 %v75, %v66
  %v82 = vld [vmem:[%s1] sm:$0xff]
  %v83 = vld [vmem:[%s1 + $0x8] sm:$0xff]
  %v84 = vunpack.c.l.bf16 %v82
  %v85 = vunpack.c.h.bf16 %v82
  %v86 = vunpack.c.l.bf16 %v83
  %v87 = vunpack.c.h.bf16 %v83
  %s88 = scalar_lea.vmem %s9, 2
  %v89 = vld [vmem:[%s88] sm:$0x3]
  %v91 = vlaneseq
  %v92 = vshrl.u32 %v91, 7
  %v93 = vsub.s32 0, %v92
  %v94 = vrot.slane %v89, %v93
  %v95 = vlaneseq
  %v96 = vshrl.u32 %v95, 7
  %v97 = vsub.s32 1, %v96
  %v98 = vrot.slane %v89, %v97
  %v101 = vmul.f32 %v84, %v94
  %v102 = vmul.f32 %v85, %v98
  %v103 = vmul.f32 %v86, %v94
  %v104 = vmul.f32 %v87, %v98
  %v105 = vadd.f32 %v78, %v101
  %v106 = vadd.f32 %v79, %v102
  %v107 = vadd.f32 %v80, %v103
  %v108 = vadd.f32 %v81, %v104
  %v109 = vld [vmem:[%s2] sm:$0xff]
  %v110 = vld [vmem:[%s2 + $0x8] sm:$0xff]
  %v111 = vunpack.c.l.bf16 %v109
  %v112 = vunpack.c.h.bf16 %v109
  %v113 = vunpack.c.l.bf16 %v110
  %v114 = vunpack.c.h.bf16 %v110
  %s115 = scalar_lea.vmem %s9, 4
  %v116 = vld [vmem:[%s115] sm:$0x3]
  %v118 = vlaneseq
  %v119 = vshrl.u32 %v118, 7
  %v120 = vsub.s32 0, %v119
  %v121 = vrot.slane %v116, %v120
  %v122 = vlaneseq
  %v123 = vshrl.u32 %v122, 7
  %v124 = vsub.s32 1, %v123
  %v125 = vrot.slane %v116, %v124
  %v128 = vmul.f32 %v111, %v121
  %v129 = vmul.f32 %v112, %v125
  %v130 = vmul.f32 %v113, %v121
  %v131 = vmul.f32 %v114, %v125
  %v132 = vadd.f32 %v105, %v128
  %v133 = vadd.f32 %v106, %v129
  %v134 = vadd.f32 %v107, %v130
  %v135 = vadd.f32 %v108, %v131
  %v136 = vld [vmem:[%s3] sm:$0xff]
  %v137 = vld [vmem:[%s3 + $0x8] sm:$0xff]
  %v138 = vunpack.c.l.bf16 %v136
  %v139 = vunpack.c.h.bf16 %v136
  %v140 = vunpack.c.l.bf16 %v137
  %v141 = vunpack.c.h.bf16 %v137
  %s142 = scalar_lea.vmem %s9, 6
  %v143 = vld [vmem:[%s142] sm:$0x3]
  %v145 = vlaneseq
  %v146 = vshrl.u32 %v145, 7
  %v147 = vsub.s32 0, %v146
  %v148 = vrot.slane %v143, %v147
  %v149 = vlaneseq
  %v150 = vshrl.u32 %v149, 7
  %v151 = vsub.s32 1, %v150
  %v152 = vrot.slane %v143, %v151
  %v155 = vmul.f32 %v138, %v148
  %v156 = vmul.f32 %v139, %v152
  %v157 = vmul.f32 %v140, %v148
  %v158 = vmul.f32 %v141, %v152
  %v159 = vadd.f32 %v132, %v155
  %v160 = vadd.f32 %v133, %v156
  %v161 = vadd.f32 %v134, %v157
  %v162 = vadd.f32 %v135, %v158
  %v163 = vld [vmem:[%s4] sm:$0xff]
  %v164 = vld [vmem:[%s4 + $0x8] sm:$0xff]
  %v165 = vunpack.c.l.bf16 %v163
  %v166 = vunpack.c.h.bf16 %v163
  %v167 = vunpack.c.l.bf16 %v164
  %v168 = vunpack.c.h.bf16 %v164
  %s169 = scalar_lea.vmem %s9, 8
  %v170 = vld [vmem:[%s169] sm:$0x3]
  %v172 = vlaneseq
  %v173 = vshrl.u32 %v172, 7
  %v174 = vsub.s32 0, %v173
  %v175 = vrot.slane %v170, %v174
  %v176 = vlaneseq
  %v177 = vshrl.u32 %v176, 7
  %v178 = vsub.s32 1, %v177
  %v179 = vrot.slane %v170, %v178
  %v182 = vmul.f32 %v165, %v175
  %v183 = vmul.f32 %v166, %v179
  %v184 = vmul.f32 %v167, %v175
  %v185 = vmul.f32 %v168, %v179
  %v186 = vadd.f32 %v159, %v182
  %v187 = vadd.f32 %v160, %v183
  %v188 = vadd.f32 %v161, %v184
  %v189 = vadd.f32 %v162, %v185
  %v190 = vld [vmem:[%s5] sm:$0xff]
  %v191 = vld [vmem:[%s5 + $0x8] sm:$0xff]
  %v192 = vunpack.c.l.bf16 %v190
  %v193 = vunpack.c.h.bf16 %v190
  %v194 = vunpack.c.l.bf16 %v191
  %v195 = vunpack.c.h.bf16 %v191
  %s196 = scalar_lea.vmem %s9, 10
  %v197 = vld [vmem:[%s196] sm:$0x3]
  %v199 = vlaneseq
  %v200 = vshrl.u32 %v199, 7
  %v201 = vsub.s32 0, %v200
  %v202 = vrot.slane %v197, %v201
  %v203 = vlaneseq
  %v204 = vshrl.u32 %v203, 7
  %v205 = vsub.s32 1, %v204
  %v206 = vrot.slane %v197, %v205
  %v209 = vmul.f32 %v192, %v202
  %v210 = vmul.f32 %v193, %v206
  %v211 = vmul.f32 %v194, %v202
  %v212 = vmul.f32 %v195, %v206
  %v213 = vadd.f32 %v186, %v209
  %v214 = vadd.f32 %v187, %v210
  %v215 = vadd.f32 %v188, %v211
  %v216 = vadd.f32 %v189, %v212
  %v217 = vld [vmem:[%s6] sm:$0xff]
  %v218 = vld [vmem:[%s6 + $0x8] sm:$0xff]
  %v219 = vunpack.c.l.bf16 %v217
  %v220 = vunpack.c.h.bf16 %v217
  %v221 = vunpack.c.l.bf16 %v218
  %v222 = vunpack.c.h.bf16 %v218
  %s223 = scalar_lea.vmem %s9, 12
  %v224 = vld [vmem:[%s223] sm:$0x3]
  %v226 = vlaneseq
  %v227 = vshrl.u32 %v226, 7
  %v228 = vsub.s32 0, %v227
  %v229 = vrot.slane %v224, %v228
  %v230 = vlaneseq
  %v231 = vshrl.u32 %v230, 7
  %v232 = vsub.s32 1, %v231
  %v233 = vrot.slane %v224, %v232
  %v236 = vmul.f32 %v219, %v229
  %v237 = vmul.f32 %v220, %v233
  %v238 = vmul.f32 %v221, %v229
  %v239 = vmul.f32 %v222, %v233
  %v240 = vadd.f32 %v213, %v236
  %v241 = vadd.f32 %v214, %v237
  %v242 = vadd.f32 %v215, %v238
  %v243 = vadd.f32 %v216, %v239
  %v244 = vld [vmem:[%s7] sm:$0xff]
  %v245 = vld [vmem:[%s7 + $0x8] sm:$0xff]
  %v246 = vunpack.c.l.bf16 %v244
  %v247 = vunpack.c.h.bf16 %v244
  %v248 = vunpack.c.l.bf16 %v245
  %v249 = vunpack.c.h.bf16 %v245
  %s250 = scalar_lea.vmem %s9, 14
  %v251 = vld [vmem:[%s250] sm:$0x3]
  %v253 = vlaneseq
  %v254 = vshrl.u32 %v253, 7
  %v255 = vsub.s32 0, %v254
  %v256 = vrot.slane %v251, %v255
  %v257 = vlaneseq
  %v258 = vshrl.u32 %v257, 7
  %v259 = vsub.s32 1, %v258
  %v260 = vrot.slane %v251, %v259
  %v263 = vmul.f32 %v246, %v256
  %v264 = vmul.f32 %v247, %v260
  %v265 = vmul.f32 %v248, %v256
  %v266 = vmul.f32 %v249, %v260
  %v267 = vadd.f32 %v240, %v263
  %v268 = vadd.f32 %v241, %v264
  %v269 = vadd.f32 %v242, %v265
  %v270 = vadd.f32 %v243, %v266
  %v271 = vld [vmem:[%s8] sm:$0xff]
  %v272 = vld [vmem:[%s8 + $0x8] sm:$0xff]
  %v273 = vunpack.c.l.bf16 %v271
  %v274 = vunpack.c.h.bf16 %v271
  %v275 = vunpack.c.l.bf16 %v272
  %v276 = vunpack.c.h.bf16 %v272
  %s277 = scalar_lea.vmem %s9, 16
  %v278 = vld [vmem:[%s277] sm:$0x3]
  %v280 = vlaneseq
  %v281 = vshrl.u32 %v280, 7
  %v282 = vsub.s32 0, %v281
  %v283 = vrot.slane %v278, %v282
  %v284 = vlaneseq
  %v285 = vshrl.u32 %v284, 7
  %v286 = vsub.s32 1, %v285
  %v287 = vrot.slane %v278, %v286
  %v290 = vmul.f32 %v273, %v283
  %v291 = vmul.f32 %v274, %v287
  %v292 = vmul.f32 %v275, %v283
  %v293 = vmul.f32 %v276, %v287
  %v294 = vadd.f32 %v267, %v290
  %v295 = vadd.f32 %v268, %v291
  %v296 = vadd.f32 %v269, %v292
  %v297 = vadd.f32 %v270, %v293
  %v298 = vmax.f32 %v294, 0.0
  %v299 = vmax.f32 %v295, 0.0
  %v300 = vmax.f32 %v296, 0.0
  %v301 = vmax.f32 %v297, 0.0
  %v302 = vmin.f32 %v298, 6.0
  %v303 = vmin.f32 %v299, 6.0
  %v304 = vmin.f32 %v300, 6.0
  %v305 = vmin.f32 %v301, 6.0
  %v306 = vpack.c.bf16 %v304, %v302
  %v307 = vpack.c.bf16 %v305, %v303
  %v308 = vld [vmem:[%s11] sm:$0xff]
  %v309 = vld [vmem:[%s11 + $0x8] sm:$0xff]
  %v310 = vld [vmem:[%s11 + $0x10] sm:$0xff]
  %v311 = vld [vmem:[%s11 + $0x18] sm:$0xff]
  %v312 = vld [vmem:[%s11 + $0x20] sm:$0xff]
  %v313 = vld [vmem:[%s11 + $0x28] sm:$0xff]
  %v314 = vld [vmem:[%s11 + $0x30] sm:$0xff]
  %v315 = vld [vmem:[%s11 + $0x38] sm:$0xff]
  %v316 = vld [vmem:[%s11 + $0x40] sm:$0xff]
  %v317 = vld [vmem:[%s11 + $0x48] sm:$0xff]
  %v318 = vld [vmem:[%s11 + $0x50] sm:$0xff]
  %v319 = vld [vmem:[%s11 + $0x58] sm:$0xff]
  %v320 = vld [vmem:[%s11 + $0x60] sm:$0xff]
  %v321 = vld [vmem:[%s11 + $0x68] sm:$0xff]
  %v322 = vld [vmem:[%s11 + $0x70] sm:$0xff]
  %v323 = vld [vmem:[%s11 + $0x78] sm:$0xff]
  %v324 = vld [vmem:[%s11 + $0x80] sm:$0xff]
  %v325 = vld [vmem:[%s11 + $0x88] sm:$0xff]
  %v326 = vld [vmem:[%s11 + $0x90] sm:$0xff]
  %v327 = vld [vmem:[%s11 + $0x98] sm:$0xff]
  %v328 = vld [vmem:[%s11 + $0xa0] sm:$0xff]
  %v329 = vld [vmem:[%s11 + $0xa8] sm:$0xff]
  %v330 = vld [vmem:[%s11 + $0xb0] sm:$0xff]
  %v331 = vld [vmem:[%s11 + $0xb8] sm:$0xff]
  %v332 = vld [vmem:[%s11 + $0xc0] sm:$0xff]
  %v333 = vld [vmem:[%s11 + $0xc8] sm:$0xff]
  %v334 = vld [vmem:[%s11 + $0xd0] sm:$0xff]
  %v335 = vld [vmem:[%s11 + $0xd8] sm:$0xff]
  %v336 = vld [vmem:[%s11 + $0xe0] sm:$0xff]
  %v337 = vld [vmem:[%s11 + $0xe8] sm:$0xff]
  %v338 = vld [vmem:[%s11 + $0xf0] sm:$0xff]
  %v339 = vld [vmem:[%s11 + $0xf8] sm:$0xff]
  %v340 = vld [vmem:[%s12] sm:$0x3]
  %v342 = vlaneseq
  %v343 = vshrl.u32 %v342, 7
  %v344 = vsub.s32 0, %v343
  %v345 = vrot.slane %v340, %v344
  %v346 = vlaneseq
  %v347 = vshrl.u32 %v346, 7
  %v348 = vsub.s32 1, %v347
  %v349 = vrot.slane %v340, %v348
  %v384 = vunpack.c.l.b16 %v308
  %v385 = vunpack.c.h.b16 %v308
  %v386 = vunpack.c.l.b16 %v309
  %v387 = vunpack.c.h.b16 %v309
  %v388 = vunpack.c.l.b16 %v310
  %v389 = vunpack.c.h.b16 %v310
  %v390 = vunpack.c.l.b16 %v311
  %v391 = vunpack.c.h.b16 %v311
  %v392 = vunpack.c.l.b16 %v312
  %v393 = vunpack.c.h.b16 %v312
  %v394 = vunpack.c.l.b16 %v313
  %v395 = vunpack.c.h.b16 %v313
  %v396 = vunpack.c.l.b16 %v314
  %v397 = vunpack.c.h.b16 %v314
  %v398 = vunpack.c.l.b16 %v315
  %v399 = vunpack.c.h.b16 %v315
  %v400 = vunpack.c.l.b16 %v316
  %v401 = vunpack.c.h.b16 %v316
  %v402 = vunpack.c.l.b16 %v317
  %v403 = vunpack.c.h.b16 %v317
  %v404 = vunpack.c.l.b16 %v318
  %v405 = vunpack.c.h.b16 %v318
  %v406 = vunpack.c.l.b16 %v319
  %v407 = vunpack.c.h.b16 %v319
  %v408 = vunpack.c.l.b16 %v320
  %v409 = vunpack.c.h.b16 %v320
  %v410 = vunpack.c.l.b16 %v321
  %v411 = vunpack.c.h.b16 %v321
  %v412 = vunpack.c.l.b16 %v322
  %v413 = vunpack.c.h.b16 %v322
  %v414 = vunpack.c.l.b16 %v323
  %v415 = vunpack.c.h.b16 %v323
  %v416 = vunpack.c.l.b16 %v324
  %v417 = vunpack.c.h.b16 %v324
  %v418 = vunpack.c.l.b16 %v325
  %v419 = vunpack.c.h.b16 %v325
  %v420 = vunpack.c.l.b16 %v326
  %v421 = vunpack.c.h.b16 %v326
  %v422 = vunpack.c.l.b16 %v327
  %v423 = vunpack.c.h.b16 %v327
  %v424 = vunpack.c.l.b16 %v328
  %v425 = vunpack.c.h.b16 %v328
  %v426 = vunpack.c.l.b16 %v329
  %v427 = vunpack.c.h.b16 %v329
  %v428 = vunpack.c.l.b16 %v330
  %v429 = vunpack.c.h.b16 %v330
  %v430 = vunpack.c.l.b16 %v331
  %v431 = vunpack.c.h.b16 %v331
  %v432 = vunpack.c.l.b16 %v332
  %v433 = vunpack.c.h.b16 %v332
  %v434 = vunpack.c.l.b16 %v333
  %v435 = vunpack.c.h.b16 %v333
  %v436 = vunpack.c.l.b16 %v334
  %v437 = vunpack.c.h.b16 %v334
  %v438 = vunpack.c.l.b16 %v335
  %v439 = vunpack.c.h.b16 %v335
  %v440 = vunpack.c.l.b16 %v336
  %v441 = vunpack.c.h.b16 %v336
  %v442 = vunpack.c.l.b16 %v337
  %v443 = vunpack.c.h.b16 %v337
  %v444 = vunpack.c.l.b16 %v338
  %v445 = vunpack.c.h.b16 %v338
  %v446 = vunpack.c.l.b16 %v339
  %v447 = vunpack.c.h.b16 %v339
  %v448 = vpack.c.b16 %v386, %v384
  %v449 = vpack.c.b16 %v387, %v385
  %v450 = vpack.c.b16 %v390, %v388
  %v451 = vpack.c.b16 %v391, %v389
  %v452 = vpack.c.b16 %v394, %v392
  %v453 = vpack.c.b16 %v395, %v393
  %v454 = vpack.c.b16 %v398, %v396
  %v455 = vpack.c.b16 %v399, %v397
  %v456 = vpack.c.b16 %v402, %v400
  %v457 = vpack.c.b16 %v403, %v401
  %v458 = vpack.c.b16 %v406, %v404
  %v459 = vpack.c.b16 %v407, %v405
  %v460 = vpack.c.b16 %v410, %v408
  %v461 = vpack.c.b16 %v411, %v409
  %v462 = vpack.c.b16 %v414, %v412
  %v463 = vpack.c.b16 %v415, %v413
  %v464 = vpack.c.b16 %v418, %v416
  %v465 = vpack.c.b16 %v419, %v417
  %v466 = vpack.c.b16 %v422, %v420
  %v467 = vpack.c.b16 %v423, %v421
  %v468 = vpack.c.b16 %v426, %v424
  %v469 = vpack.c.b16 %v427, %v425
  %v470 = vpack.c.b16 %v430, %v428
  %v471 = vpack.c.b16 %v431, %v429
  %v472 = vpack.c.b16 %v434, %v432
  %v473 = vpack.c.b16 %v435, %v433
  %v474 = vpack.c.b16 %v438, %v436
  %v475 = vpack.c.b16 %v439, %v437
  %v476 = vpack.c.b16 %v442, %v440
  %v477 = vpack.c.b16 %v443, %v441
  %v478 = vpack.c.b16 %v446, %v444
  %v479 = vpack.c.b16 %v447, %v445
  %512 = vmatprep.subr.bf16.mxu0 %v449
  %513 = vmatpush1.bf16.msra.mxu0 %v448
  %514 = vmatprep.subr.bf16.mxu0 %v451
  %515 = vmatpush1.bf16.msra.mxu0 %v450
  %516 = vmatprep.subr.bf16.mxu0 %v453
  %517 = vmatpush1.bf16.msra.mxu0 %v452
  %518 = vmatprep.subr.bf16.mxu0 %v455
  %519 = vmatpush1.bf16.msra.mxu0 %v454
  %520 = vmatprep.subr.bf16.mxu0 %v457
  %521 = vmatpush1.bf16.msra.mxu0 %v456
  %522 = vmatprep.subr.bf16.mxu0 %v459
  %523 = vmatpush1.bf16.msra.mxu0 %v458
  %524 = vmatprep.subr.bf16.mxu0 %v461
  %525 = vmatpush1.bf16.msra.mxu0 %v460
  %526 = vmatprep.subr.bf16.mxu0 %v463
  %527 = vmatpush1.bf16.msra.mxu0 %v462
  %528 = vmatprep.subr.bf16.mxu0 %v465
  %529 = vmatpush1.bf16.msra.mxu0 %v464
  %530 = vmatprep.subr.bf16.mxu0 %v467
  %531 = vmatpush1.bf16.msra.mxu0 %v466
  %532 = vmatprep.subr.bf16.mxu0 %v469
  %533 = vmatpush1.bf16.msra.mxu0 %v468
  %534 = vmatprep.subr.bf16.mxu0 %v471
  %535 = vmatpush1.bf16.msra.mxu0 %v470
  %536 = vmatprep.subr.bf16.mxu0 %v473
  %537 = vmatpush1.bf16.msra.mxu0 %v472
  %538 = vmatprep.subr.bf16.mxu0 %v475
  %539 = vmatpush1.bf16.msra.mxu0 %v474
  %540 = vmatprep.subr.bf16.mxu0 %v477
  %541 = vmatpush1.bf16.msra.mxu0 %v476
  %542 = vmatprep.subr.bf16.mxu0 %v479
  %543 = vmatpush1.bf16.msra.mxu0 %v478
  %544 = vmatprep.mubr.bf16.mxu0 %v307
  %545 = vmatmul.mubr.bf16.gmra.mrb[0].mxu0 %v306
  %v546 = vpop.f32.mrb[0].mxu0
  %v547 = vadd.f32 %v345, %v546
  %v548 = vpop.f32.mrb[0].mxu0
  %v549 = vadd.f32 %v349, %v548
  %v550 = vpop.f32.mrb[0].mxu0
  %v551 = vadd.f32 %v345, %v550
  %v552 = vpop.f32.mrb[0].mxu0
  %v553 = vadd.f32 %v349, %v552
  %554 = vdwg.mxu0
  %v555 = vmax.f32 %v547, 0.0
  %v556 = vmax.f32 %v549, 0.0
  %v557 = vmax.f32 %v551, 0.0
  %v558 = vmax.f32 %v553, 0.0
  %v559 = vmin.f32 %v555, 6.0
  %v560 = vmin.f32 %v556, 6.0
  %v561 = vmin.f32 %v557, 6.0
  %v562 = vmin.f32 %v558, 6.0
  %v563 = vpack.c.bf16 %v561, %v559
  %v564 = vpack.c.bf16 %v562, %v560
  %v567 = vunpack.c.l.b16 %v563
  %v568 = vunpack.c.l.b16 %v564
  %v569 = vunpack.c.h.b16 %v563
  %v570 = vunpack.c.h.b16 %v564
  %v571 = vpack.c.b16 %v568, %v567
  %v572 = vpack.c.b16 %v570, %v569
  %575 = vst [vmem:[%s13] sm:$0xff] %v571
  %576 = vst [vmem:[%s13 + $0x8] sm:$0xff] %v572
  // Predicated region
  $region54: #{mobilenet_forward.28} parent=0 // pred_check
    _
  $region55: #{mobilenet_forward.28} parent=0 // pred_check_branch
    %578 = sbr.rel (0) target = $region57
  $region56: #{mobilenet_forward.28} parent=0 // pred_region
    _
  $region57: #{mobilenet_forward.28} parent=0 // pred_fallthru
    _
  // Predicated region
  $region58: #{mobilenet_forward.28} parent=0 // pred_check
    _
  $region59: #{mobilenet_forward.28} parent=0 // pred_check_branch
    %580 = sbr.rel (0) target = $region61
  $region60: #{mobilenet_forward.28} parent=0 // pred_region
    _
  $region61: #{mobilenet_forward.28} parent=0 // pred_fallthru
    _

</llo_original>
